<compile_context>
chip_gen: v7x
topology: tpu7x:2x2x1
jax: 0.10.0
libtpu: 0.0.40
codegen_flags: <defaults>
</compile_context>

<pallas_src>
import math

import jax
import jax.numpy as jnp
from jax.experimental import pallas as pl
from jax.experimental.pallas import tpu as pltpu

# ----------------------------- config (small shapes) -----------------------------
DIM = 32          # model dim (module default 128, scaled down)
HEADS = 4
DEPTH = 3
VOCAB = 64        # num_tokens
NUM_CLASSES = 4
SEQ = 8
BATCH = 2
FFN_DIM = 4 * DIM
DK = DIM // (2 * HEADS)   # per-head key/query dim (split in two for differential attention)
DV = DIM // HEADS         # per-head value dim

_VMEM = pl.BlockSpec(memory_space=pltpu.MemorySpace.VMEM)
_SMEM = pl.BlockSpec(memory_space=pltpu.MemorySpace.SMEM)


# --------------------------------- in-kernel helpers ---------------------------------
def _layernorm(x, gb):
    # x: (M, D) f32, gb: (2, D) = [gamma; beta]
    g = gb[0:1, :]
    b = gb[1:2, :]
    mu = jnp.mean(x, axis=-1, keepdims=True)
    var = jnp.mean((x - mu) * (x - mu), axis=-1, keepdims=True)
    return (x - mu) * jax.lax.rsqrt(var + 1e-5) * g + b


def _softmax(s):
    m = jnp.max(s, axis=-1, keepdims=True)
    e = jnp.exp(s - m)
    return e * pl.reciprocal(jnp.sum(e, axis=-1, keepdims=True), approx=True)


def _gelu_erf(x):
    # exact (erf) GELU, matching torch.nn.GELU() default.
    # erf via Abramowitz & Stegun 7.1.26 polynomial (|err| <= 1.5e-7); only exp/VPU ops.
    z = x * 0.7071067811865476
    az = jnp.abs(z)
    t = 1.0 / (1.0 + 0.3275911 * az)
    poly = t * (0.254829592 + t * (-0.284496736 + t * (1.421413741
                + t * (-1.453152027 + t * 1.061405429))))
    erf_abs = 1.0 - poly * jnp.exp(-az * az)
    erf_z = jnp.where(z >= 0.0, erf_abs, -erf_abs)
    return 0.5 * x * (1.0 + erf_z)


# --------------------------------- fused whole-model kernel ---------------------------------
def model_kernel(
    lam_ref,       # SMEM (DEPTH, 2): [lambda, lambda_init] per layer
    tok_ref,       # VMEM (B*S, 1) int32 token ids
    embed_ref,     # VMEM (VOCAB, DIM)
    emb_ln_ref,    # VMEM (2, DIM)
    ln1_ref,       # VMEM (DEPTH, 2, DIM)
    wqkv_ref,      # VMEM (DEPTH, DIM, 3*DIM)
    bqkv_ref,      # VMEM (DEPTH, 1, 3*DIM)
    wo_ref,        # VMEM (DEPTH, DIM, DIM)
    bo_ref,        # VMEM (DEPTH, 1, DIM)
    ln2_ref,       # VMEM (DEPTH, 2, DIM)
    w1_ref,        # VMEM (DEPTH, DIM, FFN_DIM)
    b1_ref,        # VMEM (DEPTH, 1, FFN_DIM)
    w2_ref,        # VMEM (DEPTH, FFN_DIM, DIM)
    b2_ref,        # VMEM (DEPTH, 1, DIM)
    final_ln_ref,  # VMEM (2, DIM)
    wc_ref,        # VMEM (DIM, NUM_CLASSES)
    bc_ref,        # VMEM (1, NUM_CLASSES)
    o_ref,         # VMEM (BATCH, NUM_CLASSES) output
    attn_buf,      # VMEM scratch (B*S, DIM)
):
    BS = BATCH * SEQ
    scale = 1.0 / math.sqrt(DK)
    dimn = (((1,), (1,)), ((), ()))   # (S, DK) x (S, DK) -> (S, S)

    # ---- embedding lookup as one-hot matmul (keeps the gather inside the kernel) ----
    tok = tok_ref[...]                                              # (BS, 1) int32
    iota = jax.lax.broadcasted_iota(jnp.int32, (BS, VOCAB), 1)
    onehot = (iota == tok).astype(jnp.float32)                      # (BS, VOCAB)
    x = jnp.dot(onehot, embed_ref[...], preferred_element_type=jnp.float32)   # (BS, DIM)
    x = _layernorm(x, emb_ln_ref[...])

    for l in range(DEPTH):
        lam = lam_ref[l, 0]
        lam_init = lam_ref[l, 1]

        # ---------------- differential attention block (pre-LN) ----------------
        h = _layernorm(x, ln1_ref[l])
        qkv = jnp.dot(h, wqkv_ref[l], preferred_element_type=jnp.float32) + bqkv_ref[l]
        q = qkv[:, 0:DIM]
        k = qkv[:, DIM:2 * DIM]
        v = qkv[:, 2 * DIM:3 * DIM]

        for b in range(BATCH):
            r0 = b * SEQ
            qb = q[r0:r0 + SEQ, :]
            kb = k[r0:r0 + SEQ, :]
            vb = v[r0:r0 + SEQ, :]
            for hh in range(HEADS):
                c0 = hh * 2 * DK
                q1 = qb[:, c0:c0 + DK]
                q2 = qb[:, c0 + DK:c0 + 2 * DK]
                k1 = kb[:, c0:c0 + DK]
                k2 = kb[:, c0 + DK:c0 + 2 * DK]
                vh = vb[:, hh * DV:(hh + 1) * DV]

                s1 = jax.lax.dot_general(q1, k1, dimn,
                                         preferred_element_type=jnp.float32) * scale
                s2 = jax.lax.dot_general(q2, k2, dimn,
                                         preferred_element_type=jnp.float32) * scale
                a1 = _softmax(s1)
                a2 = _softmax(s2)
                attn = a1 - lam * a2
                out = jnp.dot(attn, vh, preferred_element_type=jnp.float32)   # (S, DV)

                # per-head RMSNorm, scaled by (1 - lambda_init)
                ms = jnp.mean(out * out, axis=-1, keepdims=True)
                out = out * jax.lax.rsqrt(ms + 1e-5) * (1.0 - lam_init)
                attn_buf[r0:r0 + SEQ, hh * DV:(hh + 1) * DV] = out

        a_proj = jnp.dot(attn_buf[...], wo_ref[l],
                         preferred_element_type=jnp.float32) + bo_ref[l]
        x = x + a_proj                       # residual folded in-kernel

        # ---------------- feed-forward block (pre-LN) ----------------
        h2 = _layernorm(x, ln2_ref[l])
        f = jnp.dot(h2, w1_ref[l], preferred_element_type=jnp.float32) + b1_ref[l]
        f = _gelu_erf(f)
        f = jnp.dot(f, w2_ref[l], preferred_element_type=jnp.float32) + b2_ref[l]
        x = x + f                            # residual folded in-kernel

    # ---- final LN + mean-pool over seq + classifier, all fused ----
    x = _layernorm(x, final_ln_ref[...])
    pooled = jnp.mean(x.reshape(BATCH, SEQ, DIM), axis=1)            # (B, DIM)
    logits = jnp.dot(pooled, wc_ref[...], preferred_element_type=jnp.float32) + bc_ref[...]
    o_ref[...] = logits.astype(o_ref.dtype)


# --------------------------------- parameters ---------------------------------
def init_params(key):
    keys = iter(jax.random.split(key, 16))

    def nrm(shape, scl=0.02):
        return scl * jax.random.normal(next(keys), shape, jnp.float32)

    ln_id = jnp.stack([jnp.ones((DIM,), jnp.float32), jnp.zeros((DIM,), jnp.float32)])  # (2, DIM)
    lam_init = jnp.array([0.8 - 0.6 * math.exp(-0.3 * l) for l in range(DEPTH)], jnp.float32)

    return {
        "embed": nrm((VOCAB, DIM)),
        "emb_ln": ln_id,
        "final_ln": ln_id,
        "ln1": jnp.tile(ln_id[None], (DEPTH, 1, 1)),
        "ln2": jnp.tile(ln_id[None], (DEPTH, 1, 1)),
        # fused QKV projection: wqkv = concat([wq, wk, wv], axis=1)
        "wqkv": nrm((DEPTH, DIM, 3 * DIM)),
        "bqkv": jnp.zeros((DEPTH, 1, 3 * DIM), jnp.float32),
        "wo": nrm((DEPTH, DIM, DIM)),
        "bo": jnp.zeros((DEPTH, 1, DIM), jnp.float32),
        "w1": nrm((DEPTH, DIM, FFN_DIM)),
        "b1": jnp.zeros((DEPTH, 1, FFN_DIM), jnp.float32),
        "w2": nrm((DEPTH, FFN_DIM, DIM)),
        "b2": jnp.zeros((DEPTH, 1, DIM), jnp.float32),
        "lq1": nrm((DEPTH, DK), 0.1), "lk1": nrm((DEPTH, DK), 0.1),
        "lq2": nrm((DEPTH, DK), 0.1), "lk2": nrm((DEPTH, DK), 0.1),
        "lam_init": lam_init,
        "wc": nrm((DIM, NUM_CLASSES)),
        "bc": jnp.zeros((1, NUM_CLASSES), jnp.float32),
    }


# --------------------------------- forward pass ---------------------------------
def forward(params, token_ids):
    B, S = token_ids.shape
    tok = token_ids.reshape(B * S, 1).astype(jnp.int32)

    # lambda = exp(lq1.lk1) - exp(lq2.lk2) + lambda_init  (per layer, tiny scalar math)
    lam = (jnp.exp(jnp.sum(params["lq1"] * params["lk1"], axis=-1))
           - jnp.exp(jnp.sum(params["lq2"] * params["lk2"], axis=-1))
           + params["lam_init"])
    lam_arr = jnp.stack([lam, params["lam_init"]], axis=-1).astype(jnp.float32)   # (DEPTH, 2)

    logits = pl.pallas_call(
        model_kernel,
        out_shape=jax.ShapeDtypeStruct((B, NUM_CLASSES), jnp.float32),
        in_specs=[_SMEM] + [_VMEM] * 16,
        out_specs=_VMEM,
        scratch_shapes=[pltpu.VMEM((B * S, DIM), jnp.float32)],
    )(
        lam_arr, tok,
        params["embed"], params["emb_ln"],
        params["ln1"], params["wqkv"], params["bqkv"], params["wo"], params["bo"],
        params["ln2"], params["w1"], params["b1"], params["w2"], params["b2"],
        params["final_ln"], params["wc"], params["bc"],
    )
    return logits


if __name__ == "__main__":
    root = jax.random.PRNGKey(0)
    k_param, k_data = jax.random.split(root)
    params = init_params(k_param)
    token_ids = jax.random.randint(k_data, (BATCH, SEQ), 0, VOCAB, dtype=jnp.int32)

    fwd = jax.jit(forward)
    logits = jax.block_until_ready(fwd(params, token_ids))

    assert logits.shape == (BATCH, NUM_CLASSES), logits.shape
    assert bool(jnp.all(jnp.isfinite(logits)))
    print("KERNEL_OK")
</pallas_src>

<mosaic_0001>
module attributes {stable_mosaic.version = 11 : i64} {
  func.func @model_kernel(%arg0: memref<3x2xf32, #tpu.memory_space<smem>>, %arg1: memref<16x1xi32, #tpu.memory_space<vmem>>, %arg2: memref<64x32xf32, #tpu.memory_space<vmem>>, %arg3: memref<2x32xf32, #tpu.memory_space<vmem>>, %arg4: memref<3x2x32xf32, #tpu.memory_space<vmem>>, %arg5: memref<3x32x96xf32, #tpu.memory_space<vmem>>, %arg6: memref<3x1x96xf32, #tpu.memory_space<vmem>>, %arg7: memref<3x32x32xf32, #tpu.memory_space<vmem>>, %arg8: memref<3x1x32xf32, #tpu.memory_space<vmem>>, %arg9: memref<3x2x32xf32, #tpu.memory_space<vmem>>, %arg10: memref<3x32x128xf32, #tpu.memory_space<vmem>>, %arg11: memref<3x1x128xf32, #tpu.memory_space<vmem>>, %arg12: memref<3x128x32xf32, #tpu.memory_space<vmem>>, %arg13: memref<3x1x32xf32, #tpu.memory_space<vmem>>, %arg14: memref<2x32xf32, #tpu.memory_space<vmem>>, %arg15: memref<32x4xf32, #tpu.memory_space<vmem>>, %arg16: memref<1x4xf32, #tpu.memory_space<vmem>>, %arg17: memref<2x4xf32, #tpu.memory_space<vmem>>, %arg18: memref<16x32xf32, #tpu.memory_space<vmem>>) attributes {dimension_semantics = [], scalar_prefetch = 0 : i64, scratch_operands = 1 : i64, tpu.core_type = #tpu.core_type<tc>} {
    %c0 = arith.constant 0 : index
    %c0_0 = arith.constant 0 : index
    %0 = vector.load %arg1[%c0, %c0_0] : memref<16x1xi32, #tpu.memory_space<vmem>>, vector<16x1xi32>
    %1 = tpu.iota {dimensions = array<i32: 1>} : vector<16x64xi32>
    %2 = vector.broadcast %0 : vector<16x1xi32> to vector<16x64xi32>
    %3 = arith.cmpi eq, %1, %2 : vector<16x64xi32>
    %4 = arith.extui %3 : vector<16x64xi1> to vector<16x64xi32>
    %5 = arith.sitofp %4 : vector<16x64xi32> to vector<16x64xf32>
    %c0_1 = arith.constant 0 : index
    %c0_2 = arith.constant 0 : index
    %6 = vector.load %arg2[%c0_1, %c0_2] : memref<64x32xf32, #tpu.memory_space<vmem>>, vector<64x32xf32>
    %cst = arith.constant dense<0.000000e+00> : vector<16x32xf32>
    %7 = tpu.matmul %5, %6, %cst {dimension_numbers = #tpu.dot_dimension_numbers<[1], [0], [0], [1], [0, 0, 1, 1], [], []>} : vector<16x64xf32>, vector<64x32xf32>, vector<16x32xf32> -> vector<16x32xf32>
    %c0_3 = arith.constant 0 : index
    %c0_4 = arith.constant 0 : index
    %8 = vector.load %arg3[%c0_3, %c0_4] : memref<2x32xf32, #tpu.memory_space<vmem>>, vector<2x32xf32>
    %9 = vector.extract_strided_slice %8 {offsets = [0, 0], sizes = [1, 32], strides = [1, 1]} : vector<2x32xf32> to vector<1x32xf32>
    %10 = vector.extract_strided_slice %8 {offsets = [1, 0], sizes = [1, 32], strides = [1, 1]} : vector<2x32xf32> to vector<1x32xf32>
    %cst_5 = arith.constant dense<0.000000e+00> : vector<16xf32>
    %11 = vector.multi_reduction <add>, %7, %cst_5 [1] : vector<16x32xf32> to vector<16xf32>
    %12 = vector.shape_cast %11 : vector<16xf32> to vector<16x1xf32>
    %cst_6 = arith.constant 3.200000e+01 : f32
    %13 = vector.broadcast %cst_6 : f32 to vector<16x1xf32>
    %14 = arith.divf %12, %13 : vector<16x1xf32>
    %15 = vector.broadcast %14 : vector<16x1xf32> to vector<16x32xf32>
    %16 = arith.subf %7, %15 : vector<16x32xf32>
    %17 = vector.broadcast %14 : vector<16x1xf32> to vector<16x32xf32>
    %18 = arith.subf %7, %17 : vector<16x32xf32>
    %19 = arith.mulf %16, %18 : vector<16x32xf32>
    %cst_7 = arith.constant dense<0.000000e+00> : vector<16xf32>
    %20 = vector.multi_reduction <add>, %19, %cst_7 [1] : vector<16x32xf32> to vector<16xf32>
    %21 = vector.shape_cast %20 : vector<16xf32> to vector<16x1xf32>
    %cst_8 = arith.constant 3.200000e+01 : f32
    %22 = vector.broadcast %cst_8 : f32 to vector<16x1xf32>
    %23 = arith.divf %21, %22 : vector<16x1xf32>
    %24 = vector.broadcast %14 : vector<16x1xf32> to vector<16x32xf32>
    %25 = arith.subf %7, %24 : vector<16x32xf32>
    %cst_9 = arith.constant 9.99999974E-6 : f32
    %26 = vector.broadcast %cst_9 : f32 to vector<16x1xf32>
    %27 = arith.addf %23, %26 : vector<16x1xf32>
    %28 = math.rsqrt %27 : vector<16x1xf32>
    %29 = vector.broadcast %28 : vector<16x1xf32> to vector<16x32xf32>
    %30 = arith.mulf %25, %29 : vector<16x32xf32>
    %31 = vector.broadcast %9 : vector<1x32xf32> to vector<16x32xf32>
    %32 = arith.mulf %30, %31 : vector<16x32xf32>
    %33 = vector.broadcast %10 : vector<1x32xf32> to vector<16x32xf32>
    %34 = arith.addf %32, %33 : vector<16x32xf32>
    %c0_10 = arith.constant 0 : index
    %c0_11 = arith.constant 0 : index
    %35 = memref.load %arg0[%c0_10, %c0_11] : memref<3x2xf32, #tpu.memory_space<smem>>
    %c0_12 = arith.constant 0 : index
    %c1 = arith.constant 1 : index
    %36 = memref.load %arg0[%c0_12, %c1] : memref<3x2xf32, #tpu.memory_space<smem>>
    %c0_13 = arith.constant 0 : index
    %c0_14 = arith.constant 0 : index
    %c0_15 = arith.constant 0 : index
    %37 = vector.load %arg4[%c0_13, %c0_14, %c0_15] : memref<3x2x32xf32, #tpu.memory_space<vmem>>, vector<1x2x32xf32>
    %38 = vector.shape_cast %37 : vector<1x2x32xf32> to vector<2x32xf32>
    %39 = vector.extract_strided_slice %38 {offsets = [0, 0], sizes = [1, 32], strides = [1, 1]} : vector<2x32xf32> to vector<1x32xf32>
    %40 = vector.extract_strided_slice %38 {offsets = [1, 0], sizes = [1, 32], strides = [1, 1]} : vector<2x32xf32> to vector<1x32xf32>
    %cst_16 = arith.constant dense<0.000000e+00> : vector<16xf32>
    %41 = vector.multi_reduction <add>, %34, %cst_16 [1] : vector<16x32xf32> to vector<16xf32>
    %42 = vector.shape_cast %41 : vector<16xf32> to vector<16x1xf32>
    %cst_17 = arith.constant 3.200000e+01 : f32
    %43 = vector.broadcast %cst_17 : f32 to vector<16x1xf32>
    %44 = arith.divf %42, %43 : vector<16x1xf32>
    %45 = vector.broadcast %44 : vector<16x1xf32> to vector<16x32xf32>
    %46 = arith.subf %34, %45 : vector<16x32xf32>
    %47 = vector.broadcast %44 : vector<16x1xf32> to vector<16x32xf32>
    %48 = arith.subf %34, %47 : vector<16x32xf32>
    %49 = arith.mulf %46, %48 : vector<16x32xf32>
    %cst_18 = arith.constant dense<0.000000e+00> : vector<16xf32>
    %50 = vector.multi_reduction <add>, %49, %cst_18 [1] : vector<16x32xf32> to vector<16xf32>
    %51 = vector.shape_cast %50 : vector<16xf32> to vector<16x1xf32>
    %cst_19 = arith.constant 3.200000e+01 : f32
    %52 = vector.broadcast %cst_19 : f32 to vector<16x1xf32>
    %53 = arith.divf %51, %52 : vector<16x1xf32>
    %54 = vector.broadcast %44 : vector<16x1xf32> to vector<16x32xf32>
    %55 = arith.subf %34, %54 : vector<16x32xf32>
    %cst_20 = arith.constant 9.99999974E-6 : f32
    %56 = vector.broadcast %cst_20 : f32 to vector<16x1xf32>
    %57 = arith.addf %53, %56 : vector<16x1xf32>
    %58 = math.rsqrt %57 : vector<16x1xf32>
    %59 = vector.broadcast %58 : vector<16x1xf32> to vector<16x32xf32>
    %60 = arith.mulf %55, %59 : vector<16x32xf32>
    %61 = vector.broadcast %39 : vector<1x32xf32> to vector<16x32xf32>
    %62 = arith.mulf %60, %61 : vector<16x32xf32>
    %63 = vector.broadcast %40 : vector<1x32xf32> to vector<16x32xf32>
    %64 = arith.addf %62, %63 : vector<16x32xf32>
    %c0_21 = arith.constant 0 : index
    %c0_22 = arith.constant 0 : index
    %c0_23 = arith.constant 0 : index
    %65 = vector.load %arg5[%c0_21, %c0_22, %c0_23] : memref<3x32x96xf32, #tpu.memory_space<vmem>>, vector<1x32x96xf32>
    %66 = vector.shape_cast %65 : vector<1x32x96xf32> to vector<32x96xf32>
    %cst_24 = arith.constant dense<0.000000e+00> : vector<16x96xf32>
    %67 = tpu.matmul %64, %66, %cst_24 {dimension_numbers = #tpu.dot_dimension_numbers<[1], [0], [0], [1], [0, 0, 1, 1], [], []>} : vector<16x32xf32>, vector<32x96xf32>, vector<16x96xf32> -> vector<16x96xf32>
    %c0_25 = arith.constant 0 : index
    %c0_26 = arith.constant 0 : index
    %c0_27 = arith.constant 0 : index
    %68 = vector.load %arg6[%c0_25, %c0_26, %c0_27] : memref<3x1x96xf32, #tpu.memory_space<vmem>>, vector<1x1x96xf32>
    %69 = vector.shape_cast %68 : vector<1x1x96xf32> to vector<1x96xf32>
    %70 = vector.broadcast %69 : vector<1x96xf32> to vector<16x96xf32>
    %71 = arith.addf %67, %70 : vector<16x96xf32>
    %72 = vector.extract_strided_slice %71 {offsets = [0, 0], sizes = [16, 32], strides = [1, 1]} : vector<16x96xf32> to vector<16x32xf32>
    %73 = vector.extract_strided_slice %71 {offsets = [0, 32], sizes = [16, 32], strides = [1, 1]} : vector<16x96xf32> to vector<16x32xf32>
    %74 = vector.extract_strided_slice %71 {offsets = [0, 64], sizes = [16, 32], strides = [1, 1]} : vector<16x96xf32> to vector<16x32xf32>
    %75 = vector.extract_strided_slice %72 {offsets = [0, 0], sizes = [8, 32], strides = [1, 1]} : vector<16x32xf32> to vector<8x32xf32>
    %76 = vector.extract_strided_slice %73 {offsets = [0, 0], sizes = [8, 32], strides = [1, 1]} : vector<16x32xf32> to vector<8x32xf32>
    %77 = vector.extract_strided_slice %74 {offsets = [0, 0], sizes = [8, 32], strides = [1, 1]} : vector<16x32xf32> to vector<8x32xf32>
    %78 = vector.extract_strided_slice %75 {offsets = [0, 0], sizes = [8, 4], strides = [1, 1]} : vector<8x32xf32> to vector<8x4xf32>
    %79 = vector.extract_strided_slice %75 {offsets = [0, 4], sizes = [8, 4], strides = [1, 1]} : vector<8x32xf32> to vector<8x4xf32>
    %80 = vector.extract_strided_slice %76 {offsets = [0, 0], sizes = [8, 4], strides = [1, 1]} : vector<8x32xf32> to vector<8x4xf32>
    %81 = vector.extract_strided_slice %76 {offsets = [0, 4], sizes = [8, 4], strides = [1, 1]} : vector<8x32xf32> to vector<8x4xf32>
    %82 = vector.extract_strided_slice %77 {offsets = [0, 0], sizes = [8, 8], strides = [1, 1]} : vector<8x32xf32> to vector<8x8xf32>
    %cst_28 = arith.constant dense<0.000000e+00> : vector<8x8xf32>
    %83 = tpu.matmul %78, %80, %cst_28 {dimension_numbers = #tpu.dot_dimension_numbers<[1], [1], [0], [0], [0, 0, 1, 0], [], []>} : vector<8x4xf32>, vector<8x4xf32>, vector<8x8xf32> -> vector<8x8xf32>
    %cst_29 = arith.constant 5.000000e-01 : f32
    %84 = vector.broadcast %cst_29 : f32 to vector<8x8xf32>
    %85 = arith.mulf %83, %84 : vector<8x8xf32>
    %cst_30 = arith.constant dense<0.000000e+00> : vector<8x8xf32>
    %86 = tpu.matmul %79, %81, %cst_30 {dimension_numbers = #tpu.dot_dimension_numbers<[1], [1], [0], [0], [0, 0, 1, 0], [], []>} : vector<8x4xf32>, vector<8x4xf32>, vector<8x8xf32> -> vector<8x8xf32>
    %cst_31 = arith.constant 5.000000e-01 : f32
    %87 = vector.broadcast %cst_31 : f32 to vector<8x8xf32>
    %88 = arith.mulf %86, %87 : vector<8x8xf32>
    %cst_32 = arith.constant dense<0xFF800000> : vector<8xf32>
    %89 = vector.multi_reduction <maximumf>, %85, %cst_32 [1] : vector<8x8xf32> to vector<8xf32>
    %90 = vector.shape_cast %89 : vector<8xf32> to vector<8x1xf32>
    %91 = vector.broadcast %90 : vector<8x1xf32> to vector<8x8xf32>
    %92 = arith.subf %85, %91 : vector<8x8xf32>
    %93 = math.exp %92 : vector<8x8xf32>
    %cst_33 = arith.constant dense<0.000000e+00> : vector<8xf32>
    %94 = vector.multi_reduction <add>, %93, %cst_33 [1] : vector<8x8xf32> to vector<8xf32>
    %95 = vector.shape_cast %94 : vector<8xf32> to vector<8x1xf32>
    %96 = tpu.reciprocal %95 {approx = true} : vector<8x1xf32> -> vector<8x1xf32>
    %97 = vector.broadcast %96 : vector<8x1xf32> to vector<8x8xf32>
    %98 = arith.mulf %93, %97 : vector<8x8xf32>
    %cst_34 = arith.constant dense<0xFF800000> : vector<8xf32>
    %99 = vector.multi_reduction <maximumf>, %88, %cst_34 [1] : vector<8x8xf32> to vector<8xf32>
    %100 = vector.shape_cast %99 : vector<8xf32> to vector<8x1xf32>
    %101 = vector.broadcast %100 : vector<8x1xf32> to vector<8x8xf32>
    %102 = arith.subf %88, %101 : vector<8x8xf32>
    %103 = math.exp %102 : vector<8x8xf32>
    %cst_35 = arith.constant dense<0.000000e+00> : vector<8xf32>
    %104 = vector.multi_reduction <add>, %103, %cst_35 [1] : vector<8x8xf32> to vector<8xf32>
    %105 = vector.shape_cast %104 : vector<8xf32> to vector<8x1xf32>
    %106 = tpu.reciprocal %105 {approx = true} : vector<8x1xf32> -> vector<8x1xf32>
    %107 = vector.broadcast %106 : vector<8x1xf32> to vector<8x8xf32>
    %108 = arith.mulf %103, %107 : vector<8x8xf32>
    %109 = vector.broadcast %35 : f32 to vector<8x8xf32>
    %110 = arith.mulf %109, %108 : vector<8x8xf32>
    %111 = arith.subf %98, %110 : vector<8x8xf32>
    %cst_36 = arith.constant dense<0.000000e+00> : vector<8x8xf32>
    %112 = tpu.matmul %111, %82, %cst_36 {dimension_numbers = #tpu.dot_dimension_numbers<[1], [0], [0], [1], [0, 0, 1, 1], [], []>} : vector<8x8xf32>, vector<8x8xf32>, vector<8x8xf32> -> vector<8x8xf32>
    %113 = arith.mulf %112, %112 : vector<8x8xf32>
    %cst_37 = arith.constant dense<0.000000e+00> : vector<8xf32>
    %114 = vector.multi_reduction <add>, %113, %cst_37 [1] : vector<8x8xf32> to vector<8xf32>
    %115 = vector.shape_cast %114 : vector<8xf32> to vector<8x1xf32>
    %cst_38 = arith.constant 8.000000e+00 : f32
    %116 = vector.broadcast %cst_38 : f32 to vector<8x1xf32>
    %117 = arith.divf %115, %116 : vector<8x1xf32>
    %cst_39 = arith.constant 9.99999974E-6 : f32
    %118 = vector.broadcast %cst_39 : f32 to vector<8x1xf32>
    %119 = arith.addf %117, %118 : vector<8x1xf32>
    %120 = math.rsqrt %119 : vector<8x1xf32>
    %121 = vector.broadcast %120 : vector<8x1xf32> to vector<8x8xf32>
    %122 = arith.mulf %112, %121 : vector<8x8xf32>
    %cst_40 = arith.constant 1.000000e+00 : f32
    %123 = arith.subf %cst_40, %36 : f32
    %124 = vector.broadcast %123 : f32 to vector<8x8xf32>
    %125 = arith.mulf %122, %124 : vector<8x8xf32>
    %c0_41 = arith.constant 0 : index
    %c0_42 = arith.constant 0 : index
    %126 = vector.load %arg18[%c0_41, %c0_42] : memref<16x32xf32, #tpu.memory_space<vmem>>, vector<8x8xf32>
    tpu.vector_store %arg18[%c0_41, %c0_42], %125 {strides = array<i32>} : memref<16x32xf32, #tpu.memory_space<vmem>>, vector<8x8xf32>,
    %127 = vector.extract_strided_slice %75 {offsets = [0, 8], sizes = [8, 4], strides = [1, 1]} : vector<8x32xf32> to vector<8x4xf32>
    %128 = vector.extract_strided_slice %75 {offsets = [0, 12], sizes = [8, 4], strides = [1, 1]} : vector<8x32xf32> to vector<8x4xf32>
    %129 = vector.extract_strided_slice %76 {offsets = [0, 8], sizes = [8, 4], strides = [1, 1]} : vector<8x32xf32> to vector<8x4xf32>
    %130 = vector.extract_strided_slice %76 {offsets = [0, 12], sizes = [8, 4], strides = [1, 1]} : vector<8x32xf32> to vector<8x4xf32>
    %131 = vector.extract_strided_slice %77 {offsets = [0, 8], sizes = [8, 8], strides = [1, 1]} : vector<8x32xf32> to vector<8x8xf32>
    %cst_43 = arith.constant dense<0.000000e+00> : vector<8x8xf32>
    %132 = tpu.matmul %127, %129, %cst_43 {dimension_numbers = #tpu.dot_dimension_numbers<[1], [1], [0], [0], [0, 0, 1, 0], [], []>} : vector<8x4xf32>, vector<8x4xf32>, vector<8x8xf32> -> vector<8x8xf32>
    %cst_44 = arith.constant 5.000000e-01 : f32
    %133 = vector.broadcast %cst_44 : f32 to vector<8x8xf32>
    %134 = arith.mulf %132, %133 : vector<8x8xf32>
    %cst_45 = arith.constant dense<0.000000e+00> : vector<8x8xf32>
    %135 = tpu.matmul %128, %130, %cst_45 {dimension_numbers = #tpu.dot_dimension_numbers<[1], [1], [0], [0], [0, 0, 1, 0], [], []>} : vector<8x4xf32>, vector<8x4xf32>, vector<8x8xf32> -> vector<8x8xf32>
    %cst_46 = arith.constant 5.000000e-01 : f32
    %136 = vector.broadcast %cst_46 : f32 to vector<8x8xf32>
    %137 = arith.mulf %135, %136 : vector<8x8xf32>
    %cst_47 = arith.constant dense<0xFF800000> : vector<8xf32>
    %138 = vector.multi_reduction <maximumf>, %134, %cst_47 [1] : vector<8x8xf32> to vector<8xf32>
    %139 = vector.shape_cast %138 : vector<8xf32> to vector<8x1xf32>
    %140 = vector.broadcast %139 : vector<8x1xf32> to vector<8x8xf32>
    %141 = arith.subf %134, %140 : vector<8x8xf32>
    %142 = math.exp %141 : vector<8x8xf32>
    %cst_48 = arith.constant dense<0.000000e+00> : vector<8xf32>
    %143 = vector.multi_reduction <add>, %142, %cst_48 [1] : vector<8x8xf32> to vector<8xf32>
    %144 = vector.shape_cast %143 : vector<8xf32> to vector<8x1xf32>
    %145 = tpu.reciprocal %144 {approx = true} : vector<8x1xf32> -> vector<8x1xf32>
    %146 = vector.broadcast %145 : vector<8x1xf32> to vector<8x8xf32>
    %147 = arith.mulf %142, %146 : vector<8x8xf32>
    %cst_49 = arith.constant dense<0xFF800000> : vector<8xf32>
    %148 = vector.multi_reduction <maximumf>, %137, %cst_49 [1] : vector<8x8xf32> to vector<8xf32>
    %149 = vector.shape_cast %148 : vector<8xf32> to vector<8x1xf32>
    %150 = vector.broadcast %149 : vector<8x1xf32> to vector<8x8xf32>
    %151 = arith.subf %137, %150 : vector<8x8xf32>
    %152 = math.exp %151 : vector<8x8xf32>
    %cst_50 = arith.constant dense<0.000000e+00> : vector<8xf32>
    %153 = vector.multi_reduction <add>, %152, %cst_50 [1] : vector<8x8xf32> to vector<8xf32>
    %154 = vector.shape_cast %153 : vector<8xf32> to vector<8x1xf32>
    %155 = tpu.reciprocal %154 {approx = true} : vector<8x1xf32> -> vector<8x1xf32>
    %156 = vector.broadcast %155 : vector<8x1xf32> to vector<8x8xf32>
    %157 = arith.mulf %152, %156 : vector<8x8xf32>
    %158 = vector.broadcast %35 : f32 to vector<8x8xf32>
    %159 = arith.mulf %158, %157 : vector<8x8xf32>
    %160 = arith.subf %147, %159 : vector<8x8xf32>
    %cst_51 = arith.constant dense<0.000000e+00> : vector<8x8xf32>
    %161 = tpu.matmul %160, %131, %cst_51 {dimension_numbers = #tpu.dot_dimension_numbers<[1], [0], [0], [1], [0, 0, 1, 1], [], []>} : vector<8x8xf32>, vector<8x8xf32>, vector<8x8xf32> -> vector<8x8xf32>
    %162 = arith.mulf %161, %161 : vector<8x8xf32>
    %cst_52 = arith.constant dense<0.000000e+00> : vector<8xf32>
    %163 = vector.multi_reduction <add>, %162, %cst_52 [1] : vector<8x8xf32> to vector<8xf32>
    %164 = vector.shape_cast %163 : vector<8xf32> to vector<8x1xf32>
    %cst_53 = arith.constant 8.000000e+00 : f32
    %165 = vector.broadcast %cst_53 : f32 to vector<8x1xf32>
    %166 = arith.divf %164, %165 : vector<8x1xf32>
    %cst_54 = arith.constant 9.99999974E-6 : f32
    %167 = vector.broadcast %cst_54 : f32 to vector<8x1xf32>
    %168 = arith.addf %166, %167 : vector<8x1xf32>
    %169 = math.rsqrt %168 : vector<8x1xf32>
    %170 = vector.broadcast %169 : vector<8x1xf32> to vector<8x8xf32>
    %171 = arith.mulf %161, %170 : vector<8x8xf32>
    %cst_55 = arith.constant 1.000000e+00 : f32
    %172 = arith.subf %cst_55, %36 : f32
    %173 = vector.broadcast %172 : f32 to vector<8x8xf32>
    %174 = arith.mulf %171, %173 : vector<8x8xf32>
    %c0_56 = arith.constant 0 : index
    %c8 = arith.constant 8 : index
    %175 = vector.load %arg18[%c0_56, %c8] : memref<16x32xf32, #tpu.memory_space<vmem>>, vector<8x8xf32>
    tpu.vector_store %arg18[%c0_56, %c8], %174 {strides = array<i32>} : memref<16x32xf32, #tpu.memory_space<vmem>>, vector<8x8xf32>,
    %176 = vector.extract_strided_slice %75 {offsets = [0, 16], sizes = [8, 4], strides = [1, 1]} : vector<8x32xf32> to vector<8x4xf32>
    %177 = vector.extract_strided_slice %75 {offsets = [0, 20], sizes = [8, 4], strides = [1, 1]} : vector<8x32xf32> to vector<8x4xf32>
    %178 = vector.extract_strided_slice %76 {offsets = [0, 16], sizes = [8, 4], strides = [1, 1]} : vector<8x32xf32> to vector<8x4xf32>
    %179 = vector.extract_strided_slice %76 {offsets = [0, 20], sizes = [8, 4], strides = [1, 1]} : vector<8x32xf32> to vector<8x4xf32>
    %180 = vector.extract_strided_slice %77 {offsets = [0, 16], sizes = [8, 8], strides = [1, 1]} : vector<8x32xf32> to vector<8x8xf32>
    %cst_57 = arith.constant dense<0.000000e+00> : vector<8x8xf32>
    %181 = tpu.matmul %176, %178, %cst_57 {dimension_numbers = #tpu.dot_dimension_numbers<[1], [1], [0], [0], [0, 0, 1, 0], [], []>} : vector<8x4xf32>, vector<8x4xf32>, vector<8x8xf32> -> vector<8x8xf32>
    %cst_58 = arith.constant 5.000000e-01 : f32
    %182 = vector.broadcast %cst_58 : f32 to vector<8x8xf32>
    %183 = arith.mulf %181, %182 : vector<8x8xf32>
    %cst_59 = arith.constant dense<0.000000e+00> : vector<8x8xf32>
    %184 = tpu.matmul %177, %179, %cst_59 {dimension_numbers = #tpu.dot_dimension_numbers<[1], [1], [0], [0], [0, 0, 1, 0], [], []>} : vector<8x4xf32>, vector<8x4xf32>, vector<8x8xf32> -> vector<8x8xf32>
    %cst_60 = arith.constant 5.000000e-01 : f32
    %185 = vector.broadcast %cst_60 : f32 to vector<8x8xf32>
    %186 = arith.mulf %184, %185 : vector<8x8xf32>
    %cst_61 = arith.constant dense<0xFF800000> : vector<8xf32>
    %187 = vector.multi_reduction <maximumf>, %183, %cst_61 [1] : vector<8x8xf32> to vector<8xf32>
    %188 = vector.shape_cast %187 : vector<8xf32> to vector<8x1xf32>
    %189 = vector.broadcast %188 : vector<8x1xf32> to vector<8x8xf32>
    %190 = arith.subf %183, %189 : vector<8x8xf32>
    %191 = math.exp %190 : vector<8x8xf32>
    %cst_62 = arith.constant dense<0.000000e+00> : vector<8xf32>
    %192 = vector.multi_reduction <add>, %191, %cst_62 [1] : vector<8x8xf32> to vector<8xf32>
    %193 = vector.shape_cast %192 : vector<8xf32> to vector<8x1xf32>
    %194 = tpu.reciprocal %193 {approx = true} : vector<8x1xf32> -> vector<8x1xf32>
    %195 = vector.broadcast %194 : vector<8x1xf32> to vector<8x8xf32>
    %196 = arith.mulf %191, %195 : vector<8x8xf32>
    %cst_63 = arith.constant dense<0xFF800000> : vector<8xf32>
    %197 = vector.multi_reduction <maximumf>, %186, %cst_63 [1] : vector<8x8xf32> to vector<8xf32>
    %198 = vector.shape_cast %197 : vector<8xf32> to vector<8x1xf32>
    %199 = vector.broadcast %198 : vector<8x1xf32> to vector<8x8xf32>
    %200 = arith.subf %186, %199 : vector<8x8xf32>
    %201 = math.exp %200 : vector<8x8xf32>
    %cst_64 = arith.constant dense<0.000000e+00> : vector<8xf32>
    %202 = vector.multi_reduction <add>, %201, %cst_64 [1] : vector<8x8xf32> to vector<8xf32>
    %203 = vector.shape_cast %202 : vector<8xf32> to vector<8x1xf32>
    %204 = tpu.reciprocal %203 {approx = true} : vector<8x1xf32> -> vector<8x1xf32>
    %205 = vector.broadcast %204 : vector<8x1xf32> to vector<8x8xf32>
    %206 = arith.mulf %201, %205 : vector<8x8xf32>
    %207 = vector.broadcast %35 : f32 to vector<8x8xf32>
    %208 = arith.mulf %207, %206 : vector<8x8xf32>
    %209 = arith.subf %196, %208 : vector<8x8xf32>
    %cst_65 = arith.constant dense<0.000000e+00> : vector<8x8xf32>
    %210 = tpu.matmul %209, %180, %cst_65 {dimension_numbers = #tpu.dot_dimension_numbers<[1], [0], [0], [1], [0, 0, 1, 1], [], []>} : vector<8x8xf32>, vector<8x8xf32>, vector<8x8xf32> -> vector<8x8xf32>
    %211 = arith.mulf %210, %210 : vector<8x8xf32>
    %cst_66 = arith.constant dense<0.000000e+00> : vector<8xf32>
    %212 = vector.multi_reduction <add>, %211, %cst_66 [1] : vector<8x8xf32> to vector<8xf32>
    %213 = vector.shape_cast %212 : vector<8xf32> to vector<8x1xf32>
    %cst_67 = arith.constant 8.000000e+00 : f32
    %214 = vector.broadcast %cst_67 : f32 to vector<8x1xf32>
    %215 = arith.divf %213, %214 : vector<8x1xf32>
    %cst_68 = arith.constant 9.99999974E-6 : f32
    %216 = vector.broadcast %cst_68 : f32 to vector<8x1xf32>
    %217 = arith.addf %215, %216 : vector<8x1xf32>
    %218 = math.rsqrt %217 : vector<8x1xf32>
    %219 = vector.broadcast %218 : vector<8x1xf32> to vector<8x8xf32>
    %220 = arith.mulf %210, %219 : vector<8x8xf32>
    %cst_69 = arith.constant 1.000000e+00 : f32
    %221 = arith.subf %cst_69, %36 : f32
    %222 = vector.broadcast %221 : f32 to vector<8x8xf32>
    %223 = arith.mulf %220, %222 : vector<8x8xf32>
    %c0_70 = arith.constant 0 : index
    %c16 = arith.constant 16 : index
    %224 = vector.load %arg18[%c0_70, %c16] : memref<16x32xf32, #tpu.memory_space<vmem>>, vector<8x8xf32>
    tpu.vector_store %arg18[%c0_70, %c16], %223 {strides = array<i32>} : memref<16x32xf32, #tpu.memory_space<vmem>>, vector<8x8xf32>,
    %225 = vector.extract_strided_slice %75 {offsets = [0, 24], sizes = [8, 4], strides = [1, 1]} : vector<8x32xf32> to vector<8x4xf32>
    %226 = vector.extract_strided_slice %75 {offsets = [0, 28], sizes = [8, 4], strides = [1, 1]} : vector<8x32xf32> to vector<8x4xf32>
    %227 = vector.extract_strided_slice %76 {offsets = [0, 24], sizes = [8, 4], strides = [1, 1]} : vector<8x32xf32> to vector<8x4xf32>
    %228 = vector.extract_strided_slice %76 {offsets = [0, 28], sizes = [8, 4], strides = [1, 1]} : vector<8x32xf32> to vector<8x4xf32>
    %229 = vector.extract_strided_slice %77 {offsets = [0, 24], sizes = [8, 8], strides = [1, 1]} : vector<8x32xf32> to vector<8x8xf32>
    %cst_71 = arith.constant dense<0.000000e+00> : vector<8x8xf32>
    %230 = tpu.matmul %225, %227, %cst_71 {dimension_numbers = #tpu.dot_dimension_numbers<[1], [1], [0], [0], [0, 0, 1, 0], [], []>} : vector<8x4xf32>, vector<8x4xf32>, vector<8x8xf32> -> vector<8x8xf32>
    %cst_72 = arith.constant 5.000000e-01 : f32
    %231 = vector.broadcast %cst_72 : f32 to vector<8x8xf32>
    %232 = arith.mulf %230, %231 : vector<8x8xf32>
    %cst_73 = arith.constant dense<0.000000e+00> : vector<8x8xf32>
    %233 = tpu.matmul %226, %228, %cst_73 {dimension_numbers = #tpu.dot_dimension_numbers<[1], [1], [0], [0], [0, 0, 1, 0], [], []>} : vector<8x4xf32>, vector<8x4xf32>, vector<8x8xf32> -> vector<8x8xf32>
    %cst_74 = arith.constant 5.000000e-01 : f32
    %234 = vector.broadcast %cst_74 : f32 to vector<8x8xf32>
    %235 = arith.mulf %233, %234 : vector<8x8xf32>
    %cst_75 = arith.constant dense<0xFF800000> : vector<8xf32>
    %236 = vector.multi_reduction <maximumf>, %232, %cst_75 [1] : vector<8x8xf32> to vector<8xf32>
    %237 = vector.shape_cast %236 : vector<8xf32> to vector<8x1xf32>
    %238 = vector.broadcast %237 : vector<8x1xf32> to vector<8x8xf32>
    %239 = arith.subf %232, %238 : vector<8x8xf32>
    %240 = math.exp %239 : vector<8x8xf32>
    %cst_76 = arith.constant dense<0.000000e+00> : vector<8xf32>
    %241 = vector.multi_reduction <add>, %240, %cst_76 [1] : vector<8x8xf32> to vector<8xf32>
    %242 = vector.shape_cast %241 : vector<8xf32> to vector<8x1xf32>
    %243 = tpu.reciprocal %242 {approx = true} : vector<8x1xf32> -> vector<8x1xf32>
    %244 = vector.broadcast %243 : vector<8x1xf32> to vector<8x8xf32>
    %245 = arith.mulf %240, %244 : vector<8x8xf32>
    %cst_77 = arith.constant dense<0xFF800000> : vector<8xf32>
    %246 = vector.multi_reduction <maximumf>, %235, %cst_77 [1] : vector<8x8xf32> to vector<8xf32>
    %247 = vector.shape_cast %246 : vector<8xf32> to vector<8x1xf32>
    %248 = vector.broadcast %247 : vector<8x1xf32> to vector<8x8xf32>
    %249 = arith.subf %235, %248 : vector<8x8xf32>
    %250 = math.exp %249 : vector<8x8xf32>
    %cst_78 = arith.constant dense<0.000000e+00> : vector<8xf32>
    %251 = vector.multi_reduction <add>, %250, %cst_78 [1] : vector<8x8xf32> to vector<8xf32>
    %252 = vector.shape_cast %251 : vector<8xf32> to vector<8x1xf32>
    %253 = tpu.reciprocal %252 {approx = true} : vector<8x1xf32> -> vector<8x1xf32>
    %254 = vector.broadcast %253 : vector<8x1xf32> to vector<8x8xf32>
    %255 = arith.mulf %250, %254 : vector<8x8xf32>
    %256 = vector.broadcast %35 : f32 to vector<8x8xf32>
    %257 = arith.mulf %256, %255 : vector<8x8xf32>
    %258 = arith.subf %245, %257 : vector<8x8xf32>
    %cst_79 = arith.constant dense<0.000000e+00> : vector<8x8xf32>
    %259 = tpu.matmul %258, %229, %cst_79 {dimension_numbers = #tpu.dot_dimension_numbers<[1], [0], [0], [1], [0, 0, 1, 1], [], []>} : vector<8x8xf32>, vector<8x8xf32>, vector<8x8xf32> -> vector<8x8xf32>
    %260 = arith.mulf %259, %259 : vector<8x8xf32>
    %cst_80 = arith.constant dense<0.000000e+00> : vector<8xf32>
    %261 = vector.multi_reduction <add>, %260, %cst_80 [1] : vector<8x8xf32> to vector<8xf32>
    %262 = vector.shape_cast %261 : vector<8xf32> to vector<8x1xf32>
    %cst_81 = arith.constant 8.000000e+00 : f32
    %263 = vector.broadcast %cst_81 : f32 to vector<8x1xf32>
    %264 = arith.divf %262, %263 : vector<8x1xf32>
    %cst_82 = arith.constant 9.99999974E-6 : f32
    %265 = vector.broadcast %cst_82 : f32 to vector<8x1xf32>
    %266 = arith.addf %264, %265 : vector<8x1xf32>
    %267 = math.rsqrt %266 : vector<8x1xf32>
    %268 = vector.broadcast %267 : vector<8x1xf32> to vector<8x8xf32>
    %269 = arith.mulf %259, %268 : vector<8x8xf32>
    %cst_83 = arith.constant 1.000000e+00 : f32
    %270 = arith.subf %cst_83, %36 : f32
    %271 = vector.broadcast %270 : f32 to vector<8x8xf32>
    %272 = arith.mulf %269, %271 : vector<8x8xf32>
    %c0_84 = arith.constant 0 : index
    %c24 = arith.constant 24 : index
    %273 = vector.load %arg18[%c0_84, %c24] : memref<16x32xf32, #tpu.memory_space<vmem>>, vector<8x8xf32>
    tpu.vector_store %arg18[%c0_84, %c24], %272 {strides = array<i32>} : memref<16x32xf32, #tpu.memory_space<vmem>>, vector<8x8xf32>,
    %274 = vector.extract_strided_slice %72 {offsets = [8, 0], sizes = [8, 32], strides = [1, 1]} : vector<16x32xf32> to vector<8x32xf32>
    %275 = vector.extract_strided_slice %73 {offsets = [8, 0], sizes = [8, 32], strides = [1, 1]} : vector<16x32xf32> to vector<8x32xf32>
    %276 = vector.extract_strided_slice %74 {offsets = [8, 0], sizes = [8, 32], strides = [1, 1]} : vector<16x32xf32> to vector<8x32xf32>
    %277 = vector.extract_strided_slice %274 {offsets = [0, 0], sizes = [8, 4], strides = [1, 1]} : vector<8x32xf32> to vector<8x4xf32>
    %278 = vector.extract_strided_slice %274 {offsets = [0, 4], sizes = [8, 4], strides = [1, 1]} : vector<8x32xf32> to vector<8x4xf32>
    %279 = vector.extract_strided_slice %275 {offsets = [0, 0], sizes = [8, 4], strides = [1, 1]} : vector<8x32xf32> to vector<8x4xf32>
    %280 = vector.extract_strided_slice %275 {offsets = [0, 4], sizes = [8, 4], strides = [1, 1]} : vector<8x32xf32> to vector<8x4xf32>
    %281 = vector.extract_strided_slice %276 {offsets = [0, 0], sizes = [8, 8], strides = [1, 1]} : vector<8x32xf32> to vector<8x8xf32>
    %cst_85 = arith.constant dense<0.000000e+00> : vector<8x8xf32>
    %282 = tpu.matmul %277, %279, %cst_85 {dimension_numbers = #tpu.dot_dimension_numbers<[1], [1], [0], [0], [0, 0, 1, 0], [], []>} : vector<8x4xf32>, vector<8x4xf32>, vector<8x8xf32> -> vector<8x8xf32>
    %cst_86 = arith.constant 5.000000e-01 : f32
    %283 = vector.broadcast %cst_86 : f32 to vector<8x8xf32>
    %284 = arith.mulf %282, %283 : vector<8x8xf32>
    %cst_87 = arith.constant dense<0.000000e+00> : vector<8x8xf32>
    %285 = tpu.matmul %278, %280, %cst_87 {dimension_numbers = #tpu.dot_dimension_numbers<[1], [1], [0], [0], [0, 0, 1, 0], [], []>} : vector<8x4xf32>, vector<8x4xf32>, vector<8x8xf32> -> vector<8x8xf32>
    %cst_88 = arith.constant 5.000000e-01 : f32
    %286 = vector.broadcast %cst_88 : f32 to vector<8x8xf32>
    %287 = arith.mulf %285, %286 : vector<8x8xf32>
    %cst_89 = arith.constant dense<0xFF800000> : vector<8xf32>
    %288 = vector.multi_reduction <maximumf>, %284, %cst_89 [1] : vector<8x8xf32> to vector<8xf32>
    %289 = vector.shape_cast %288 : vector<8xf32> to vector<8x1xf32>
    %290 = vector.broadcast %289 : vector<8x1xf32> to vector<8x8xf32>
    %291 = arith.subf %284, %290 : vector<8x8xf32>
    %292 = math.exp %291 : vector<8x8xf32>
    %cst_90 = arith.constant dense<0.000000e+00> : vector<8xf32>
    %293 = vector.multi_reduction <add>, %292, %cst_90 [1] : vector<8x8xf32> to vector<8xf32>
    %294 = vector.shape_cast %293 : vector<8xf32> to vector<8x1xf32>
    %295 = tpu.reciprocal %294 {approx = true} : vector<8x1xf32> -> vector<8x1xf32>
    %296 = vector.broadcast %295 : vector<8x1xf32> to vector<8x8xf32>
    %297 = arith.mulf %292, %296 : vector<8x8xf32>
    %cst_91 = arith.constant dense<0xFF800000> : vector<8xf32>
    %298 = vector.multi_reduction <maximumf>, %287, %cst_91 [1] : vector<8x8xf32> to vector<8xf32>
    %299 = vector.shape_cast %298 : vector<8xf32> to vector<8x1xf32>
    %300 = vector.broadcast %299 : vector<8x1xf32> to vector<8x8xf32>
    %301 = arith.subf %287, %300 : vector<8x8xf32>
    %302 = math.exp %301 : vector<8x8xf32>
    %cst_92 = arith.constant dense<0.000000e+00> : vector<8xf32>
    %303 = vector.multi_reduction <add>, %302, %cst_92 [1] : vector<8x8xf32> to vector<8xf32>
    %304 = vector.shape_cast %303 : vector<8xf32> to vector<8x1xf32>
    %305 = tpu.reciprocal %304 {approx = true} : vector<8x1xf32> -> vector<8x1xf32>
    %306 = vector.broadcast %305 : vector<8x1xf32> to vector<8x8xf32>
    %307 = arith.mulf %302, %306 : vector<8x8xf32>
    %308 = vector.broadcast %35 : f32 to vector<8x8xf32>
    %309 = arith.mulf %308, %307 : vector<8x8xf32>
    %310 = arith.subf %297, %309 : vector<8x8xf32>
    %cst_93 = arith.constant dense<0.000000e+00> : vector<8x8xf32>
    %311 = tpu.matmul %310, %281, %cst_93 {dimension_numbers = #tpu.dot_dimension_numbers<[1], [0], [0], [1], [0, 0, 1, 1], [], []>} : vector<8x8xf32>, vector<8x8xf32>, vector<8x8xf32> -> vector<8x8xf32>
    %312 = arith.mulf %311, %311 : vector<8x8xf32>
    %cst_94 = arith.constant dense<0.000000e+00> : vector<8xf32>
    %313 = vector.multi_reduction <add>, %312, %cst_94 [1] : vector<8x8xf32> to vector<8xf32>
    %314 = vector.shape_cast %313 : vector<8xf32> to vector<8x1xf32>
    %cst_95 = arith.constant 8.000000e+00 : f32
    %315 = vector.broadcast %cst_95 : f32 to vector<8x1xf32>
    %316 = arith.divf %314, %315 : vector<8x1xf32>
    %cst_96 = arith.constant 9.99999974E-6 : f32
    %317 = vector.broadcast %cst_96 : f32 to vector<8x1xf32>
    %318 = arith.addf %316, %317 : vector<8x1xf32>
    %319 = math.rsqrt %318 : vector<8x1xf32>
    %320 = vector.broadcast %319 : vector<8x1xf32> to vector<8x8xf32>
    %321 = arith.mulf %311, %320 : vector<8x8xf32>
    %cst_97 = arith.constant 1.000000e+00 : f32
    %322 = arith.subf %cst_97, %36 : f32
    %323 = vector.broadcast %322 : f32 to vector<8x8xf32>
    %324 = arith.mulf %321, %323 : vector<8x8xf32>
    %c8_98 = arith.constant 8 : index
    %c0_99 = arith.constant 0 : index
    %325 = vector.load %arg18[%c8_98, %c0_99] : memref<16x32xf32, #tpu.memory_space<vmem>>, vector<8x8xf32>
    tpu.vector_store %arg18[%c8_98, %c0_99], %324 {strides = array<i32>} : memref<16x32xf32, #tpu.memory_space<vmem>>, vector<8x8xf32>,
    %326 = vector.extract_strided_slice %274 {offsets = [0, 8], sizes = [8, 4], strides = [1, 1]} : vector<8x32xf32> to vector<8x4xf32>
    %327 = vector.extract_strided_slice %274 {offsets = [0, 12], sizes = [8, 4], strides = [1, 1]} : vector<8x32xf32> to vector<8x4xf32>
    %328 = vector.extract_strided_slice %275 {offsets = [0, 8], sizes = [8, 4], strides = [1, 1]} : vector<8x32xf32> to vector<8x4xf32>
    %329 = vector.extract_strided_slice %275 {offsets = [0, 12], sizes = [8, 4], strides = [1, 1]} : vector<8x32xf32> to vector<8x4xf32>
    %330 = vector.extract_strided_slice %276 {offsets = [0, 8], sizes = [8, 8], strides = [1, 1]} : vector<8x32xf32> to vector<8x8xf32>
    %cst_100 = arith.constant dense<0.000000e+00> : vector<8x8xf32>
    %331 = tpu.matmul %326, %328, %cst_100 {dimension_numbers = #tpu.dot_dimension_numbers<[1], [1], [0], [0], [0, 0, 1, 0], [], []>} : vector<8x4xf32>, vector<8x4xf32>, vector<8x8xf32> -> vector<8x8xf32>
    %cst_101 = arith.constant 5.000000e-01 : f32
    %332 = vector.broadcast %cst_101 : f32 to vector<8x8xf32>
    %333 = arith.mulf %331, %332 : vector<8x8xf32>
    %cst_102 = arith.constant dense<0.000000e+00> : vector<8x8xf32>
    %334 = tpu.matmul %327, %329, %cst_102 {dimension_numbers = #tpu.dot_dimension_numbers<[1], [1], [0], [0], [0, 0, 1, 0], [], []>} : vector<8x4xf32>, vector<8x4xf32>, vector<8x8xf32> -> vector<8x8xf32>
    %cst_103 = arith.constant 5.000000e-01 : f32
    %335 = vector.broadcast %cst_103 : f32 to vector<8x8xf32>
    %336 = arith.mulf %334, %335 : vector<8x8xf32>
    %cst_104 = arith.constant dense<0xFF800000> : vector<8xf32>
    %337 = vector.multi_reduction <maximumf>, %333, %cst_104 [1] : vector<8x8xf32> to vector<8xf32>
    %338 = vector.shape_cast %337 : vector<8xf32> to vector<8x1xf32>
    %339 = vector.broadcast %338 : vector<8x1xf32> to vector<8x8xf32>
    %340 = arith.subf %333, %339 : vector<8x8xf32>
    %341 = math.exp %340 : vector<8x8xf32>
    %cst_105 = arith.constant dense<0.000000e+00> : vector<8xf32>
    %342 = vector.multi_reduction <add>, %341, %cst_105 [1] : vector<8x8xf32> to vector<8xf32>
    %343 = vector.shape_cast %342 : vector<8xf32> to vector<8x1xf32>
    %344 = tpu.reciprocal %343 {approx = true} : vector<8x1xf32> -> vector<8x1xf32>
    %345 = vector.broadcast %344 : vector<8x1xf32> to vector<8x8xf32>
    %346 = arith.mulf %341, %345 : vector<8x8xf32>
    %cst_106 = arith.constant dense<0xFF800000> : vector<8xf32>
    %347 = vector.multi_reduction <maximumf>, %336, %cst_106 [1] : vector<8x8xf32> to vector<8xf32>
    %348 = vector.shape_cast %347 : vector<8xf32> to vector<8x1xf32>
    %349 = vector.broadcast %348 : vector<8x1xf32> to vector<8x8xf32>
    %350 = arith.subf %336, %349 : vector<8x8xf32>
    %351 = math.exp %350 : vector<8x8xf32>
    %cst_107 = arith.constant dense<0.000000e+00> : vector<8xf32>
    %352 = vector.multi_reduction <add>, %351, %cst_107 [1] : vector<8x8xf32> to vector<8xf32>
    %353 = vector.shape_cast %352 : vector<8xf32> to vector<8x1xf32>
    %354 = tpu.reciprocal %353 {approx = true} : vector<8x1xf32> -> vector<8x1xf32>
    %355 = vector.broadcast %354 : vector<8x1xf32> to vector<8x8xf32>
    %356 = arith.mulf %351, %355 : vector<8x8xf32>
    %357 = vector.broadcast %35 : f32 to vector<8x8xf32>
    %358 = arith.mulf %357, %356 : vector<8x8xf32>
    %359 = arith.subf %346, %358 : vector<8x8xf32>
    %cst_108 = arith.constant dense<0.000000e+00> : vector<8x8xf32>
    %360 = tpu.matmul %359, %330, %cst_108 {dimension_numbers = #tpu.dot_dimension_numbers<[1], [0], [0], [1], [0, 0, 1, 1], [], []>} : vector<8x8xf32>, vector<8x8xf32>, vector<8x8xf32> -> vector<8x8xf32>
    %361 = arith.mulf %360, %360 : vector<8x8xf32>
    %cst_109 = arith.constant dense<0.000000e+00> : vector<8xf32>
    %362 = vector.multi_reduction <add>, %361, %cst_109 [1] : vector<8x8xf32> to vector<8xf32>
    %363 = vector.shape_cast %362 : vector<8xf32> to vector<8x1xf32>
    %cst_110 = arith.constant 8.000000e+00 : f32
    %364 = vector.broadcast %cst_110 : f32 to vector<8x1xf32>
    %365 = arith.divf %363, %364 : vector<8x1xf32>
    %cst_111 = arith.constant 9.99999974E-6 : f32
    %366 = vector.broadcast %cst_111 : f32 to vector<8x1xf32>
    %367 = arith.addf %365, %366 : vector<8x1xf32>
    %368 = math.rsqrt %367 : vector<8x1xf32>
    %369 = vector.broadcast %368 : vector<8x1xf32> to vector<8x8xf32>
    %370 = arith.mulf %360, %369 : vector<8x8xf32>
    %cst_112 = arith.constant 1.000000e+00 : f32
    %371 = arith.subf %cst_112, %36 : f32
    %372 = vector.broadcast %371 : f32 to vector<8x8xf32>
    %373 = arith.mulf %370, %372 : vector<8x8xf32>
    %c8_113 = arith.constant 8 : index
    %c8_114 = arith.constant 8 : index
    %374 = vector.load %arg18[%c8_113, %c8_114] : memref<16x32xf32, #tpu.memory_space<vmem>>, vector<8x8xf32>
    tpu.vector_store %arg18[%c8_113, %c8_114], %373 {strides = array<i32>} : memref<16x32xf32, #tpu.memory_space<vmem>>, vector<8x8xf32>,
    %375 = vector.extract_strided_slice %274 {offsets = [0, 16], sizes = [8, 4], strides = [1, 1]} : vector<8x32xf32> to vector<8x4xf32>
    %376 = vector.extract_strided_slice %274 {offsets = [0, 20], sizes = [8, 4], strides = [1, 1]} : vector<8x32xf32> to vector<8x4xf32>
    %377 = vector.extract_strided_slice %275 {offsets = [0, 16], sizes = [8, 4], strides = [1, 1]} : vector<8x32xf32> to vector<8x4xf32>
    %378 = vector.extract_strided_slice %275 {offsets = [0, 20], sizes = [8, 4], strides = [1, 1]} : vector<8x32xf32> to vector<8x4xf32>
    %379 = vector.extract_strided_slice %276 {offsets = [0, 16], sizes = [8, 8], strides = [1, 1]} : vector<8x32xf32> to vector<8x8xf32>
    %cst_115 = arith.constant dense<0.000000e+00> : vector<8x8xf32>
    %380 = tpu.matmul %375, %377, %cst_115 {dimension_numbers = #tpu.dot_dimension_numbers<[1], [1], [0], [0], [0, 0, 1, 0], [], []>} : vector<8x4xf32>, vector<8x4xf32>, vector<8x8xf32> -> vector<8x8xf32>
    %cst_116 = arith.constant 5.000000e-01 : f32
    %381 = vector.broadcast %cst_116 : f32 to vector<8x8xf32>
    %382 = arith.mulf %380, %381 : vector<8x8xf32>
    %cst_117 = arith.constant dense<0.000000e+00> : vector<8x8xf32>
    %383 = tpu.matmul %376, %378, %cst_117 {dimension_numbers = #tpu.dot_dimension_numbers<[1], [1], [0], [0], [0, 0, 1, 0], [], []>} : vector<8x4xf32>, vector<8x4xf32>, vector<8x8xf32> -> vector<8x8xf32>
    %cst_118 = arith.constant 5.000000e-01 : f32
    %384 = vector.broadcast %cst_118 : f32 to vector<8x8xf32>
    %385 = arith.mulf %383, %384 : vector<8x8xf32>
    %cst_119 = arith.constant dense<0xFF800000> : vector<8xf32>
    %386 = vector.multi_reduction <maximumf>, %382, %cst_119 [1] : vector<8x8xf32> to vector<8xf32>
    %387 = vector.shape_cast %386 : vector<8xf32> to vector<8x1xf32>
    %388 = vector.broadcast %387 : vector<8x1xf32> to vector<8x8xf32>
    %389 = arith.subf %382, %388 : vector<8x8xf32>
    %390 = math.exp %389 : vector<8x8xf32>
    %cst_120 = arith.constant dense<0.000000e+00> : vector<8xf32>
    %391 = vector.multi_reduction <add>, %390, %cst_120 [1] : vector<8x8xf32> to vector<8xf32>
    %392 = vector.shape_cast %391 : vector<8xf32> to vector<8x1xf32>
    %393 = tpu.reciprocal %392 {approx = true} : vector<8x1xf32> -> vector<8x1xf32>
    %394 = vector.broadcast %393 : vector<8x1xf32> to vector<8x8xf32>
    %395 = arith.mulf %390, %394 : vector<8x8xf32>
    %cst_121 = arith.constant dense<0xFF800000> : vector<8xf32>
    %396 = vector.multi_reduction <maximumf>, %385, %cst_121 [1] : vector<8x8xf32> to vector<8xf32>
    %397 = vector.shape_cast %396 : vector<8xf32> to vector<8x1xf32>
    %398 = vector.broadcast %397 : vector<8x1xf32> to vector<8x8xf32>
    %399 = arith.subf %385, %398 : vector<8x8xf32>
    %400 = math.exp %399 : vector<8x8xf32>
    %cst_122 = arith.constant dense<0.000000e+00> : vector<8xf32>
    %401 = vector.multi_reduction <add>, %400, %cst_122 [1] : vector<8x8xf32> to vector<8xf32>
    %402 = vector.shape_cast %401 : vector<8xf32> to vector<8x1xf32>
    %403 = tpu.reciprocal %402 {approx = true} : vector<8x1xf32> -> vector<8x1xf32>
    %404 = vector.broadcast %403 : vector<8x1xf32> to vector<8x8xf32>
    %405 = arith.mulf %400, %404 : vector<8x8xf32>
    %406 = vector.broadcast %35 : f32 to vector<8x8xf32>
    %407 = arith.mulf %406, %405 : vector<8x8xf32>
    %408 = arith.subf %395, %407 : vector<8x8xf32>
    %cst_123 = arith.constant dense<0.000000e+00> : vector<8x8xf32>
    %409 = tpu.matmul %408, %379, %cst_123 {dimension_numbers = #tpu.dot_dimension_numbers<[1], [0], [0], [1], [0, 0, 1, 1], [], []>} : vector<8x8xf32>, vector<8x8xf32>, vector<8x8xf32> -> vector<8x8xf32>
    %410 = arith.mulf %409, %409 : vector<8x8xf32>
    %cst_124 = arith.constant dense<0.000000e+00> : vector<8xf32>
    %411 = vector.multi_reduction <add>, %410, %cst_124 [1] : vector<8x8xf32> to vector<8xf32>
    %412 = vector.shape_cast %411 : vector<8xf32> to vector<8x1xf32>
    %cst_125 = arith.constant 8.000000e+00 : f32
    %413 = vector.broadcast %cst_125 : f32 to vector<8x1xf32>
    %414 = arith.divf %412, %413 : vector<8x1xf32>
    %cst_126 = arith.constant 9.99999974E-6 : f32
    %415 = vector.broadcast %cst_126 : f32 to vector<8x1xf32>
    %416 = arith.addf %414, %415 : vector<8x1xf32>
    %417 = math.rsqrt %416 : vector<8x1xf32>
    %418 = vector.broadcast %417 : vector<8x1xf32> to vector<8x8xf32>
    %419 = arith.mulf %409, %418 : vector<8x8xf32>
    %cst_127 = arith.constant 1.000000e+00 : f32
    %420 = arith.subf %cst_127, %36 : f32
    %421 = vector.broadcast %420 : f32 to vector<8x8xf32>
    %422 = arith.mulf %419, %421 : vector<8x8xf32>
    %c8_128 = arith.constant 8 : index
    %c16_129 = arith.constant 16 : index
    %423 = vector.load %arg18[%c8_128, %c16_129] : memref<16x32xf32, #tpu.memory_space<vmem>>, vector<8x8xf32>
    tpu.vector_store %arg18[%c8_128, %c16_129], %422 {strides = array<i32>} : memref<16x32xf32, #tpu.memory_space<vmem>>, vector<8x8xf32>,
    %424 = vector.extract_strided_slice %274 {offsets = [0, 24], sizes = [8, 4], strides = [1, 1]} : vector<8x32xf32> to vector<8x4xf32>
    %425 = vector.extract_strided_slice %274 {offsets = [0, 28], sizes = [8, 4], strides = [1, 1]} : vector<8x32xf32> to vector<8x4xf32>
    %426 = vector.extract_strided_slice %275 {offsets = [0, 24], sizes = [8, 4], strides = [1, 1]} : vector<8x32xf32> to vector<8x4xf32>
    %427 = vector.extract_strided_slice %275 {offsets = [0, 28], sizes = [8, 4], strides = [1, 1]} : vector<8x32xf32> to vector<8x4xf32>
    %428 = vector.extract_strided_slice %276 {offsets = [0, 24], sizes = [8, 8], strides = [1, 1]} : vector<8x32xf32> to vector<8x8xf32>
    %cst_130 = arith.constant dense<0.000000e+00> : vector<8x8xf32>
    %429 = tpu.matmul %424, %426, %cst_130 {dimension_numbers = #tpu.dot_dimension_numbers<[1], [1], [0], [0], [0, 0, 1, 0], [], []>} : vector<8x4xf32>, vector<8x4xf32>, vector<8x8xf32> -> vector<8x8xf32>
    %cst_131 = arith.constant 5.000000e-01 : f32
    %430 = vector.broadcast %cst_131 : f32 to vector<8x8xf32>
    %431 = arith.mulf %429, %430 : vector<8x8xf32>
    %cst_132 = arith.constant dense<0.000000e+00> : vector<8x8xf32>
    %432 = tpu.matmul %425, %427, %cst_132 {dimension_numbers = #tpu.dot_dimension_numbers<[1], [1], [0], [0], [0, 0, 1, 0], [], []>} : vector<8x4xf32>, vector<8x4xf32>, vector<8x8xf32> -> vector<8x8xf32>
    %cst_133 = arith.constant 5.000000e-01 : f32
    %433 = vector.broadcast %cst_133 : f32 to vector<8x8xf32>
    %434 = arith.mulf %432, %433 : vector<8x8xf32>
    %cst_134 = arith.constant dense<0xFF800000> : vector<8xf32>
    %435 = vector.multi_reduction <maximumf>, %431, %cst_134 [1] : vector<8x8xf32> to vector<8xf32>
    %436 = vector.shape_cast %435 : vector<8xf32> to vector<8x1xf32>
    %437 = vector.broadcast %436 : vector<8x1xf32> to vector<8x8xf32>
    %438 = arith.subf %431, %437 : vector<8x8xf32>
    %439 = math.exp %438 : vector<8x8xf32>
    %cst_135 = arith.constant dense<0.000000e+00> : vector<8xf32>
    %440 = vector.multi_reduction <add>, %439, %cst_135 [1] : vector<8x8xf32> to vector<8xf32>
    %441 = vector.shape_cast %440 : vector<8xf32> to vector<8x1xf32>
    %442 = tpu.reciprocal %441 {approx = true} : vector<8x1xf32> -> vector<8x1xf32>
    %443 = vector.broadcast %442 : vector<8x1xf32> to vector<8x8xf32>
    %444 = arith.mulf %439, %443 : vector<8x8xf32>
    %cst_136 = arith.constant dense<0xFF800000> : vector<8xf32>
    %445 = vector.multi_reduction <maximumf>, %434, %cst_136 [1] : vector<8x8xf32> to vector<8xf32>
    %446 = vector.shape_cast %445 : vector<8xf32> to vector<8x1xf32>
    %447 = vector.broadcast %446 : vector<8x1xf32> to vector<8x8xf32>
    %448 = arith.subf %434, %447 : vector<8x8xf32>
    %449 = math.exp %448 : vector<8x8xf32>
    %cst_137 = arith.constant dense<0.000000e+00> : vector<8xf32>
    %450 = vector.multi_reduction <add>, %449, %cst_137 [1] : vector<8x8xf32> to vector<8xf32>
    %451 = vector.shape_cast %450 : vector<8xf32> to vector<8x1xf32>
    %452 = tpu.reciprocal %451 {approx = true} : vector<8x1xf32> -> vector<8x1xf32>
    %453 = vector.broadcast %452 : vector<8x1xf32> to vector<8x8xf32>
    %454 = arith.mulf %449, %453 : vector<8x8xf32>
    %455 = vector.broadcast %35 : f32 to vector<8x8xf32>
    %456 = arith.mulf %455, %454 : vector<8x8xf32>
    %457 = arith.subf %444, %456 : vector<8x8xf32>
    %cst_138 = arith.constant dense<0.000000e+00> : vector<8x8xf32>
    %458 = tpu.matmul %457, %428, %cst_138 {dimension_numbers = #tpu.dot_dimension_numbers<[1], [0], [0], [1], [0, 0, 1, 1], [], []>} : vector<8x8xf32>, vector<8x8xf32>, vector<8x8xf32> -> vector<8x8xf32>
    %459 = arith.mulf %458, %458 : vector<8x8xf32>
    %cst_139 = arith.constant dense<0.000000e+00> : vector<8xf32>
    %460 = vector.multi_reduction <add>, %459, %cst_139 [1] : vector<8x8xf32> to vector<8xf32>
    %461 = vector.shape_cast %460 : vector<8xf32> to vector<8x1xf32>
    %cst_140 = arith.constant 8.000000e+00 : f32
    %462 = vector.broadcast %cst_140 : f32 to vector<8x1xf32>
    %463 = arith.divf %461, %462 : vector<8x1xf32>
    %cst_141 = arith.constant 9.99999974E-6 : f32
    %464 = vector.broadcast %cst_141 : f32 to vector<8x1xf32>
    %465 = arith.addf %463, %464 : vector<8x1xf32>
    %466 = math.rsqrt %465 : vector<8x1xf32>
    %467 = vector.broadcast %466 : vector<8x1xf32> to vector<8x8xf32>
    %468 = arith.mulf %458, %467 : vector<8x8xf32>
    %cst_142 = arith.constant 1.000000e+00 : f32
    %469 = arith.subf %cst_142, %36 : f32
    %470 = vector.broadcast %469 : f32 to vector<8x8xf32>
    %471 = arith.mulf %468, %470 : vector<8x8xf32>
    %c8_143 = arith.constant 8 : index
    %c24_144 = arith.constant 24 : index
    %472 = vector.load %arg18[%c8_143, %c24_144] : memref<16x32xf32, #tpu.memory_space<vmem>>, vector<8x8xf32>
    tpu.vector_store %arg18[%c8_143, %c24_144], %471 {strides = array<i32>} : memref<16x32xf32, #tpu.memory_space<vmem>>, vector<8x8xf32>,
    %c0_145 = arith.constant 0 : index
    %c0_146 = arith.constant 0 : index
    %473 = vector.load %arg18[%c0_145, %c0_146] : memref<16x32xf32, #tpu.memory_space<vmem>>, vector<16x32xf32>
    %c0_147 = arith.constant 0 : index
    %c0_148 = arith.constant 0 : index
    %c0_149 = arith.constant 0 : index
    %474 = vector.load %arg7[%c0_147, %c0_148, %c0_149] : memref<3x32x32xf32, #tpu.memory_space<vmem>>, vector<1x32x32xf32>
    %475 = vector.shape_cast %474 : vector<1x32x32xf32> to vector<32x32xf32>
    %cst_150 = arith.constant dense<0.000000e+00> : vector<16x32xf32>
    %476 = tpu.matmul %473, %475, %cst_150 {dimension_numbers = #tpu.dot_dimension_numbers<[1], [0], [0], [1], [0, 0, 1, 1], [], []>} : vector<16x32xf32>, vector<32x32xf32>, vector<16x32xf32> -> vector<16x32xf32>
    %c0_151 = arith.constant 0 : index
    %c0_152 = arith.constant 0 : index
    %c0_153 = arith.constant 0 : index
    %477 = vector.load %arg8[%c0_151, %c0_152, %c0_153] : memref<3x1x32xf32, #tpu.memory_space<vmem>>, vector<1x1x32xf32>
    %478 = vector.shape_cast %477 : vector<1x1x32xf32> to vector<1x32xf32>
    %479 = vector.broadcast %478 : vector<1x32xf32> to vector<16x32xf32>
    %480 = arith.addf %476, %479 : vector<16x32xf32>
    %481 = arith.addf %34, %480 : vector<16x32xf32>
    %c0_154 = arith.constant 0 : index
    %c0_155 = arith.constant 0 : index
    %c0_156 = arith.constant 0 : index
    %482 = vector.load %arg9[%c0_154, %c0_155, %c0_156] : memref<3x2x32xf32, #tpu.memory_space<vmem>>, vector<1x2x32xf32>
    %483 = vector.shape_cast %482 : vector<1x2x32xf32> to vector<2x32xf32>
    %484 = vector.extract_strided_slice %483 {offsets = [0, 0], sizes = [1, 32], strides = [1, 1]} : vector<2x32xf32> to vector<1x32xf32>
    %485 = vector.extract_strided_slice %483 {offsets = [1, 0], sizes = [1, 32], strides = [1, 1]} : vector<2x32xf32> to vector<1x32xf32>
    %cst_157 = arith.constant dense<0.000000e+00> : vector<16xf32>
    %486 = vector.multi_reduction <add>, %481, %cst_157 [1] : vector<16x32xf32> to vector<16xf32>
    %487 = vector.shape_cast %486 : vector<16xf32> to vector<16x1xf32>
    %cst_158 = arith.constant 3.200000e+01 : f32
    %488 = vector.broadcast %cst_158 : f32 to vector<16x1xf32>
    %489 = arith.divf %487, %488 : vector<16x1xf32>
    %490 = vector.broadcast %489 : vector<16x1xf32> to vector<16x32xf32>
    %491 = arith.subf %481, %490 : vector<16x32xf32>
    %492 = vector.broadcast %489 : vector<16x1xf32> to vector<16x32xf32>
    %493 = arith.subf %481, %492 : vector<16x32xf32>
    %494 = arith.mulf %491, %493 : vector<16x32xf32>
    %cst_159 = arith.constant dense<0.000000e+00> : vector<16xf32>
    %495 = vector.multi_reduction <add>, %494, %cst_159 [1] : vector<16x32xf32> to vector<16xf32>
    %496 = vector.shape_cast %495 : vector<16xf32> to vector<16x1xf32>
    %cst_160 = arith.constant 3.200000e+01 : f32
    %497 = vector.broadcast %cst_160 : f32 to vector<16x1xf32>
    %498 = arith.divf %496, %497 : vector<16x1xf32>
    %499 = vector.broadcast %489 : vector<16x1xf32> to vector<16x32xf32>
    %500 = arith.subf %481, %499 : vector<16x32xf32>
    %cst_161 = arith.constant 9.99999974E-6 : f32
    %501 = vector.broadcast %cst_161 : f32 to vector<16x1xf32>
    %502 = arith.addf %498, %501 : vector<16x1xf32>
    %503 = math.rsqrt %502 : vector<16x1xf32>
    %504 = vector.broadcast %503 : vector<16x1xf32> to vector<16x32xf32>
    %505 = arith.mulf %500, %504 : vector<16x32xf32>
    %506 = vector.broadcast %484 : vector<1x32xf32> to vector<16x32xf32>
    %507 = arith.mulf %505, %506 : vector<16x32xf32>
    %508 = vector.broadcast %485 : vector<1x32xf32> to vector<16x32xf32>
    %509 = arith.addf %507, %508 : vector<16x32xf32>
    %c0_162 = arith.constant 0 : index
    %c0_163 = arith.constant 0 : index
    %c0_164 = arith.constant 0 : index
    %510 = vector.load %arg10[%c0_162, %c0_163, %c0_164] : memref<3x32x128xf32, #tpu.memory_space<vmem>>, vector<1x32x128xf32>
    %511 = vector.shape_cast %510 : vector<1x32x128xf32> to vector<32x128xf32>
    %cst_165 = arith.constant dense<0.000000e+00> : vector<16x128xf32>
    %512 = tpu.matmul %509, %511, %cst_165 {dimension_numbers = #tpu.dot_dimension_numbers<[1], [0], [0], [1], [0, 0, 1, 1], [], []>} : vector<16x32xf32>, vector<32x128xf32>, vector<16x128xf32> -> vector<16x128xf32>
    %c0_166 = arith.constant 0 : index
    %c0_167 = arith.constant 0 : index
    %c0_168 = arith.constant 0 : index
    %513 = vector.load %arg11[%c0_166, %c0_167, %c0_168] : memref<3x1x128xf32, #tpu.memory_space<vmem>>, vector<1x1x128xf32>
    %514 = vector.shape_cast %513 : vector<1x1x128xf32> to vector<1x128xf32>
    %515 = vector.broadcast %514 : vector<1x128xf32> to vector<16x128xf32>
    %516 = arith.addf %512, %515 : vector<16x128xf32>
    %cst_169 = arith.constant 0.707106769 : f32
    %517 = vector.broadcast %cst_169 : f32 to vector<16x128xf32>
    %518 = arith.mulf %516, %517 : vector<16x128xf32>
    %519 = math.absf %518 : vector<16x128xf32>
    %cst_170 = arith.constant 0.327591091 : f32
    %520 = vector.broadcast %cst_170 : f32 to vector<16x128xf32>
    %521 = arith.mulf %520, %519 : vector<16x128xf32>
    %cst_171 = arith.constant 1.000000e+00 : f32
    %522 = vector.broadcast %cst_171 : f32 to vector<16x128xf32>
    %523 = arith.addf %522, %521 : vector<16x128xf32>
    %cst_172 = arith.constant 1.000000e+00 : f32
    %524 = vector.broadcast %cst_172 : f32 to vector<16x128xf32>
    %525 = arith.divf %524, %523 : vector<16x128xf32>
    %cst_173 = arith.constant 1.06140542 : f32
    %526 = vector.broadcast %cst_173 : f32 to vector<16x128xf32>
    %527 = arith.mulf %525, %526 : vector<16x128xf32>
    %cst_174 = arith.constant -1.45315206 : f32
    %528 = vector.broadcast %cst_174 : f32 to vector<16x128xf32>
    %529 = arith.addf %528, %527 : vector<16x128xf32>
    %530 = arith.mulf %525, %529 : vector<16x128xf32>
    %cst_175 = arith.constant 1.42141378 : f32
    %531 = vector.broadcast %cst_175 : f32 to vector<16x128xf32>
    %532 = arith.addf %531, %530 : vector<16x128xf32>
    %533 = arith.mulf %525, %532 : vector<16x128xf32>
    %cst_176 = arith.constant -0.284496725 : f32
    %534 = vector.broadcast %cst_176 : f32 to vector<16x128xf32>
    %535 = arith.addf %534, %533 : vector<16x128xf32>
    %536 = arith.mulf %525, %535 : vector<16x128xf32>
    %cst_177 = arith.constant 0.254829586 : f32
    %537 = vector.broadcast %cst_177 : f32 to vector<16x128xf32>
    %538 = arith.addf %537, %536 : vector<16x128xf32>
    %539 = arith.mulf %525, %538 : vector<16x128xf32>
    %cst_178 = arith.constant 0.000000e+00 : f32
    %540 = vector.broadcast %cst_178 : f32 to vector<16x128xf32>
    %541 = arith.subf %540, %519 : vector<16x128xf32>
    %542 = arith.mulf %541, %519 : vector<16x128xf32>
    %543 = math.exp %542 : vector<16x128xf32>
    %544 = arith.mulf %539, %543 : vector<16x128xf32>
    %cst_179 = arith.constant 1.000000e+00 : f32
    %545 = vector.broadcast %cst_179 : f32 to vector<16x128xf32>
    %546 = arith.subf %545, %544 : vector<16x128xf32>
    %cst_180 = arith.constant 0.000000e+00 : f32
    %547 = vector.broadcast %cst_180 : f32 to vector<16x128xf32>
    %548 = arith.cmpf oge, %518, %547 : vector<16x128xf32>
    %cst_181 = arith.constant 0.000000e+00 : f32
    %549 = vector.broadcast %cst_181 : f32 to vector<16x128xf32>
    %550 = arith.subf %549, %546 : vector<16x128xf32>
    %551 = arith.select %548, %546, %550 : vector<16x128xi1>, vector<16x128xf32>
    %cst_182 = arith.constant 5.000000e-01 : f32
    %552 = vector.broadcast %cst_182 : f32 to vector<16x128xf32>
    %553 = arith.mulf %552, %516 : vector<16x128xf32>
    %cst_183 = arith.constant 1.000000e+00 : f32
    %554 = vector.broadcast %cst_183 : f32 to vector<16x128xf32>
    %555 = arith.addf %554, %551 : vector<16x128xf32>
    %556 = arith.mulf %553, %555 : vector<16x128xf32>
    %c0_184 = arith.constant 0 : index
    %c0_185 = arith.constant 0 : index
    %c0_186 = arith.constant 0 : index
    %557 = vector.load %arg12[%c0_184, %c0_185, %c0_186] : memref<3x128x32xf32, #tpu.memory_space<vmem>>, vector<1x128x32xf32>
    %558 = vector.shape_cast %557 : vector<1x128x32xf32> to vector<128x32xf32>
    %cst_187 = arith.constant dense<0.000000e+00> : vector<16x32xf32>
    %559 = tpu.matmul %556, %558, %cst_187 {dimension_numbers = #tpu.dot_dimension_numbers<[1], [0], [0], [1], [0, 0, 1, 1], [], []>} : vector<16x128xf32>, vector<128x32xf32>, vector<16x32xf32> -> vector<16x32xf32>
    %c0_188 = arith.constant 0 : index
    %c0_189 = arith.constant 0 : index
    %c0_190 = arith.constant 0 : index
    %560 = vector.load %arg13[%c0_188, %c0_189, %c0_190] : memref<3x1x32xf32, #tpu.memory_space<vmem>>, vector<1x1x32xf32>
    %561 = vector.shape_cast %560 : vector<1x1x32xf32> to vector<1x32xf32>
    %562 = vector.broadcast %561 : vector<1x32xf32> to vector<16x32xf32>
    %563 = arith.addf %559, %562 : vector<16x32xf32>
    %564 = arith.addf %481, %563 : vector<16x32xf32>
    %c1_191 = arith.constant 1 : index
    %c0_192 = arith.constant 0 : index
    %565 = memref.load %arg0[%c1_191, %c0_192] : memref<3x2xf32, #tpu.memory_space<smem>>
    %c1_193 = arith.constant 1 : index
    %c1_194 = arith.constant 1 : index
    %566 = memref.load %arg0[%c1_193, %c1_194] : memref<3x2xf32, #tpu.memory_space<smem>>
    %c1_195 = arith.constant 1 : index
    %c0_196 = arith.constant 0 : index
    %c0_197 = arith.constant 0 : index
    %567 = vector.load %arg4[%c1_195, %c0_196, %c0_197] : memref<3x2x32xf32, #tpu.memory_space<vmem>>, vector<1x2x32xf32>
    %568 = vector.shape_cast %567 : vector<1x2x32xf32> to vector<2x32xf32>
    %569 = vector.extract_strided_slice %568 {offsets = [0, 0], sizes = [1, 32], strides = [1, 1]} : vector<2x32xf32> to vector<1x32xf32>
    %570 = vector.extract_strided_slice %568 {offsets = [1, 0], sizes = [1, 32], strides = [1, 1]} : vector<2x32xf32> to vector<1x32xf32>
    %cst_198 = arith.constant dense<0.000000e+00> : vector<16xf32>
    %571 = vector.multi_reduction <add>, %564, %cst_198 [1] : vector<16x32xf32> to vector<16xf32>
    %572 = vector.shape_cast %571 : vector<16xf32> to vector<16x1xf32>
    %cst_199 = arith.constant 3.200000e+01 : f32
    %573 = vector.broadcast %cst_199 : f32 to vector<16x1xf32>
    %574 = arith.divf %572, %573 : vector<16x1xf32>
    %575 = vector.broadcast %574 : vector<16x1xf32> to vector<16x32xf32>
    %576 = arith.subf %564, %575 : vector<16x32xf32>
    %577 = vector.broadcast %574 : vector<16x1xf32> to vector<16x32xf32>
    %578 = arith.subf %564, %577 : vector<16x32xf32>
    %579 = arith.mulf %576, %578 : vector<16x32xf32>
    %cst_200 = arith.constant dense<0.000000e+00> : vector<16xf32>
    %580 = vector.multi_reduction <add>, %579, %cst_200 [1] : vector<16x32xf32> to vector<16xf32>
    %581 = vector.shape_cast %580 : vector<16xf32> to vector<16x1xf32>
    %cst_201 = arith.constant 3.200000e+01 : f32
    %582 = vector.broadcast %cst_201 : f32 to vector<16x1xf32>
    %583 = arith.divf %581, %582 : vector<16x1xf32>
    %584 = vector.broadcast %574 : vector<16x1xf32> to vector<16x32xf32>
    %585 = arith.subf %564, %584 : vector<16x32xf32>
    %cst_202 = arith.constant 9.99999974E-6 : f32
    %586 = vector.broadcast %cst_202 : f32 to vector<16x1xf32>
    %587 = arith.addf %583, %586 : vector<16x1xf32>
    %588 = math.rsqrt %587 : vector<16x1xf32>
    %589 = vector.broadcast %588 : vector<16x1xf32> to vector<16x32xf32>
    %590 = arith.mulf %585, %589 : vector<16x32xf32>
    %591 = vector.broadcast %569 : vector<1x32xf32> to vector<16x32xf32>
    %592 = arith.mulf %590, %591 : vector<16x32xf32>
    %593 = vector.broadcast %570 : vector<1x32xf32> to vector<16x32xf32>
    %594 = arith.addf %592, %593 : vector<16x32xf32>
    %c1_203 = arith.constant 1 : index
    %c0_204 = arith.constant 0 : index
    %c0_205 = arith.constant 0 : index
    %595 = vector.load %arg5[%c1_203, %c0_204, %c0_205] : memref<3x32x96xf32, #tpu.memory_space<vmem>>, vector<1x32x96xf32>
    %596 = vector.shape_cast %595 : vector<1x32x96xf32> to vector<32x96xf32>
    %cst_206 = arith.constant dense<0.000000e+00> : vector<16x96xf32>
    %597 = tpu.matmul %594, %596, %cst_206 {dimension_numbers = #tpu.dot_dimension_numbers<[1], [0], [0], [1], [0, 0, 1, 1], [], []>} : vector<16x32xf32>, vector<32x96xf32>, vector<16x96xf32> -> vector<16x96xf32>
    %c1_207 = arith.constant 1 : index
    %c0_208 = arith.constant 0 : index
    %c0_209 = arith.constant 0 : index
    %598 = vector.load %arg6[%c1_207, %c0_208, %c0_209] : memref<3x1x96xf32, #tpu.memory_space<vmem>>, vector<1x1x96xf32>
    %599 = vector.shape_cast %598 : vector<1x1x96xf32> to vector<1x96xf32>
    %600 = vector.broadcast %599 : vector<1x96xf32> to vector<16x96xf32>
    %601 = arith.addf %597, %600 : vector<16x96xf32>
    %602 = vector.extract_strided_slice %601 {offsets = [0, 0], sizes = [16, 32], strides = [1, 1]} : vector<16x96xf32> to vector<16x32xf32>
    %603 = vector.extract_strided_slice %601 {offsets = [0, 32], sizes = [16, 32], strides = [1, 1]} : vector<16x96xf32> to vector<16x32xf32>
    %604 = vector.extract_strided_slice %601 {offsets = [0, 64], sizes = [16, 32], strides = [1, 1]} : vector<16x96xf32> to vector<16x32xf32>
    %605 = vector.extract_strided_slice %602 {offsets = [0, 0], sizes = [8, 32], strides = [1, 1]} : vector<16x32xf32> to vector<8x32xf32>
    %606 = vector.extract_strided_slice %603 {offsets = [0, 0], sizes = [8, 32], strides = [1, 1]} : vector<16x32xf32> to vector<8x32xf32>
    %607 = vector.extract_strided_slice %604 {offsets = [0, 0], sizes = [8, 32], strides = [1, 1]} : vector<16x32xf32> to vector<8x32xf32>
    %608 = vector.extract_strided_slice %605 {offsets = [0, 0], sizes = [8, 4], strides = [1, 1]} : vector<8x32xf32> to vector<8x4xf32>
    %609 = vector.extract_strided_slice %605 {offsets = [0, 4], sizes = [8, 4], strides = [1, 1]} : vector<8x32xf32> to vector<8x4xf32>
    %610 = vector.extract_strided_slice %606 {offsets = [0, 0], sizes = [8, 4], strides = [1, 1]} : vector<8x32xf32> to vector<8x4xf32>
    %611 = vector.extract_strided_slice %606 {offsets = [0, 4], sizes = [8, 4], strides = [1, 1]} : vector<8x32xf32> to vector<8x4xf32>
    %612 = vector.extract_strided_slice %607 {offsets = [0, 0], sizes = [8, 8], strides = [1, 1]} : vector<8x32xf32> to vector<8x8xf32>
    %cst_210 = arith.constant dense<0.000000e+00> : vector<8x8xf32>
    %613 = tpu.matmul %608, %610, %cst_210 {dimension_numbers = #tpu.dot_dimension_numbers<[1], [1], [0], [0], [0, 0, 1, 0], [], []>} : vector<8x4xf32>, vector<8x4xf32>, vector<8x8xf32> -> vector<8x8xf32>
    %cst_211 = arith.constant 5.000000e-01 : f32
    %614 = vector.broadcast %cst_211 : f32 to vector<8x8xf32>
    %615 = arith.mulf %613, %614 : vector<8x8xf32>
    %cst_212 = arith.constant dense<0.000000e+00> : vector<8x8xf32>
    %616 = tpu.matmul %609, %611, %cst_212 {dimension_numbers = #tpu.dot_dimension_numbers<[1], [1], [0], [0], [0, 0, 1, 0], [], []>} : vector<8x4xf32>, vector<8x4xf32>, vector<8x8xf32> -> vector<8x8xf32>
    %cst_213 = arith.constant 5.000000e-01 : f32
    %617 = vector.broadcast %cst_213 : f32 to vector<8x8xf32>
    %618 = arith.mulf %616, %617 : vector<8x8xf32>
    %cst_214 = arith.constant dense<0xFF800000> : vector<8xf32>
    %619 = vector.multi_reduction <maximumf>, %615, %cst_214 [1] : vector<8x8xf32> to vector<8xf32>
    %620 = vector.shape_cast %619 : vector<8xf32> to vector<8x1xf32>
    %621 = vector.broadcast %620 : vector<8x1xf32> to vector<8x8xf32>
    %622 = arith.subf %615, %621 : vector<8x8xf32>
    %623 = math.exp %622 : vector<8x8xf32>
    %cst_215 = arith.constant dense<0.000000e+00> : vector<8xf32>
    %624 = vector.multi_reduction <add>, %623, %cst_215 [1] : vector<8x8xf32> to vector<8xf32>
    %625 = vector.shape_cast %624 : vector<8xf32> to vector<8x1xf32>
    %626 = tpu.reciprocal %625 {approx = true} : vector<8x1xf32> -> vector<8x1xf32>
    %627 = vector.broadcast %626 : vector<8x1xf32> to vector<8x8xf32>
    %628 = arith.mulf %623, %627 : vector<8x8xf32>
    %cst_216 = arith.constant dense<0xFF800000> : vector<8xf32>
    %629 = vector.multi_reduction <maximumf>, %618, %cst_216 [1] : vector<8x8xf32> to vector<8xf32>
    %630 = vector.shape_cast %629 : vector<8xf32> to vector<8x1xf32>
    %631 = vector.broadcast %630 : vector<8x1xf32> to vector<8x8xf32>
    %632 = arith.subf %618, %631 : vector<8x8xf32>
    %633 = math.exp %632 : vector<8x8xf32>
    %cst_217 = arith.constant dense<0.000000e+00> : vector<8xf32>
    %634 = vector.multi_reduction <add>, %633, %cst_217 [1] : vector<8x8xf32> to vector<8xf32>
    %635 = vector.shape_cast %634 : vector<8xf32> to vector<8x1xf32>
    %636 = tpu.reciprocal %635 {approx = true} : vector<8x1xf32> -> vector<8x1xf32>
    %637 = vector.broadcast %636 : vector<8x1xf32> to vector<8x8xf32>
    %638 = arith.mulf %633, %637 : vector<8x8xf32>
    %639 = vector.broadcast %565 : f32 to vector<8x8xf32>
    %640 = arith.mulf %639, %638 : vector<8x8xf32>
    %641 = arith.subf %628, %640 : vector<8x8xf32>
    %cst_218 = arith.constant dense<0.000000e+00> : vector<8x8xf32>
    %642 = tpu.matmul %641, %612, %cst_218 {dimension_numbers = #tpu.dot_dimension_numbers<[1], [0], [0], [1], [0, 0, 1, 1], [], []>} : vector<8x8xf32>, vector<8x8xf32>, vector<8x8xf32> -> vector<8x8xf32>
    %643 = arith.mulf %642, %642 : vector<8x8xf32>
    %cst_219 = arith.constant dense<0.000000e+00> : vector<8xf32>
    %644 = vector.multi_reduction <add>, %643, %cst_219 [1] : vector<8x8xf32> to vector<8xf32>
    %645 = vector.shape_cast %644 : vector<8xf32> to vector<8x1xf32>
    %cst_220 = arith.constant 8.000000e+00 : f32
    %646 = vector.broadcast %cst_220 : f32 to vector<8x1xf32>
    %647 = arith.divf %645, %646 : vector<8x1xf32>
    %cst_221 = arith.constant 9.99999974E-6 : f32
    %648 = vector.broadcast %cst_221 : f32 to vector<8x1xf32>
    %649 = arith.addf %647, %648 : vector<8x1xf32>
    %650 = math.rsqrt %649 : vector<8x1xf32>
    %651 = vector.broadcast %650 : vector<8x1xf32> to vector<8x8xf32>
    %652 = arith.mulf %642, %651 : vector<8x8xf32>
    %cst_222 = arith.constant 1.000000e+00 : f32
    %653 = arith.subf %cst_222, %566 : f32
    %654 = vector.broadcast %653 : f32 to vector<8x8xf32>
    %655 = arith.mulf %652, %654 : vector<8x8xf32>
    %c0_223 = arith.constant 0 : index
    %c0_224 = arith.constant 0 : index
    %656 = vector.load %arg18[%c0_223, %c0_224] : memref<16x32xf32, #tpu.memory_space<vmem>>, vector<8x8xf32>
    tpu.vector_store %arg18[%c0_223, %c0_224], %655 {strides = array<i32>} : memref<16x32xf32, #tpu.memory_space<vmem>>, vector<8x8xf32>,
    %657 = vector.extract_strided_slice %605 {offsets = [0, 8], sizes = [8, 4], strides = [1, 1]} : vector<8x32xf32> to vector<8x4xf32>
    %658 = vector.extract_strided_slice %605 {offsets = [0, 12], sizes = [8, 4], strides = [1, 1]} : vector<8x32xf32> to vector<8x4xf32>
    %659 = vector.extract_strided_slice %606 {offsets = [0, 8], sizes = [8, 4], strides = [1, 1]} : vector<8x32xf32> to vector<8x4xf32>
    %660 = vector.extract_strided_slice %606 {offsets = [0, 12], sizes = [8, 4], strides = [1, 1]} : vector<8x32xf32> to vector<8x4xf32>
    %661 = vector.extract_strided_slice %607 {offsets = [0, 8], sizes = [8, 8], strides = [1, 1]} : vector<8x32xf32> to vector<8x8xf32>
    %cst_225 = arith.constant dense<0.000000e+00> : vector<8x8xf32>
    %662 = tpu.matmul %657, %659, %cst_225 {dimension_numbers = #tpu.dot_dimension_numbers<[1], [1], [0], [0], [0, 0, 1, 0], [], []>} : vector<8x4xf32>, vector<8x4xf32>, vector<8x8xf32> -> vector<8x8xf32>
    %cst_226 = arith.constant 5.000000e-01 : f32
    %663 = vector.broadcast %cst_226 : f32 to vector<8x8xf32>
    %664 = arith.mulf %662, %663 : vector<8x8xf32>
    %cst_227 = arith.constant dense<0.000000e+00> : vector<8x8xf32>
    %665 = tpu.matmul %658, %660, %cst_227 {dimension_numbers = #tpu.dot_dimension_numbers<[1], [1], [0], [0], [0, 0, 1, 0], [], []>} : vector<8x4xf32>, vector<8x4xf32>, vector<8x8xf32> -> vector<8x8xf32>
    %cst_228 = arith.constant 5.000000e-01 : f32
    %666 = vector.broadcast %cst_228 : f32 to vector<8x8xf32>
    %667 = arith.mulf %665, %666 : vector<8x8xf32>
    %cst_229 = arith.constant dense<0xFF800000> : vector<8xf32>
    %668 = vector.multi_reduction <maximumf>, %664, %cst_229 [1] : vector<8x8xf32> to vector<8xf32>
    %669 = vector.shape_cast %668 : vector<8xf32> to vector<8x1xf32>
    %670 = vector.broadcast %669 : vector<8x1xf32> to vector<8x8xf32>
    %671 = arith.subf %664, %670 : vector<8x8xf32>
    %672 = math.exp %671 : vector<8x8xf32>
    %cst_230 = arith.constant dense<0.000000e+00> : vector<8xf32>
    %673 = vector.multi_reduction <add>, %672, %cst_230 [1] : vector<8x8xf32> to vector<8xf32>
    %674 = vector.shape_cast %673 : vector<8xf32> to vector<8x1xf32>
    %675 = tpu.reciprocal %674 {approx = true} : vector<8x1xf32> -> vector<8x1xf32>
    %676 = vector.broadcast %675 : vector<8x1xf32> to vector<8x8xf32>
    %677 = arith.mulf %672, %676 : vector<8x8xf32>
    %cst_231 = arith.constant dense<0xFF800000> : vector<8xf32>
    %678 = vector.multi_reduction <maximumf>, %667, %cst_231 [1] : vector<8x8xf32> to vector<8xf32>
    %679 = vector.shape_cast %678 : vector<8xf32> to vector<8x1xf32>
    %680 = vector.broadcast %679 : vector<8x1xf32> to vector<8x8xf32>
    %681 = arith.subf %667, %680 : vector<8x8xf32>
    %682 = math.exp %681 : vector<8x8xf32>
    %cst_232 = arith.constant dense<0.000000e+00> : vector<8xf32>
    %683 = vector.multi_reduction <add>, %682, %cst_232 [1] : vector<8x8xf32> to vector<8xf32>
    %684 = vector.shape_cast %683 : vector<8xf32> to vector<8x1xf32>
    %685 = tpu.reciprocal %684 {approx = true} : vector<8x1xf32> -> vector<8x1xf32>
    %686 = vector.broadcast %685 : vector<8x1xf32> to vector<8x8xf32>
    %687 = arith.mulf %682, %686 : vector<8x8xf32>
    %688 = vector.broadcast %565 : f32 to vector<8x8xf32>
    %689 = arith.mulf %688, %687 : vector<8x8xf32>
    %690 = arith.subf %677, %689 : vector<8x8xf32>
    %cst_233 = arith.constant dense<0.000000e+00> : vector<8x8xf32>
    %691 = tpu.matmul %690, %661, %cst_233 {dimension_numbers = #tpu.dot_dimension_numbers<[1], [0], [0], [1], [0, 0, 1, 1], [], []>} : vector<8x8xf32>, vector<8x8xf32>, vector<8x8xf32> -> vector<8x8xf32>
    %692 = arith.mulf %691, %691 : vector<8x8xf32>
    %cst_234 = arith.constant dense<0.000000e+00> : vector<8xf32>
    %693 = vector.multi_reduction <add>, %692, %cst_234 [1] : vector<8x8xf32> to vector<8xf32>
    %694 = vector.shape_cast %693 : vector<8xf32> to vector<8x1xf32>
    %cst_235 = arith.constant 8.000000e+00 : f32
    %695 = vector.broadcast %cst_235 : f32 to vector<8x1xf32>
    %696 = arith.divf %694, %695 : vector<8x1xf32>
    %cst_236 = arith.constant 9.99999974E-6 : f32
    %697 = vector.broadcast %cst_236 : f32 to vector<8x1xf32>
    %698 = arith.addf %696, %697 : vector<8x1xf32>
    %699 = math.rsqrt %698 : vector<8x1xf32>
    %700 = vector.broadcast %699 : vector<8x1xf32> to vector<8x8xf32>
    %701 = arith.mulf %691, %700 : vector<8x8xf32>
    %cst_237 = arith.constant 1.000000e+00 : f32
    %702 = arith.subf %cst_237, %566 : f32
    %703 = vector.broadcast %702 : f32 to vector<8x8xf32>
    %704 = arith.mulf %701, %703 : vector<8x8xf32>
    %c0_238 = arith.constant 0 : index
    %c8_239 = arith.constant 8 : index
    %705 = vector.load %arg18[%c0_238, %c8_239] : memref<16x32xf32, #tpu.memory_space<vmem>>, vector<8x8xf32>
    tpu.vector_store %arg18[%c0_238, %c8_239], %704 {strides = array<i32>} : memref<16x32xf32, #tpu.memory_space<vmem>>, vector<8x8xf32>,
    %706 = vector.extract_strided_slice %605 {offsets = [0, 16], sizes = [8, 4], strides = [1, 1]} : vector<8x32xf32> to vector<8x4xf32>
    %707 = vector.extract_strided_slice %605 {offsets = [0, 20], sizes = [8, 4], strides = [1, 1]} : vector<8x32xf32> to vector<8x4xf32>
    %708 = vector.extract_strided_slice %606 {offsets = [0, 16], sizes = [8, 4], strides = [1, 1]} : vector<8x32xf32> to vector<8x4xf32>
    %709 = vector.extract_strided_slice %606 {offsets = [0, 20], sizes = [8, 4], strides = [1, 1]} : vector<8x32xf32> to vector<8x4xf32>
    %710 = vector.extract_strided_slice %607 {offsets = [0, 16], sizes = [8, 8], strides = [1, 1]} : vector<8x32xf32> to vector<8x8xf32>
    %cst_240 = arith.constant dense<0.000000e+00> : vector<8x8xf32>
    %711 = tpu.matmul %706, %708, %cst_240 {dimension_numbers = #tpu.dot_dimension_numbers<[1], [1], [0], [0], [0, 0, 1, 0], [], []>} : vector<8x4xf32>, vector<8x4xf32>, vector<8x8xf32> -> vector<8x8xf32>
    %cst_241 = arith.constant 5.000000e-01 : f32
    %712 = vector.broadcast %cst_241 : f32 to vector<8x8xf32>
    %713 = arith.mulf %711, %712 : vector<8x8xf32>
    %cst_242 = arith.constant dense<0.000000e+00> : vector<8x8xf32>
    %714 = tpu.matmul %707, %709, %cst_242 {dimension_numbers = #tpu.dot_dimension_numbers<[1], [1], [0], [0], [0, 0, 1, 0], [], []>} : vector<8x4xf32>, vector<8x4xf32>, vector<8x8xf32> -> vector<8x8xf32>
    %cst_243 = arith.constant 5.000000e-01 : f32
    %715 = vector.broadcast %cst_243 : f32 to vector<8x8xf32>
    %716 = arith.mulf %714, %715 : vector<8x8xf32>
    %cst_244 = arith.constant dense<0xFF800000> : vector<8xf32>
    %717 = vector.multi_reduction <maximumf>, %713, %cst_244 [1] : vector<8x8xf32> to vector<8xf32>
    %718 = vector.shape_cast %717 : vector<8xf32> to vector<8x1xf32>
    %719 = vector.broadcast %718 : vector<8x1xf32> to vector<8x8xf32>
    %720 = arith.subf %713, %719 : vector<8x8xf32>
    %721 = math.exp %720 : vector<8x8xf32>
    %cst_245 = arith.constant dense<0.000000e+00> : vector<8xf32>
    %722 = vector.multi_reduction <add>, %721, %cst_245 [1] : vector<8x8xf32> to vector<8xf32>
    %723 = vector.shape_cast %722 : vector<8xf32> to vector<8x1xf32>
    %724 = tpu.reciprocal %723 {approx = true} : vector<8x1xf32> -> vector<8x1xf32>
    %725 = vector.broadcast %724 : vector<8x1xf32> to vector<8x8xf32>
    %726 = arith.mulf %721, %725 : vector<8x8xf32>
    %cst_246 = arith.constant dense<0xFF800000> : vector<8xf32>
    %727 = vector.multi_reduction <maximumf>, %716, %cst_246 [1] : vector<8x8xf32> to vector<8xf32>
    %728 = vector.shape_cast %727 : vector<8xf32> to vector<8x1xf32>
    %729 = vector.broadcast %728 : vector<8x1xf32> to vector<8x8xf32>
    %730 = arith.subf %716, %729 : vector<8x8xf32>
    %731 = math.exp %730 : vector<8x8xf32>
    %cst_247 = arith.constant dense<0.000000e+00> : vector<8xf32>
    %732 = vector.multi_reduction <add>, %731, %cst_247 [1] : vector<8x8xf32> to vector<8xf32>
    %733 = vector.shape_cast %732 : vector<8xf32> to vector<8x1xf32>
    %734 = tpu.reciprocal %733 {approx = true} : vector<8x1xf32> -> vector<8x1xf32>
    %735 = vector.broadcast %734 : vector<8x1xf32> to vector<8x8xf32>
    %736 = arith.mulf %731, %735 : vector<8x8xf32>
    %737 = vector.broadcast %565 : f32 to vector<8x8xf32>
    %738 = arith.mulf %737, %736 : vector<8x8xf32>
    %739 = arith.subf %726, %738 : vector<8x8xf32>
    %cst_248 = arith.constant dense<0.000000e+00> : vector<8x8xf32>
    %740 = tpu.matmul %739, %710, %cst_248 {dimension_numbers = #tpu.dot_dimension_numbers<[1], [0], [0], [1], [0, 0, 1, 1], [], []>} : vector<8x8xf32>, vector<8x8xf32>, vector<8x8xf32> -> vector<8x8xf32>
    %741 = arith.mulf %740, %740 : vector<8x8xf32>
    %cst_249 = arith.constant dense<0.000000e+00> : vector<8xf32>
    %742 = vector.multi_reduction <add>, %741, %cst_249 [1] : vector<8x8xf32> to vector<8xf32>
    %743 = vector.shape_cast %742 : vector<8xf32> to vector<8x1xf32>
    %cst_250 = arith.constant 8.000000e+00 : f32
    %744 = vector.broadcast %cst_250 : f32 to vector<8x1xf32>
    %745 = arith.divf %743, %744 : vector<8x1xf32>
    %cst_251 = arith.constant 9.99999974E-6 : f32
    %746 = vector.broadcast %cst_251 : f32 to vector<8x1xf32>
    %747 = arith.addf %745, %746 : vector<8x1xf32>
    %748 = math.rsqrt %747 : vector<8x1xf32>
    %749 = vector.broadcast %748 : vector<8x1xf32> to vector<8x8xf32>
    %750 = arith.mulf %740, %749 : vector<8x8xf32>
    %cst_252 = arith.constant 1.000000e+00 : f32
    %751 = arith.subf %cst_252, %566 : f32
    %752 = vector.broadcast %751 : f32 to vector<8x8xf32>
    %753 = arith.mulf %750, %752 : vector<8x8xf32>
    %c0_253 = arith.constant 0 : index
    %c16_254 = arith.constant 16 : index
    %754 = vector.load %arg18[%c0_253, %c16_254] : memref<16x32xf32, #tpu.memory_space<vmem>>, vector<8x8xf32>
    tpu.vector_store %arg18[%c0_253, %c16_254], %753 {strides = array<i32>} : memref<16x32xf32, #tpu.memory_space<vmem>>, vector<8x8xf32>,
    %755 = vector.extract_strided_slice %605 {offsets = [0, 24], sizes = [8, 4], strides = [1, 1]} : vector<8x32xf32> to vector<8x4xf32>
    %756 = vector.extract_strided_slice %605 {offsets = [0, 28], sizes = [8, 4], strides = [1, 1]} : vector<8x32xf32> to vector<8x4xf32>
    %757 = vector.extract_strided_slice %606 {offsets = [0, 24], sizes = [8, 4], strides = [1, 1]} : vector<8x32xf32> to vector<8x4xf32>
    %758 = vector.extract_strided_slice %606 {offsets = [0, 28], sizes = [8, 4], strides = [1, 1]} : vector<8x32xf32> to vector<8x4xf32>
    %759 = vector.extract_strided_slice %607 {offsets = [0, 24], sizes = [8, 8], strides = [1, 1]} : vector<8x32xf32> to vector<8x8xf32>
    %cst_255 = arith.constant dense<0.000000e+00> : vector<8x8xf32>
    %760 = tpu.matmul %755, %757, %cst_255 {dimension_numbers = #tpu.dot_dimension_numbers<[1], [1], [0], [0], [0, 0, 1, 0], [], []>} : vector<8x4xf32>, vector<8x4xf32>, vector<8x8xf32> -> vector<8x8xf32>
    %cst_256 = arith.constant 5.000000e-01 : f32
    %761 = vector.broadcast %cst_256 : f32 to vector<8x8xf32>
    %762 = arith.mulf %760, %761 : vector<8x8xf32>
    %cst_257 = arith.constant dense<0.000000e+00> : vector<8x8xf32>
    %763 = tpu.matmul %756, %758, %cst_257 {dimension_numbers = #tpu.dot_dimension_numbers<[1], [1], [0], [0], [0, 0, 1, 0], [], []>} : vector<8x4xf32>, vector<8x4xf32>, vector<8x8xf32> -> vector<8x8xf32>
    %cst_258 = arith.constant 5.000000e-01 : f32
    %764 = vector.broadcast %cst_258 : f32 to vector<8x8xf32>
    %765 = arith.mulf %763, %764 : vector<8x8xf32>
    %cst_259 = arith.constant dense<0xFF800000> : vector<8xf32>
    %766 = vector.multi_reduction <maximumf>, %762, %cst_259 [1] : vector<8x8xf32> to vector<8xf32>
    %767 = vector.shape_cast %766 : vector<8xf32> to vector<8x1xf32>
    %768 = vector.broadcast %767 : vector<8x1xf32> to vector<8x8xf32>
    %769 = arith.subf %762, %768 : vector<8x8xf32>
    %770 = math.exp %769 : vector<8x8xf32>
    %cst_260 = arith.constant dense<0.000000e+00> : vector<8xf32>
    %771 = vector.multi_reduction <add>, %770, %cst_260 [1] : vector<8x8xf32> to vector<8xf32>
    %772 = vector.shape_cast %771 : vector<8xf32> to vector<8x1xf32>
    %773 = tpu.reciprocal %772 {approx = true} : vector<8x1xf32> -> vector<8x1xf32>
    %774 = vector.broadcast %773 : vector<8x1xf32> to vector<8x8xf32>
    %775 = arith.mulf %770, %774 : vector<8x8xf32>
    %cst_261 = arith.constant dense<0xFF800000> : vector<8xf32>
    %776 = vector.multi_reduction <maximumf>, %765, %cst_261 [1] : vector<8x8xf32> to vector<8xf32>
    %777 = vector.shape_cast %776 : vector<8xf32> to vector<8x1xf32>
    %778 = vector.broadcast %777 : vector<8x1xf32> to vector<8x8xf32>
    %779 = arith.subf %765, %778 : vector<8x8xf32>
    %780 = math.exp %779 : vector<8x8xf32>
    %cst_262 = arith.constant dense<0.000000e+00> : vector<8xf32>
    %781 = vector.multi_reduction <add>, %780, %cst_262 [1] : vector<8x8xf32> to vector<8xf32>
    %782 = vector.shape_cast %781 : vector<8xf32> to vector<8x1xf32>
    %783 = tpu.reciprocal %782 {approx = true} : vector<8x1xf32> -> vector<8x1xf32>
    %784 = vector.broadcast %783 : vector<8x1xf32> to vector<8x8xf32>
    %785 = arith.mulf %780, %784 : vector<8x8xf32>
    %786 = vector.broadcast %565 : f32 to vector<8x8xf32>
    %787 = arith.mulf %786, %785 : vector<8x8xf32>
    %788 = arith.subf %775, %787 : vector<8x8xf32>
    %cst_263 = arith.constant dense<0.000000e+00> : vector<8x8xf32>
    %789 = tpu.matmul %788, %759, %cst_263 {dimension_numbers = #tpu.dot_dimension_numbers<[1], [0], [0], [1], [0, 0, 1, 1], [], []>} : vector<8x8xf32>, vector<8x8xf32>, vector<8x8xf32> -> vector<8x8xf32>
    %790 = arith.mulf %789, %789 : vector<8x8xf32>
    %cst_264 = arith.constant dense<0.000000e+00> : vector<8xf32>
    %791 = vector.multi_reduction <add>, %790, %cst_264 [1] : vector<8x8xf32> to vector<8xf32>
    %792 = vector.shape_cast %791 : vector<8xf32> to vector<8x1xf32>
    %cst_265 = arith.constant 8.000000e+00 : f32
    %793 = vector.broadcast %cst_265 : f32 to vector<8x1xf32>
    %794 = arith.divf %792, %793 : vector<8x1xf32>
    %cst_266 = arith.constant 9.99999974E-6 : f32
    %795 = vector.broadcast %cst_266 : f32 to vector<8x1xf32>
    %796 = arith.addf %794, %795 : vector<8x1xf32>
    %797 = math.rsqrt %796 : vector<8x1xf32>
    %798 = vector.broadcast %797 : vector<8x1xf32> to vector<8x8xf32>
    %799 = arith.mulf %789, %798 : vector<8x8xf32>
    %cst_267 = arith.constant 1.000000e+00 : f32
    %800 = arith.subf %cst_267, %566 : f32
    %801 = vector.broadcast %800 : f32 to vector<8x8xf32>
    %802 = arith.mulf %799, %801 : vector<8x8xf32>
    %c0_268 = arith.constant 0 : index
    %c24_269 = arith.constant 24 : index
    %803 = vector.load %arg18[%c0_268, %c24_269] : memref<16x32xf32, #tpu.memory_space<vmem>>, vector<8x8xf32>
    tpu.vector_store %arg18[%c0_268, %c24_269], %802 {strides = array<i32>} : memref<16x32xf32, #tpu.memory_space<vmem>>, vector<8x8xf32>,
    %804 = vector.extract_strided_slice %602 {offsets = [8, 0], sizes = [8, 32], strides = [1, 1]} : vector<16x32xf32> to vector<8x32xf32>
    %805 = vector.extract_strided_slice %603 {offsets = [8, 0], sizes = [8, 32], strides = [1, 1]} : vector<16x32xf32> to vector<8x32xf32>
    %806 = vector.extract_strided_slice %604 {offsets = [8, 0], sizes = [8, 32], strides = [1, 1]} : vector<16x32xf32> to vector<8x32xf32>
    %807 = vector.extract_strided_slice %804 {offsets = [0, 0], sizes = [8, 4], strides = [1, 1]} : vector<8x32xf32> to vector<8x4xf32>
    %808 = vector.extract_strided_slice %804 {offsets = [0, 4], sizes = [8, 4], strides = [1, 1]} : vector<8x32xf32> to vector<8x4xf32>
    %809 = vector.extract_strided_slice %805 {offsets = [0, 0], sizes = [8, 4], strides = [1, 1]} : vector<8x32xf32> to vector<8x4xf32>
    %810 = vector.extract_strided_slice %805 {offsets = [0, 4], sizes = [8, 4], strides = [1, 1]} : vector<8x32xf32> to vector<8x4xf32>
    %811 = vector.extract_strided_slice %806 {offsets = [0, 0], sizes = [8, 8], strides = [1, 1]} : vector<8x32xf32> to vector<8x8xf32>
    %cst_270 = arith.constant dense<0.000000e+00> : vector<8x8xf32>
    %812 = tpu.matmul %807, %809, %cst_270 {dimension_numbers = #tpu.dot_dimension_numbers<[1], [1], [0], [0], [0, 0, 1, 0], [], []>} : vector<8x4xf32>, vector<8x4xf32>, vector<8x8xf32> -> vector<8x8xf32>
    %cst_271 = arith.constant 5.000000e-01 : f32
    %813 = vector.broadcast %cst_271 : f32 to vector<8x8xf32>
    %814 = arith.mulf %812, %813 : vector<8x8xf32>
    %cst_272 = arith.constant dense<0.000000e+00> : vector<8x8xf32>
    %815 = tpu.matmul %808, %810, %cst_272 {dimension_numbers = #tpu.dot_dimension_numbers<[1], [1], [0], [0], [0, 0, 1, 0], [], []>} : vector<8x4xf32>, vector<8x4xf32>, vector<8x8xf32> -> vector<8x8xf32>
    %cst_273 = arith.constant 5.000000e-01 : f32
    %816 = vector.broadcast %cst_273 : f32 to vector<8x8xf32>
    %817 = arith.mulf %815, %816 : vector<8x8xf32>
    %cst_274 = arith.constant dense<0xFF800000> : vector<8xf32>
    %818 = vector.multi_reduction <maximumf>, %814, %cst_274 [1] : vector<8x8xf32> to vector<8xf32>
    %819 = vector.shape_cast %818 : vector<8xf32> to vector<8x1xf32>
    %820 = vector.broadcast %819 : vector<8x1xf32> to vector<8x8xf32>
    %821 = arith.subf %814, %820 : vector<8x8xf32>
    %822 = math.exp %821 : vector<8x8xf32>
    %cst_275 = arith.constant dense<0.000000e+00> : vector<8xf32>
    %823 = vector.multi_reduction <add>, %822, %cst_275 [1] : vector<8x8xf32> to vector<8xf32>
    %824 = vector.shape_cast %823 : vector<8xf32> to vector<8x1xf32>
    %825 = tpu.reciprocal %824 {approx = true} : vector<8x1xf32> -> vector<8x1xf32>
    %826 = vector.broadcast %825 : vector<8x1xf32> to vector<8x8xf32>
    %827 = arith.mulf %822, %826 : vector<8x8xf32>
    %cst_276 = arith.constant dense<0xFF800000> : vector<8xf32>
    %828 = vector.multi_reduction <maximumf>, %817, %cst_276 [1] : vector<8x8xf32> to vector<8xf32>
    %829 = vector.shape_cast %828 : vector<8xf32> to vector<8x1xf32>
    %830 = vector.broadcast %829 : vector<8x1xf32> to vector<8x8xf32>
    %831 = arith.subf %817, %830 : vector<8x8xf32>
    %832 = math.exp %831 : vector<8x8xf32>
    %cst_277 = arith.constant dense<0.000000e+00> : vector<8xf32>
    %833 = vector.multi_reduction <add>, %832, %cst_277 [1] : vector<8x8xf32> to vector<8xf32>
    %834 = vector.shape_cast %833 : vector<8xf32> to vector<8x1xf32>
    %835 = tpu.reciprocal %834 {approx = true} : vector<8x1xf32> -> vector<8x1xf32>
    %836 = vector.broadcast %835 : vector<8x1xf32> to vector<8x8xf32>
    %837 = arith.mulf %832, %836 : vector<8x8xf32>
    %838 = vector.broadcast %565 : f32 to vector<8x8xf32>
    %839 = arith.mulf %838, %837 : vector<8x8xf32>
    %840 = arith.subf %827, %839 : vector<8x8xf32>
    %cst_278 = arith.constant dense<0.000000e+00> : vector<8x8xf32>
    %841 = tpu.matmul %840, %811, %cst_278 {dimension_numbers = #tpu.dot_dimension_numbers<[1], [0], [0], [1], [0, 0, 1, 1], [], []>} : vector<8x8xf32>, vector<8x8xf32>, vector<8x8xf32> -> vector<8x8xf32>
    %842 = arith.mulf %841, %841 : vector<8x8xf32>
    %cst_279 = arith.constant dense<0.000000e+00> : vector<8xf32>
    %843 = vector.multi_reduction <add>, %842, %cst_279 [1] : vector<8x8xf32> to vector<8xf32>
    %844 = vector.shape_cast %843 : vector<8xf32> to vector<8x1xf32>
    %cst_280 = arith.constant 8.000000e+00 : f32
    %845 = vector.broadcast %cst_280 : f32 to vector<8x1xf32>
    %846 = arith.divf %844, %845 : vector<8x1xf32>
    %cst_281 = arith.constant 9.99999974E-6 : f32
    %847 = vector.broadcast %cst_281 : f32 to vector<8x1xf32>
    %848 = arith.addf %846, %847 : vector<8x1xf32>
    %849 = math.rsqrt %848 : vector<8x1xf32>
    %850 = vector.broadcast %849 : vector<8x1xf32> to vector<8x8xf32>
    %851 = arith.mulf %841, %850 : vector<8x8xf32>
    %cst_282 = arith.constant 1.000000e+00 : f32
    %852 = arith.subf %cst_282, %566 : f32
    %853 = vector.broadcast %852 : f32 to vector<8x8xf32>
    %854 = arith.mulf %851, %853 : vector<8x8xf32>
    %c8_283 = arith.constant 8 : index
    %c0_284 = arith.constant 0 : index
    %855 = vector.load %arg18[%c8_283, %c0_284] : memref<16x32xf32, #tpu.memory_space<vmem>>, vector<8x8xf32>
    tpu.vector_store %arg18[%c8_283, %c0_284], %854 {strides = array<i32>} : memref<16x32xf32, #tpu.memory_space<vmem>>, vector<8x8xf32>,
    %856 = vector.extract_strided_slice %804 {offsets = [0, 8], sizes = [8, 4], strides = [1, 1]} : vector<8x32xf32> to vector<8x4xf32>
    %857 = vector.extract_strided_slice %804 {offsets = [0, 12], sizes = [8, 4], strides = [1, 1]} : vector<8x32xf32> to vector<8x4xf32>
    %858 = vector.extract_strided_slice %805 {offsets = [0, 8], sizes = [8, 4], strides = [1, 1]} : vector<8x32xf32> to vector<8x4xf32>
    %859 = vector.extract_strided_slice %805 {offsets = [0, 12], sizes = [8, 4], strides = [1, 1]} : vector<8x32xf32> to vector<8x4xf32>
    %860 = vector.extract_strided_slice %806 {offsets = [0, 8], sizes = [8, 8], strides = [1, 1]} : vector<8x32xf32> to vector<8x8xf32>
    %cst_285 = arith.constant dense<0.000000e+00> : vector<8x8xf32>
    %861 = tpu.matmul %856, %858, %cst_285 {dimension_numbers = #tpu.dot_dimension_numbers<[1], [1], [0], [0], [0, 0, 1, 0], [], []>} : vector<8x4xf32>, vector<8x4xf32>, vector<8x8xf32> -> vector<8x8xf32>
    %cst_286 = arith.constant 5.000000e-01 : f32
    %862 = vector.broadcast %cst_286 : f32 to vector<8x8xf32>
    %863 = arith.mulf %861, %862 : vector<8x8xf32>
    %cst_287 = arith.constant dense<0.000000e+00> : vector<8x8xf32>
    %864 = tpu.matmul %857, %859, %cst_287 {dimension_numbers = #tpu.dot_dimension_numbers<[1], [1], [0], [0], [0, 0, 1, 0], [], []>} : vector<8x4xf32>, vector<8x4xf32>, vector<8x8xf32> -> vector<8x8xf32>
    %cst_288 = arith.constant 5.000000e-01 : f32
    %865 = vector.broadcast %cst_288 : f32 to vector<8x8xf32>
    %866 = arith.mulf %864, %865 : vector<8x8xf32>
    %cst_289 = arith.constant dense<0xFF800000> : vector<8xf32>
    %867 = vector.multi_reduction <maximumf>, %863, %cst_289 [1] : vector<8x8xf32> to vector<8xf32>
    %868 = vector.shape_cast %867 : vector<8xf32> to vector<8x1xf32>
    %869 = vector.broadcast %868 : vector<8x1xf32> to vector<8x8xf32>
    %870 = arith.subf %863, %869 : vector<8x8xf32>
    %871 = math.exp %870 : vector<8x8xf32>
    %cst_290 = arith.constant dense<0.000000e+00> : vector<8xf32>
    %872 = vector.multi_reduction <add>, %871, %cst_290 [1] : vector<8x8xf32> to vector<8xf32>
    %873 = vector.shape_cast %872 : vector<8xf32> to vector<8x1xf32>
    %874 = tpu.reciprocal %873 {approx = true} : vector<8x1xf32> -> vector<8x1xf32>
    %875 = vector.broadcast %874 : vector<8x1xf32> to vector<8x8xf32>
    %876 = arith.mulf %871, %875 : vector<8x8xf32>
    %cst_291 = arith.constant dense<0xFF800000> : vector<8xf32>
    %877 = vector.multi_reduction <maximumf>, %866, %cst_291 [1] : vector<8x8xf32> to vector<8xf32>
    %878 = vector.shape_cast %877 : vector<8xf32> to vector<8x1xf32>
    %879 = vector.broadcast %878 : vector<8x1xf32> to vector<8x8xf32>
    %880 = arith.subf %866, %879 : vector<8x8xf32>
    %881 = math.exp %880 : vector<8x8xf32>
    %cst_292 = arith.constant dense<0.000000e+00> : vector<8xf32>
    %882 = vector.multi_reduction <add>, %881, %cst_292 [1] : vector<8x8xf32> to vector<8xf32>
    %883 = vector.shape_cast %882 : vector<8xf32> to vector<8x1xf32>
    %884 = tpu.reciprocal %883 {approx = true} : vector<8x1xf32> -> vector<8x1xf32>
    %885 = vector.broadcast %884 : vector<8x1xf32> to vector<8x8xf32>
    %886 = arith.mulf %881, %885 : vector<8x8xf32>
    %887 = vector.broadcast %565 : f32 to vector<8x8xf32>
    %888 = arith.mulf %887, %886 : vector<8x8xf32>
    %889 = arith.subf %876, %888 : vector<8x8xf32>
    %cst_293 = arith.constant dense<0.000000e+00> : vector<8x8xf32>
    %890 = tpu.matmul %889, %860, %cst_293 {dimension_numbers = #tpu.dot_dimension_numbers<[1], [0], [0], [1], [0, 0, 1, 1], [], []>} : vector<8x8xf32>, vector<8x8xf32>, vector<8x8xf32> -> vector<8x8xf32>
    %891 = arith.mulf %890, %890 : vector<8x8xf32>
    %cst_294 = arith.constant dense<0.000000e+00> : vector<8xf32>
    %892 = vector.multi_reduction <add>, %891, %cst_294 [1] : vector<8x8xf32> to vector<8xf32>
    %893 = vector.shape_cast %892 : vector<8xf32> to vector<8x1xf32>
    %cst_295 = arith.constant 8.000000e+00 : f32
    %894 = vector.broadcast %cst_295 : f32 to vector<8x1xf32>
    %895 = arith.divf %893, %894 : vector<8x1xf32>
    %cst_296 = arith.constant 9.99999974E-6 : f32
    %896 = vector.broadcast %cst_296 : f32 to vector<8x1xf32>
    %897 = arith.addf %895, %896 : vector<8x1xf32>
    %898 = math.rsqrt %897 : vector<8x1xf32>
    %899 = vector.broadcast %898 : vector<8x1xf32> to vector<8x8xf32>
    %900 = arith.mulf %890, %899 : vector<8x8xf32>
    %cst_297 = arith.constant 1.000000e+00 : f32
    %901 = arith.subf %cst_297, %566 : f32
    %902 = vector.broadcast %901 : f32 to vector<8x8xf32>
    %903 = arith.mulf %900, %902 : vector<8x8xf32>
    %c8_298 = arith.constant 8 : index
    %c8_299 = arith.constant 8 : index
    %904 = vector.load %arg18[%c8_298, %c8_299] : memref<16x32xf32, #tpu.memory_space<vmem>>, vector<8x8xf32>
    tpu.vector_store %arg18[%c8_298, %c8_299], %903 {strides = array<i32>} : memref<16x32xf32, #tpu.memory_space<vmem>>, vector<8x8xf32>,
    %905 = vector.extract_strided_slice %804 {offsets = [0, 16], sizes = [8, 4], strides = [1, 1]} : vector<8x32xf32> to vector<8x4xf32>
    %906 = vector.extract_strided_slice %804 {offsets = [0, 20], sizes = [8, 4], strides = [1, 1]} : vector<8x32xf32> to vector<8x4xf32>
    %907 = vector.extract_strided_slice %805 {offsets = [0, 16], sizes = [8, 4], strides = [1, 1]} : vector<8x32xf32> to vector<8x4xf32>
    %908 = vector.extract_strided_slice %805 {offsets = [0, 20], sizes = [8, 4], strides = [1, 1]} : vector<8x32xf32> to vector<8x4xf32>
    %909 = vector.extract_strided_slice %806 {offsets = [0, 16], sizes = [8, 8], strides = [1, 1]} : vector<8x32xf32> to vector<8x8xf32>
    %cst_300 = arith.constant dense<0.000000e+00> : vector<8x8xf32>
    %910 = tpu.matmul %905, %907, %cst_300 {dimension_numbers = #tpu.dot_dimension_numbers<[1], [1], [0], [0], [0, 0, 1, 0], [], []>} : vector<8x4xf32>, vector<8x4xf32>, vector<8x8xf32> -> vector<8x8xf32>
    %cst_301 = arith.constant 5.000000e-01 : f32
    %911 = vector.broadcast %cst_301 : f32 to vector<8x8xf32>
    %912 = arith.mulf %910, %911 : vector<8x8xf32>
    %cst_302 = arith.constant dense<0.000000e+00> : vector<8x8xf32>
    %913 = tpu.matmul %906, %908, %cst_302 {dimension_numbers = #tpu.dot_dimension_numbers<[1], [1], [0], [0], [0, 0, 1, 0], [], []>} : vector<8x4xf32>, vector<8x4xf32>, vector<8x8xf32> -> vector<8x8xf32>
    %cst_303 = arith.constant 5.000000e-01 : f32
    %914 = vector.broadcast %cst_303 : f32 to vector<8x8xf32>
    %915 = arith.mulf %913, %914 : vector<8x8xf32>
    %cst_304 = arith.constant dense<0xFF800000> : vector<8xf32>
    %916 = vector.multi_reduction <maximumf>, %912, %cst_304 [1] : vector<8x8xf32> to vector<8xf32>
    %917 = vector.shape_cast %916 : vector<8xf32> to vector<8x1xf32>
    %918 = vector.broadcast %917 : vector<8x1xf32> to vector<8x8xf32>
    %919 = arith.subf %912, %918 : vector<8x8xf32>
    %920 = math.exp %919 : vector<8x8xf32>
    %cst_305 = arith.constant dense<0.000000e+00> : vector<8xf32>
    %921 = vector.multi_reduction <add>, %920, %cst_305 [1] : vector<8x8xf32> to vector<8xf32>
    %922 = vector.shape_cast %921 : vector<8xf32> to vector<8x1xf32>
    %923 = tpu.reciprocal %922 {approx = true} : vector<8x1xf32> -> vector<8x1xf32>
    %924 = vector.broadcast %923 : vector<8x1xf32> to vector<8x8xf32>
    %925 = arith.mulf %920, %924 : vector<8x8xf32>
    %cst_306 = arith.constant dense<0xFF800000> : vector<8xf32>
    %926 = vector.multi_reduction <maximumf>, %915, %cst_306 [1] : vector<8x8xf32> to vector<8xf32>
    %927 = vector.shape_cast %926 : vector<8xf32> to vector<8x1xf32>
    %928 = vector.broadcast %927 : vector<8x1xf32> to vector<8x8xf32>
    %929 = arith.subf %915, %928 : vector<8x8xf32>
    %930 = math.exp %929 : vector<8x8xf32>
    %cst_307 = arith.constant dense<0.000000e+00> : vector<8xf32>
    %931 = vector.multi_reduction <add>, %930, %cst_307 [1] : vector<8x8xf32> to vector<8xf32>
    %932 = vector.shape_cast %931 : vector<8xf32> to vector<8x1xf32>
    %933 = tpu.reciprocal %932 {approx = true} : vector<8x1xf32> -> vector<8x1xf32>
    %934 = vector.broadcast %933 : vector<8x1xf32> to vector<8x8xf32>
    %935 = arith.mulf %930, %934 : vector<8x8xf32>
    %936 = vector.broadcast %565 : f32 to vector<8x8xf32>
    %937 = arith.mulf %936, %935 : vector<8x8xf32>
    %938 = arith.subf %925, %937 : vector<8x8xf32>
    %cst_308 = arith.constant dense<0.000000e+00> : vector<8x8xf32>
    %939 = tpu.matmul %938, %909, %cst_308 {dimension_numbers = #tpu.dot_dimension_numbers<[1], [0], [0], [1], [0, 0, 1, 1], [], []>} : vector<8x8xf32>, vector<8x8xf32>, vector<8x8xf32> -> vector<8x8xf32>
    %940 = arith.mulf %939, %939 : vector<8x8xf32>
    %cst_309 = arith.constant dense<0.000000e+00> : vector<8xf32>
    %941 = vector.multi_reduction <add>, %940, %cst_309 [1] : vector<8x8xf32> to vector<8xf32>
    %942 = vector.shape_cast %941 : vector<8xf32> to vector<8x1xf32>
    %cst_310 = arith.constant 8.000000e+00 : f32
    %943 = vector.broadcast %cst_310 : f32 to vector<8x1xf32>
    %944 = arith.divf %942, %943 : vector<8x1xf32>
    %cst_311 = arith.constant 9.99999974E-6 : f32
    %945 = vector.broadcast %cst_311 : f32 to vector<8x1xf32>
    %946 = arith.addf %944, %945 : vector<8x1xf32>
    %947 = math.rsqrt %946 : vector<8x1xf32>
    %948 = vector.broadcast %947 : vector<8x1xf32> to vector<8x8xf32>
    %949 = arith.mulf %939, %948 : vector<8x8xf32>
    %cst_312 = arith.constant 1.000000e+00 : f32
    %950 = arith.subf %cst_312, %566 : f32
    %951 = vector.broadcast %950 : f32 to vector<8x8xf32>
    %952 = arith.mulf %949, %951 : vector<8x8xf32>
    %c8_313 = arith.constant 8 : index
    %c16_314 = arith.constant 16 : index
    %953 = vector.load %arg18[%c8_313, %c16_314] : memref<16x32xf32, #tpu.memory_space<vmem>>, vector<8x8xf32>
    tpu.vector_store %arg18[%c8_313, %c16_314], %952 {strides = array<i32>} : memref<16x32xf32, #tpu.memory_space<vmem>>, vector<8x8xf32>,
    %954 = vector.extract_strided_slice %804 {offsets = [0, 24], sizes = [8, 4], strides = [1, 1]} : vector<8x32xf32> to vector<8x4xf32>
    %955 = vector.extract_strided_slice %804 {offsets = [0, 28], sizes = [8, 4], strides = [1, 1]} : vector<8x32xf32> to vector<8x4xf32>
    %956 = vector.extract_strided_slice %805 {offsets = [0, 24], sizes = [8, 4], strides = [1, 1]} : vector<8x32xf32> to vector<8x4xf32>
    %957 = vector.extract_strided_slice %805 {offsets = [0, 28], sizes = [8, 4], strides = [1, 1]} : vector<8x32xf32> to vector<8x4xf32>
    %958 = vector.extract_strided_slice %806 {offsets = [0, 24], sizes = [8, 8], strides = [1, 1]} : vector<8x32xf32> to vector<8x8xf32>
    %cst_315 = arith.constant dense<0.000000e+00> : vector<8x8xf32>
    %959 = tpu.matmul %954, %956, %cst_315 {dimension_numbers = #tpu.dot_dimension_numbers<[1], [1], [0], [0], [0, 0, 1, 0], [], []>} : vector<8x4xf32>, vector<8x4xf32>, vector<8x8xf32> -> vector<8x8xf32>
    %cst_316 = arith.constant 5.000000e-01 : f32
    %960 = vector.broadcast %cst_316 : f32 to vector<8x8xf32>
    %961 = arith.mulf %959, %960 : vector<8x8xf32>
    %cst_317 = arith.constant dense<0.000000e+00> : vector<8x8xf32>
    %962 = tpu.matmul %955, %957, %cst_317 {dimension_numbers = #tpu.dot_dimension_numbers<[1], [1], [0], [0], [0, 0, 1, 0], [], []>} : vector<8x4xf32>, vector<8x4xf32>, vector<8x8xf32> -> vector<8x8xf32>
    %cst_318 = arith.constant 5.000000e-01 : f32
    %963 = vector.broadcast %cst_318 : f32 to vector<8x8xf32>
    %964 = arith.mulf %962, %963 : vector<8x8xf32>
    %cst_319 = arith.constant dense<0xFF800000> : vector<8xf32>
    %965 = vector.multi_reduction <maximumf>, %961, %cst_319 [1] : vector<8x8xf32> to vector<8xf32>
    %966 = vector.shape_cast %965 : vector<8xf32> to vector<8x1xf32>
    %967 = vector.broadcast %966 : vector<8x1xf32> to vector<8x8xf32>
    %968 = arith.subf %961, %967 : vector<8x8xf32>
    %969 = math.exp %968 : vector<8x8xf32>
    %cst_320 = arith.constant dense<0.000000e+00> : vector<8xf32>
    %970 = vector.multi_reduction <add>, %969, %cst_320 [1] : vector<8x8xf32> to vector<8xf32>
    %971 = vector.shape_cast %970 : vector<8xf32> to vector<8x1xf32>
    %972 = tpu.reciprocal %971 {approx = true} : vector<8x1xf32> -> vector<8x1xf32>
    %973 = vector.broadcast %972 : vector<8x1xf32> to vector<8x8xf32>
    %974 = arith.mulf %969, %973 : vector<8x8xf32>
    %cst_321 = arith.constant dense<0xFF800000> : vector<8xf32>
    %975 = vector.multi_reduction <maximumf>, %964, %cst_321 [1] : vector<8x8xf32> to vector<8xf32>
    %976 = vector.shape_cast %975 : vector<8xf32> to vector<8x1xf32>
    %977 = vector.broadcast %976 : vector<8x1xf32> to vector<8x8xf32>
    %978 = arith.subf %964, %977 : vector<8x8xf32>
    %979 = math.exp %978 : vector<8x8xf32>
    %cst_322 = arith.constant dense<0.000000e+00> : vector<8xf32>
    %980 = vector.multi_reduction <add>, %979, %cst_322 [1] : vector<8x8xf32> to vector<8xf32>
    %981 = vector.shape_cast %980 : vector<8xf32> to vector<8x1xf32>
    %982 = tpu.reciprocal %981 {approx = true} : vector<8x1xf32> -> vector<8x1xf32>
    %983 = vector.broadcast %982 : vector<8x1xf32> to vector<8x8xf32>
    %984 = arith.mulf %979, %983 : vector<8x8xf32>
    %985 = vector.broadcast %565 : f32 to vector<8x8xf32>
    %986 = arith.mulf %985, %984 : vector<8x8xf32>
    %987 = arith.subf %974, %986 : vector<8x8xf32>
    %cst_323 = arith.constant dense<0.000000e+00> : vector<8x8xf32>
    %988 = tpu.matmul %987, %958, %cst_323 {dimension_numbers = #tpu.dot_dimension_numbers<[1], [0], [0], [1], [0, 0, 1, 1], [], []>} : vector<8x8xf32>, vector<8x8xf32>, vector<8x8xf32> -> vector<8x8xf32>
    %989 = arith.mulf %988, %988 : vector<8x8xf32>
    %cst_324 = arith.constant dense<0.000000e+00> : vector<8xf32>
    %990 = vector.multi_reduction <add>, %989, %cst_324 [1] : vector<8x8xf32> to vector<8xf32>
    %991 = vector.shape_cast %990 : vector<8xf32> to vector<8x1xf32>
    %cst_325 = arith.constant 8.000000e+00 : f32
    %992 = vector.broadcast %cst_325 : f32 to vector<8x1xf32>
    %993 = arith.divf %991, %992 : vector<8x1xf32>
    %cst_326 = arith.constant 9.99999974E-6 : f32
    %994 = vector.broadcast %cst_326 : f32 to vector<8x1xf32>
    %995 = arith.addf %993, %994 : vector<8x1xf32>
    %996 = math.rsqrt %995 : vector<8x1xf32>
    %997 = vector.broadcast %996 : vector<8x1xf32> to vector<8x8xf32>
    %998 = arith.mulf %988, %997 : vector<8x8xf32>
    %cst_327 = arith.constant 1.000000e+00 : f32
    %999 = arith.subf %cst_327, %566 : f32
    %1000 = vector.broadcast %999 : f32 to vector<8x8xf32>
    %1001 = arith.mulf %998, %1000 : vector<8x8xf32>
    %c8_328 = arith.constant 8 : index
    %c24_329 = arith.constant 24 : index
    %1002 = vector.load %arg18[%c8_328, %c24_329] : memref<16x32xf32, #tpu.memory_space<vmem>>, vector<8x8xf32>
    tpu.vector_store %arg18[%c8_328, %c24_329], %1001 {strides = array<i32>} : memref<16x32xf32, #tpu.memory_space<vmem>>, vector<8x8xf32>,
    %c0_330 = arith.constant 0 : index
    %c0_331 = arith.constant 0 : index
    %1003 = vector.load %arg18[%c0_330, %c0_331] : memref<16x32xf32, #tpu.memory_space<vmem>>, vector<16x32xf32>
    %c1_332 = arith.constant 1 : index
    %c0_333 = arith.constant 0 : index
    %c0_334 = arith.constant 0 : index
    %1004 = vector.load %arg7[%c1_332, %c0_333, %c0_334] : memref<3x32x32xf32, #tpu.memory_space<vmem>>, vector<1x32x32xf32>
    %1005 = vector.shape_cast %1004 : vector<1x32x32xf32> to vector<32x32xf32>
    %cst_335 = arith.constant dense<0.000000e+00> : vector<16x32xf32>
    %1006 = tpu.matmul %1003, %1005, %cst_335 {dimension_numbers = #tpu.dot_dimension_numbers<[1], [0], [0], [1], [0, 0, 1, 1], [], []>} : vector<16x32xf32>, vector<32x32xf32>, vector<16x32xf32> -> vector<16x32xf32>
    %c1_336 = arith.constant 1 : index
    %c0_337 = arith.constant 0 : index
    %c0_338 = arith.constant 0 : index
    %1007 = vector.load %arg8[%c1_336, %c0_337, %c0_338] : memref<3x1x32xf32, #tpu.memory_space<vmem>>, vector<1x1x32xf32>
    %1008 = vector.shape_cast %1007 : vector<1x1x32xf32> to vector<1x32xf32>
    %1009 = vector.broadcast %1008 : vector<1x32xf32> to vector<16x32xf32>
    %1010 = arith.addf %1006, %1009 : vector<16x32xf32>
    %1011 = arith.addf %564, %1010 : vector<16x32xf32>
    %c1_339 = arith.constant 1 : index
    %c0_340 = arith.constant 0 : index
    %c0_341 = arith.constant 0 : index
    %1012 = vector.load %arg9[%c1_339, %c0_340, %c0_341] : memref<3x2x32xf32, #tpu.memory_space<vmem>>, vector<1x2x32xf32>
    %1013 = vector.shape_cast %1012 : vector<1x2x32xf32> to vector<2x32xf32>
    %1014 = vector.extract_strided_slice %1013 {offsets = [0, 0], sizes = [1, 32], strides = [1, 1]} : vector<2x32xf32> to vector<1x32xf32>
    %1015 = vector.extract_strided_slice %1013 {offsets = [1, 0], sizes = [1, 32], strides = [1, 1]} : vector<2x32xf32> to vector<1x32xf32>
    %cst_342 = arith.constant dense<0.000000e+00> : vector<16xf32>
    %1016 = vector.multi_reduction <add>, %1011, %cst_342 [1] : vector<16x32xf32> to vector<16xf32>
    %1017 = vector.shape_cast %1016 : vector<16xf32> to vector<16x1xf32>
    %cst_343 = arith.constant 3.200000e+01 : f32
    %1018 = vector.broadcast %cst_343 : f32 to vector<16x1xf32>
    %1019 = arith.divf %1017, %1018 : vector<16x1xf32>
    %1020 = vector.broadcast %1019 : vector<16x1xf32> to vector<16x32xf32>
    %1021 = arith.subf %1011, %1020 : vector<16x32xf32>
    %1022 = vector.broadcast %1019 : vector<16x1xf32> to vector<16x32xf32>
    %1023 = arith.subf %1011, %1022 : vector<16x32xf32>
    %1024 = arith.mulf %1021, %1023 : vector<16x32xf32>
    %cst_344 = arith.constant dense<0.000000e+00> : vector<16xf32>
    %1025 = vector.multi_reduction <add>, %1024, %cst_344 [1] : vector<16x32xf32> to vector<16xf32>
    %1026 = vector.shape_cast %1025 : vector<16xf32> to vector<16x1xf32>
    %cst_345 = arith.constant 3.200000e+01 : f32
    %1027 = vector.broadcast %cst_345 : f32 to vector<16x1xf32>
    %1028 = arith.divf %1026, %1027 : vector<16x1xf32>
    %1029 = vector.broadcast %1019 : vector<16x1xf32> to vector<16x32xf32>
    %1030 = arith.subf %1011, %1029 : vector<16x32xf32>
    %cst_346 = arith.constant 9.99999974E-6 : f32
    %1031 = vector.broadcast %cst_346 : f32 to vector<16x1xf32>
    %1032 = arith.addf %1028, %1031 : vector<16x1xf32>
    %1033 = math.rsqrt %1032 : vector<16x1xf32>
    %1034 = vector.broadcast %1033 : vector<16x1xf32> to vector<16x32xf32>
    %1035 = arith.mulf %1030, %1034 : vector<16x32xf32>
    %1036 = vector.broadcast %1014 : vector<1x32xf32> to vector<16x32xf32>
    %1037 = arith.mulf %1035, %1036 : vector<16x32xf32>
    %1038 = vector.broadcast %1015 : vector<1x32xf32> to vector<16x32xf32>
    %1039 = arith.addf %1037, %1038 : vector<16x32xf32>
    %c1_347 = arith.constant 1 : index
    %c0_348 = arith.constant 0 : index
    %c0_349 = arith.constant 0 : index
    %1040 = vector.load %arg10[%c1_347, %c0_348, %c0_349] : memref<3x32x128xf32, #tpu.memory_space<vmem>>, vector<1x32x128xf32>
    %1041 = vector.shape_cast %1040 : vector<1x32x128xf32> to vector<32x128xf32>
    %cst_350 = arith.constant dense<0.000000e+00> : vector<16x128xf32>
    %1042 = tpu.matmul %1039, %1041, %cst_350 {dimension_numbers = #tpu.dot_dimension_numbers<[1], [0], [0], [1], [0, 0, 1, 1], [], []>} : vector<16x32xf32>, vector<32x128xf32>, vector<16x128xf32> -> vector<16x128xf32>
    %c1_351 = arith.constant 1 : index
    %c0_352 = arith.constant 0 : index
    %c0_353 = arith.constant 0 : index
    %1043 = vector.load %arg11[%c1_351, %c0_352, %c0_353] : memref<3x1x128xf32, #tpu.memory_space<vmem>>, vector<1x1x128xf32>
    %1044 = vector.shape_cast %1043 : vector<1x1x128xf32> to vector<1x128xf32>
    %1045 = vector.broadcast %1044 : vector<1x128xf32> to vector<16x128xf32>
    %1046 = arith.addf %1042, %1045 : vector<16x128xf32>
    %cst_354 = arith.constant 0.707106769 : f32
    %1047 = vector.broadcast %cst_354 : f32 to vector<16x128xf32>
    %1048 = arith.mulf %1046, %1047 : vector<16x128xf32>
    %1049 = math.absf %1048 : vector<16x128xf32>
    %cst_355 = arith.constant 0.327591091 : f32
    %1050 = vector.broadcast %cst_355 : f32 to vector<16x128xf32>
    %1051 = arith.mulf %1050, %1049 : vector<16x128xf32>
    %cst_356 = arith.constant 1.000000e+00 : f32
    %1052 = vector.broadcast %cst_356 : f32 to vector<16x128xf32>
    %1053 = arith.addf %1052, %1051 : vector<16x128xf32>
    %cst_357 = arith.constant 1.000000e+00 : f32
    %1054 = vector.broadcast %cst_357 : f32 to vector<16x128xf32>
    %1055 = arith.divf %1054, %1053 : vector<16x128xf32>
    %cst_358 = arith.constant 1.06140542 : f32
    %1056 = vector.broadcast %cst_358 : f32 to vector<16x128xf32>
    %1057 = arith.mulf %1055, %1056 : vector<16x128xf32>
    %cst_359 = arith.constant -1.45315206 : f32
    %1058 = vector.broadcast %cst_359 : f32 to vector<16x128xf32>
    %1059 = arith.addf %1058, %1057 : vector<16x128xf32>
    %1060 = arith.mulf %1055, %1059 : vector<16x128xf32>
    %cst_360 = arith.constant 1.42141378 : f32
    %1061 = vector.broadcast %cst_360 : f32 to vector<16x128xf32>
    %1062 = arith.addf %1061, %1060 : vector<16x128xf32>
    %1063 = arith.mulf %1055, %1062 : vector<16x128xf32>
    %cst_361 = arith.constant -0.284496725 : f32
    %1064 = vector.broadcast %cst_361 : f32 to vector<16x128xf32>
    %1065 = arith.addf %1064, %1063 : vector<16x128xf32>
    %1066 = arith.mulf %1055, %1065 : vector<16x128xf32>
    %cst_362 = arith.constant 0.254829586 : f32
    %1067 = vector.broadcast %cst_362 : f32 to vector<16x128xf32>
    %1068 = arith.addf %1067, %1066 : vector<16x128xf32>
    %1069 = arith.mulf %1055, %1068 : vector<16x128xf32>
    %cst_363 = arith.constant 0.000000e+00 : f32
    %1070 = vector.broadcast %cst_363 : f32 to vector<16x128xf32>
    %1071 = arith.subf %1070, %1049 : vector<16x128xf32>
    %1072 = arith.mulf %1071, %1049 : vector<16x128xf32>
    %1073 = math.exp %1072 : vector<16x128xf32>
    %1074 = arith.mulf %1069, %1073 : vector<16x128xf32>
    %cst_364 = arith.constant 1.000000e+00 : f32
    %1075 = vector.broadcast %cst_364 : f32 to vector<16x128xf32>
    %1076 = arith.subf %1075, %1074 : vector<16x128xf32>
    %cst_365 = arith.constant 0.000000e+00 : f32
    %1077 = vector.broadcast %cst_365 : f32 to vector<16x128xf32>
    %1078 = arith.cmpf oge, %1048, %1077 : vector<16x128xf32>
    %cst_366 = arith.constant 0.000000e+00 : f32
    %1079 = vector.broadcast %cst_366 : f32 to vector<16x128xf32>
    %1080 = arith.subf %1079, %1076 : vector<16x128xf32>
    %1081 = arith.select %1078, %1076, %1080 : vector<16x128xi1>, vector<16x128xf32>
    %cst_367 = arith.constant 5.000000e-01 : f32
    %1082 = vector.broadcast %cst_367 : f32 to vector<16x128xf32>
    %1083 = arith.mulf %1082, %1046 : vector<16x128xf32>
    %cst_368 = arith.constant 1.000000e+00 : f32
    %1084 = vector.broadcast %cst_368 : f32 to vector<16x128xf32>
    %1085 = arith.addf %1084, %1081 : vector<16x128xf32>
    %1086 = arith.mulf %1083, %1085 : vector<16x128xf32>
    %c1_369 = arith.constant 1 : index
    %c0_370 = arith.constant 0 : index
    %c0_371 = arith.constant 0 : index
    %1087 = vector.load %arg12[%c1_369, %c0_370, %c0_371] : memref<3x128x32xf32, #tpu.memory_space<vmem>>, vector<1x128x32xf32>
    %1088 = vector.shape_cast %1087 : vector<1x128x32xf32> to vector<128x32xf32>
    %cst_372 = arith.constant dense<0.000000e+00> : vector<16x32xf32>
    %1089 = tpu.matmul %1086, %1088, %cst_372 {dimension_numbers = #tpu.dot_dimension_numbers<[1], [0], [0], [1], [0, 0, 1, 1], [], []>} : vector<16x128xf32>, vector<128x32xf32>, vector<16x32xf32> -> vector<16x32xf32>
    %c1_373 = arith.constant 1 : index
    %c0_374 = arith.constant 0 : index
    %c0_375 = arith.constant 0 : index
    %1090 = vector.load %arg13[%c1_373, %c0_374, %c0_375] : memref<3x1x32xf32, #tpu.memory_space<vmem>>, vector<1x1x32xf32>
    %1091 = vector.shape_cast %1090 : vector<1x1x32xf32> to vector<1x32xf32>
    %1092 = vector.broadcast %1091 : vector<1x32xf32> to vector<16x32xf32>
    %1093 = arith.addf %1089, %1092 : vector<16x32xf32>
    %1094 = arith.addf %1011, %1093 : vector<16x32xf32>
    %c2 = arith.constant 2 : index
    %c0_376 = arith.constant 0 : index
    %1095 = memref.load %arg0[%c2, %c0_376] : memref<3x2xf32, #tpu.memory_space<smem>>
    %c2_377 = arith.constant 2 : index
    %c1_378 = arith.constant 1 : index
    %1096 = memref.load %arg0[%c2_377, %c1_378] : memref<3x2xf32, #tpu.memory_space<smem>>
    %c2_379 = arith.constant 2 : index
    %c0_380 = arith.constant 0 : index
    %c0_381 = arith.constant 0 : index
    %1097 = vector.load %arg4[%c2_379, %c0_380, %c0_381] : memref<3x2x32xf32, #tpu.memory_space<vmem>>, vector<1x2x32xf32>
    %1098 = vector.shape_cast %1097 : vector<1x2x32xf32> to vector<2x32xf32>
    %1099 = vector.extract_strided_slice %1098 {offsets = [0, 0], sizes = [1, 32], strides = [1, 1]} : vector<2x32xf32> to vector<1x32xf32>
    %1100 = vector.extract_strided_slice %1098 {offsets = [1, 0], sizes = [1, 32], strides = [1, 1]} : vector<2x32xf32> to vector<1x32xf32>
    %cst_382 = arith.constant dense<0.000000e+00> : vector<16xf32>
    %1101 = vector.multi_reduction <add>, %1094, %cst_382 [1] : vector<16x32xf32> to vector<16xf32>
    %1102 = vector.shape_cast %1101 : vector<16xf32> to vector<16x1xf32>
    %cst_383 = arith.constant 3.200000e+01 : f32
    %1103 = vector.broadcast %cst_383 : f32 to vector<16x1xf32>
    %1104 = arith.divf %1102, %1103 : vector<16x1xf32>
    %1105 = vector.broadcast %1104 : vector<16x1xf32> to vector<16x32xf32>
    %1106 = arith.subf %1094, %1105 : vector<16x32xf32>
    %1107 = vector.broadcast %1104 : vector<16x1xf32> to vector<16x32xf32>
    %1108 = arith.subf %1094, %1107 : vector<16x32xf32>
    %1109 = arith.mulf %1106, %1108 : vector<16x32xf32>
    %cst_384 = arith.constant dense<0.000000e+00> : vector<16xf32>
    %1110 = vector.multi_reduction <add>, %1109, %cst_384 [1] : vector<16x32xf32> to vector<16xf32>
    %1111 = vector.shape_cast %1110 : vector<16xf32> to vector<16x1xf32>
    %cst_385 = arith.constant 3.200000e+01 : f32
    %1112 = vector.broadcast %cst_385 : f32 to vector<16x1xf32>
    %1113 = arith.divf %1111, %1112 : vector<16x1xf32>
    %1114 = vector.broadcast %1104 : vector<16x1xf32> to vector<16x32xf32>
    %1115 = arith.subf %1094, %1114 : vector<16x32xf32>
    %cst_386 = arith.constant 9.99999974E-6 : f32
    %1116 = vector.broadcast %cst_386 : f32 to vector<16x1xf32>
    %1117 = arith.addf %1113, %1116 : vector<16x1xf32>
    %1118 = math.rsqrt %1117 : vector<16x1xf32>
    %1119 = vector.broadcast %1118 : vector<16x1xf32> to vector<16x32xf32>
    %1120 = arith.mulf %1115, %1119 : vector<16x32xf32>
    %1121 = vector.broadcast %1099 : vector<1x32xf32> to vector<16x32xf32>
    %1122 = arith.mulf %1120, %1121 : vector<16x32xf32>
    %1123 = vector.broadcast %1100 : vector<1x32xf32> to vector<16x32xf32>
    %1124 = arith.addf %1122, %1123 : vector<16x32xf32>
    %c2_387 = arith.constant 2 : index
    %c0_388 = arith.constant 0 : index
    %c0_389 = arith.constant 0 : index
    %1125 = vector.load %arg5[%c2_387, %c0_388, %c0_389] : memref<3x32x96xf32, #tpu.memory_space<vmem>>, vector<1x32x96xf32>
    %1126 = vector.shape_cast %1125 : vector<1x32x96xf32> to vector<32x96xf32>
    %cst_390 = arith.constant dense<0.000000e+00> : vector<16x96xf32>
    %1127 = tpu.matmul %1124, %1126, %cst_390 {dimension_numbers = #tpu.dot_dimension_numbers<[1], [0], [0], [1], [0, 0, 1, 1], [], []>} : vector<16x32xf32>, vector<32x96xf32>, vector<16x96xf32> -> vector<16x96xf32>
    %c2_391 = arith.constant 2 : index
    %c0_392 = arith.constant 0 : index
    %c0_393 = arith.constant 0 : index
    %1128 = vector.load %arg6[%c2_391, %c0_392, %c0_393] : memref<3x1x96xf32, #tpu.memory_space<vmem>>, vector<1x1x96xf32>
    %1129 = vector.shape_cast %1128 : vector<1x1x96xf32> to vector<1x96xf32>
    %1130 = vector.broadcast %1129 : vector<1x96xf32> to vector<16x96xf32>
    %1131 = arith.addf %1127, %1130 : vector<16x96xf32>
    %1132 = vector.extract_strided_slice %1131 {offsets = [0, 0], sizes = [16, 32], strides = [1, 1]} : vector<16x96xf32> to vector<16x32xf32>
    %1133 = vector.extract_strided_slice %1131 {offsets = [0, 32], sizes = [16, 32], strides = [1, 1]} : vector<16x96xf32> to vector<16x32xf32>
    %1134 = vector.extract_strided_slice %1131 {offsets = [0, 64], sizes = [16, 32], strides = [1, 1]} : vector<16x96xf32> to vector<16x32xf32>
    %1135 = vector.extract_strided_slice %1132 {offsets = [0, 0], sizes = [8, 32], strides = [1, 1]} : vector<16x32xf32> to vector<8x32xf32>
    %1136 = vector.extract_strided_slice %1133 {offsets = [0, 0], sizes = [8, 32], strides = [1, 1]} : vector<16x32xf32> to vector<8x32xf32>
    %1137 = vector.extract_strided_slice %1134 {offsets = [0, 0], sizes = [8, 32], strides = [1, 1]} : vector<16x32xf32> to vector<8x32xf32>
    %1138 = vector.extract_strided_slice %1135 {offsets = [0, 0], sizes = [8, 4], strides = [1, 1]} : vector<8x32xf32> to vector<8x4xf32>
    %1139 = vector.extract_strided_slice %1135 {offsets = [0, 4], sizes = [8, 4], strides = [1, 1]} : vector<8x32xf32> to vector<8x4xf32>
    %1140 = vector.extract_strided_slice %1136 {offsets = [0, 0], sizes = [8, 4], strides = [1, 1]} : vector<8x32xf32> to vector<8x4xf32>
    %1141 = vector.extract_strided_slice %1136 {offsets = [0, 4], sizes = [8, 4], strides = [1, 1]} : vector<8x32xf32> to vector<8x4xf32>
    %1142 = vector.extract_strided_slice %1137 {offsets = [0, 0], sizes = [8, 8], strides = [1, 1]} : vector<8x32xf32> to vector<8x8xf32>
    %cst_394 = arith.constant dense<0.000000e+00> : vector<8x8xf32>
    %1143 = tpu.matmul %1138, %1140, %cst_394 {dimension_numbers = #tpu.dot_dimension_numbers<[1], [1], [0], [0], [0, 0, 1, 0], [], []>} : vector<8x4xf32>, vector<8x4xf32>, vector<8x8xf32> -> vector<8x8xf32>
    %cst_395 = arith.constant 5.000000e-01 : f32
    %1144 = vector.broadcast %cst_395 : f32 to vector<8x8xf32>
    %1145 = arith.mulf %1143, %1144 : vector<8x8xf32>
    %cst_396 = arith.constant dense<0.000000e+00> : vector<8x8xf32>
    %1146 = tpu.matmul %1139, %1141, %cst_396 {dimension_numbers = #tpu.dot_dimension_numbers<[1], [1], [0], [0], [0, 0, 1, 0], [], []>} : vector<8x4xf32>, vector<8x4xf32>, vector<8x8xf32> -> vector<8x8xf32>
    %cst_397 = arith.constant 5.000000e-01 : f32
    %1147 = vector.broadcast %cst_397 : f32 to vector<8x8xf32>
    %1148 = arith.mulf %1146, %1147 : vector<8x8xf32>
    %cst_398 = arith.constant dense<0xFF800000> : vector<8xf32>
    %1149 = vector.multi_reduction <maximumf>, %1145, %cst_398 [1] : vector<8x8xf32> to vector<8xf32>
    %1150 = vector.shape_cast %1149 : vector<8xf32> to vector<8x1xf32>
    %1151 = vector.broadcast %1150 : vector<8x1xf32> to vector<8x8xf32>
    %1152 = arith.subf %1145, %1151 : vector<8x8xf32>
    %1153 = math.exp %1152 : vector<8x8xf32>
    %cst_399 = arith.constant dense<0.000000e+00> : vector<8xf32>
    %1154 = vector.multi_reduction <add>, %1153, %cst_399 [1] : vector<8x8xf32> to vector<8xf32>
    %1155 = vector.shape_cast %1154 : vector<8xf32> to vector<8x1xf32>
    %1156 = tpu.reciprocal %1155 {approx = true} : vector<8x1xf32> -> vector<8x1xf32>
    %1157 = vector.broadcast %1156 : vector<8x1xf32> to vector<8x8xf32>
    %1158 = arith.mulf %1153, %1157 : vector<8x8xf32>
    %cst_400 = arith.constant dense<0xFF800000> : vector<8xf32>
    %1159 = vector.multi_reduction <maximumf>, %1148, %cst_400 [1] : vector<8x8xf32> to vector<8xf32>
    %1160 = vector.shape_cast %1159 : vector<8xf32> to vector<8x1xf32>
    %1161 = vector.broadcast %1160 : vector<8x1xf32> to vector<8x8xf32>
    %1162 = arith.subf %1148, %1161 : vector<8x8xf32>
    %1163 = math.exp %1162 : vector<8x8xf32>
    %cst_401 = arith.constant dense<0.000000e+00> : vector<8xf32>
    %1164 = vector.multi_reduction <add>, %1163, %cst_401 [1] : vector<8x8xf32> to vector<8xf32>
    %1165 = vector.shape_cast %1164 : vector<8xf32> to vector<8x1xf32>
    %1166 = tpu.reciprocal %1165 {approx = true} : vector<8x1xf32> -> vector<8x1xf32>
    %1167 = vector.broadcast %1166 : vector<8x1xf32> to vector<8x8xf32>
    %1168 = arith.mulf %1163, %1167 : vector<8x8xf32>
    %1169 = vector.broadcast %1095 : f32 to vector<8x8xf32>
    %1170 = arith.mulf %1169, %1168 : vector<8x8xf32>
    %1171 = arith.subf %1158, %1170 : vector<8x8xf32>
    %cst_402 = arith.constant dense<0.000000e+00> : vector<8x8xf32>
    %1172 = tpu.matmul %1171, %1142, %cst_402 {dimension_numbers = #tpu.dot_dimension_numbers<[1], [0], [0], [1], [0, 0, 1, 1], [], []>} : vector<8x8xf32>, vector<8x8xf32>, vector<8x8xf32> -> vector<8x8xf32>
    %1173 = arith.mulf %1172, %1172 : vector<8x8xf32>
    %cst_403 = arith.constant dense<0.000000e+00> : vector<8xf32>
    %1174 = vector.multi_reduction <add>, %1173, %cst_403 [1] : vector<8x8xf32> to vector<8xf32>
    %1175 = vector.shape_cast %1174 : vector<8xf32> to vector<8x1xf32>
    %cst_404 = arith.constant 8.000000e+00 : f32
    %1176 = vector.broadcast %cst_404 : f32 to vector<8x1xf32>
    %1177 = arith.divf %1175, %1176 : vector<8x1xf32>
    %cst_405 = arith.constant 9.99999974E-6 : f32
    %1178 = vector.broadcast %cst_405 : f32 to vector<8x1xf32>
    %1179 = arith.addf %1177, %1178 : vector<8x1xf32>
    %1180 = math.rsqrt %1179 : vector<8x1xf32>
    %1181 = vector.broadcast %1180 : vector<8x1xf32> to vector<8x8xf32>
    %1182 = arith.mulf %1172, %1181 : vector<8x8xf32>
    %cst_406 = arith.constant 1.000000e+00 : f32
    %1183 = arith.subf %cst_406, %1096 : f32
    %1184 = vector.broadcast %1183 : f32 to vector<8x8xf32>
    %1185 = arith.mulf %1182, %1184 : vector<8x8xf32>
    %c0_407 = arith.constant 0 : index
    %c0_408 = arith.constant 0 : index
    %1186 = vector.load %arg18[%c0_407, %c0_408] : memref<16x32xf32, #tpu.memory_space<vmem>>, vector<8x8xf32>
    tpu.vector_store %arg18[%c0_407, %c0_408], %1185 {strides = array<i32>} : memref<16x32xf32, #tpu.memory_space<vmem>>, vector<8x8xf32>,
    %1187 = vector.extract_strided_slice %1135 {offsets = [0, 8], sizes = [8, 4], strides = [1, 1]} : vector<8x32xf32> to vector<8x4xf32>
    %1188 = vector.extract_strided_slice %1135 {offsets = [0, 12], sizes = [8, 4], strides = [1, 1]} : vector<8x32xf32> to vector<8x4xf32>
    %1189 = vector.extract_strided_slice %1136 {offsets = [0, 8], sizes = [8, 4], strides = [1, 1]} : vector<8x32xf32> to vector<8x4xf32>
    %1190 = vector.extract_strided_slice %1136 {offsets = [0, 12], sizes = [8, 4], strides = [1, 1]} : vector<8x32xf32> to vector<8x4xf32>
    %1191 = vector.extract_strided_slice %1137 {offsets = [0, 8], sizes = [8, 8], strides = [1, 1]} : vector<8x32xf32> to vector<8x8xf32>
    %cst_409 = arith.constant dense<0.000000e+00> : vector<8x8xf32>
    %1192 = tpu.matmul %1187, %1189, %cst_409 {dimension_numbers = #tpu.dot_dimension_numbers<[1], [1], [0], [0], [0, 0, 1, 0], [], []>} : vector<8x4xf32>, vector<8x4xf32>, vector<8x8xf32> -> vector<8x8xf32>
    %cst_410 = arith.constant 5.000000e-01 : f32
    %1193 = vector.broadcast %cst_410 : f32 to vector<8x8xf32>
    %1194 = arith.mulf %1192, %1193 : vector<8x8xf32>
    %cst_411 = arith.constant dense<0.000000e+00> : vector<8x8xf32>
    %1195 = tpu.matmul %1188, %1190, %cst_411 {dimension_numbers = #tpu.dot_dimension_numbers<[1], [1], [0], [0], [0, 0, 1, 0], [], []>} : vector<8x4xf32>, vector<8x4xf32>, vector<8x8xf32> -> vector<8x8xf32>
    %cst_412 = arith.constant 5.000000e-01 : f32
    %1196 = vector.broadcast %cst_412 : f32 to vector<8x8xf32>
    %1197 = arith.mulf %1195, %1196 : vector<8x8xf32>
    %cst_413 = arith.constant dense<0xFF800000> : vector<8xf32>
    %1198 = vector.multi_reduction <maximumf>, %1194, %cst_413 [1] : vector<8x8xf32> to vector<8xf32>
    %1199 = vector.shape_cast %1198 : vector<8xf32> to vector<8x1xf32>
    %1200 = vector.broadcast %1199 : vector<8x1xf32> to vector<8x8xf32>
    %1201 = arith.subf %1194, %1200 : vector<8x8xf32>
    %1202 = math.exp %1201 : vector<8x8xf32>
    %cst_414 = arith.constant dense<0.000000e+00> : vector<8xf32>
    %1203 = vector.multi_reduction <add>, %1202, %cst_414 [1] : vector<8x8xf32> to vector<8xf32>
    %1204 = vector.shape_cast %1203 : vector<8xf32> to vector<8x1xf32>
    %1205 = tpu.reciprocal %1204 {approx = true} : vector<8x1xf32> -> vector<8x1xf32>
    %1206 = vector.broadcast %1205 : vector<8x1xf32> to vector<8x8xf32>
    %1207 = arith.mulf %1202, %1206 : vector<8x8xf32>
    %cst_415 = arith.constant dense<0xFF800000> : vector<8xf32>
    %1208 = vector.multi_reduction <maximumf>, %1197, %cst_415 [1] : vector<8x8xf32> to vector<8xf32>
    %1209 = vector.shape_cast %1208 : vector<8xf32> to vector<8x1xf32>
    %1210 = vector.broadcast %1209 : vector<8x1xf32> to vector<8x8xf32>
    %1211 = arith.subf %1197, %1210 : vector<8x8xf32>
    %1212 = math.exp %1211 : vector<8x8xf32>
    %cst_416 = arith.constant dense<0.000000e+00> : vector<8xf32>
    %1213 = vector.multi_reduction <add>, %1212, %cst_416 [1] : vector<8x8xf32> to vector<8xf32>
    %1214 = vector.shape_cast %1213 : vector<8xf32> to vector<8x1xf32>
    %1215 = tpu.reciprocal %1214 {approx = true} : vector<8x1xf32> -> vector<8x1xf32>
    %1216 = vector.broadcast %1215 : vector<8x1xf32> to vector<8x8xf32>
    %1217 = arith.mulf %1212, %1216 : vector<8x8xf32>
    %1218 = vector.broadcast %1095 : f32 to vector<8x8xf32>
    %1219 = arith.mulf %1218, %1217 : vector<8x8xf32>
    %1220 = arith.subf %1207, %1219 : vector<8x8xf32>
    %cst_417 = arith.constant dense<0.000000e+00> : vector<8x8xf32>
    %1221 = tpu.matmul %1220, %1191, %cst_417 {dimension_numbers = #tpu.dot_dimension_numbers<[1], [0], [0], [1], [0, 0, 1, 1], [], []>} : vector<8x8xf32>, vector<8x8xf32>, vector<8x8xf32> -> vector<8x8xf32>
    %1222 = arith.mulf %1221, %1221 : vector<8x8xf32>
    %cst_418 = arith.constant dense<0.000000e+00> : vector<8xf32>
    %1223 = vector.multi_reduction <add>, %1222, %cst_418 [1] : vector<8x8xf32> to vector<8xf32>
    %1224 = vector.shape_cast %1223 : vector<8xf32> to vector<8x1xf32>
    %cst_419 = arith.constant 8.000000e+00 : f32
    %1225 = vector.broadcast %cst_419 : f32 to vector<8x1xf32>
    %1226 = arith.divf %1224, %1225 : vector<8x1xf32>
    %cst_420 = arith.constant 9.99999974E-6 : f32
    %1227 = vector.broadcast %cst_420 : f32 to vector<8x1xf32>
    %1228 = arith.addf %1226, %1227 : vector<8x1xf32>
    %1229 = math.rsqrt %1228 : vector<8x1xf32>
    %1230 = vector.broadcast %1229 : vector<8x1xf32> to vector<8x8xf32>
    %1231 = arith.mulf %1221, %1230 : vector<8x8xf32>
    %cst_421 = arith.constant 1.000000e+00 : f32
    %1232 = arith.subf %cst_421, %1096 : f32
    %1233 = vector.broadcast %1232 : f32 to vector<8x8xf32>
    %1234 = arith.mulf %1231, %1233 : vector<8x8xf32>
    %c0_422 = arith.constant 0 : index
    %c8_423 = arith.constant 8 : index
    %1235 = vector.load %arg18[%c0_422, %c8_423] : memref<16x32xf32, #tpu.memory_space<vmem>>, vector<8x8xf32>
    tpu.vector_store %arg18[%c0_422, %c8_423], %1234 {strides = array<i32>} : memref<16x32xf32, #tpu.memory_space<vmem>>, vector<8x8xf32>,
    %1236 = vector.extract_strided_slice %1135 {offsets = [0, 16], sizes = [8, 4], strides = [1, 1]} : vector<8x32xf32> to vector<8x4xf32>
    %1237 = vector.extract_strided_slice %1135 {offsets = [0, 20], sizes = [8, 4], strides = [1, 1]} : vector<8x32xf32> to vector<8x4xf32>
    %1238 = vector.extract_strided_slice %1136 {offsets = [0, 16], sizes = [8, 4], strides = [1, 1]} : vector<8x32xf32> to vector<8x4xf32>
    %1239 = vector.extract_strided_slice %1136 {offsets = [0, 20], sizes = [8, 4], strides = [1, 1]} : vector<8x32xf32> to vector<8x4xf32>
    %1240 = vector.extract_strided_slice %1137 {offsets = [0, 16], sizes = [8, 8], strides = [1, 1]} : vector<8x32xf32> to vector<8x8xf32>
    %cst_424 = arith.constant dense<0.000000e+00> : vector<8x8xf32>
    %1241 = tpu.matmul %1236, %1238, %cst_424 {dimension_numbers = #tpu.dot_dimension_numbers<[1], [1], [0], [0], [0, 0, 1, 0], [], []>} : vector<8x4xf32>, vector<8x4xf32>, vector<8x8xf32> -> vector<8x8xf32>
    %cst_425 = arith.constant 5.000000e-01 : f32
    %1242 = vector.broadcast %cst_425 : f32 to vector<8x8xf32>
    %1243 = arith.mulf %1241, %1242 : vector<8x8xf32>
    %cst_426 = arith.constant dense<0.000000e+00> : vector<8x8xf32>
    %1244 = tpu.matmul %1237, %1239, %cst_426 {dimension_numbers = #tpu.dot_dimension_numbers<[1], [1], [0], [0], [0, 0, 1, 0], [], []>} : vector<8x4xf32>, vector<8x4xf32>, vector<8x8xf32> -> vector<8x8xf32>
    %cst_427 = arith.constant 5.000000e-01 : f32
    %1245 = vector.broadcast %cst_427 : f32 to vector<8x8xf32>
    %1246 = arith.mulf %1244, %1245 : vector<8x8xf32>
    %cst_428 = arith.constant dense<0xFF800000> : vector<8xf32>
    %1247 = vector.multi_reduction <maximumf>, %1243, %cst_428 [1] : vector<8x8xf32> to vector<8xf32>
    %1248 = vector.shape_cast %1247 : vector<8xf32> to vector<8x1xf32>
    %1249 = vector.broadcast %1248 : vector<8x1xf32> to vector<8x8xf32>
    %1250 = arith.subf %1243, %1249 : vector<8x8xf32>
    %1251 = math.exp %1250 : vector<8x8xf32>
    %cst_429 = arith.constant dense<0.000000e+00> : vector<8xf32>
    %1252 = vector.multi_reduction <add>, %1251, %cst_429 [1] : vector<8x8xf32> to vector<8xf32>
    %1253 = vector.shape_cast %1252 : vector<8xf32> to vector<8x1xf32>
    %1254 = tpu.reciprocal %1253 {approx = true} : vector<8x1xf32> -> vector<8x1xf32>
    %1255 = vector.broadcast %1254 : vector<8x1xf32> to vector<8x8xf32>
    %1256 = arith.mulf %1251, %1255 : vector<8x8xf32>
    %cst_430 = arith.constant dense<0xFF800000> : vector<8xf32>
    %1257 = vector.multi_reduction <maximumf>, %1246, %cst_430 [1] : vector<8x8xf32> to vector<8xf32>
    %1258 = vector.shape_cast %1257 : vector<8xf32> to vector<8x1xf32>
    %1259 = vector.broadcast %1258 : vector<8x1xf32> to vector<8x8xf32>
    %1260 = arith.subf %1246, %1259 : vector<8x8xf32>
    %1261 = math.exp %1260 : vector<8x8xf32>
    %cst_431 = arith.constant dense<0.000000e+00> : vector<8xf32>
    %1262 = vector.multi_reduction <add>, %1261, %cst_431 [1] : vector<8x8xf32> to vector<8xf32>
    %1263 = vector.shape_cast %1262 : vector<8xf32> to vector<8x1xf32>
    %1264 = tpu.reciprocal %1263 {approx = true} : vector<8x1xf32> -> vector<8x1xf32>
    %1265 = vector.broadcast %1264 : vector<8x1xf32> to vector<8x8xf32>
    %1266 = arith.mulf %1261, %1265 : vector<8x8xf32>
    %1267 = vector.broadcast %1095 : f32 to vector<8x8xf32>
    %1268 = arith.mulf %1267, %1266 : vector<8x8xf32>
    %1269 = arith.subf %1256, %1268 : vector<8x8xf32>
    %cst_432 = arith.constant dense<0.000000e+00> : vector<8x8xf32>
    %1270 = tpu.matmul %1269, %1240, %cst_432 {dimension_numbers = #tpu.dot_dimension_numbers<[1], [0], [0], [1], [0, 0, 1, 1], [], []>} : vector<8x8xf32>, vector<8x8xf32>, vector<8x8xf32> -> vector<8x8xf32>
    %1271 = arith.mulf %1270, %1270 : vector<8x8xf32>
    %cst_433 = arith.constant dense<0.000000e+00> : vector<8xf32>
    %1272 = vector.multi_reduction <add>, %1271, %cst_433 [1] : vector<8x8xf32> to vector<8xf32>
    %1273 = vector.shape_cast %1272 : vector<8xf32> to vector<8x1xf32>
    %cst_434 = arith.constant 8.000000e+00 : f32
    %1274 = vector.broadcast %cst_434 : f32 to vector<8x1xf32>
    %1275 = arith.divf %1273, %1274 : vector<8x1xf32>
    %cst_435 = arith.constant 9.99999974E-6 : f32
    %1276 = vector.broadcast %cst_435 : f32 to vector<8x1xf32>
    %1277 = arith.addf %1275, %1276 : vector<8x1xf32>
    %1278 = math.rsqrt %1277 : vector<8x1xf32>
    %1279 = vector.broadcast %1278 : vector<8x1xf32> to vector<8x8xf32>
    %1280 = arith.mulf %1270, %1279 : vector<8x8xf32>
    %cst_436 = arith.constant 1.000000e+00 : f32
    %1281 = arith.subf %cst_436, %1096 : f32
    %1282 = vector.broadcast %1281 : f32 to vector<8x8xf32>
    %1283 = arith.mulf %1280, %1282 : vector<8x8xf32>
    %c0_437 = arith.constant 0 : index
    %c16_438 = arith.constant 16 : index
    %1284 = vector.load %arg18[%c0_437, %c16_438] : memref<16x32xf32, #tpu.memory_space<vmem>>, vector<8x8xf32>
    tpu.vector_store %arg18[%c0_437, %c16_438], %1283 {strides = array<i32>} : memref<16x32xf32, #tpu.memory_space<vmem>>, vector<8x8xf32>,
    %1285 = vector.extract_strided_slice %1135 {offsets = [0, 24], sizes = [8, 4], strides = [1, 1]} : vector<8x32xf32> to vector<8x4xf32>
    %1286 = vector.extract_strided_slice %1135 {offsets = [0, 28], sizes = [8, 4], strides = [1, 1]} : vector<8x32xf32> to vector<8x4xf32>
    %1287 = vector.extract_strided_slice %1136 {offsets = [0, 24], sizes = [8, 4], strides = [1, 1]} : vector<8x32xf32> to vector<8x4xf32>
    %1288 = vector.extract_strided_slice %1136 {offsets = [0, 28], sizes = [8, 4], strides = [1, 1]} : vector<8x32xf32> to vector<8x4xf32>
    %1289 = vector.extract_strided_slice %1137 {offsets = [0, 24], sizes = [8, 8], strides = [1, 1]} : vector<8x32xf32> to vector<8x8xf32>
    %cst_439 = arith.constant dense<0.000000e+00> : vector<8x8xf32>
    %1290 = tpu.matmul %1285, %1287, %cst_439 {dimension_numbers = #tpu.dot_dimension_numbers<[1], [1], [0], [0], [0, 0, 1, 0], [], []>} : vector<8x4xf32>, vector<8x4xf32>, vector<8x8xf32> -> vector<8x8xf32>
    %cst_440 = arith.constant 5.000000e-01 : f32
    %1291 = vector.broadcast %cst_440 : f32 to vector<8x8xf32>
    %1292 = arith.mulf %1290, %1291 : vector<8x8xf32>
    %cst_441 = arith.constant dense<0.000000e+00> : vector<8x8xf32>
    %1293 = tpu.matmul %1286, %1288, %cst_441 {dimension_numbers = #tpu.dot_dimension_numbers<[1], [1], [0], [0], [0, 0, 1, 0], [], []>} : vector<8x4xf32>, vector<8x4xf32>, vector<8x8xf32> -> vector<8x8xf32>
    %cst_442 = arith.constant 5.000000e-01 : f32
    %1294 = vector.broadcast %cst_442 : f32 to vector<8x8xf32>
    %1295 = arith.mulf %1293, %1294 : vector<8x8xf32>
    %cst_443 = arith.constant dense<0xFF800000> : vector<8xf32>
    %1296 = vector.multi_reduction <maximumf>, %1292, %cst_443 [1] : vector<8x8xf32> to vector<8xf32>
    %1297 = vector.shape_cast %1296 : vector<8xf32> to vector<8x1xf32>
    %1298 = vector.broadcast %1297 : vector<8x1xf32> to vector<8x8xf32>
    %1299 = arith.subf %1292, %1298 : vector<8x8xf32>
    %1300 = math.exp %1299 : vector<8x8xf32>
    %cst_444 = arith.constant dense<0.000000e+00> : vector<8xf32>
    %1301 = vector.multi_reduction <add>, %1300, %cst_444 [1] : vector<8x8xf32> to vector<8xf32>
    %1302 = vector.shape_cast %1301 : vector<8xf32> to vector<8x1xf32>
    %1303 = tpu.reciprocal %1302 {approx = true} : vector<8x1xf32> -> vector<8x1xf32>
    %1304 = vector.broadcast %1303 : vector<8x1xf32> to vector<8x8xf32>
    %1305 = arith.mulf %1300, %1304 : vector<8x8xf32>
    %cst_445 = arith.constant dense<0xFF800000> : vector<8xf32>
    %1306 = vector.multi_reduction <maximumf>, %1295, %cst_445 [1] : vector<8x8xf32> to vector<8xf32>
    %1307 = vector.shape_cast %1306 : vector<8xf32> to vector<8x1xf32>
    %1308 = vector.broadcast %1307 : vector<8x1xf32> to vector<8x8xf32>
    %1309 = arith.subf %1295, %1308 : vector<8x8xf32>
    %1310 = math.exp %1309 : vector<8x8xf32>
    %cst_446 = arith.constant dense<0.000000e+00> : vector<8xf32>
    %1311 = vector.multi_reduction <add>, %1310, %cst_446 [1] : vector<8x8xf32> to vector<8xf32>
    %1312 = vector.shape_cast %1311 : vector<8xf32> to vector<8x1xf32>
    %1313 = tpu.reciprocal %1312 {approx = true} : vector<8x1xf32> -> vector<8x1xf32>
    %1314 = vector.broadcast %1313 : vector<8x1xf32> to vector<8x8xf32>
    %1315 = arith.mulf %1310, %1314 : vector<8x8xf32>
    %1316 = vector.broadcast %1095 : f32 to vector<8x8xf32>
    %1317 = arith.mulf %1316, %1315 : vector<8x8xf32>
    %1318 = arith.subf %1305, %1317 : vector<8x8xf32>
    %cst_447 = arith.constant dense<0.000000e+00> : vector<8x8xf32>
    %1319 = tpu.matmul %1318, %1289, %cst_447 {dimension_numbers = #tpu.dot_dimension_numbers<[1], [0], [0], [1], [0, 0, 1, 1], [], []>} : vector<8x8xf32>, vector<8x8xf32>, vector<8x8xf32> -> vector<8x8xf32>
    %1320 = arith.mulf %1319, %1319 : vector<8x8xf32>
    %cst_448 = arith.constant dense<0.000000e+00> : vector<8xf32>
    %1321 = vector.multi_reduction <add>, %1320, %cst_448 [1] : vector<8x8xf32> to vector<8xf32>
    %1322 = vector.shape_cast %1321 : vector<8xf32> to vector<8x1xf32>
    %cst_449 = arith.constant 8.000000e+00 : f32
    %1323 = vector.broadcast %cst_449 : f32 to vector<8x1xf32>
    %1324 = arith.divf %1322, %1323 : vector<8x1xf32>
    %cst_450 = arith.constant 9.99999974E-6 : f32
    %1325 = vector.broadcast %cst_450 : f32 to vector<8x1xf32>
    %1326 = arith.addf %1324, %1325 : vector<8x1xf32>
    %1327 = math.rsqrt %1326 : vector<8x1xf32>
    %1328 = vector.broadcast %1327 : vector<8x1xf32> to vector<8x8xf32>
    %1329 = arith.mulf %1319, %1328 : vector<8x8xf32>
    %cst_451 = arith.constant 1.000000e+00 : f32
    %1330 = arith.subf %cst_451, %1096 : f32
    %1331 = vector.broadcast %1330 : f32 to vector<8x8xf32>
    %1332 = arith.mulf %1329, %1331 : vector<8x8xf32>
    %c0_452 = arith.constant 0 : index
    %c24_453 = arith.constant 24 : index
    %1333 = vector.load %arg18[%c0_452, %c24_453] : memref<16x32xf32, #tpu.memory_space<vmem>>, vector<8x8xf32>
    tpu.vector_store %arg18[%c0_452, %c24_453], %1332 {strides = array<i32>} : memref<16x32xf32, #tpu.memory_space<vmem>>, vector<8x8xf32>,
    %1334 = vector.extract_strided_slice %1132 {offsets = [8, 0], sizes = [8, 32], strides = [1, 1]} : vector<16x32xf32> to vector<8x32xf32>
    %1335 = vector.extract_strided_slice %1133 {offsets = [8, 0], sizes = [8, 32], strides = [1, 1]} : vector<16x32xf32> to vector<8x32xf32>
    %1336 = vector.extract_strided_slice %1134 {offsets = [8, 0], sizes = [8, 32], strides = [1, 1]} : vector<16x32xf32> to vector<8x32xf32>
    %1337 = vector.extract_strided_slice %1334 {offsets = [0, 0], sizes = [8, 4], strides = [1, 1]} : vector<8x32xf32> to vector<8x4xf32>
    %1338 = vector.extract_strided_slice %1334 {offsets = [0, 4], sizes = [8, 4], strides = [1, 1]} : vector<8x32xf32> to vector<8x4xf32>
    %1339 = vector.extract_strided_slice %1335 {offsets = [0, 0], sizes = [8, 4], strides = [1, 1]} : vector<8x32xf32> to vector<8x4xf32>
    %1340 = vector.extract_strided_slice %1335 {offsets = [0, 4], sizes = [8, 4], strides = [1, 1]} : vector<8x32xf32> to vector<8x4xf32>
    %1341 = vector.extract_strided_slice %1336 {offsets = [0, 0], sizes = [8, 8], strides = [1, 1]} : vector<8x32xf32> to vector<8x8xf32>
    %cst_454 = arith.constant dense<0.000000e+00> : vector<8x8xf32>
    %1342 = tpu.matmul %1337, %1339, %cst_454 {dimension_numbers = #tpu.dot_dimension_numbers<[1], [1], [0], [0], [0, 0, 1, 0], [], []>} : vector<8x4xf32>, vector<8x4xf32>, vector<8x8xf32> -> vector<8x8xf32>
    %cst_455 = arith.constant 5.000000e-01 : f32
    %1343 = vector.broadcast %cst_455 : f32 to vector<8x8xf32>
    %1344 = arith.mulf %1342, %1343 : vector<8x8xf32>
    %cst_456 = arith.constant dense<0.000000e+00> : vector<8x8xf32>
    %1345 = tpu.matmul %1338, %1340, %cst_456 {dimension_numbers = #tpu.dot_dimension_numbers<[1], [1], [0], [0], [0, 0, 1, 0], [], []>} : vector<8x4xf32>, vector<8x4xf32>, vector<8x8xf32> -> vector<8x8xf32>
    %cst_457 = arith.constant 5.000000e-01 : f32
    %1346 = vector.broadcast %cst_457 : f32 to vector<8x8xf32>
    %1347 = arith.mulf %1345, %1346 : vector<8x8xf32>
    %cst_458 = arith.constant dense<0xFF800000> : vector<8xf32>
    %1348 = vector.multi_reduction <maximumf>, %1344, %cst_458 [1] : vector<8x8xf32> to vector<8xf32>
    %1349 = vector.shape_cast %1348 : vector<8xf32> to vector<8x1xf32>
    %1350 = vector.broadcast %1349 : vector<8x1xf32> to vector<8x8xf32>
    %1351 = arith.subf %1344, %1350 : vector<8x8xf32>
    %1352 = math.exp %1351 : vector<8x8xf32>
    %cst_459 = arith.constant dense<0.000000e+00> : vector<8xf32>
    %1353 = vector.multi_reduction <add>, %1352, %cst_459 [1] : vector<8x8xf32> to vector<8xf32>
    %1354 = vector.shape_cast %1353 : vector<8xf32> to vector<8x1xf32>
    %1355 = tpu.reciprocal %1354 {approx = true} : vector<8x1xf32> -> vector<8x1xf32>
    %1356 = vector.broadcast %1355 : vector<8x1xf32> to vector<8x8xf32>
    %1357 = arith.mulf %1352, %1356 : vector<8x8xf32>
    %cst_460 = arith.constant dense<0xFF800000> : vector<8xf32>
    %1358 = vector.multi_reduction <maximumf>, %1347, %cst_460 [1] : vector<8x8xf32> to vector<8xf32>
    %1359 = vector.shape_cast %1358 : vector<8xf32> to vector<8x1xf32>
    %1360 = vector.broadcast %1359 : vector<8x1xf32> to vector<8x8xf32>
    %1361 = arith.subf %1347, %1360 : vector<8x8xf32>
    %1362 = math.exp %1361 : vector<8x8xf32>
    %cst_461 = arith.constant dense<0.000000e+00> : vector<8xf32>
    %1363 = vector.multi_reduction <add>, %1362, %cst_461 [1] : vector<8x8xf32> to vector<8xf32>
    %1364 = vector.shape_cast %1363 : vector<8xf32> to vector<8x1xf32>
    %1365 = tpu.reciprocal %1364 {approx = true} : vector<8x1xf32> -> vector<8x1xf32>
    %1366 = vector.broadcast %1365 : vector<8x1xf32> to vector<8x8xf32>
    %1367 = arith.mulf %1362, %1366 : vector<8x8xf32>
    %1368 = vector.broadcast %1095 : f32 to vector<8x8xf32>
    %1369 = arith.mulf %1368, %1367 : vector<8x8xf32>
    %1370 = arith.subf %1357, %1369 : vector<8x8xf32>
    %cst_462 = arith.constant dense<0.000000e+00> : vector<8x8xf32>
    %1371 = tpu.matmul %1370, %1341, %cst_462 {dimension_numbers = #tpu.dot_dimension_numbers<[1], [0], [0], [1], [0, 0, 1, 1], [], []>} : vector<8x8xf32>, vector<8x8xf32>, vector<8x8xf32> -> vector<8x8xf32>
    %1372 = arith.mulf %1371, %1371 : vector<8x8xf32>
    %cst_463 = arith.constant dense<0.000000e+00> : vector<8xf32>
    %1373 = vector.multi_reduction <add>, %1372, %cst_463 [1] : vector<8x8xf32> to vector<8xf32>
    %1374 = vector.shape_cast %1373 : vector<8xf32> to vector<8x1xf32>
    %cst_464 = arith.constant 8.000000e+00 : f32
    %1375 = vector.broadcast %cst_464 : f32 to vector<8x1xf32>
    %1376 = arith.divf %1374, %1375 : vector<8x1xf32>
    %cst_465 = arith.constant 9.99999974E-6 : f32
    %1377 = vector.broadcast %cst_465 : f32 to vector<8x1xf32>
    %1378 = arith.addf %1376, %1377 : vector<8x1xf32>
    %1379 = math.rsqrt %1378 : vector<8x1xf32>
    %1380 = vector.broadcast %1379 : vector<8x1xf32> to vector<8x8xf32>
    %1381 = arith.mulf %1371, %1380 : vector<8x8xf32>
    %cst_466 = arith.constant 1.000000e+00 : f32
    %1382 = arith.subf %cst_466, %1096 : f32
    %1383 = vector.broadcast %1382 : f32 to vector<8x8xf32>
    %1384 = arith.mulf %1381, %1383 : vector<8x8xf32>
    %c8_467 = arith.constant 8 : index
    %c0_468 = arith.constant 0 : index
    %1385 = vector.load %arg18[%c8_467, %c0_468] : memref<16x32xf32, #tpu.memory_space<vmem>>, vector<8x8xf32>
    tpu.vector_store %arg18[%c8_467, %c0_468], %1384 {strides = array<i32>} : memref<16x32xf32, #tpu.memory_space<vmem>>, vector<8x8xf32>,
    %1386 = vector.extract_strided_slice %1334 {offsets = [0, 8], sizes = [8, 4], strides = [1, 1]} : vector<8x32xf32> to vector<8x4xf32>
    %1387 = vector.extract_strided_slice %1334 {offsets = [0, 12], sizes = [8, 4], strides = [1, 1]} : vector<8x32xf32> to vector<8x4xf32>
    %1388 = vector.extract_strided_slice %1335 {offsets = [0, 8], sizes = [8, 4], strides = [1, 1]} : vector<8x32xf32> to vector<8x4xf32>
    %1389 = vector.extract_strided_slice %1335 {offsets = [0, 12], sizes = [8, 4], strides = [1, 1]} : vector<8x32xf32> to vector<8x4xf32>
    %1390 = vector.extract_strided_slice %1336 {offsets = [0, 8], sizes = [8, 8], strides = [1, 1]} : vector<8x32xf32> to vector<8x8xf32>
    %cst_469 = arith.constant dense<0.000000e+00> : vector<8x8xf32>
    %1391 = tpu.matmul %1386, %1388, %cst_469 {dimension_numbers = #tpu.dot_dimension_numbers<[1], [1], [0], [0], [0, 0, 1, 0], [], []>} : vector<8x4xf32>, vector<8x4xf32>, vector<8x8xf32> -> vector<8x8xf32>
    %cst_470 = arith.constant 5.000000e-01 : f32
    %1392 = vector.broadcast %cst_470 : f32 to vector<8x8xf32>
    %1393 = arith.mulf %1391, %1392 : vector<8x8xf32>
    %cst_471 = arith.constant dense<0.000000e+00> : vector<8x8xf32>
    %1394 = tpu.matmul %1387, %1389, %cst_471 {dimension_numbers = #tpu.dot_dimension_numbers<[1], [1], [0], [0], [0, 0, 1, 0], [], []>} : vector<8x4xf32>, vector<8x4xf32>, vector<8x8xf32> -> vector<8x8xf32>
    %cst_472 = arith.constant 5.000000e-01 : f32
    %1395 = vector.broadcast %cst_472 : f32 to vector<8x8xf32>
    %1396 = arith.mulf %1394, %1395 : vector<8x8xf32>
    %cst_473 = arith.constant dense<0xFF800000> : vector<8xf32>
    %1397 = vector.multi_reduction <maximumf>, %1393, %cst_473 [1] : vector<8x8xf32> to vector<8xf32>
    %1398 = vector.shape_cast %1397 : vector<8xf32> to vector<8x1xf32>
    %1399 = vector.broadcast %1398 : vector<8x1xf32> to vector<8x8xf32>
    %1400 = arith.subf %1393, %1399 : vector<8x8xf32>
    %1401 = math.exp %1400 : vector<8x8xf32>
    %cst_474 = arith.constant dense<0.000000e+00> : vector<8xf32>
    %1402 = vector.multi_reduction <add>, %1401, %cst_474 [1] : vector<8x8xf32> to vector<8xf32>
    %1403 = vector.shape_cast %1402 : vector<8xf32> to vector<8x1xf32>
    %1404 = tpu.reciprocal %1403 {approx = true} : vector<8x1xf32> -> vector<8x1xf32>
    %1405 = vector.broadcast %1404 : vector<8x1xf32> to vector<8x8xf32>
    %1406 = arith.mulf %1401, %1405 : vector<8x8xf32>
    %cst_475 = arith.constant dense<0xFF800000> : vector<8xf32>
    %1407 = vector.multi_reduction <maximumf>, %1396, %cst_475 [1] : vector<8x8xf32> to vector<8xf32>
    %1408 = vector.shape_cast %1407 : vector<8xf32> to vector<8x1xf32>
    %1409 = vector.broadcast %1408 : vector<8x1xf32> to vector<8x8xf32>
    %1410 = arith.subf %1396, %1409 : vector<8x8xf32>
    %1411 = math.exp %1410 : vector<8x8xf32>
    %cst_476 = arith.constant dense<0.000000e+00> : vector<8xf32>
    %1412 = vector.multi_reduction <add>, %1411, %cst_476 [1] : vector<8x8xf32> to vector<8xf32>
    %1413 = vector.shape_cast %1412 : vector<8xf32> to vector<8x1xf32>
    %1414 = tpu.reciprocal %1413 {approx = true} : vector<8x1xf32> -> vector<8x1xf32>
    %1415 = vector.broadcast %1414 : vector<8x1xf32> to vector<8x8xf32>
    %1416 = arith.mulf %1411, %1415 : vector<8x8xf32>
    %1417 = vector.broadcast %1095 : f32 to vector<8x8xf32>
    %1418 = arith.mulf %1417, %1416 : vector<8x8xf32>
    %1419 = arith.subf %1406, %1418 : vector<8x8xf32>
    %cst_477 = arith.constant dense<0.000000e+00> : vector<8x8xf32>
    %1420 = tpu.matmul %1419, %1390, %cst_477 {dimension_numbers = #tpu.dot_dimension_numbers<[1], [0], [0], [1], [0, 0, 1, 1], [], []>} : vector<8x8xf32>, vector<8x8xf32>, vector<8x8xf32> -> vector<8x8xf32>
    %1421 = arith.mulf %1420, %1420 : vector<8x8xf32>
    %cst_478 = arith.constant dense<0.000000e+00> : vector<8xf32>
    %1422 = vector.multi_reduction <add>, %1421, %cst_478 [1] : vector<8x8xf32> to vector<8xf32>
    %1423 = vector.shape_cast %1422 : vector<8xf32> to vector<8x1xf32>
    %cst_479 = arith.constant 8.000000e+00 : f32
    %1424 = vector.broadcast %cst_479 : f32 to vector<8x1xf32>
    %1425 = arith.divf %1423, %1424 : vector<8x1xf32>
    %cst_480 = arith.constant 9.99999974E-6 : f32
    %1426 = vector.broadcast %cst_480 : f32 to vector<8x1xf32>
    %1427 = arith.addf %1425, %1426 : vector<8x1xf32>
    %1428 = math.rsqrt %1427 : vector<8x1xf32>
    %1429 = vector.broadcast %1428 : vector<8x1xf32> to vector<8x8xf32>
    %1430 = arith.mulf %1420, %1429 : vector<8x8xf32>
    %cst_481 = arith.constant 1.000000e+00 : f32
    %1431 = arith.subf %cst_481, %1096 : f32
    %1432 = vector.broadcast %1431 : f32 to vector<8x8xf32>
    %1433 = arith.mulf %1430, %1432 : vector<8x8xf32>
    %c8_482 = arith.constant 8 : index
    %c8_483 = arith.constant 8 : index
    %1434 = vector.load %arg18[%c8_482, %c8_483] : memref<16x32xf32, #tpu.memory_space<vmem>>, vector<8x8xf32>
    tpu.vector_store %arg18[%c8_482, %c8_483], %1433 {strides = array<i32>} : memref<16x32xf32, #tpu.memory_space<vmem>>, vector<8x8xf32>,
    %1435 = vector.extract_strided_slice %1334 {offsets = [0, 16], sizes = [8, 4], strides = [1, 1]} : vector<8x32xf32> to vector<8x4xf32>
    %1436 = vector.extract_strided_slice %1334 {offsets = [0, 20], sizes = [8, 4], strides = [1, 1]} : vector<8x32xf32> to vector<8x4xf32>
    %1437 = vector.extract_strided_slice %1335 {offsets = [0, 16], sizes = [8, 4], strides = [1, 1]} : vector<8x32xf32> to vector<8x4xf32>
    %1438 = vector.extract_strided_slice %1335 {offsets = [0, 20], sizes = [8, 4], strides = [1, 1]} : vector<8x32xf32> to vector<8x4xf32>
    %1439 = vector.extract_strided_slice %1336 {offsets = [0, 16], sizes = [8, 8], strides = [1, 1]} : vector<8x32xf32> to vector<8x8xf32>
    %cst_484 = arith.constant dense<0.000000e+00> : vector<8x8xf32>
    %1440 = tpu.matmul %1435, %1437, %cst_484 {dimension_numbers = #tpu.dot_dimension_numbers<[1], [1], [0], [0], [0, 0, 1, 0], [], []>} : vector<8x4xf32>, vector<8x4xf32>, vector<8x8xf32> -> vector<8x8xf32>
    %cst_485 = arith.constant 5.000000e-01 : f32
    %1441 = vector.broadcast %cst_485 : f32 to vector<8x8xf32>
    %1442 = arith.mulf %1440, %1441 : vector<8x8xf32>
    %cst_486 = arith.constant dense<0.000000e+00> : vector<8x8xf32>
    %1443 = tpu.matmul %1436, %1438, %cst_486 {dimension_numbers = #tpu.dot_dimension_numbers<[1], [1], [0], [0], [0, 0, 1, 0], [], []>} : vector<8x4xf32>, vector<8x4xf32>, vector<8x8xf32> -> vector<8x8xf32>
    %cst_487 = arith.constant 5.000000e-01 : f32
    %1444 = vector.broadcast %cst_487 : f32 to vector<8x8xf32>
    %1445 = arith.mulf %1443, %1444 : vector<8x8xf32>
    %cst_488 = arith.constant dense<0xFF800000> : vector<8xf32>
    %1446 = vector.multi_reduction <maximumf>, %1442, %cst_488 [1] : vector<8x8xf32> to vector<8xf32>
    %1447 = vector.shape_cast %1446 : vector<8xf32> to vector<8x1xf32>
    %1448 = vector.broadcast %1447 : vector<8x1xf32> to vector<8x8xf32>
    %1449 = arith.subf %1442, %1448 : vector<8x8xf32>
    %1450 = math.exp %1449 : vector<8x8xf32>
    %cst_489 = arith.constant dense<0.000000e+00> : vector<8xf32>
    %1451 = vector.multi_reduction <add>, %1450, %cst_489 [1] : vector<8x8xf32> to vector<8xf32>
    %1452 = vector.shape_cast %1451 : vector<8xf32> to vector<8x1xf32>
    %1453 = tpu.reciprocal %1452 {approx = true} : vector<8x1xf32> -> vector<8x1xf32>
    %1454 = vector.broadcast %1453 : vector<8x1xf32> to vector<8x8xf32>
    %1455 = arith.mulf %1450, %1454 : vector<8x8xf32>
    %cst_490 = arith.constant dense<0xFF800000> : vector<8xf32>
    %1456 = vector.multi_reduction <maximumf>, %1445, %cst_490 [1] : vector<8x8xf32> to vector<8xf32>
    %1457 = vector.shape_cast %1456 : vector<8xf32> to vector<8x1xf32>
    %1458 = vector.broadcast %1457 : vector<8x1xf32> to vector<8x8xf32>
    %1459 = arith.subf %1445, %1458 : vector<8x8xf32>
    %1460 = math.exp %1459 : vector<8x8xf32>
    %cst_491 = arith.constant dense<0.000000e+00> : vector<8xf32>
    %1461 = vector.multi_reduction <add>, %1460, %cst_491 [1] : vector<8x8xf32> to vector<8xf32>
    %1462 = vector.shape_cast %1461 : vector<8xf32> to vector<8x1xf32>
    %1463 = tpu.reciprocal %1462 {approx = true} : vector<8x1xf32> -> vector<8x1xf32>
    %1464 = vector.broadcast %1463 : vector<8x1xf32> to vector<8x8xf32>
    %1465 = arith.mulf %1460, %1464 : vector<8x8xf32>
    %1466 = vector.broadcast %1095 : f32 to vector<8x8xf32>
    %1467 = arith.mulf %1466, %1465 : vector<8x8xf32>
    %1468 = arith.subf %1455, %1467 : vector<8x8xf32>
    %cst_492 = arith.constant dense<0.000000e+00> : vector<8x8xf32>
    %1469 = tpu.matmul %1468, %1439, %cst_492 {dimension_numbers = #tpu.dot_dimension_numbers<[1], [0], [0], [1], [0, 0, 1, 1], [], []>} : vector<8x8xf32>, vector<8x8xf32>, vector<8x8xf32> -> vector<8x8xf32>
    %1470 = arith.mulf %1469, %1469 : vector<8x8xf32>
    %cst_493 = arith.constant dense<0.000000e+00> : vector<8xf32>
    %1471 = vector.multi_reduction <add>, %1470, %cst_493 [1] : vector<8x8xf32> to vector<8xf32>
    %1472 = vector.shape_cast %1471 : vector<8xf32> to vector<8x1xf32>
    %cst_494 = arith.constant 8.000000e+00 : f32
    %1473 = vector.broadcast %cst_494 : f32 to vector<8x1xf32>
    %1474 = arith.divf %1472, %1473 : vector<8x1xf32>
    %cst_495 = arith.constant 9.99999974E-6 : f32
    %1475 = vector.broadcast %cst_495 : f32 to vector<8x1xf32>
    %1476 = arith.addf %1474, %1475 : vector<8x1xf32>
    %1477 = math.rsqrt %1476 : vector<8x1xf32>
    %1478 = vector.broadcast %1477 : vector<8x1xf32> to vector<8x8xf32>
    %1479 = arith.mulf %1469, %1478 : vector<8x8xf32>
    %cst_496 = arith.constant 1.000000e+00 : f32
    %1480 = arith.subf %cst_496, %1096 : f32
    %1481 = vector.broadcast %1480 : f32 to vector<8x8xf32>
    %1482 = arith.mulf %1479, %1481 : vector<8x8xf32>
    %c8_497 = arith.constant 8 : index
    %c16_498 = arith.constant 16 : index
    %1483 = vector.load %arg18[%c8_497, %c16_498] : memref<16x32xf32, #tpu.memory_space<vmem>>, vector<8x8xf32>
    tpu.vector_store %arg18[%c8_497, %c16_498], %1482 {strides = array<i32>} : memref<16x32xf32, #tpu.memory_space<vmem>>, vector<8x8xf32>,
    %1484 = vector.extract_strided_slice %1334 {offsets = [0, 24], sizes = [8, 4], strides = [1, 1]} : vector<8x32xf32> to vector<8x4xf32>
    %1485 = vector.extract_strided_slice %1334 {offsets = [0, 28], sizes = [8, 4], strides = [1, 1]} : vector<8x32xf32> to vector<8x4xf32>
    %1486 = vector.extract_strided_slice %1335 {offsets = [0, 24], sizes = [8, 4], strides = [1, 1]} : vector<8x32xf32> to vector<8x4xf32>
    %1487 = vector.extract_strided_slice %1335 {offsets = [0, 28], sizes = [8, 4], strides = [1, 1]} : vector<8x32xf32> to vector<8x4xf32>
    %1488 = vector.extract_strided_slice %1336 {offsets = [0, 24], sizes = [8, 8], strides = [1, 1]} : vector<8x32xf32> to vector<8x8xf32>
    %cst_499 = arith.constant dense<0.000000e+00> : vector<8x8xf32>
    %1489 = tpu.matmul %1484, %1486, %cst_499 {dimension_numbers = #tpu.dot_dimension_numbers<[1], [1], [0], [0], [0, 0, 1, 0], [], []>} : vector<8x4xf32>, vector<8x4xf32>, vector<8x8xf32> -> vector<8x8xf32>
    %cst_500 = arith.constant 5.000000e-01 : f32
    %1490 = vector.broadcast %cst_500 : f32 to vector<8x8xf32>
    %1491 = arith.mulf %1489, %1490 : vector<8x8xf32>
    %cst_501 = arith.constant dense<0.000000e+00> : vector<8x8xf32>
    %1492 = tpu.matmul %1485, %1487, %cst_501 {dimension_numbers = #tpu.dot_dimension_numbers<[1], [1], [0], [0], [0, 0, 1, 0], [], []>} : vector<8x4xf32>, vector<8x4xf32>, vector<8x8xf32> -> vector<8x8xf32>
    %cst_502 = arith.constant 5.000000e-01 : f32
    %1493 = vector.broadcast %cst_502 : f32 to vector<8x8xf32>
    %1494 = arith.mulf %1492, %1493 : vector<8x8xf32>
    %cst_503 = arith.constant dense<0xFF800000> : vector<8xf32>
    %1495 = vector.multi_reduction <maximumf>, %1491, %cst_503 [1] : vector<8x8xf32> to vector<8xf32>
    %1496 = vector.shape_cast %1495 : vector<8xf32> to vector<8x1xf32>
    %1497 = vector.broadcast %1496 : vector<8x1xf32> to vector<8x8xf32>
    %1498 = arith.subf %1491, %1497 : vector<8x8xf32>
    %1499 = math.exp %1498 : vector<8x8xf32>
    %cst_504 = arith.constant dense<0.000000e+00> : vector<8xf32>
    %1500 = vector.multi_reduction <add>, %1499, %cst_504 [1] : vector<8x8xf32> to vector<8xf32>
    %1501 = vector.shape_cast %1500 : vector<8xf32> to vector<8x1xf32>
    %1502 = tpu.reciprocal %1501 {approx = true} : vector<8x1xf32> -> vector<8x1xf32>
    %1503 = vector.broadcast %1502 : vector<8x1xf32> to vector<8x8xf32>
    %1504 = arith.mulf %1499, %1503 : vector<8x8xf32>
    %cst_505 = arith.constant dense<0xFF800000> : vector<8xf32>
    %1505 = vector.multi_reduction <maximumf>, %1494, %cst_505 [1] : vector<8x8xf32> to vector<8xf32>
    %1506 = vector.shape_cast %1505 : vector<8xf32> to vector<8x1xf32>
    %1507 = vector.broadcast %1506 : vector<8x1xf32> to vector<8x8xf32>
    %1508 = arith.subf %1494, %1507 : vector<8x8xf32>
    %1509 = math.exp %1508 : vector<8x8xf32>
    %cst_506 = arith.constant dense<0.000000e+00> : vector<8xf32>
    %1510 = vector.multi_reduction <add>, %1509, %cst_506 [1] : vector<8x8xf32> to vector<8xf32>
    %1511 = vector.shape_cast %1510 : vector<8xf32> to vector<8x1xf32>
    %1512 = tpu.reciprocal %1511 {approx = true} : vector<8x1xf32> -> vector<8x1xf32>
    %1513 = vector.broadcast %1512 : vector<8x1xf32> to vector<8x8xf32>
    %1514 = arith.mulf %1509, %1513 : vector<8x8xf32>
    %1515 = vector.broadcast %1095 : f32 to vector<8x8xf32>
    %1516 = arith.mulf %1515, %1514 : vector<8x8xf32>
    %1517 = arith.subf %1504, %1516 : vector<8x8xf32>
    %cst_507 = arith.constant dense<0.000000e+00> : vector<8x8xf32>
    %1518 = tpu.matmul %1517, %1488, %cst_507 {dimension_numbers = #tpu.dot_dimension_numbers<[1], [0], [0], [1], [0, 0, 1, 1], [], []>} : vector<8x8xf32>, vector<8x8xf32>, vector<8x8xf32> -> vector<8x8xf32>
    %1519 = arith.mulf %1518, %1518 : vector<8x8xf32>
    %cst_508 = arith.constant dense<0.000000e+00> : vector<8xf32>
    %1520 = vector.multi_reduction <add>, %1519, %cst_508 [1] : vector<8x8xf32> to vector<8xf32>
    %1521 = vector.shape_cast %1520 : vector<8xf32> to vector<8x1xf32>
    %cst_509 = arith.constant 8.000000e+00 : f32
    %1522 = vector.broadcast %cst_509 : f32 to vector<8x1xf32>
    %1523 = arith.divf %1521, %1522 : vector<8x1xf32>
    %cst_510 = arith.constant 9.99999974E-6 : f32
    %1524 = vector.broadcast %cst_510 : f32 to vector<8x1xf32>
    %1525 = arith.addf %1523, %1524 : vector<8x1xf32>
    %1526 = math.rsqrt %1525 : vector<8x1xf32>
    %1527 = vector.broadcast %1526 : vector<8x1xf32> to vector<8x8xf32>
    %1528 = arith.mulf %1518, %1527 : vector<8x8xf32>
    %cst_511 = arith.constant 1.000000e+00 : f32
    %1529 = arith.subf %cst_511, %1096 : f32
    %1530 = vector.broadcast %1529 : f32 to vector<8x8xf32>
    %1531 = arith.mulf %1528, %1530 : vector<8x8xf32>
    %c8_512 = arith.constant 8 : index
    %c24_513 = arith.constant 24 : index
    %1532 = vector.load %arg18[%c8_512, %c24_513] : memref<16x32xf32, #tpu.memory_space<vmem>>, vector<8x8xf32>
    tpu.vector_store %arg18[%c8_512, %c24_513], %1531 {strides = array<i32>} : memref<16x32xf32, #tpu.memory_space<vmem>>, vector<8x8xf32>,
    %c0_514 = arith.constant 0 : index
    %c0_515 = arith.constant 0 : index
    %1533 = vector.load %arg18[%c0_514, %c0_515] : memref<16x32xf32, #tpu.memory_space<vmem>>, vector<16x32xf32>
    %c2_516 = arith.constant 2 : index
    %c0_517 = arith.constant 0 : index
    %c0_518 = arith.constant 0 : index
    %1534 = vector.load %arg7[%c2_516, %c0_517, %c0_518] : memref<3x32x32xf32, #tpu.memory_space<vmem>>, vector<1x32x32xf32>
    %1535 = vector.shape_cast %1534 : vector<1x32x32xf32> to vector<32x32xf32>
    %cst_519 = arith.constant dense<0.000000e+00> : vector<16x32xf32>
    %1536 = tpu.matmul %1533, %1535, %cst_519 {dimension_numbers = #tpu.dot_dimension_numbers<[1], [0], [0], [1], [0, 0, 1, 1], [], []>} : vector<16x32xf32>, vector<32x32xf32>, vector<16x32xf32> -> vector<16x32xf32>
    %c2_520 = arith.constant 2 : index
    %c0_521 = arith.constant 0 : index
    %c0_522 = arith.constant 0 : index
    %1537 = vector.load %arg8[%c2_520, %c0_521, %c0_522] : memref<3x1x32xf32, #tpu.memory_space<vmem>>, vector<1x1x32xf32>
    %1538 = vector.shape_cast %1537 : vector<1x1x32xf32> to vector<1x32xf32>
    %1539 = vector.broadcast %1538 : vector<1x32xf32> to vector<16x32xf32>
    %1540 = arith.addf %1536, %1539 : vector<16x32xf32>
    %1541 = arith.addf %1094, %1540 : vector<16x32xf32>
    %c2_523 = arith.constant 2 : index
    %c0_524 = arith.constant 0 : index
    %c0_525 = arith.constant 0 : index
    %1542 = vector.load %arg9[%c2_523, %c0_524, %c0_525] : memref<3x2x32xf32, #tpu.memory_space<vmem>>, vector<1x2x32xf32>
    %1543 = vector.shape_cast %1542 : vector<1x2x32xf32> to vector<2x32xf32>
    %1544 = vector.extract_strided_slice %1543 {offsets = [0, 0], sizes = [1, 32], strides = [1, 1]} : vector<2x32xf32> to vector<1x32xf32>
    %1545 = vector.extract_strided_slice %1543 {offsets = [1, 0], sizes = [1, 32], strides = [1, 1]} : vector<2x32xf32> to vector<1x32xf32>
    %cst_526 = arith.constant dense<0.000000e+00> : vector<16xf32>
    %1546 = vector.multi_reduction <add>, %1541, %cst_526 [1] : vector<16x32xf32> to vector<16xf32>
    %1547 = vector.shape_cast %1546 : vector<16xf32> to vector<16x1xf32>
    %cst_527 = arith.constant 3.200000e+01 : f32
    %1548 = vector.broadcast %cst_527 : f32 to vector<16x1xf32>
    %1549 = arith.divf %1547, %1548 : vector<16x1xf32>
    %1550 = vector.broadcast %1549 : vector<16x1xf32> to vector<16x32xf32>
    %1551 = arith.subf %1541, %1550 : vector<16x32xf32>
    %1552 = vector.broadcast %1549 : vector<16x1xf32> to vector<16x32xf32>
    %1553 = arith.subf %1541, %1552 : vector<16x32xf32>
    %1554 = arith.mulf %1551, %1553 : vector<16x32xf32>
    %cst_528 = arith.constant dense<0.000000e+00> : vector<16xf32>
    %1555 = vector.multi_reduction <add>, %1554, %cst_528 [1] : vector<16x32xf32> to vector<16xf32>
    %1556 = vector.shape_cast %1555 : vector<16xf32> to vector<16x1xf32>
    %cst_529 = arith.constant 3.200000e+01 : f32
    %1557 = vector.broadcast %cst_529 : f32 to vector<16x1xf32>
    %1558 = arith.divf %1556, %1557 : vector<16x1xf32>
    %1559 = vector.broadcast %1549 : vector<16x1xf32> to vector<16x32xf32>
    %1560 = arith.subf %1541, %1559 : vector<16x32xf32>
    %cst_530 = arith.constant 9.99999974E-6 : f32
    %1561 = vector.broadcast %cst_530 : f32 to vector<16x1xf32>
    %1562 = arith.addf %1558, %1561 : vector<16x1xf32>
    %1563 = math.rsqrt %1562 : vector<16x1xf32>
    %1564 = vector.broadcast %1563 : vector<16x1xf32> to vector<16x32xf32>
    %1565 = arith.mulf %1560, %1564 : vector<16x32xf32>
    %1566 = vector.broadcast %1544 : vector<1x32xf32> to vector<16x32xf32>
    %1567 = arith.mulf %1565, %1566 : vector<16x32xf32>
    %1568 = vector.broadcast %1545 : vector<1x32xf32> to vector<16x32xf32>
    %1569 = arith.addf %1567, %1568 : vector<16x32xf32>
    %c2_531 = arith.constant 2 : index
    %c0_532 = arith.constant 0 : index
    %c0_533 = arith.constant 0 : index
    %1570 = vector.load %arg10[%c2_531, %c0_532, %c0_533] : memref<3x32x128xf32, #tpu.memory_space<vmem>>, vector<1x32x128xf32>
    %1571 = vector.shape_cast %1570 : vector<1x32x128xf32> to vector<32x128xf32>
    %cst_534 = arith.constant dense<0.000000e+00> : vector<16x128xf32>
    %1572 = tpu.matmul %1569, %1571, %cst_534 {dimension_numbers = #tpu.dot_dimension_numbers<[1], [0], [0], [1], [0, 0, 1, 1], [], []>} : vector<16x32xf32>, vector<32x128xf32>, vector<16x128xf32> -> vector<16x128xf32>
    %c2_535 = arith.constant 2 : index
    %c0_536 = arith.constant 0 : index
    %c0_537 = arith.constant 0 : index
    %1573 = vector.load %arg11[%c2_535, %c0_536, %c0_537] : memref<3x1x128xf32, #tpu.memory_space<vmem>>, vector<1x1x128xf32>
    %1574 = vector.shape_cast %1573 : vector<1x1x128xf32> to vector<1x128xf32>
    %1575 = vector.broadcast %1574 : vector<1x128xf32> to vector<16x128xf32>
    %1576 = arith.addf %1572, %1575 : vector<16x128xf32>
    %cst_538 = arith.constant 0.707106769 : f32
    %1577 = vector.broadcast %cst_538 : f32 to vector<16x128xf32>
    %1578 = arith.mulf %1576, %1577 : vector<16x128xf32>
    %1579 = math.absf %1578 : vector<16x128xf32>
    %cst_539 = arith.constant 0.327591091 : f32
    %1580 = vector.broadcast %cst_539 : f32 to vector<16x128xf32>
    %1581 = arith.mulf %1580, %1579 : vector<16x128xf32>
    %cst_540 = arith.constant 1.000000e+00 : f32
    %1582 = vector.broadcast %cst_540 : f32 to vector<16x128xf32>
    %1583 = arith.addf %1582, %1581 : vector<16x128xf32>
    %cst_541 = arith.constant 1.000000e+00 : f32
    %1584 = vector.broadcast %cst_541 : f32 to vector<16x128xf32>
    %1585 = arith.divf %1584, %1583 : vector<16x128xf32>
    %cst_542 = arith.constant 1.06140542 : f32
    %1586 = vector.broadcast %cst_542 : f32 to vector<16x128xf32>
    %1587 = arith.mulf %1585, %1586 : vector<16x128xf32>
    %cst_543 = arith.constant -1.45315206 : f32
    %1588 = vector.broadcast %cst_543 : f32 to vector<16x128xf32>
    %1589 = arith.addf %1588, %1587 : vector<16x128xf32>
    %1590 = arith.mulf %1585, %1589 : vector<16x128xf32>
    %cst_544 = arith.constant 1.42141378 : f32
    %1591 = vector.broadcast %cst_544 : f32 to vector<16x128xf32>
    %1592 = arith.addf %1591, %1590 : vector<16x128xf32>
    %1593 = arith.mulf %1585, %1592 : vector<16x128xf32>
    %cst_545 = arith.constant -0.284496725 : f32
    %1594 = vector.broadcast %cst_545 : f32 to vector<16x128xf32>
    %1595 = arith.addf %1594, %1593 : vector<16x128xf32>
    %1596 = arith.mulf %1585, %1595 : vector<16x128xf32>
    %cst_546 = arith.constant 0.254829586 : f32
    %1597 = vector.broadcast %cst_546 : f32 to vector<16x128xf32>
    %1598 = arith.addf %1597, %1596 : vector<16x128xf32>
    %1599 = arith.mulf %1585, %1598 : vector<16x128xf32>
    %cst_547 = arith.constant 0.000000e+00 : f32
    %1600 = vector.broadcast %cst_547 : f32 to vector<16x128xf32>
    %1601 = arith.subf %1600, %1579 : vector<16x128xf32>
    %1602 = arith.mulf %1601, %1579 : vector<16x128xf32>
    %1603 = math.exp %1602 : vector<16x128xf32>
    %1604 = arith.mulf %1599, %1603 : vector<16x128xf32>
    %cst_548 = arith.constant 1.000000e+00 : f32
    %1605 = vector.broadcast %cst_548 : f32 to vector<16x128xf32>
    %1606 = arith.subf %1605, %1604 : vector<16x128xf32>
    %cst_549 = arith.constant 0.000000e+00 : f32
    %1607 = vector.broadcast %cst_549 : f32 to vector<16x128xf32>
    %1608 = arith.cmpf oge, %1578, %1607 : vector<16x128xf32>
    %cst_550 = arith.constant 0.000000e+00 : f32
    %1609 = vector.broadcast %cst_550 : f32 to vector<16x128xf32>
    %1610 = arith.subf %1609, %1606 : vector<16x128xf32>
    %1611 = arith.select %1608, %1606, %1610 : vector<16x128xi1>, vector<16x128xf32>
    %cst_551 = arith.constant 5.000000e-01 : f32
    %1612 = vector.broadcast %cst_551 : f32 to vector<16x128xf32>
    %1613 = arith.mulf %1612, %1576 : vector<16x128xf32>
    %cst_552 = arith.constant 1.000000e+00 : f32
    %1614 = vector.broadcast %cst_552 : f32 to vector<16x128xf32>
    %1615 = arith.addf %1614, %1611 : vector<16x128xf32>
    %1616 = arith.mulf %1613, %1615 : vector<16x128xf32>
    %c2_553 = arith.constant 2 : index
    %c0_554 = arith.constant 0 : index
    %c0_555 = arith.constant 0 : index
    %1617 = vector.load %arg12[%c2_553, %c0_554, %c0_555] : memref<3x128x32xf32, #tpu.memory_space<vmem>>, vector<1x128x32xf32>
    %1618 = vector.shape_cast %1617 : vector<1x128x32xf32> to vector<128x32xf32>
    %cst_556 = arith.constant dense<0.000000e+00> : vector<16x32xf32>
    %1619 = tpu.matmul %1616, %1618, %cst_556 {dimension_numbers = #tpu.dot_dimension_numbers<[1], [0], [0], [1], [0, 0, 1, 1], [], []>} : vector<16x128xf32>, vector<128x32xf32>, vector<16x32xf32> -> vector<16x32xf32>
    %c2_557 = arith.constant 2 : index
    %c0_558 = arith.constant 0 : index
    %c0_559 = arith.constant 0 : index
    %1620 = vector.load %arg13[%c2_557, %c0_558, %c0_559] : memref<3x1x32xf32, #tpu.memory_space<vmem>>, vector<1x1x32xf32>
    %1621 = vector.shape_cast %1620 : vector<1x1x32xf32> to vector<1x32xf32>
    %1622 = vector.broadcast %1621 : vector<1x32xf32> to vector<16x32xf32>
    %1623 = arith.addf %1619, %1622 : vector<16x32xf32>
    %1624 = arith.addf %1541, %1623 : vector<16x32xf32>
    %c0_560 = arith.constant 0 : index
    %c0_561 = arith.constant 0 : index
    %1625 = vector.load %arg14[%c0_560, %c0_561] : memref<2x32xf32, #tpu.memory_space<vmem>>, vector<2x32xf32>
    %1626 = vector.extract_strided_slice %1625 {offsets = [0, 0], sizes = [1, 32], strides = [1, 1]} : vector<2x32xf32> to vector<1x32xf32>
    %1627 = vector.extract_strided_slice %1625 {offsets = [1, 0], sizes = [1, 32], strides = [1, 1]} : vector<2x32xf32> to vector<1x32xf32>
    %cst_562 = arith.constant dense<0.000000e+00> : vector<16xf32>
    %1628 = vector.multi_reduction <add>, %1624, %cst_562 [1] : vector<16x32xf32> to vector<16xf32>
    %1629 = vector.shape_cast %1628 : vector<16xf32> to vector<16x1xf32>
    %cst_563 = arith.constant 3.200000e+01 : f32
    %1630 = vector.broadcast %cst_563 : f32 to vector<16x1xf32>
    %1631 = arith.divf %1629, %1630 : vector<16x1xf32>
    %1632 = vector.broadcast %1631 : vector<16x1xf32> to vector<16x32xf32>
    %1633 = arith.subf %1624, %1632 : vector<16x32xf32>
    %1634 = vector.broadcast %1631 : vector<16x1xf32> to vector<16x32xf32>
    %1635 = arith.subf %1624, %1634 : vector<16x32xf32>
    %1636 = arith.mulf %1633, %1635 : vector<16x32xf32>
    %cst_564 = arith.constant dense<0.000000e+00> : vector<16xf32>
    %1637 = vector.multi_reduction <add>, %1636, %cst_564 [1] : vector<16x32xf32> to vector<16xf32>
    %1638 = vector.shape_cast %1637 : vector<16xf32> to vector<16x1xf32>
    %cst_565 = arith.constant 3.200000e+01 : f32
    %1639 = vector.broadcast %cst_565 : f32 to vector<16x1xf32>
    %1640 = arith.divf %1638, %1639 : vector<16x1xf32>
    %1641 = vector.broadcast %1631 : vector<16x1xf32> to vector<16x32xf32>
    %1642 = arith.subf %1624, %1641 : vector<16x32xf32>
    %cst_566 = arith.constant 9.99999974E-6 : f32
    %1643 = vector.broadcast %cst_566 : f32 to vector<16x1xf32>
    %1644 = arith.addf %1640, %1643 : vector<16x1xf32>
    %1645 = math.rsqrt %1644 : vector<16x1xf32>
    %1646 = vector.broadcast %1645 : vector<16x1xf32> to vector<16x32xf32>
    %1647 = arith.mulf %1642, %1646 : vector<16x32xf32>
    %1648 = vector.broadcast %1626 : vector<1x32xf32> to vector<16x32xf32>
    %1649 = arith.mulf %1647, %1648 : vector<16x32xf32>
    %1650 = vector.broadcast %1627 : vector<1x32xf32> to vector<16x32xf32>
    %1651 = arith.addf %1649, %1650 : vector<16x32xf32>
    %1652 = vector.shape_cast %1651 : vector<16x32xf32> to vector<2x8x32xf32>
    %cst_567 = arith.constant dense<0.000000e+00> : vector<2x32xf32>
    %1653 = vector.multi_reduction <add>, %1652, %cst_567 [1] : vector<2x8x32xf32> to vector<2x32xf32>
    %cst_568 = arith.constant 8.000000e+00 : f32
    %1654 = vector.broadcast %cst_568 : f32 to vector<2x32xf32>
    %1655 = arith.divf %1653, %1654 : vector<2x32xf32>
    %c0_569 = arith.constant 0 : index
    %c0_570 = arith.constant 0 : index
    %1656 = vector.load %arg15[%c0_569, %c0_570] : memref<32x4xf32, #tpu.memory_space<vmem>>, vector<32x4xf32>
    %cst_571 = arith.constant dense<0.000000e+00> : vector<2x4xf32>
    %1657 = tpu.matmul %1655, %1656, %cst_571 {dimension_numbers = #tpu.dot_dimension_numbers<[1], [0], [0], [1], [0, 0, 1, 1], [], []>} : vector<2x32xf32>, vector<32x4xf32>, vector<2x4xf32> -> vector<2x4xf32>
    %c0_572 = arith.constant 0 : index
    %c0_573 = arith.constant 0 : index
    %1658 = vector.load %arg16[%c0_572, %c0_573] : memref<1x4xf32, #tpu.memory_space<vmem>>, vector<1x4xf32>
    %1659 = vector.broadcast %1658 : vector<1x4xf32> to vector<2x4xf32>
    %1660 = arith.addf %1657, %1659 : vector<2x4xf32>
    %c0_574 = arith.constant 0 : index
    %c0_575 = arith.constant 0 : index
    %1661 = vector.load %arg17[%c0_574, %c0_575] : memref<2x4xf32, #tpu.memory_space<vmem>>, vector<2x4xf32>
    tpu.vector_store %arg17[%c0_574, %c0_575], %1660 {strides = array<i32>} : memref<2x4xf32, #tpu.memory_space<vmem>>, vector<2x4xf32>,
    return
  }
}

</mosaic_0001>

<llo_original>
// kernel: forward.1
$region0: #{forward.1}
  #allocation0 [shape = 'u32[]', space=smem, size = 0x4, offset = 0x4, fixed_abs, tag = 'smem constant byte address 0x4 - core index']
  #allocation1 [shape = 'u32[144,128]{1,0:T(1,128)}', space=vmem, size = 0x12000, scoped, tag = 'internal scratch']
  #allocation2 [shape = 'f32[16,32]{1,0:T(8,128)}', space=vmem, size = 0x2000, scoped, tag = 'scratch operand']
  %s0 = inlined_call_operand.vmem [shape: f32[3,2], index: 0, kind: input, shape index: {}]
  %s1 = inlined_call_operand.vmem [shape: s32[16,1], index: 1, kind: input, shape index: {}]
  %s2 = inlined_call_operand.vmem [shape: f32[64,32], index: 2, kind: input, shape index: {}]
  %s3 = inlined_call_operand.vmem [shape: f32[2,32], index: 3, kind: input, shape index: {}]
  %s4 = inlined_call_operand.vmem [shape: f32[3,2,32], index: 4, kind: input, shape index: {}]
  %s5 = inlined_call_operand.vmem [shape: f32[3,32,96], index: 5, kind: input, shape index: {}]
  %s6 = inlined_call_operand.vmem [shape: f32[3,1,96], index: 6, kind: input, shape index: {}]
  %s7 = inlined_call_operand.vmem [shape: f32[3,32,32], index: 7, kind: input, shape index: {}]
  %s8 = inlined_call_operand.vmem [shape: f32[3,1,32], index: 8, kind: input, shape index: {}]
  %s9 = inlined_call_operand.vmem [shape: f32[3,2,32], index: 9, kind: input, shape index: {}]
  %s10 = inlined_call_operand.vmem [shape: f32[3,32,128], index: 10, kind: input, shape index: {}]
  %s11 = inlined_call_operand.vmem [shape: f32[3,1,128], index: 11, kind: input, shape index: {}]
  %s12 = inlined_call_operand.vmem [shape: f32[3,128,32], index: 12, kind: input, shape index: {}]
  %s13 = inlined_call_operand.vmem [shape: f32[3,1,32], index: 13, kind: input, shape index: {}]
  %s14 = inlined_call_operand.vmem [shape: f32[2,32], index: 14, kind: input, shape index: {}]
  %s15 = inlined_call_operand.vmem [shape: f32[32,4], index: 15, kind: input, shape index: {}]
  %s16 = inlined_call_operand.vmem [shape: f32[1,4], index: 16, kind: input, shape index: {}]
  %s17 = inlined_call_operand.hbm [shape: f32[2,4], index: 17, kind: output, shape index: {}]
  %s18 = sld [smem:[#allocation0]]
  $region82: #{forward.1} parent=0
    _
  %s20 = ssub.s32 1, %s18
  %s21 = scalar_select 0, %s20, %s18
  $region1: #{forward.1} parent=0
    #allocation3 [shape = 'u8[2048]{0}', space=smem, size = 0x800, scoped, tag = 'input window, operand 0, single buffered']
    #allocation4 [shape = 's32[1]{0}', space=sflag, size = 0x4, scoped, tag = 'scoped memory for forward.1']
    #allocation5 [shape = 's32[1]{0}', space=sflag, size = 0x4, scoped, tag = 'scoped memory for forward.1']
    #allocation6 [shape = 'u8[1024]{0}', space=vmem, size = 0x400, scoped, tag = 'output window, operand 0, single buffered']
    %22 = vsyncpa [#allocation5], 0
    %23 = vsyncpa [#allocation4], 0
    // Predicated region
    $region2: #{forward.1} parent=1 // pred_check
      _
    $region3: #{forward.1} parent=1 // pred_check_branch
      %25 = sbr.rel (0) target = $region5
    $region4: #{forward.1} parent=1 // pred_region
      %s27 = ssub.s32 64, 64
      %28 = vsyncadd [#allocation5], %s27
      %s30 = sshll.u32 %s0, 4
      %s31 = int_to_ptr.vmem [resolvable:$true] %s30
      %33 = dma.vmem_to_smem %s31, 64, [#allocation3], [#allocation5]
    $region5: #{forward.1} parent=1 // pred_fallthru
      _
    // Predicated region
    $region6: #{forward.1} parent=1 // pred_check
      _
    $region7: #{forward.1} parent=1 // pred_check_branch
      %35 = sbr.rel (0) target = $region9
    $region8: #{forward.1} parent=1 // pred_region
      _
    $region9: #{forward.1} parent=1 // pred_fallthru
      _
    // Predicated region
    $region10: #{forward.1} parent=1 // pred_check
      _
    $region11: #{forward.1} parent=1 // pred_check_branch
      %37 = sbr.rel (0) target = $region13
    $region12: #{forward.1} parent=1 // pred_region
      _
    $region13: #{forward.1} parent=1 // pred_fallthru
      _
    // Predicated region
    $region14: #{forward.1} parent=1 // pred_check
      _
    $region15: #{forward.1} parent=1 // pred_check_branch
      %39 = sbr.rel (0) target = $region17
    $region16: #{forward.1} parent=1 // pred_region
      _
    $region17: #{forward.1} parent=1 // pred_fallthru
      _
    // Predicated region
    $region18: #{forward.1} parent=1 // pred_check
      _
    $region19: #{forward.1} parent=1 // pred_check_branch
      %41 = sbr.rel (0) target = $region21
    $region20: #{forward.1} parent=1 // pred_region
      _
    $region21: #{forward.1} parent=1 // pred_fallthru
      _
    // Predicated region
    $region22: #{forward.1} parent=1 // pred_check
      _
    $region23: #{forward.1} parent=1 // pred_check_branch
      %43 = sbr.rel (0) target = $region25
    $region24: #{forward.1} parent=1 // pred_region
      _
    $region25: #{forward.1} parent=1 // pred_fallthru
      _
    // Predicated region
    $region26: #{forward.1} parent=1 // pred_check
      _
    $region27: #{forward.1} parent=1 // pred_check_branch
      %45 = sbr.rel (0) target = $region29
    $region28: #{forward.1} parent=1 // pred_region
      _
    $region29: #{forward.1} parent=1 // pred_fallthru
      _
    // Predicated region
    $region30: #{forward.1} parent=1 // pred_check
      _
    $region31: #{forward.1} parent=1 // pred_check_branch
      %47 = sbr.rel (0) target = $region33
    $region32: #{forward.1} parent=1 // pred_region
      _
    $region33: #{forward.1} parent=1 // pred_fallthru
      _
    // Predicated region
    $region34: #{forward.1} parent=1 // pred_check
      _
    $region35: #{forward.1} parent=1 // pred_check_branch
      %49 = sbr.rel (0) target = $region37
    $region36: #{forward.1} parent=1 // pred_region
      _
    $region37: #{forward.1} parent=1 // pred_fallthru
      _
    // Predicated region
    $region38: #{forward.1} parent=1 // pred_check
      _
    $region39: #{forward.1} parent=1 // pred_check_branch
      %51 = sbr.rel (0) target = $region41
    $region40: #{forward.1} parent=1 // pred_region
      _
    $region41: #{forward.1} parent=1 // pred_fallthru
      _
    // Predicated region
    $region42: #{forward.1} parent=1 // pred_check
      _
    $region43: #{forward.1} parent=1 // pred_check_branch
      %53 = sbr.rel (0) target = $region45
    $region44: #{forward.1} parent=1 // pred_region
      _
    $region45: #{forward.1} parent=1 // pred_fallthru
      _
    // Predicated region
    $region46: #{forward.1} parent=1 // pred_check
      _
    $region47: #{forward.1} parent=1 // pred_check_branch
      %55 = sbr.rel (0) target = $region49
    $region48: #{forward.1} parent=1 // pred_region
      _
    $region49: #{forward.1} parent=1 // pred_fallthru
      _
    // Predicated region
    $region50: #{forward.1} parent=1 // pred_check
      _
    $region51: #{forward.1} parent=1 // pred_check_branch
      %57 = sbr.rel (0) target = $region53
    $region52: #{forward.1} parent=1 // pred_region
      _
    $region53: #{forward.1} parent=1 // pred_fallthru
      _
    // Predicated region
    $region54: #{forward.1} parent=1 // pred_check
      _
    $region55: #{forward.1} parent=1 // pred_check_branch
      %59 = sbr.rel (0) target = $region57
    $region56: #{forward.1} parent=1 // pred_region
      _
    $region57: #{forward.1} parent=1 // pred_fallthru
      _
    // Predicated region
    $region58: #{forward.1} parent=1 // pred_check
      _
    $region59: #{forward.1} parent=1 // pred_check_branch
      %61 = sbr.rel (0) target = $region61
    $region60: #{forward.1} parent=1 // pred_region
      _
    $region61: #{forward.1} parent=1 // pred_fallthru
      _
    // Predicated region
    $region62: #{forward.1} parent=1 // pred_check
      _
    $region63: #{forward.1} parent=1 // pred_check_branch
      %63 = sbr.rel (0) target = $region65
    $region64: #{forward.1} parent=1 // pred_region
      _
    $region65: #{forward.1} parent=1 // pred_fallthru
      _
    // Predicated region
    $region66: #{forward.1} parent=1 // pred_check
      _
    $region67: #{forward.1} parent=1 // pred_check_branch
      %65 = sbr.rel (0) target = $region69
    $region68: #{forward.1} parent=1 // pred_region
      _
    $region69: #{forward.1} parent=1 // pred_fallthru
      _
    // Predicated region
    $region70: #{forward.1} parent=1 // pred_check
      _
    $region71: #{forward.1} parent=1 // pred_check_branch
      %67 = sbr.rel (0) target = $region73
    $region72: #{forward.1} parent=1 // pred_region
      %68 = dma.done [#allocation5], 64
    $region73: #{forward.1} parent=1 // pred_fallthru
      _
    %69 = sfence
    %v70 = vld [vmem:[%s1] sm:$0xff]
    %v71 = vld [vmem:[%s1 + $0x8] sm:$0xff]
    %v72 = vlaneseq
    %v73 = vand.u32 %v72, 127
    %74 = vset.pattern.permute.xlu0 0
    %75 = vperm.xlu0 %74, %v70
    %v76 = vpop.permute.xlu0 %75
    %77 = vset.pattern.permute.xlu0 0
    %78 = vperm.xlu0 %77, %v71
    %v79 = vpop.permute.xlu0 %78
    %vm80 = vcmp.eq.s32.totalorder %v73, %v76
    %vm81 = vcmp.eq.s32.totalorder %v73, %v79
    %v82 = vsel %vm80, 1, 0
    %v83 = vsel %vm81, 1, 0
    %v84 = vcvt.s32.f32 %v82
    %v85 = vcvt.s32.f32 %v83
    %v86 = vld [vmem:[%s2] sm:$0xff]
    %v87 = vld [vmem:[%s2 + $0x8] sm:$0xff]
    %v88 = vld [vmem:[%s2 + $0x10] sm:$0xff]
    %v89 = vld [vmem:[%s2 + $0x18] sm:$0xff]
    %v90 = vld [vmem:[%s2 + $0x20] sm:$0xff]
    %v91 = vld [vmem:[%s2 + $0x28] sm:$0xff]
    %v92 = vld [vmem:[%s2 + $0x30] sm:$0xff]
    %v93 = vld [vmem:[%s2 + $0x38] sm:$0xff]
    %vm94 = vcmask 523264
    %v96 = vsel %vm94, %v84, 0
    %v99 = vsel %vm94, %v85, 0
    %101 = vmatprep.subr.mxu0 0.0
    %102 = vmatpush1.msra.mxu0 %v86
    %103 = vmatprep.subr.mxu0 0.0
    %104 = vmatpush1.msra.mxu0 %v87
    %105 = vmatprep.subr.mxu0 0.0
    %106 = vmatpush1.msra.mxu0 %v88
    %107 = vmatprep.subr.mxu0 0.0
    %108 = vmatpush1.msra.mxu0 %v89
    %109 = vmatprep.subr.mxu0 0.0
    %110 = vmatpush1.msra.mxu0 %v90
    %111 = vmatprep.subr.mxu0 0.0
    %112 = vmatpush1.msra.mxu0 %v91
    %113 = vmatprep.subr.mxu0 0.0
    %114 = vmatpush1.msra.mxu0 %v92
    %115 = vmatprep.subr.mxu0 0.0
    %116 = vmatpush1.msra.mxu0 %v93
    %117 = vmatprep.subr.mxu0 0.0
    %118 = vmatpush1.msra.mxu0 0.0
    %119 = vmatprep.subr.mxu0 0.0
    %120 = vmatpush1.msra.mxu0 0.0
    %121 = vmatprep.subr.mxu0 0.0
    %122 = vmatpush1.msra.mxu0 0.0
    %123 = vmatprep.subr.mxu0 0.0
    %124 = vmatpush1.msra.mxu0 0.0
    %125 = vmatprep.subr.mxu0 0.0
    %126 = vmatpush1.msra.mxu0 0.0
    %127 = vmatprep.subr.mxu0 0.0
    %128 = vmatpush1.msra.mxu0 0.0
    %129 = vmatprep.subr.mxu0 0.0
    %130 = vmatpush1.msra.mxu0 0.0
    %131 = vmatprep.subr.mxu0 0.0
    %132 = vmatpush1.msra.mxu0 0.0
    %133 = vmatprep.subr.mxu0 0.0
    %134 = vmatpush1.msra.mxu0 0.0
    %135 = vmatprep.subr.mxu0 0.0
    %136 = vmatpush1.msra.mxu0 0.0
    %137 = vmatprep.subr.mxu0 0.0
    %138 = vmatpush1.msra.mxu0 0.0
    %139 = vmatprep.subr.mxu0 0.0
    %140 = vmatpush1.msra.mxu0 0.0
    %141 = vmatprep.subr.mxu0 0.0
    %142 = vmatpush1.msra.mxu0 0.0
    %143 = vmatprep.subr.mxu0 0.0
    %144 = vmatpush1.msra.mxu0 0.0
    %145 = vmatprep.subr.mxu0 0.0
    %146 = vmatpush1.msra.mxu0 0.0
    %147 = vmatprep.subr.mxu0 0.0
    %148 = vmatpush1.msra.mxu0 0.0
    %149 = vmatprep.subr.mxu0 0.0
    %150 = vmatpush1.msra.mxu0 0.0
    %151 = vmatprep.subr.mxu0 0.0
    %152 = vmatpush1.msra.mxu0 0.0
    %153 = vmatprep.subr.mxu0 0.0
    %154 = vmatpush1.msra.mxu0 0.0
    %155 = vmatprep.subr.mxu0 0.0
    %156 = vmatpush1.msra.mxu0 0.0
    %157 = vmatprep.subr.mxu0 0.0
    %158 = vmatpush1.msra.mxu0 0.0
    %159 = vmatprep.subr.mxu0 0.0
    %160 = vmatpush1.msra.mxu0 0.0
    %161 = vmatprep.subr.mxu0 0.0
    %162 = vmatpush1.msra.mxu0 0.0
    %163 = vmatprep.subr.mxu0 0.0
    %164 = vmatpush1.msra.mxu0 0.0
    %165 = vmatprep.mubr.f32.mxu0 0.0
    %166 = vmatmul.mubr.f32.gmra.mrb[0].mxu0 %v96
    %v167 = vpop.f32.mrb[0].mxu0
    %v168 = vadd.f32 0.0, %v167
    %v169 = vpop.f32.mrb[0].mxu0
    %170 = vmatprep.mubr.f32.mxu0 0.0
    %171 = vmatmul.mubr.f32.gmra.mrb[0].mxu0 %v99
    %v172 = vpop.f32.mrb[0].mxu0
    %v173 = vadd.f32 0.0, %v172
    %v174 = vpop.f32.mrb[0].mxu0
    %175 = vdwg.mxu0
    %v176 = vld [vmem:[%s3] sm:$0x3]
    %vm177 = vcmask 261120
    %v178 = vsel %vm177, %v168, 0.0
    %179 = vadd.xlane.f32.xlu0 %v178
    %v180 = vpop.xlane.xlu0 %179
    %v181 = vsel %vm177, %v173, 0.0
    %182 = vadd.xlane.f32.xlu0 %v181
    %v183 = vpop.xlane.xlu0 %182
    %v184 = vrcp.pop 32.0
    %v185 = vmul.f32 %v180, %v184
    %v186 = vmul.f32 %v183, %v184
    %v187 = vsub.f32 %v168, %v185
    %v188 = vsub.f32 %v173, %v186
    %v189 = vmul.f32 %v187, %v187
    %v190 = vmul.f32 %v188, %v188
    %v191 = vsel %vm177, %v189, 0.0
    %192 = vadd.xlane.f32.xlu0 %v191
    %v193 = vpop.xlane.xlu0 %192
    %v194 = vsel %vm177, %v190, 0.0
    %195 = vadd.xlane.f32.xlu0 %v194
    %v196 = vpop.xlane.xlu0 %195
    %v197 = vmul.f32 %v193, %v184
    %v198 = vmul.f32 %v196, %v184
    %v199 = vadd.f32 %v197, 1e-05
    %v200 = vadd.f32 %v198, 1e-05
    %v201 = vrsqrt.pop %v199
    %v202 = vrsqrt.pop %v200
    %v203 = vmul.f32 %v187, %v201
    %v204 = vmul.f32 %v188, %v202
    %v205 = vlaneseq
    %v206 = vshrl.u32 %v205, 7
    %v207 = vsub.s32 0, %v206
    %v208 = vrot.slane %v176, %v207
    %v209 = vmul.f32 %v203, %v208
    %v210 = vmul.f32 %v204, %v208
    %v211 = vlaneseq
    %v212 = vshrl.u32 %v211, 7
    %v213 = vsub.s32 1, %v212
    %v214 = vrot.slane %v176, %v213
    %v215 = vadd.f32 %v209, %v214
    %v216 = vadd.f32 %v210, %v214
    %s217 = sld [smem:[#allocation3]]
    %s218 = sld [smem:[#allocation3 + $0x1]]
    %v219 = vld [vmem:[%s4] sm:$0x3]
    %v220 = vsel %vm177, %v215, 0.0
    %221 = vadd.xlane.f32.xlu0 %v220
    %v222 = vpop.xlane.xlu0 %221
    %v223 = vsel %vm177, %v216, 0.0
    %224 = vadd.xlane.f32.xlu0 %v223
    %v225 = vpop.xlane.xlu0 %224
    %v226 = vmul.f32 %v222, %v184
    %v227 = vmul.f32 %v225, %v184
    %v228 = vsub.f32 %v215, %v226
    %v229 = vsub.f32 %v216, %v227
    %v230 = vmul.f32 %v228, %v228
    %v231 = vmul.f32 %v229, %v229
    %v232 = vsel %vm177, %v230, 0.0
    %233 = vadd.xlane.f32.xlu0 %v232
    %v234 = vpop.xlane.xlu0 %233
    %v235 = vsel %vm177, %v231, 0.0
    %236 = vadd.xlane.f32.xlu0 %v235
    %v237 = vpop.xlane.xlu0 %236
    %v238 = vmul.f32 %v234, %v184
    %v239 = vmul.f32 %v237, %v184
    %v240 = vadd.f32 %v238, 1e-05
    %v241 = vadd.f32 %v239, 1e-05
    %v242 = vrsqrt.pop %v240
    %v243 = vrsqrt.pop %v241
    %v244 = vmul.f32 %v228, %v242
    %v245 = vmul.f32 %v229, %v243
    %v246 = vlaneseq
    %v247 = vshrl.u32 %v246, 7
    %v248 = vsub.s32 0, %v247
    %v249 = vrot.slane %v219, %v248
    %v250 = vmul.f32 %v244, %v249
    %v251 = vmul.f32 %v245, %v249
    %v252 = vlaneseq
    %v253 = vshrl.u32 %v252, 7
    %v254 = vsub.s32 1, %v253
    %v255 = vrot.slane %v219, %v254
    %v256 = vadd.f32 %v250, %v255
    %v257 = vadd.f32 %v251, %v255
    %v258 = vld [vmem:[%s5] sm:$0xff]
    %v259 = vld [vmem:[%s5 + $0x8] sm:$0xff]
    %v260 = vld [vmem:[%s5 + $0x10] sm:$0xff]
    %v261 = vld [vmem:[%s5 + $0x18] sm:$0xff]
    %v262 = vld [vmem:[%s6] sm:$0x1]
    %v264 = vlaneseq
    %v265 = vshrl.u32 %v264, 7
    %v266 = vsub.s32 0, %v265
    %v267 = vrot.slane %v262, %v266
    %v270 = vsel %vm177, %v256, 0
    %v273 = vsel %vm177, %v257, 0
    %275 = vmatprep.subr.mxu0 0.0
    %276 = vmatpush1.msra.mxu0 %v258
    %277 = vmatprep.subr.mxu0 0.0
    %278 = vmatpush1.msra.mxu0 %v259
    %279 = vmatprep.subr.mxu0 0.0
    %280 = vmatpush1.msra.mxu0 %v260
    %281 = vmatprep.subr.mxu0 0.0
    %282 = vmatpush1.msra.mxu0 %v261
    %283 = vmatprep.subr.mxu0 0.0
    %284 = vmatpush1.msra.mxu0 0.0
    %285 = vmatprep.subr.mxu0 0.0
    %286 = vmatpush1.msra.mxu0 0.0
    %287 = vmatprep.subr.mxu0 0.0
    %288 = vmatpush1.msra.mxu0 0.0
    %289 = vmatprep.subr.mxu0 0.0
    %290 = vmatpush1.msra.mxu0 0.0
    %291 = vmatprep.subr.mxu0 0.0
    %292 = vmatpush1.msra.mxu0 0.0
    %293 = vmatprep.subr.mxu0 0.0
    %294 = vmatpush1.msra.mxu0 0.0
    %295 = vmatprep.subr.mxu0 0.0
    %296 = vmatpush1.msra.mxu0 0.0
    %297 = vmatprep.subr.mxu0 0.0
    %298 = vmatpush1.msra.mxu0 0.0
    %299 = vmatprep.subr.mxu0 0.0
    %300 = vmatpush1.msra.mxu0 0.0
    %301 = vmatprep.subr.mxu0 0.0
    %302 = vmatpush1.msra.mxu0 0.0
    %303 = vmatprep.subr.mxu0 0.0
    %304 = vmatpush1.msra.mxu0 0.0
    %305 = vmatprep.subr.mxu0 0.0
    %306 = vmatpush1.msra.mxu0 0.0
    %307 = vmatprep.subr.mxu0 0.0
    %308 = vmatpush1.msra.mxu0 0.0
    %309 = vmatprep.subr.mxu0 0.0
    %310 = vmatpush1.msra.mxu0 0.0
    %311 = vmatprep.subr.mxu0 0.0
    %312 = vmatpush1.msra.mxu0 0.0
    %313 = vmatprep.subr.mxu0 0.0
    %314 = vmatpush1.msra.mxu0 0.0
    %315 = vmatprep.subr.mxu0 0.0
    %316 = vmatpush1.msra.mxu0 0.0
    %317 = vmatprep.subr.mxu0 0.0
    %318 = vmatpush1.msra.mxu0 0.0
    %319 = vmatprep.subr.mxu0 0.0
    %320 = vmatpush1.msra.mxu0 0.0
    %321 = vmatprep.subr.mxu0 0.0
    %322 = vmatpush1.msra.mxu0 0.0
    %323 = vmatprep.subr.mxu0 0.0
    %324 = vmatpush1.msra.mxu0 0.0
    %325 = vmatprep.subr.mxu0 0.0
    %326 = vmatpush1.msra.mxu0 0.0
    %327 = vmatprep.subr.mxu0 0.0
    %328 = vmatpush1.msra.mxu0 0.0
    %329 = vmatprep.subr.mxu0 0.0
    %330 = vmatpush1.msra.mxu0 0.0
    %331 = vmatprep.subr.mxu0 0.0
    %332 = vmatpush1.msra.mxu0 0.0
    %333 = vmatprep.subr.mxu0 0.0
    %334 = vmatpush1.msra.mxu0 0.0
    %335 = vmatprep.subr.mxu0 0.0
    %336 = vmatpush1.msra.mxu0 0.0
    %337 = vmatprep.subr.mxu0 0.0
    %338 = vmatpush1.msra.mxu0 0.0
    %339 = vmatprep.mubr.f32.mxu0 0.0
    %340 = vmatmul.mubr.f32.gmra.mrb[0].mxu0 %v270
    %v341 = vpop.f32.mrb[0].mxu0
    %v342 = vadd.f32 %v267, %v341
    %v343 = vpop.f32.mrb[0].mxu0
    %344 = vmatprep.mubr.f32.mxu0 0.0
    %345 = vmatmul.mubr.f32.gmra.mrb[0].mxu0 %v273
    %v346 = vpop.f32.mrb[0].mxu0
    %v347 = vadd.f32 %v267, %v346
    %v348 = vpop.f32.mrb[0].mxu0
    %349 = vdwg.mxu0
    %351 = vrot.lane.b32.xlu0 %v342, 96
    %v352 = vpop.permute.xlu0 %351
    %vm353 = vcmask 31744
    %v354 = vsel %vm353, %v342, 0
    %v356 = vsel %vm353, %v352, 0
    %358 = vmatprep.subr.mxu0 0.0
    %359 = vmatpush1.xpose.msra.mxu0 %v356
    %360 = vmatprep.subr.mxu0 0.0
    %361 = vmatpush1.xpose.msra.mxu0 0.0
    %362 = vmatprep.subr.mxu0 0.0
    %363 = vmatpush1.xpose.msra.mxu0 0.0
    %364 = vmatprep.subr.mxu0 0.0
    %365 = vmatpush1.xpose.msra.mxu0 0.0
    %366 = vmatprep.subr.mxu0 0.0
    %367 = vmatpush1.xpose.msra.mxu0 0.0
    %368 = vmatprep.subr.mxu0 0.0
    %369 = vmatpush1.xpose.msra.mxu0 0.0
    %370 = vmatprep.subr.mxu0 0.0
    %371 = vmatpush1.xpose.msra.mxu0 0.0
    %372 = vmatprep.subr.mxu0 0.0
    %373 = vmatpush1.xpose.msra.mxu0 0.0
    %374 = vmatprep.subr.mxu0 0.0
    %375 = vmatpush1.xpose.msra.mxu0 0.0
    %376 = vmatprep.subr.mxu0 0.0
    %377 = vmatpush1.xpose.msra.mxu0 0.0
    %378 = vmatprep.subr.mxu0 0.0
    %379 = vmatpush1.xpose.msra.mxu0 0.0
    %380 = vmatprep.subr.mxu0 0.0
    %381 = vmatpush1.xpose.msra.mxu0 0.0
    %382 = vmatprep.subr.mxu0 0.0
    %383 = vmatpush1.xpose.msra.mxu0 0.0
    %384 = vmatprep.subr.mxu0 0.0
    %385 = vmatpush1.xpose.msra.mxu0 0.0
    %386 = vmatprep.subr.mxu0 0.0
    %387 = vmatpush1.xpose.msra.mxu0 0.0
    %388 = vmatprep.subr.mxu0 0.0
    %389 = vmatpush1.xpose.msra.mxu0 0.0
    %390 = vmatprep.subr.mxu0 0.0
    %391 = vmatpush1.xpose.msra.mxu0 0.0
    %392 = vmatprep.subr.mxu0 0.0
    %393 = vmatpush1.xpose.msra.mxu0 0.0
    %394 = vmatprep.subr.mxu0 0.0
    %395 = vmatpush1.xpose.msra.mxu0 0.0
    %396 = vmatprep.subr.mxu0 0.0
    %397 = vmatpush1.xpose.msra.mxu0 0.0
    %398 = vmatprep.subr.mxu0 0.0
    %399 = vmatpush1.xpose.msra.mxu0 0.0
    %400 = vmatprep.subr.mxu0 0.0
    %401 = vmatpush1.xpose.msra.mxu0 0.0
    %402 = vmatprep.subr.mxu0 0.0
    %403 = vmatpush1.xpose.msra.mxu0 0.0
    %404 = vmatprep.subr.mxu0 0.0
    %405 = vmatpush1.xpose.msra.mxu0 0.0
    %406 = vmatprep.subr.mxu0 0.0
    %407 = vmatpush1.xpose.msra.mxu0 0.0
    %408 = vmatprep.subr.mxu0 0.0
    %409 = vmatpush1.xpose.msra.mxu0 0.0
    %410 = vmatprep.subr.mxu0 0.0
    %411 = vmatpush1.xpose.msra.mxu0 0.0
    %412 = vmatprep.subr.mxu0 0.0
    %413 = vmatpush1.xpose.msra.mxu0 0.0
    %414 = vmatprep.subr.mxu0 0.0
    %415 = vmatpush1.xpose.msra.mxu0 0.0
    %416 = vmatprep.subr.mxu0 0.0
    %417 = vmatpush1.xpose.msra.mxu0 0.0
    %418 = vmatprep.subr.mxu0 0.0
    %419 = vmatpush1.xpose.msra.mxu0 0.0
    %420 = vmatprep.subr.mxu0 0.0
    %421 = vmatpush1.xpose.msra.mxu0 0.0
    %422 = vmatprep.mubr.f32.mxu0 0.0
    %423 = vmatmul.mubr.f32.gmra.mrb[0].mxu0 %v354
    %v424 = vpop.f32.mrb[0].mxu0
    %v425 = vadd.f32 0.0, %v424
    %v426 = vpop.f32.mrb[0].mxu0
    %427 = vdwg.mxu0
    %v428 = vmul.f32 %v425, 0.5
    %429 = vrot.lane.b32.xlu0 %v342, 124
    %v430 = vpop.permute.xlu0 %429
    %431 = vrot.lane.b32.xlu0 %v342, 92
    %v432 = vpop.permute.xlu0 %431
    %v433 = vsel %vm353, %v430, 0
    %v435 = vsel %vm353, %v432, 0
    %437 = vmatprep.subr.mxu0 0.0
    %438 = vmatpush1.xpose.msra.mxu0 %v435
    %439 = vmatprep.subr.mxu0 0.0
    %440 = vmatpush1.xpose.msra.mxu0 0.0
    %441 = vmatprep.subr.mxu0 0.0
    %442 = vmatpush1.xpose.msra.mxu0 0.0
    %443 = vmatprep.subr.mxu0 0.0
    %444 = vmatpush1.xpose.msra.mxu0 0.0
    %445 = vmatprep.subr.mxu0 0.0
    %446 = vmatpush1.xpose.msra.mxu0 0.0
    %447 = vmatprep.subr.mxu0 0.0
    %448 = vmatpush1.xpose.msra.mxu0 0.0
    %449 = vmatprep.subr.mxu0 0.0
    %450 = vmatpush1.xpose.msra.mxu0 0.0
    %451 = vmatprep.subr.mxu0 0.0
    %452 = vmatpush1.xpose.msra.mxu0 0.0
    %453 = vmatprep.subr.mxu0 0.0
    %454 = vmatpush1.xpose.msra.mxu0 0.0
    %455 = vmatprep.subr.mxu0 0.0
    %456 = vmatpush1.xpose.msra.mxu0 0.0
    %457 = vmatprep.subr.mxu0 0.0
    %458 = vmatpush1.xpose.msra.mxu0 0.0
    %459 = vmatprep.subr.mxu0 0.0
    %460 = vmatpush1.xpose.msra.mxu0 0.0
    %461 = vmatprep.subr.mxu0 0.0
    %462 = vmatpush1.xpose.msra.mxu0 0.0
    %463 = vmatprep.subr.mxu0 0.0
    %464 = vmatpush1.xpose.msra.mxu0 0.0
    %465 = vmatprep.subr.mxu0 0.0
    %466 = vmatpush1.xpose.msra.mxu0 0.0
    %467 = vmatprep.subr.mxu0 0.0
    %468 = vmatpush1.xpose.msra.mxu0 0.0
    %469 = vmatprep.subr.mxu0 0.0
    %470 = vmatpush1.xpose.msra.mxu0 0.0
    %471 = vmatprep.subr.mxu0 0.0
    %472 = vmatpush1.xpose.msra.mxu0 0.0
    %473 = vmatprep.subr.mxu0 0.0
    %474 = vmatpush1.xpose.msra.mxu0 0.0
    %475 = vmatprep.subr.mxu0 0.0
    %476 = vmatpush1.xpose.msra.mxu0 0.0
    %477 = vmatprep.subr.mxu0 0.0
    %478 = vmatpush1.xpose.msra.mxu0 0.0
    %479 = vmatprep.subr.mxu0 0.0
    %480 = vmatpush1.xpose.msra.mxu0 0.0
    %481 = vmatprep.subr.mxu0 0.0
    %482 = vmatpush1.xpose.msra.mxu0 0.0
    %483 = vmatprep.subr.mxu0 0.0
    %484 = vmatpush1.xpose.msra.mxu0 0.0
    %485 = vmatprep.subr.mxu0 0.0
    %486 = vmatpush1.xpose.msra.mxu0 0.0
    %487 = vmatprep.subr.mxu0 0.0
    %488 = vmatpush1.xpose.msra.mxu0 0.0
    %489 = vmatprep.subr.mxu0 0.0
    %490 = vmatpush1.xpose.msra.mxu0 0.0
    %491 = vmatprep.subr.mxu0 0.0
    %492 = vmatpush1.xpose.msra.mxu0 0.0
    %493 = vmatprep.subr.mxu0 0.0
    %494 = vmatpush1.xpose.msra.mxu0 0.0
    %495 = vmatprep.subr.mxu0 0.0
    %496 = vmatpush1.xpose.msra.mxu0 0.0
    %497 = vmatprep.subr.mxu0 0.0
    %498 = vmatpush1.xpose.msra.mxu0 0.0
    %499 = vmatprep.subr.mxu0 0.0
    %500 = vmatpush1.xpose.msra.mxu0 0.0
    %501 = vmatprep.mubr.f32.mxu0 0.0
    %502 = vmatmul.mubr.f32.gmra.mrb[0].mxu0 %v433
    %v503 = vpop.f32.mrb[0].mxu0
    %v504 = vadd.f32 0.0, %v503
    %v505 = vpop.f32.mrb[0].mxu0
    %506 = vdwg.mxu0
    %v507 = vmul.f32 %v504, 0.5
    %vm508 = vcmask 64512
    %v509 = vsel %vm508, %v428, -inf
    %510 = vmax.xlane.f32.xlu0 %v509
    %v511 = vpop.xlane.xlu0 %510
    %v512 = vsub.f32 %v428, %v511
    %v513 = vmul.f32 %v512, 1.442695
    %v514 = vpow.pop %v513
    %v515 = vsel %vm508, %v514, 0.0
    %516 = vadd.xlane.f32.xlu0 %v515
    %v517 = vpop.xlane.xlu0 %516
    %v518 = vrcp.pop %v517
    %v519 = vmul.f32 %v514, %v518
    %v520 = vsel %vm508, %v507, -inf
    %521 = vmax.xlane.f32.xlu0 %v520
    %v522 = vpop.xlane.xlu0 %521
    %v523 = vsub.f32 %v507, %v522
    %v524 = vmul.f32 %v523, 1.442695
    %v525 = vpow.pop %v524
    %v526 = vsel %vm508, %v525, 0.0
    %527 = vadd.xlane.f32.xlu0 %v526
    %v528 = vpop.xlane.xlu0 %527
    %v529 = vrcp.pop %v528
    %v530 = vmul.f32 %v525, %v529
    %v531 = vstv %s217
    %v532 = vmul.f32 %v531, %v530
    %v533 = vsub.f32 %v519, %v532
    %534 = vrot.lane.b32.xlu0 %v342, 64
    %v535 = vpop.permute.xlu0 %534
    %v538 = vsel %vm508, %v533, 0
    %540 = vmatprep.subr.mxu0 0.0
    %541 = vmatpush1.msra.mxu0 %v535
    %542 = vmatprep.subr.mxu0 0.0
    %543 = vmatpush1.msra.mxu0 0.0
    %544 = vmatprep.subr.mxu0 0.0
    %545 = vmatpush1.msra.mxu0 0.0
    %546 = vmatprep.subr.mxu0 0.0
    %547 = vmatpush1.msra.mxu0 0.0
    %548 = vmatprep.subr.mxu0 0.0
    %549 = vmatpush1.msra.mxu0 0.0
    %550 = vmatprep.subr.mxu0 0.0
    %551 = vmatpush1.msra.mxu0 0.0
    %552 = vmatprep.subr.mxu0 0.0
    %553 = vmatpush1.msra.mxu0 0.0
    %554 = vmatprep.subr.mxu0 0.0
    %555 = vmatpush1.msra.mxu0 0.0
    %556 = vmatprep.subr.mxu0 0.0
    %557 = vmatpush1.msra.mxu0 0.0
    %558 = vmatprep.subr.mxu0 0.0
    %559 = vmatpush1.msra.mxu0 0.0
    %560 = vmatprep.subr.mxu0 0.0
    %561 = vmatpush1.msra.mxu0 0.0
    %562 = vmatprep.subr.mxu0 0.0
    %563 = vmatpush1.msra.mxu0 0.0
    %564 = vmatprep.subr.mxu0 0.0
    %565 = vmatpush1.msra.mxu0 0.0
    %566 = vmatprep.subr.mxu0 0.0
    %567 = vmatpush1.msra.mxu0 0.0
    %568 = vmatprep.subr.mxu0 0.0
    %569 = vmatpush1.msra.mxu0 0.0
    %570 = vmatprep.subr.mxu0 0.0
    %571 = vmatpush1.msra.mxu0 0.0
    %572 = vmatprep.subr.mxu0 0.0
    %573 = vmatpush1.msra.mxu0 0.0
    %574 = vmatprep.subr.mxu0 0.0
    %575 = vmatpush1.msra.mxu0 0.0
    %576 = vmatprep.subr.mxu0 0.0
    %577 = vmatpush1.msra.mxu0 0.0
    %578 = vmatprep.subr.mxu0 0.0
    %579 = vmatpush1.msra.mxu0 0.0
    %580 = vmatprep.subr.mxu0 0.0
    %581 = vmatpush1.msra.mxu0 0.0
    %582 = vmatprep.subr.mxu0 0.0
    %583 = vmatpush1.msra.mxu0 0.0
    %584 = vmatprep.subr.mxu0 0.0
    %585 = vmatpush1.msra.mxu0 0.0
    %586 = vmatprep.subr.mxu0 0.0
    %587 = vmatpush1.msra.mxu0 0.0
    %588 = vmatprep.subr.mxu0 0.0
    %589 = vmatpush1.msra.mxu0 0.0
    %590 = vmatprep.subr.mxu0 0.0
    %591 = vmatpush1.msra.mxu0 0.0
    %592 = vmatprep.subr.mxu0 0.0
    %593 = vmatpush1.msra.mxu0 0.0
    %594 = vmatprep.subr.mxu0 0.0
    %595 = vmatpush1.msra.mxu0 0.0
    %596 = vmatprep.subr.mxu0 0.0
    %597 = vmatpush1.msra.mxu0 0.0
    %598 = vmatprep.subr.mxu0 0.0
    %599 = vmatpush1.msra.mxu0 0.0
    %600 = vmatprep.subr.mxu0 0.0
    %601 = vmatpush1.msra.mxu0 0.0
    %602 = vmatprep.subr.mxu0 0.0
    %603 = vmatpush1.msra.mxu0 0.0
    %604 = vmatprep.mubr.f32.mxu0 0.0
    %605 = vmatmul.mubr.f32.gmra.mrb[0].mxu0 %v538
    %v606 = vpop.f32.mrb[0].mxu0
    %v607 = vadd.f32 0.0, %v606
    %v608 = vpop.f32.mrb[0].mxu0
    %609 = vdwg.mxu0
    %v610 = vmul.f32 %v607, %v607
    %v611 = vsel %vm508, %v610, 0.0
    %612 = vadd.xlane.f32.xlu0 %v611
    %v613 = vpop.xlane.xlu0 %612
    %v614 = vrcp.pop 8.0
    %v615 = vmul.f32 %v613, %v614
    %v616 = vadd.f32 %v615, 1e-05
    %v617 = vrsqrt.pop %v616
    %v618 = vmul.f32 %v607, %v617
    %s619 = ssub.f32 1.0, %s218
    %v620 = vstv %s619
    %v621 = vmul.f32 %v618, %v620
    %622 = vst.msk [vmem:[#allocation2] sm:$0xff] %vm508, %v621
    %623 = vrot.lane.b32.xlu0 %v342, 120
    %v624 = vpop.permute.xlu0 %623
    %625 = vrot.lane.b32.xlu0 %v342, 88
    %v626 = vpop.permute.xlu0 %625
    %v627 = vsel %vm353, %v624, 0
    %v629 = vsel %vm353, %v626, 0
    %631 = vmatprep.subr.mxu0 0.0
    %632 = vmatpush1.xpose.msra.mxu0 %v629
    %633 = vmatprep.subr.mxu0 0.0
    %634 = vmatpush1.xpose.msra.mxu0 0.0
    %635 = vmatprep.subr.mxu0 0.0
    %636 = vmatpush1.xpose.msra.mxu0 0.0
    %637 = vmatprep.subr.mxu0 0.0
    %638 = vmatpush1.xpose.msra.mxu0 0.0
    %639 = vmatprep.subr.mxu0 0.0
    %640 = vmatpush1.xpose.msra.mxu0 0.0
    %641 = vmatprep.subr.mxu0 0.0
    %642 = vmatpush1.xpose.msra.mxu0 0.0
    %643 = vmatprep.subr.mxu0 0.0
    %644 = vmatpush1.xpose.msra.mxu0 0.0
    %645 = vmatprep.subr.mxu0 0.0
    %646 = vmatpush1.xpose.msra.mxu0 0.0
    %647 = vmatprep.subr.mxu0 0.0
    %648 = vmatpush1.xpose.msra.mxu0 0.0
    %649 = vmatprep.subr.mxu0 0.0
    %650 = vmatpush1.xpose.msra.mxu0 0.0
    %651 = vmatprep.subr.mxu0 0.0
    %652 = vmatpush1.xpose.msra.mxu0 0.0
    %653 = vmatprep.subr.mxu0 0.0
    %654 = vmatpush1.xpose.msra.mxu0 0.0
    %655 = vmatprep.subr.mxu0 0.0
    %656 = vmatpush1.xpose.msra.mxu0 0.0
    %657 = vmatprep.subr.mxu0 0.0
    %658 = vmatpush1.xpose.msra.mxu0 0.0
    %659 = vmatprep.subr.mxu0 0.0
    %660 = vmatpush1.xpose.msra.mxu0 0.0
    %661 = vmatprep.subr.mxu0 0.0
    %662 = vmatpush1.xpose.msra.mxu0 0.0
    %663 = vmatprep.subr.mxu0 0.0
    %664 = vmatpush1.xpose.msra.mxu0 0.0
    %665 = vmatprep.subr.mxu0 0.0
    %666 = vmatpush1.xpose.msra.mxu0 0.0
    %667 = vmatprep.subr.mxu0 0.0
    %668 = vmatpush1.xpose.msra.mxu0 0.0
    %669 = vmatprep.subr.mxu0 0.0
    %670 = vmatpush1.xpose.msra.mxu0 0.0
    %671 = vmatprep.subr.mxu0 0.0
    %672 = vmatpush1.xpose.msra.mxu0 0.0
    %673 = vmatprep.subr.mxu0 0.0
    %674 = vmatpush1.xpose.msra.mxu0 0.0
    %675 = vmatprep.subr.mxu0 0.0
    %676 = vmatpush1.xpose.msra.mxu0 0.0
    %677 = vmatprep.subr.mxu0 0.0
    %678 = vmatpush1.xpose.msra.mxu0 0.0
    %679 = vmatprep.subr.mxu0 0.0
    %680 = vmatpush1.xpose.msra.mxu0 0.0
    %681 = vmatprep.subr.mxu0 0.0
    %682 = vmatpush1.xpose.msra.mxu0 0.0
    %683 = vmatprep.subr.mxu0 0.0
    %684 = vmatpush1.xpose.msra.mxu0 0.0
    %685 = vmatprep.subr.mxu0 0.0
    %686 = vmatpush1.xpose.msra.mxu0 0.0
    %687 = vmatprep.subr.mxu0 0.0
    %688 = vmatpush1.xpose.msra.mxu0 0.0
    %689 = vmatprep.subr.mxu0 0.0
    %690 = vmatpush1.xpose.msra.mxu0 0.0
    %691 = vmatprep.subr.mxu0 0.0
    %692 = vmatpush1.xpose.msra.mxu0 0.0
    %693 = vmatprep.subr.mxu0 0.0
    %694 = vmatpush1.xpose.msra.mxu0 0.0
    %695 = vmatprep.mubr.f32.mxu0 0.0
    %696 = vmatmul.mubr.f32.gmra.mrb[0].mxu0 %v627
    %v697 = vpop.f32.mrb[0].mxu0
    %v698 = vadd.f32 0.0, %v697
    %v699 = vpop.f32.mrb[0].mxu0
    %700 = vdwg.mxu0
    %v701 = vmul.f32 %v698, 0.5
    %702 = vrot.lane.b32.xlu0 %v342, 116
    %v703 = vpop.permute.xlu0 %702
    %704 = vrot.lane.b32.xlu0 %v342, 84
    %v705 = vpop.permute.xlu0 %704
    %v706 = vsel %vm353, %v703, 0
    %v708 = vsel %vm353, %v705, 0
    %710 = vmatprep.subr.mxu0 0.0
    %711 = vmatpush1.xpose.msra.mxu0 %v708
    %712 = vmatprep.subr.mxu0 0.0
    %713 = vmatpush1.xpose.msra.mxu0 0.0
    %714 = vmatprep.subr.mxu0 0.0
    %715 = vmatpush1.xpose.msra.mxu0 0.0
    %716 = vmatprep.subr.mxu0 0.0
    %717 = vmatpush1.xpose.msra.mxu0 0.0
    %718 = vmatprep.subr.mxu0 0.0
    %719 = vmatpush1.xpose.msra.mxu0 0.0
    %720 = vmatprep.subr.mxu0 0.0
    %721 = vmatpush1.xpose.msra.mxu0 0.0
    %722 = vmatprep.subr.mxu0 0.0
    %723 = vmatpush1.xpose.msra.mxu0 0.0
    %724 = vmatprep.subr.mxu0 0.0
    %725 = vmatpush1.xpose.msra.mxu0 0.0
    %726 = vmatprep.subr.mxu0 0.0
    %727 = vmatpush1.xpose.msra.mxu0 0.0
    %728 = vmatprep.subr.mxu0 0.0
    %729 = vmatpush1.xpose.msra.mxu0 0.0
    %730 = vmatprep.subr.mxu0 0.0
    %731 = vmatpush1.xpose.msra.mxu0 0.0
    %732 = vmatprep.subr.mxu0 0.0
    %733 = vmatpush1.xpose.msra.mxu0 0.0
    %734 = vmatprep.subr.mxu0 0.0
    %735 = vmatpush1.xpose.msra.mxu0 0.0
    %736 = vmatprep.subr.mxu0 0.0
    %737 = vmatpush1.xpose.msra.mxu0 0.0
    %738 = vmatprep.subr.mxu0 0.0
    %739 = vmatpush1.xpose.msra.mxu0 0.0
    %740 = vmatprep.subr.mxu0 0.0
    %741 = vmatpush1.xpose.msra.mxu0 0.0
    %742 = vmatprep.subr.mxu0 0.0
    %743 = vmatpush1.xpose.msra.mxu0 0.0
    %744 = vmatprep.subr.mxu0 0.0
    %745 = vmatpush1.xpose.msra.mxu0 0.0
    %746 = vmatprep.subr.mxu0 0.0
    %747 = vmatpush1.xpose.msra.mxu0 0.0
    %748 = vmatprep.subr.mxu0 0.0
    %749 = vmatpush1.xpose.msra.mxu0 0.0
    %750 = vmatprep.subr.mxu0 0.0
    %751 = vmatpush1.xpose.msra.mxu0 0.0
    %752 = vmatprep.subr.mxu0 0.0
    %753 = vmatpush1.xpose.msra.mxu0 0.0
    %754 = vmatprep.subr.mxu0 0.0
    %755 = vmatpush1.xpose.msra.mxu0 0.0
    %756 = vmatprep.subr.mxu0 0.0
    %757 = vmatpush1.xpose.msra.mxu0 0.0
    %758 = vmatprep.subr.mxu0 0.0
    %759 = vmatpush1.xpose.msra.mxu0 0.0
    %760 = vmatprep.subr.mxu0 0.0
    %761 = vmatpush1.xpose.msra.mxu0 0.0
    %762 = vmatprep.subr.mxu0 0.0
    %763 = vmatpush1.xpose.msra.mxu0 0.0
    %764 = vmatprep.subr.mxu0 0.0
    %765 = vmatpush1.xpose.msra.mxu0 0.0
    %766 = vmatprep.subr.mxu0 0.0
    %767 = vmatpush1.xpose.msra.mxu0 0.0
    %768 = vmatprep.subr.mxu0 0.0
    %769 = vmatpush1.xpose.msra.mxu0 0.0
    %770 = vmatprep.subr.mxu0 0.0
    %771 = vmatpush1.xpose.msra.mxu0 0.0
    %772 = vmatprep.subr.mxu0 0.0
    %773 = vmatpush1.xpose.msra.mxu0 0.0
    %774 = vmatprep.mubr.f32.mxu0 0.0
    %775 = vmatmul.mubr.f32.gmra.mrb[0].mxu0 %v706
    %v776 = vpop.f32.mrb[0].mxu0
    %v777 = vadd.f32 0.0, %v776
    %v778 = vpop.f32.mrb[0].mxu0
    %779 = vdwg.mxu0
    %v780 = vmul.f32 %v777, 0.5
    %v781 = vsel %vm508, %v701, -inf
    %782 = vmax.xlane.f32.xlu0 %v781
    %v783 = vpop.xlane.xlu0 %782
    %v784 = vsub.f32 %v701, %v783
    %v785 = vmul.f32 %v784, 1.442695
    %v786 = vpow.pop %v785
    %v787 = vsel %vm508, %v786, 0.0
    %788 = vadd.xlane.f32.xlu0 %v787
    %v789 = vpop.xlane.xlu0 %788
    %v790 = vrcp.pop %v789
    %v791 = vmul.f32 %v786, %v790
    %v792 = vsel %vm508, %v780, -inf
    %793 = vmax.xlane.f32.xlu0 %v792
    %v794 = vpop.xlane.xlu0 %793
    %v795 = vsub.f32 %v780, %v794
    %v796 = vmul.f32 %v795, 1.442695
    %v797 = vpow.pop %v796
    %v798 = vsel %vm508, %v797, 0.0
    %799 = vadd.xlane.f32.xlu0 %v798
    %v800 = vpop.xlane.xlu0 %799
    %v801 = vrcp.pop %v800
    %v802 = vmul.f32 %v797, %v801
    %v803 = vmul.f32 %v531, %v802
    %v804 = vsub.f32 %v791, %v803
    %805 = vrot.lane.b32.xlu0 %v342, 56
    %v806 = vpop.permute.xlu0 %805
    %v809 = vsel %vm508, %v804, 0
    %811 = vmatprep.subr.mxu0 0.0
    %812 = vmatpush1.msra.mxu0 %v806
    %813 = vmatprep.subr.mxu0 0.0
    %814 = vmatpush1.msra.mxu0 0.0
    %815 = vmatprep.subr.mxu0 0.0
    %816 = vmatpush1.msra.mxu0 0.0
    %817 = vmatprep.subr.mxu0 0.0
    %818 = vmatpush1.msra.mxu0 0.0
    %819 = vmatprep.subr.mxu0 0.0
    %820 = vmatpush1.msra.mxu0 0.0
    %821 = vmatprep.subr.mxu0 0.0
    %822 = vmatpush1.msra.mxu0 0.0
    %823 = vmatprep.subr.mxu0 0.0
    %824 = vmatpush1.msra.mxu0 0.0
    %825 = vmatprep.subr.mxu0 0.0
    %826 = vmatpush1.msra.mxu0 0.0
    %827 = vmatprep.subr.mxu0 0.0
    %828 = vmatpush1.msra.mxu0 0.0
    %829 = vmatprep.subr.mxu0 0.0
    %830 = vmatpush1.msra.mxu0 0.0
    %831 = vmatprep.subr.mxu0 0.0
    %832 = vmatpush1.msra.mxu0 0.0
    %833 = vmatprep.subr.mxu0 0.0
    %834 = vmatpush1.msra.mxu0 0.0
    %835 = vmatprep.subr.mxu0 0.0
    %836 = vmatpush1.msra.mxu0 0.0
    %837 = vmatprep.subr.mxu0 0.0
    %838 = vmatpush1.msra.mxu0 0.0
    %839 = vmatprep.subr.mxu0 0.0
    %840 = vmatpush1.msra.mxu0 0.0
    %841 = vmatprep.subr.mxu0 0.0
    %842 = vmatpush1.msra.mxu0 0.0
    %843 = vmatprep.subr.mxu0 0.0
    %844 = vmatpush1.msra.mxu0 0.0
    %845 = vmatprep.subr.mxu0 0.0
    %846 = vmatpush1.msra.mxu0 0.0
    %847 = vmatprep.subr.mxu0 0.0
    %848 = vmatpush1.msra.mxu0 0.0
    %849 = vmatprep.subr.mxu0 0.0
    %850 = vmatpush1.msra.mxu0 0.0
    %851 = vmatprep.subr.mxu0 0.0
    %852 = vmatpush1.msra.mxu0 0.0
    %853 = vmatprep.subr.mxu0 0.0
    %854 = vmatpush1.msra.mxu0 0.0
    %855 = vmatprep.subr.mxu0 0.0
    %856 = vmatpush1.msra.mxu0 0.0
    %857 = vmatprep.subr.mxu0 0.0
    %858 = vmatpush1.msra.mxu0 0.0
    %859 = vmatprep.subr.mxu0 0.0
    %860 = vmatpush1.msra.mxu0 0.0
    %861 = vmatprep.subr.mxu0 0.0
    %862 = vmatpush1.msra.mxu0 0.0
    %863 = vmatprep.subr.mxu0 0.0
    %864 = vmatpush1.msra.mxu0 0.0
    %865 = vmatprep.subr.mxu0 0.0
    %866 = vmatpush1.msra.mxu0 0.0
    %867 = vmatprep.subr.mxu0 0.0
    %868 = vmatpush1.msra.mxu0 0.0
    %869 = vmatprep.subr.mxu0 0.0
    %870 = vmatpush1.msra.mxu0 0.0
    %871 = vmatprep.subr.mxu0 0.0
    %872 = vmatpush1.msra.mxu0 0.0
    %873 = vmatprep.subr.mxu0 0.0
    %874 = vmatpush1.msra.mxu0 0.0
    %875 = vmatprep.mubr.f32.mxu0 0.0
    %876 = vmatmul.mubr.f32.gmra.mrb[0].mxu0 %v809
    %v877 = vpop.f32.mrb[0].mxu0
    %v878 = vadd.f32 0.0, %v877
    %v879 = vpop.f32.mrb[0].mxu0
    %880 = vdwg.mxu0
    %v881 = vmul.f32 %v878, %v878
    %v882 = vsel %vm508, %v881, 0.0
    %883 = vadd.xlane.f32.xlu0 %v882
    %v884 = vpop.xlane.xlu0 %883
    %v885 = vmul.f32 %v884, %v614
    %v886 = vadd.f32 %v885, 1e-05
    %v887 = vrsqrt.pop %v886
    %v888 = vmul.f32 %v878, %v887
    %v889 = vmul.f32 %v888, %v620
    %891 = vrot.lane.b32.xlu0 %v889, 8
    %v892 = vpop.permute.xlu0 %891
    %vm894 = vcmask 130112
    %895 = vst.msk [vmem:[#allocation2] sm:$0xff] %vm894, %v892
    %896 = vrot.lane.b32.xlu0 %v342, 112
    %v897 = vpop.permute.xlu0 %896
    %898 = vrot.lane.b32.xlu0 %v342, 80
    %v899 = vpop.permute.xlu0 %898
    %v900 = vsel %vm353, %v897, 0
    %v902 = vsel %vm353, %v899, 0
    %904 = vmatprep.subr.mxu0 0.0
    %905 = vmatpush1.xpose.msra.mxu0 %v902
    %906 = vmatprep.subr.mxu0 0.0
    %907 = vmatpush1.xpose.msra.mxu0 0.0
    %908 = vmatprep.subr.mxu0 0.0
    %909 = vmatpush1.xpose.msra.mxu0 0.0
    %910 = vmatprep.subr.mxu0 0.0
    %911 = vmatpush1.xpose.msra.mxu0 0.0
    %912 = vmatprep.subr.mxu0 0.0
    %913 = vmatpush1.xpose.msra.mxu0 0.0
    %914 = vmatprep.subr.mxu0 0.0
    %915 = vmatpush1.xpose.msra.mxu0 0.0
    %916 = vmatprep.subr.mxu0 0.0
    %917 = vmatpush1.xpose.msra.mxu0 0.0
    %918 = vmatprep.subr.mxu0 0.0
    %919 = vmatpush1.xpose.msra.mxu0 0.0
    %920 = vmatprep.subr.mxu0 0.0
    %921 = vmatpush1.xpose.msra.mxu0 0.0
    %922 = vmatprep.subr.mxu0 0.0
    %923 = vmatpush1.xpose.msra.mxu0 0.0
    %924 = vmatprep.subr.mxu0 0.0
    %925 = vmatpush1.xpose.msra.mxu0 0.0
    %926 = vmatprep.subr.mxu0 0.0
    %927 = vmatpush1.xpose.msra.mxu0 0.0
    %928 = vmatprep.subr.mxu0 0.0
    %929 = vmatpush1.xpose.msra.mxu0 0.0
    %930 = vmatprep.subr.mxu0 0.0
    %931 = vmatpush1.xpose.msra.mxu0 0.0
    %932 = vmatprep.subr.mxu0 0.0
    %933 = vmatpush1.xpose.msra.mxu0 0.0
    %934 = vmatprep.subr.mxu0 0.0
    %935 = vmatpush1.xpose.msra.mxu0 0.0
    %936 = vmatprep.subr.mxu0 0.0
    %937 = vmatpush1.xpose.msra.mxu0 0.0
    %938 = vmatprep.subr.mxu0 0.0
    %939 = vmatpush1.xpose.msra.mxu0 0.0
    %940 = vmatprep.subr.mxu0 0.0
    %941 = vmatpush1.xpose.msra.mxu0 0.0
    %942 = vmatprep.subr.mxu0 0.0
    %943 = vmatpush1.xpose.msra.mxu0 0.0
    %944 = vmatprep.subr.mxu0 0.0
    %945 = vmatpush1.xpose.msra.mxu0 0.0
    %946 = vmatprep.subr.mxu0 0.0
    %947 = vmatpush1.xpose.msra.mxu0 0.0
    %948 = vmatprep.subr.mxu0 0.0
    %949 = vmatpush1.xpose.msra.mxu0 0.0
    %950 = vmatprep.subr.mxu0 0.0
    %951 = vmatpush1.xpose.msra.mxu0 0.0
    %952 = vmatprep.subr.mxu0 0.0
    %953 = vmatpush1.xpose.msra.mxu0 0.0
    %954 = vmatprep.subr.mxu0 0.0
    %955 = vmatpush1.xpose.msra.mxu0 0.0
    %956 = vmatprep.subr.mxu0 0.0
    %957 = vmatpush1.xpose.msra.mxu0 0.0
    %958 = vmatprep.subr.mxu0 0.0
    %959 = vmatpush1.xpose.msra.mxu0 0.0
    %960 = vmatprep.subr.mxu0 0.0
    %961 = vmatpush1.xpose.msra.mxu0 0.0
    %962 = vmatprep.subr.mxu0 0.0
    %963 = vmatpush1.xpose.msra.mxu0 0.0
    %964 = vmatprep.subr.mxu0 0.0
    %965 = vmatpush1.xpose.msra.mxu0 0.0
    %966 = vmatprep.subr.mxu0 0.0
    %967 = vmatpush1.xpose.msra.mxu0 0.0
    %968 = vmatprep.mubr.f32.mxu0 0.0
    %969 = vmatmul.mubr.f32.gmra.mrb[0].mxu0 %v900
    %v970 = vpop.f32.mrb[0].mxu0
    %v971 = vadd.f32 0.0, %v970
    %v972 = vpop.f32.mrb[0].mxu0
    %973 = vdwg.mxu0
    %v974 = vmul.f32 %v971, 0.5
    %975 = vrot.lane.b32.xlu0 %v342, 108
    %v976 = vpop.permute.xlu0 %975
    %977 = vrot.lane.b32.xlu0 %v342, 76
    %v978 = vpop.permute.xlu0 %977
    %v979 = vsel %vm353, %v976, 0
    %v981 = vsel %vm353, %v978, 0
    %983 = vmatprep.subr.mxu0 0.0
    %984 = vmatpush1.xpose.msra.mxu0 %v981
    %985 = vmatprep.subr.mxu0 0.0
    %986 = vmatpush1.xpose.msra.mxu0 0.0
    %987 = vmatprep.subr.mxu0 0.0
    %988 = vmatpush1.xpose.msra.mxu0 0.0
    %989 = vmatprep.subr.mxu0 0.0
    %990 = vmatpush1.xpose.msra.mxu0 0.0
    %991 = vmatprep.subr.mxu0 0.0
    %992 = vmatpush1.xpose.msra.mxu0 0.0
    %993 = vmatprep.subr.mxu0 0.0
    %994 = vmatpush1.xpose.msra.mxu0 0.0
    %995 = vmatprep.subr.mxu0 0.0
    %996 = vmatpush1.xpose.msra.mxu0 0.0
    %997 = vmatprep.subr.mxu0 0.0
    %998 = vmatpush1.xpose.msra.mxu0 0.0
    %999 = vmatprep.subr.mxu0 0.0
    %1000 = vmatpush1.xpose.msra.mxu0 0.0
    %1001 = vmatprep.subr.mxu0 0.0
    %1002 = vmatpush1.xpose.msra.mxu0 0.0
    %1003 = vmatprep.subr.mxu0 0.0
    %1004 = vmatpush1.xpose.msra.mxu0 0.0
    %1005 = vmatprep.subr.mxu0 0.0
    %1006 = vmatpush1.xpose.msra.mxu0 0.0
    %1007 = vmatprep.subr.mxu0 0.0
    %1008 = vmatpush1.xpose.msra.mxu0 0.0
    %1009 = vmatprep.subr.mxu0 0.0
    %1010 = vmatpush1.xpose.msra.mxu0 0.0
    %1011 = vmatprep.subr.mxu0 0.0
    %1012 = vmatpush1.xpose.msra.mxu0 0.0
    %1013 = vmatprep.subr.mxu0 0.0
    %1014 = vmatpush1.xpose.msra.mxu0 0.0
    %1015 = vmatprep.subr.mxu0 0.0
    %1016 = vmatpush1.xpose.msra.mxu0 0.0
    %1017 = vmatprep.subr.mxu0 0.0
    %1018 = vmatpush1.xpose.msra.mxu0 0.0
    %1019 = vmatprep.subr.mxu0 0.0
    %1020 = vmatpush1.xpose.msra.mxu0 0.0
    %1021 = vmatprep.subr.mxu0 0.0
    %1022 = vmatpush1.xpose.msra.mxu0 0.0
    %1023 = vmatprep.subr.mxu0 0.0
    %1024 = vmatpush1.xpose.msra.mxu0 0.0
    %1025 = vmatprep.subr.mxu0 0.0
    %1026 = vmatpush1.xpose.msra.mxu0 0.0
    %1027 = vmatprep.subr.mxu0 0.0
    %1028 = vmatpush1.xpose.msra.mxu0 0.0
    %1029 = vmatprep.subr.mxu0 0.0
    %1030 = vmatpush1.xpose.msra.mxu0 0.0
    %1031 = vmatprep.subr.mxu0 0.0
    %1032 = vmatpush1.xpose.msra.mxu0 0.0
    %1033 = vmatprep.subr.mxu0 0.0
    %1034 = vmatpush1.xpose.msra.mxu0 0.0
    %1035 = vmatprep.subr.mxu0 0.0
    %1036 = vmatpush1.xpose.msra.mxu0 0.0
    %1037 = vmatprep.subr.mxu0 0.0
    %1038 = vmatpush1.xpose.msra.mxu0 0.0
    %1039 = vmatprep.subr.mxu0 0.0
    %1040 = vmatpush1.xpose.msra.mxu0 0.0
    %1041 = vmatprep.subr.mxu0 0.0
    %1042 = vmatpush1.xpose.msra.mxu0 0.0
    %1043 = vmatprep.subr.mxu0 0.0
    %1044 = vmatpush1.xpose.msra.mxu0 0.0
    %1045 = vmatprep.subr.mxu0 0.0
    %1046 = vmatpush1.xpose.msra.mxu0 0.0
    %1047 = vmatprep.mubr.f32.mxu0 0.0
    %1048 = vmatmul.mubr.f32.gmra.mrb[0].mxu0 %v979
    %v1049 = vpop.f32.mrb[0].mxu0
    %v1050 = vadd.f32 0.0, %v1049
    %v1051 = vpop.f32.mrb[0].mxu0
    %1052 = vdwg.mxu0
    %v1053 = vmul.f32 %v1050, 0.5
    %v1054 = vsel %vm508, %v974, -inf
    %1055 = vmax.xlane.f32.xlu0 %v1054
    %v1056 = vpop.xlane.xlu0 %1055
    %v1057 = vsub.f32 %v974, %v1056
    %v1058 = vmul.f32 %v1057, 1.442695
    %v1059 = vpow.pop %v1058
    %v1060 = vsel %vm508, %v1059, 0.0
    %1061 = vadd.xlane.f32.xlu0 %v1060
    %v1062 = vpop.xlane.xlu0 %1061
    %v1063 = vrcp.pop %v1062
    %v1064 = vmul.f32 %v1059, %v1063
    %v1065 = vsel %vm508, %v1053, -inf
    %1066 = vmax.xlane.f32.xlu0 %v1065
    %v1067 = vpop.xlane.xlu0 %1066
    %v1068 = vsub.f32 %v1053, %v1067
    %v1069 = vmul.f32 %v1068, 1.442695
    %v1070 = vpow.pop %v1069
    %v1071 = vsel %vm508, %v1070, 0.0
    %1072 = vadd.xlane.f32.xlu0 %v1071
    %v1073 = vpop.xlane.xlu0 %1072
    %v1074 = vrcp.pop %v1073
    %v1075 = vmul.f32 %v1070, %v1074
    %v1076 = vmul.f32 %v531, %v1075
    %v1077 = vsub.f32 %v1064, %v1076
    %1078 = vrot.lane.b32.xlu0 %v342, 48
    %v1079 = vpop.permute.xlu0 %1078
    %v1082 = vsel %vm508, %v1077, 0
    %1084 = vmatprep.subr.mxu0 0.0
    %1085 = vmatpush1.msra.mxu0 %v1079
    %1086 = vmatprep.subr.mxu0 0.0
    %1087 = vmatpush1.msra.mxu0 0.0
    %1088 = vmatprep.subr.mxu0 0.0
    %1089 = vmatpush1.msra.mxu0 0.0
    %1090 = vmatprep.subr.mxu0 0.0
    %1091 = vmatpush1.msra.mxu0 0.0
    %1092 = vmatprep.subr.mxu0 0.0
    %1093 = vmatpush1.msra.mxu0 0.0
    %1094 = vmatprep.subr.mxu0 0.0
    %1095 = vmatpush1.msra.mxu0 0.0
    %1096 = vmatprep.subr.mxu0 0.0
    %1097 = vmatpush1.msra.mxu0 0.0
    %1098 = vmatprep.subr.mxu0 0.0
    %1099 = vmatpush1.msra.mxu0 0.0
    %1100 = vmatprep.subr.mxu0 0.0
    %1101 = vmatpush1.msra.mxu0 0.0
    %1102 = vmatprep.subr.mxu0 0.0
    %1103 = vmatpush1.msra.mxu0 0.0
    %1104 = vmatprep.subr.mxu0 0.0
    %1105 = vmatpush1.msra.mxu0 0.0
    %1106 = vmatprep.subr.mxu0 0.0
    %1107 = vmatpush1.msra.mxu0 0.0
    %1108 = vmatprep.subr.mxu0 0.0
    %1109 = vmatpush1.msra.mxu0 0.0
    %1110 = vmatprep.subr.mxu0 0.0
    %1111 = vmatpush1.msra.mxu0 0.0
    %1112 = vmatprep.subr.mxu0 0.0
    %1113 = vmatpush1.msra.mxu0 0.0
    %1114 = vmatprep.subr.mxu0 0.0
    %1115 = vmatpush1.msra.mxu0 0.0
    %1116 = vmatprep.subr.mxu0 0.0
    %1117 = vmatpush1.msra.mxu0 0.0
    %1118 = vmatprep.subr.mxu0 0.0
    %1119 = vmatpush1.msra.mxu0 0.0
    %1120 = vmatprep.subr.mxu0 0.0
    %1121 = vmatpush1.msra.mxu0 0.0
    %1122 = vmatprep.subr.mxu0 0.0
    %1123 = vmatpush1.msra.mxu0 0.0
    %1124 = vmatprep.subr.mxu0 0.0
    %1125 = vmatpush1.msra.mxu0 0.0
    %1126 = vmatprep.subr.mxu0 0.0
    %1127 = vmatpush1.msra.mxu0 0.0
    %1128 = vmatprep.subr.mxu0 0.0
    %1129 = vmatpush1.msra.mxu0 0.0
    %1130 = vmatprep.subr.mxu0 0.0
    %1131 = vmatpush1.msra.mxu0 0.0
    %1132 = vmatprep.subr.mxu0 0.0
    %1133 = vmatpush1.msra.mxu0 0.0
    %1134 = vmatprep.subr.mxu0 0.0
    %1135 = vmatpush1.msra.mxu0 0.0
    %1136 = vmatprep.subr.mxu0 0.0
    %1137 = vmatpush1.msra.mxu0 0.0
    %1138 = vmatprep.subr.mxu0 0.0
    %1139 = vmatpush1.msra.mxu0 0.0
    %1140 = vmatprep.subr.mxu0 0.0
    %1141 = vmatpush1.msra.mxu0 0.0
    %1142 = vmatprep.subr.mxu0 0.0
    %1143 = vmatpush1.msra.mxu0 0.0
    %1144 = vmatprep.subr.mxu0 0.0
    %1145 = vmatpush1.msra.mxu0 0.0
    %1146 = vmatprep.subr.mxu0 0.0
    %1147 = vmatpush1.msra.mxu0 0.0
    %1148 = vmatprep.mubr.f32.mxu0 0.0
    %1149 = vmatmul.mubr.f32.gmra.mrb[0].mxu0 %v1082
    %v1150 = vpop.f32.mrb[0].mxu0
    %v1151 = vadd.f32 0.0, %v1150
    %v1152 = vpop.f32.mrb[0].mxu0
    %1153 = vdwg.mxu0
    %v1154 = vmul.f32 %v1151, %v1151
    %v1155 = vsel %vm508, %v1154, 0.0
    %1156 = vadd.xlane.f32.xlu0 %v1155
    %v1157 = vpop.xlane.xlu0 %1156
    %v1158 = vmul.f32 %v1157, %v614
    %v1159 = vadd.f32 %v1158, 1e-05
    %v1160 = vrsqrt.pop %v1159
    %v1161 = vmul.f32 %v1151, %v1160
    %v1162 = vmul.f32 %v1161, %v620
    %1164 = vrot.lane.b32.xlu0 %v1162, 16
    %v1165 = vpop.permute.xlu0 %1164
    %vm1167 = vcmask 195712
    %1168 = vst.msk [vmem:[#allocation2] sm:$0xff] %vm1167, %v1165
    %1169 = vrot.lane.b32.xlu0 %v342, 104
    %v1170 = vpop.permute.xlu0 %1169
    %1171 = vrot.lane.b32.xlu0 %v342, 72
    %v1172 = vpop.permute.xlu0 %1171
    %v1173 = vsel %vm353, %v1170, 0
    %v1175 = vsel %vm353, %v1172, 0
    %1177 = vmatprep.subr.mxu0 0.0
    %1178 = vmatpush1.xpose.msra.mxu0 %v1175
    %1179 = vmatprep.subr.mxu0 0.0
    %1180 = vmatpush1.xpose.msra.mxu0 0.0
    %1181 = vmatprep.subr.mxu0 0.0
    %1182 = vmatpush1.xpose.msra.mxu0 0.0
    %1183 = vmatprep.subr.mxu0 0.0
    %1184 = vmatpush1.xpose.msra.mxu0 0.0
    %1185 = vmatprep.subr.mxu0 0.0
    %1186 = vmatpush1.xpose.msra.mxu0 0.0
    %1187 = vmatprep.subr.mxu0 0.0
    %1188 = vmatpush1.xpose.msra.mxu0 0.0
    %1189 = vmatprep.subr.mxu0 0.0
    %1190 = vmatpush1.xpose.msra.mxu0 0.0
    %1191 = vmatprep.subr.mxu0 0.0
    %1192 = vmatpush1.xpose.msra.mxu0 0.0
    %1193 = vmatprep.subr.mxu0 0.0
    %1194 = vmatpush1.xpose.msra.mxu0 0.0
    %1195 = vmatprep.subr.mxu0 0.0
    %1196 = vmatpush1.xpose.msra.mxu0 0.0
    %1197 = vmatprep.subr.mxu0 0.0
    %1198 = vmatpush1.xpose.msra.mxu0 0.0
    %1199 = vmatprep.subr.mxu0 0.0
    %1200 = vmatpush1.xpose.msra.mxu0 0.0
    %1201 = vmatprep.subr.mxu0 0.0
    %1202 = vmatpush1.xpose.msra.mxu0 0.0
    %1203 = vmatprep.subr.mxu0 0.0
    %1204 = vmatpush1.xpose.msra.mxu0 0.0
    %1205 = vmatprep.subr.mxu0 0.0
    %1206 = vmatpush1.xpose.msra.mxu0 0.0
    %1207 = vmatprep.subr.mxu0 0.0
    %1208 = vmatpush1.xpose.msra.mxu0 0.0
    %1209 = vmatprep.subr.mxu0 0.0
    %1210 = vmatpush1.xpose.msra.mxu0 0.0
    %1211 = vmatprep.subr.mxu0 0.0
    %1212 = vmatpush1.xpose.msra.mxu0 0.0
    %1213 = vmatprep.subr.mxu0 0.0
    %1214 = vmatpush1.xpose.msra.mxu0 0.0
    %1215 = vmatprep.subr.mxu0 0.0
    %1216 = vmatpush1.xpose.msra.mxu0 0.0
    %1217 = vmatprep.subr.mxu0 0.0
    %1218 = vmatpush1.xpose.msra.mxu0 0.0
    %1219 = vmatprep.subr.mxu0 0.0
    %1220 = vmatpush1.xpose.msra.mxu0 0.0
    %1221 = vmatprep.subr.mxu0 0.0
    %1222 = vmatpush1.xpose.msra.mxu0 0.0
    %1223 = vmatprep.subr.mxu0 0.0
    %1224 = vmatpush1.xpose.msra.mxu0 0.0
    %1225 = vmatprep.subr.mxu0 0.0
    %1226 = vmatpush1.xpose.msra.mxu0 0.0
    %1227 = vmatprep.subr.mxu0 0.0
    %1228 = vmatpush1.xpose.msra.mxu0 0.0
    %1229 = vmatprep.subr.mxu0 0.0
    %1230 = vmatpush1.xpose.msra.mxu0 0.0
    %1231 = vmatprep.subr.mxu0 0.0
    %1232 = vmatpush1.xpose.msra.mxu0 0.0
    %1233 = vmatprep.subr.mxu0 0.0
    %1234 = vmatpush1.xpose.msra.mxu0 0.0
    %1235 = vmatprep.subr.mxu0 0.0
    %1236 = vmatpush1.xpose.msra.mxu0 0.0
    %1237 = vmatprep.subr.mxu0 0.0
    %1238 = vmatpush1.xpose.msra.mxu0 0.0
    %1239 = vmatprep.subr.mxu0 0.0
    %1240 = vmatpush1.xpose.msra.mxu0 0.0
    %1241 = vmatprep.mubr.f32.mxu0 0.0
    %1242 = vmatmul.mubr.f32.gmra.mrb[0].mxu0 %v1173
    %v1243 = vpop.f32.mrb[0].mxu0
    %v1244 = vadd.f32 0.0, %v1243
    %v1245 = vpop.f32.mrb[0].mxu0
    %1246 = vdwg.mxu0
    %v1247 = vmul.f32 %v1244, 0.5
    %1248 = vrot.lane.b32.xlu0 %v342, 100
    %v1249 = vpop.permute.xlu0 %1248
    %1250 = vrot.lane.b32.xlu0 %v342, 68
    %v1251 = vpop.permute.xlu0 %1250
    %v1252 = vsel %vm353, %v1249, 0
    %v1254 = vsel %vm353, %v1251, 0
    %1256 = vmatprep.subr.mxu0 0.0
    %1257 = vmatpush1.xpose.msra.mxu0 %v1254
    %1258 = vmatprep.subr.mxu0 0.0
    %1259 = vmatpush1.xpose.msra.mxu0 0.0
    %1260 = vmatprep.subr.mxu0 0.0
    %1261 = vmatpush1.xpose.msra.mxu0 0.0
    %1262 = vmatprep.subr.mxu0 0.0
    %1263 = vmatpush1.xpose.msra.mxu0 0.0
    %1264 = vmatprep.subr.mxu0 0.0
    %1265 = vmatpush1.xpose.msra.mxu0 0.0
    %1266 = vmatprep.subr.mxu0 0.0
    %1267 = vmatpush1.xpose.msra.mxu0 0.0
    %1268 = vmatprep.subr.mxu0 0.0
    %1269 = vmatpush1.xpose.msra.mxu0 0.0
    %1270 = vmatprep.subr.mxu0 0.0
    %1271 = vmatpush1.xpose.msra.mxu0 0.0
    %1272 = vmatprep.subr.mxu0 0.0
    %1273 = vmatpush1.xpose.msra.mxu0 0.0
    %1274 = vmatprep.subr.mxu0 0.0
    %1275 = vmatpush1.xpose.msra.mxu0 0.0
    %1276 = vmatprep.subr.mxu0 0.0
    %1277 = vmatpush1.xpose.msra.mxu0 0.0
    %1278 = vmatprep.subr.mxu0 0.0
    %1279 = vmatpush1.xpose.msra.mxu0 0.0
    %1280 = vmatprep.subr.mxu0 0.0
    %1281 = vmatpush1.xpose.msra.mxu0 0.0
    %1282 = vmatprep.subr.mxu0 0.0
    %1283 = vmatpush1.xpose.msra.mxu0 0.0
    %1284 = vmatprep.subr.mxu0 0.0
    %1285 = vmatpush1.xpose.msra.mxu0 0.0
    %1286 = vmatprep.subr.mxu0 0.0
    %1287 = vmatpush1.xpose.msra.mxu0 0.0
    %1288 = vmatprep.subr.mxu0 0.0
    %1289 = vmatpush1.xpose.msra.mxu0 0.0
    %1290 = vmatprep.subr.mxu0 0.0
    %1291 = vmatpush1.xpose.msra.mxu0 0.0
    %1292 = vmatprep.subr.mxu0 0.0
    %1293 = vmatpush1.xpose.msra.mxu0 0.0
    %1294 = vmatprep.subr.mxu0 0.0
    %1295 = vmatpush1.xpose.msra.mxu0 0.0
    %1296 = vmatprep.subr.mxu0 0.0
    %1297 = vmatpush1.xpose.msra.mxu0 0.0
    %1298 = vmatprep.subr.mxu0 0.0
    %1299 = vmatpush1.xpose.msra.mxu0 0.0
    %1300 = vmatprep.subr.mxu0 0.0
    %1301 = vmatpush1.xpose.msra.mxu0 0.0
    %1302 = vmatprep.subr.mxu0 0.0
    %1303 = vmatpush1.xpose.msra.mxu0 0.0
    %1304 = vmatprep.subr.mxu0 0.0
    %1305 = vmatpush1.xpose.msra.mxu0 0.0
    %1306 = vmatprep.subr.mxu0 0.0
    %1307 = vmatpush1.xpose.msra.mxu0 0.0
    %1308 = vmatprep.subr.mxu0 0.0
    %1309 = vmatpush1.xpose.msra.mxu0 0.0
    %1310 = vmatprep.subr.mxu0 0.0
    %1311 = vmatpush1.xpose.msra.mxu0 0.0
    %1312 = vmatprep.subr.mxu0 0.0
    %1313 = vmatpush1.xpose.msra.mxu0 0.0
    %1314 = vmatprep.subr.mxu0 0.0
    %1315 = vmatpush1.xpose.msra.mxu0 0.0
    %1316 = vmatprep.subr.mxu0 0.0
    %1317 = vmatpush1.xpose.msra.mxu0 0.0
    %1318 = vmatprep.subr.mxu0 0.0
    %1319 = vmatpush1.xpose.msra.mxu0 0.0
    %1320 = vmatprep.mubr.f32.mxu0 0.0
    %1321 = vmatmul.mubr.f32.gmra.mrb[0].mxu0 %v1252
    %v1322 = vpop.f32.mrb[0].mxu0
    %v1323 = vadd.f32 0.0, %v1322
    %v1324 = vpop.f32.mrb[0].mxu0
    %1325 = vdwg.mxu0
    %v1326 = vmul.f32 %v1323, 0.5
    %v1327 = vsel %vm508, %v1247, -inf
    %1328 = vmax.xlane.f32.xlu0 %v1327
    %v1329 = vpop.xlane.xlu0 %1328
    %v1330 = vsub.f32 %v1247, %v1329
    %v1331 = vmul.f32 %v1330, 1.442695
    %v1332 = vpow.pop %v1331
    %v1333 = vsel %vm508, %v1332, 0.0
    %1334 = vadd.xlane.f32.xlu0 %v1333
    %v1335 = vpop.xlane.xlu0 %1334
    %v1336 = vrcp.pop %v1335
    %v1337 = vmul.f32 %v1332, %v1336
    %v1338 = vsel %vm508, %v1326, -inf
    %1339 = vmax.xlane.f32.xlu0 %v1338
    %v1340 = vpop.xlane.xlu0 %1339
    %v1341 = vsub.f32 %v1326, %v1340
    %v1342 = vmul.f32 %v1341, 1.442695
    %v1343 = vpow.pop %v1342
    %v1344 = vsel %vm508, %v1343, 0.0
    %1345 = vadd.xlane.f32.xlu0 %v1344
    %v1346 = vpop.xlane.xlu0 %1345
    %v1347 = vrcp.pop %v1346
    %v1348 = vmul.f32 %v1343, %v1347
    %v1349 = vmul.f32 %v531, %v1348
    %v1350 = vsub.f32 %v1337, %v1349
    %1351 = vrot.lane.b32.xlu0 %v342, 40
    %v1352 = vpop.permute.xlu0 %1351
    %v1355 = vsel %vm508, %v1350, 0
    %1357 = vmatprep.subr.mxu0 0.0
    %1358 = vmatpush1.msra.mxu0 %v1352
    %1359 = vmatprep.subr.mxu0 0.0
    %1360 = vmatpush1.msra.mxu0 0.0
    %1361 = vmatprep.subr.mxu0 0.0
    %1362 = vmatpush1.msra.mxu0 0.0
    %1363 = vmatprep.subr.mxu0 0.0
    %1364 = vmatpush1.msra.mxu0 0.0
    %1365 = vmatprep.subr.mxu0 0.0
    %1366 = vmatpush1.msra.mxu0 0.0
    %1367 = vmatprep.subr.mxu0 0.0
    %1368 = vmatpush1.msra.mxu0 0.0
    %1369 = vmatprep.subr.mxu0 0.0
    %1370 = vmatpush1.msra.mxu0 0.0
    %1371 = vmatprep.subr.mxu0 0.0
    %1372 = vmatpush1.msra.mxu0 0.0
    %1373 = vmatprep.subr.mxu0 0.0
    %1374 = vmatpush1.msra.mxu0 0.0
    %1375 = vmatprep.subr.mxu0 0.0
    %1376 = vmatpush1.msra.mxu0 0.0
    %1377 = vmatprep.subr.mxu0 0.0
    %1378 = vmatpush1.msra.mxu0 0.0
    %1379 = vmatprep.subr.mxu0 0.0
    %1380 = vmatpush1.msra.mxu0 0.0
    %1381 = vmatprep.subr.mxu0 0.0
    %1382 = vmatpush1.msra.mxu0 0.0
    %1383 = vmatprep.subr.mxu0 0.0
    %1384 = vmatpush1.msra.mxu0 0.0
    %1385 = vmatprep.subr.mxu0 0.0
    %1386 = vmatpush1.msra.mxu0 0.0
    %1387 = vmatprep.subr.mxu0 0.0
    %1388 = vmatpush1.msra.mxu0 0.0
    %1389 = vmatprep.subr.mxu0 0.0
    %1390 = vmatpush1.msra.mxu0 0.0
    %1391 = vmatprep.subr.mxu0 0.0
    %1392 = vmatpush1.msra.mxu0 0.0
    %1393 = vmatprep.subr.mxu0 0.0
    %1394 = vmatpush1.msra.mxu0 0.0
    %1395 = vmatprep.subr.mxu0 0.0
    %1396 = vmatpush1.msra.mxu0 0.0
    %1397 = vmatprep.subr.mxu0 0.0
    %1398 = vmatpush1.msra.mxu0 0.0
    %1399 = vmatprep.subr.mxu0 0.0
    %1400 = vmatpush1.msra.mxu0 0.0
    %1401 = vmatprep.subr.mxu0 0.0
    %1402 = vmatpush1.msra.mxu0 0.0
    %1403 = vmatprep.subr.mxu0 0.0
    %1404 = vmatpush1.msra.mxu0 0.0
    %1405 = vmatprep.subr.mxu0 0.0
    %1406 = vmatpush1.msra.mxu0 0.0
    %1407 = vmatprep.subr.mxu0 0.0
    %1408 = vmatpush1.msra.mxu0 0.0
    %1409 = vmatprep.subr.mxu0 0.0
    %1410 = vmatpush1.msra.mxu0 0.0
    %1411 = vmatprep.subr.mxu0 0.0
    %1412 = vmatpush1.msra.mxu0 0.0
    %1413 = vmatprep.subr.mxu0 0.0
    %1414 = vmatpush1.msra.mxu0 0.0
    %1415 = vmatprep.subr.mxu0 0.0
    %1416 = vmatpush1.msra.mxu0 0.0
    %1417 = vmatprep.subr.mxu0 0.0
    %1418 = vmatpush1.msra.mxu0 0.0
    %1419 = vmatprep.subr.mxu0 0.0
    %1420 = vmatpush1.msra.mxu0 0.0
    %1421 = vmatprep.mubr.f32.mxu0 0.0
    %1422 = vmatmul.mubr.f32.gmra.mrb[0].mxu0 %v1355
    %v1423 = vpop.f32.mrb[0].mxu0
    %v1424 = vadd.f32 0.0, %v1423
    %v1425 = vpop.f32.mrb[0].mxu0
    %1426 = vdwg.mxu0
    %v1427 = vmul.f32 %v1424, %v1424
    %v1428 = vsel %vm508, %v1427, 0.0
    %1429 = vadd.xlane.f32.xlu0 %v1428
    %v1430 = vpop.xlane.xlu0 %1429
    %v1431 = vmul.f32 %v1430, %v614
    %v1432 = vadd.f32 %v1431, 1e-05
    %v1433 = vrsqrt.pop %v1432
    %v1434 = vmul.f32 %v1424, %v1433
    %v1435 = vmul.f32 %v1434, %v620
    %1437 = vrot.lane.b32.xlu0 %v1435, 24
    %v1438 = vpop.permute.xlu0 %1437
    %vm1440 = vcmask 261312
    %1441 = vst.msk [vmem:[#allocation2] sm:$0xff] %vm1440, %v1438
    %1443 = vrot.lane.b32.xlu0 %v347, 96
    %v1444 = vpop.permute.xlu0 %1443
    %v1445 = vsel %vm353, %v347, 0
    %v1447 = vsel %vm353, %v1444, 0
    %1449 = vmatprep.subr.mxu0 0.0
    %1450 = vmatpush1.xpose.msra.mxu0 %v1447
    %1451 = vmatprep.subr.mxu0 0.0
    %1452 = vmatpush1.xpose.msra.mxu0 0.0
    %1453 = vmatprep.subr.mxu0 0.0
    %1454 = vmatpush1.xpose.msra.mxu0 0.0
    %1455 = vmatprep.subr.mxu0 0.0
    %1456 = vmatpush1.xpose.msra.mxu0 0.0
    %1457 = vmatprep.subr.mxu0 0.0
    %1458 = vmatpush1.xpose.msra.mxu0 0.0
    %1459 = vmatprep.subr.mxu0 0.0
    %1460 = vmatpush1.xpose.msra.mxu0 0.0
    %1461 = vmatprep.subr.mxu0 0.0
    %1462 = vmatpush1.xpose.msra.mxu0 0.0
    %1463 = vmatprep.subr.mxu0 0.0
    %1464 = vmatpush1.xpose.msra.mxu0 0.0
    %1465 = vmatprep.subr.mxu0 0.0
    %1466 = vmatpush1.xpose.msra.mxu0 0.0
    %1467 = vmatprep.subr.mxu0 0.0
    %1468 = vmatpush1.xpose.msra.mxu0 0.0
    %1469 = vmatprep.subr.mxu0 0.0
    %1470 = vmatpush1.xpose.msra.mxu0 0.0
    %1471 = vmatprep.subr.mxu0 0.0
    %1472 = vmatpush1.xpose.msra.mxu0 0.0
    %1473 = vmatprep.subr.mxu0 0.0
    %1474 = vmatpush1.xpose.msra.mxu0 0.0
    %1475 = vmatprep.subr.mxu0 0.0
    %1476 = vmatpush1.xpose.msra.mxu0 0.0
    %1477 = vmatprep.subr.mxu0 0.0
    %1478 = vmatpush1.xpose.msra.mxu0 0.0
    %1479 = vmatprep.subr.mxu0 0.0
    %1480 = vmatpush1.xpose.msra.mxu0 0.0
    %1481 = vmatprep.subr.mxu0 0.0
    %1482 = vmatpush1.xpose.msra.mxu0 0.0
    %1483 = vmatprep.subr.mxu0 0.0
    %1484 = vmatpush1.xpose.msra.mxu0 0.0
    %1485 = vmatprep.subr.mxu0 0.0
    %1486 = vmatpush1.xpose.msra.mxu0 0.0
    %1487 = vmatprep.subr.mxu0 0.0
    %1488 = vmatpush1.xpose.msra.mxu0 0.0
    %1489 = vmatprep.subr.mxu0 0.0
    %1490 = vmatpush1.xpose.msra.mxu0 0.0
    %1491 = vmatprep.subr.mxu0 0.0
    %1492 = vmatpush1.xpose.msra.mxu0 0.0
    %1493 = vmatprep.subr.mxu0 0.0
    %1494 = vmatpush1.xpose.msra.mxu0 0.0
    %1495 = vmatprep.subr.mxu0 0.0
    %1496 = vmatpush1.xpose.msra.mxu0 0.0
    %1497 = vmatprep.subr.mxu0 0.0
    %1498 = vmatpush1.xpose.msra.mxu0 0.0
    %1499 = vmatprep.subr.mxu0 0.0
    %1500 = vmatpush1.xpose.msra.mxu0 0.0
    %1501 = vmatprep.subr.mxu0 0.0
    %1502 = vmatpush1.xpose.msra.mxu0 0.0
    %1503 = vmatprep.subr.mxu0 0.0
    %1504 = vmatpush1.xpose.msra.mxu0 0.0
    %1505 = vmatprep.subr.mxu0 0.0
    %1506 = vmatpush1.xpose.msra.mxu0 0.0
    %1507 = vmatprep.subr.mxu0 0.0
    %1508 = vmatpush1.xpose.msra.mxu0 0.0
    %1509 = vmatprep.subr.mxu0 0.0
    %1510 = vmatpush1.xpose.msra.mxu0 0.0
    %1511 = vmatprep.subr.mxu0 0.0
    %1512 = vmatpush1.xpose.msra.mxu0 0.0
    %1513 = vmatprep.mubr.f32.mxu0 0.0
    %1514 = vmatmul.mubr.f32.gmra.mrb[0].mxu0 %v1445
    %v1515 = vpop.f32.mrb[0].mxu0
    %v1516 = vadd.f32 0.0, %v1515
    %v1517 = vpop.f32.mrb[0].mxu0
    %1518 = vdwg.mxu0
    %v1519 = vmul.f32 %v1516, 0.5
    %1520 = vrot.lane.b32.xlu0 %v347, 124
    %v1521 = vpop.permute.xlu0 %1520
    %1522 = vrot.lane.b32.xlu0 %v347, 92
    %v1523 = vpop.permute.xlu0 %1522
    %v1524 = vsel %vm353, %v1521, 0
    %v1526 = vsel %vm353, %v1523, 0
    %1528 = vmatprep.subr.mxu0 0.0
    %1529 = vmatpush1.xpose.msra.mxu0 %v1526
    %1530 = vmatprep.subr.mxu0 0.0
    %1531 = vmatpush1.xpose.msra.mxu0 0.0
    %1532 = vmatprep.subr.mxu0 0.0
    %1533 = vmatpush1.xpose.msra.mxu0 0.0
    %1534 = vmatprep.subr.mxu0 0.0
    %1535 = vmatpush1.xpose.msra.mxu0 0.0
    %1536 = vmatprep.subr.mxu0 0.0
    %1537 = vmatpush1.xpose.msra.mxu0 0.0
    %1538 = vmatprep.subr.mxu0 0.0
    %1539 = vmatpush1.xpose.msra.mxu0 0.0
    %1540 = vmatprep.subr.mxu0 0.0
    %1541 = vmatpush1.xpose.msra.mxu0 0.0
    %1542 = vmatprep.subr.mxu0 0.0
    %1543 = vmatpush1.xpose.msra.mxu0 0.0
    %1544 = vmatprep.subr.mxu0 0.0
    %1545 = vmatpush1.xpose.msra.mxu0 0.0
    %1546 = vmatprep.subr.mxu0 0.0
    %1547 = vmatpush1.xpose.msra.mxu0 0.0
    %1548 = vmatprep.subr.mxu0 0.0
    %1549 = vmatpush1.xpose.msra.mxu0 0.0
    %1550 = vmatprep.subr.mxu0 0.0
    %1551 = vmatpush1.xpose.msra.mxu0 0.0
    %1552 = vmatprep.subr.mxu0 0.0
    %1553 = vmatpush1.xpose.msra.mxu0 0.0
    %1554 = vmatprep.subr.mxu0 0.0
    %1555 = vmatpush1.xpose.msra.mxu0 0.0
    %1556 = vmatprep.subr.mxu0 0.0
    %1557 = vmatpush1.xpose.msra.mxu0 0.0
    %1558 = vmatprep.subr.mxu0 0.0
    %1559 = vmatpush1.xpose.msra.mxu0 0.0
    %1560 = vmatprep.subr.mxu0 0.0
    %1561 = vmatpush1.xpose.msra.mxu0 0.0
    %1562 = vmatprep.subr.mxu0 0.0
    %1563 = vmatpush1.xpose.msra.mxu0 0.0
    %1564 = vmatprep.subr.mxu0 0.0
    %1565 = vmatpush1.xpose.msra.mxu0 0.0
    %1566 = vmatprep.subr.mxu0 0.0
    %1567 = vmatpush1.xpose.msra.mxu0 0.0
    %1568 = vmatprep.subr.mxu0 0.0
    %1569 = vmatpush1.xpose.msra.mxu0 0.0
    %1570 = vmatprep.subr.mxu0 0.0
    %1571 = vmatpush1.xpose.msra.mxu0 0.0
    %1572 = vmatprep.subr.mxu0 0.0
    %1573 = vmatpush1.xpose.msra.mxu0 0.0
    %1574 = vmatprep.subr.mxu0 0.0
    %1575 = vmatpush1.xpose.msra.mxu0 0.0
    %1576 = vmatprep.subr.mxu0 0.0
    %1577 = vmatpush1.xpose.msra.mxu0 0.0
    %1578 = vmatprep.subr.mxu0 0.0
    %1579 = vmatpush1.xpose.msra.mxu0 0.0
    %1580 = vmatprep.subr.mxu0 0.0
    %1581 = vmatpush1.xpose.msra.mxu0 0.0
    %1582 = vmatprep.subr.mxu0 0.0
    %1583 = vmatpush1.xpose.msra.mxu0 0.0
    %1584 = vmatprep.subr.mxu0 0.0
    %1585 = vmatpush1.xpose.msra.mxu0 0.0
    %1586 = vmatprep.subr.mxu0 0.0
    %1587 = vmatpush1.xpose.msra.mxu0 0.0
    %1588 = vmatprep.subr.mxu0 0.0
    %1589 = vmatpush1.xpose.msra.mxu0 0.0
    %1590 = vmatprep.subr.mxu0 0.0
    %1591 = vmatpush1.xpose.msra.mxu0 0.0
    %1592 = vmatprep.mubr.f32.mxu0 0.0
    %1593 = vmatmul.mubr.f32.gmra.mrb[0].mxu0 %v1524
    %v1594 = vpop.f32.mrb[0].mxu0
    %v1595 = vadd.f32 0.0, %v1594
    %v1596 = vpop.f32.mrb[0].mxu0
    %1597 = vdwg.mxu0
    %v1598 = vmul.f32 %v1595, 0.5
    %v1599 = vsel %vm508, %v1519, -inf
    %1600 = vmax.xlane.f32.xlu0 %v1599
    %v1601 = vpop.xlane.xlu0 %1600
    %v1602 = vsub.f32 %v1519, %v1601
    %v1603 = vmul.f32 %v1602, 1.442695
    %v1604 = vpow.pop %v1603
    %v1605 = vsel %vm508, %v1604, 0.0
    %1606 = vadd.xlane.f32.xlu0 %v1605
    %v1607 = vpop.xlane.xlu0 %1606
    %v1608 = vrcp.pop %v1607
    %v1609 = vmul.f32 %v1604, %v1608
    %v1610 = vsel %vm508, %v1598, -inf
    %1611 = vmax.xlane.f32.xlu0 %v1610
    %v1612 = vpop.xlane.xlu0 %1611
    %v1613 = vsub.f32 %v1598, %v1612
    %v1614 = vmul.f32 %v1613, 1.442695
    %v1615 = vpow.pop %v1614
    %v1616 = vsel %vm508, %v1615, 0.0
    %1617 = vadd.xlane.f32.xlu0 %v1616
    %v1618 = vpop.xlane.xlu0 %1617
    %v1619 = vrcp.pop %v1618
    %v1620 = vmul.f32 %v1615, %v1619
    %v1621 = vmul.f32 %v531, %v1620
    %v1622 = vsub.f32 %v1609, %v1621
    %1623 = vrot.lane.b32.xlu0 %v347, 64
    %v1624 = vpop.permute.xlu0 %1623
    %v1627 = vsel %vm508, %v1622, 0
    %1629 = vmatprep.subr.mxu0 0.0
    %1630 = vmatpush1.msra.mxu0 %v1624
    %1631 = vmatprep.subr.mxu0 0.0
    %1632 = vmatpush1.msra.mxu0 0.0
    %1633 = vmatprep.subr.mxu0 0.0
    %1634 = vmatpush1.msra.mxu0 0.0
    %1635 = vmatprep.subr.mxu0 0.0
    %1636 = vmatpush1.msra.mxu0 0.0
    %1637 = vmatprep.subr.mxu0 0.0
    %1638 = vmatpush1.msra.mxu0 0.0
    %1639 = vmatprep.subr.mxu0 0.0
    %1640 = vmatpush1.msra.mxu0 0.0
    %1641 = vmatprep.subr.mxu0 0.0
    %1642 = vmatpush1.msra.mxu0 0.0
    %1643 = vmatprep.subr.mxu0 0.0
    %1644 = vmatpush1.msra.mxu0 0.0
    %1645 = vmatprep.subr.mxu0 0.0
    %1646 = vmatpush1.msra.mxu0 0.0
    %1647 = vmatprep.subr.mxu0 0.0
    %1648 = vmatpush1.msra.mxu0 0.0
    %1649 = vmatprep.subr.mxu0 0.0
    %1650 = vmatpush1.msra.mxu0 0.0
    %1651 = vmatprep.subr.mxu0 0.0
    %1652 = vmatpush1.msra.mxu0 0.0
    %1653 = vmatprep.subr.mxu0 0.0
    %1654 = vmatpush1.msra.mxu0 0.0
    %1655 = vmatprep.subr.mxu0 0.0
    %1656 = vmatpush1.msra.mxu0 0.0
    %1657 = vmatprep.subr.mxu0 0.0
    %1658 = vmatpush1.msra.mxu0 0.0
    %1659 = vmatprep.subr.mxu0 0.0
    %1660 = vmatpush1.msra.mxu0 0.0
    %1661 = vmatprep.subr.mxu0 0.0
    %1662 = vmatpush1.msra.mxu0 0.0
    %1663 = vmatprep.subr.mxu0 0.0
    %1664 = vmatpush1.msra.mxu0 0.0
    %1665 = vmatprep.subr.mxu0 0.0
    %1666 = vmatpush1.msra.mxu0 0.0
    %1667 = vmatprep.subr.mxu0 0.0
    %1668 = vmatpush1.msra.mxu0 0.0
    %1669 = vmatprep.subr.mxu0 0.0
    %1670 = vmatpush1.msra.mxu0 0.0
    %1671 = vmatprep.subr.mxu0 0.0
    %1672 = vmatpush1.msra.mxu0 0.0
    %1673 = vmatprep.subr.mxu0 0.0
    %1674 = vmatpush1.msra.mxu0 0.0
    %1675 = vmatprep.subr.mxu0 0.0
    %1676 = vmatpush1.msra.mxu0 0.0
    %1677 = vmatprep.subr.mxu0 0.0
    %1678 = vmatpush1.msra.mxu0 0.0
    %1679 = vmatprep.subr.mxu0 0.0
    %1680 = vmatpush1.msra.mxu0 0.0
    %1681 = vmatprep.subr.mxu0 0.0
    %1682 = vmatpush1.msra.mxu0 0.0
    %1683 = vmatprep.subr.mxu0 0.0
    %1684 = vmatpush1.msra.mxu0 0.0
    %1685 = vmatprep.subr.mxu0 0.0
    %1686 = vmatpush1.msra.mxu0 0.0
    %1687 = vmatprep.subr.mxu0 0.0
    %1688 = vmatpush1.msra.mxu0 0.0
    %1689 = vmatprep.subr.mxu0 0.0
    %1690 = vmatpush1.msra.mxu0 0.0
    %1691 = vmatprep.subr.mxu0 0.0
    %1692 = vmatpush1.msra.mxu0 0.0
    %1693 = vmatprep.mubr.f32.mxu0 0.0
    %1694 = vmatmul.mubr.f32.gmra.mrb[0].mxu0 %v1627
    %v1695 = vpop.f32.mrb[0].mxu0
    %v1696 = vadd.f32 0.0, %v1695
    %v1697 = vpop.f32.mrb[0].mxu0
    %1698 = vdwg.mxu0
    %v1699 = vmul.f32 %v1696, %v1696
    %v1700 = vsel %vm508, %v1699, 0.0
    %1701 = vadd.xlane.f32.xlu0 %v1700
    %v1702 = vpop.xlane.xlu0 %1701
    %v1703 = vmul.f32 %v1702, %v614
    %v1704 = vadd.f32 %v1703, 1e-05
    %v1705 = vrsqrt.pop %v1704
    %v1706 = vmul.f32 %v1696, %v1705
    %v1707 = vmul.f32 %v1706, %v620
    %1708 = vst.msk [vmem:[#allocation2 + $0x8] sm:$0xff] %vm508, %v1707
    %1709 = vrot.lane.b32.xlu0 %v347, 120
    %v1710 = vpop.permute.xlu0 %1709
    %1711 = vrot.lane.b32.xlu0 %v347, 88
    %v1712 = vpop.permute.xlu0 %1711
    %v1713 = vsel %vm353, %v1710, 0
    %v1715 = vsel %vm353, %v1712, 0
    %1717 = vmatprep.subr.mxu0 0.0
    %1718 = vmatpush1.xpose.msra.mxu0 %v1715
    %1719 = vmatprep.subr.mxu0 0.0
    %1720 = vmatpush1.xpose.msra.mxu0 0.0
    %1721 = vmatprep.subr.mxu0 0.0
    %1722 = vmatpush1.xpose.msra.mxu0 0.0
    %1723 = vmatprep.subr.mxu0 0.0
    %1724 = vmatpush1.xpose.msra.mxu0 0.0
    %1725 = vmatprep.subr.mxu0 0.0
    %1726 = vmatpush1.xpose.msra.mxu0 0.0
    %1727 = vmatprep.subr.mxu0 0.0
    %1728 = vmatpush1.xpose.msra.mxu0 0.0
    %1729 = vmatprep.subr.mxu0 0.0
    %1730 = vmatpush1.xpose.msra.mxu0 0.0
    %1731 = vmatprep.subr.mxu0 0.0
    %1732 = vmatpush1.xpose.msra.mxu0 0.0
    %1733 = vmatprep.subr.mxu0 0.0
    %1734 = vmatpush1.xpose.msra.mxu0 0.0
    %1735 = vmatprep.subr.mxu0 0.0
    %1736 = vmatpush1.xpose.msra.mxu0 0.0
    %1737 = vmatprep.subr.mxu0 0.0
    %1738 = vmatpush1.xpose.msra.mxu0 0.0
    %1739 = vmatprep.subr.mxu0 0.0
    %1740 = vmatpush1.xpose.msra.mxu0 0.0
    %1741 = vmatprep.subr.mxu0 0.0
    %1742 = vmatpush1.xpose.msra.mxu0 0.0
    %1743 = vmatprep.subr.mxu0 0.0
    %1744 = vmatpush1.xpose.msra.mxu0 0.0
    %1745 = vmatprep.subr.mxu0 0.0
    %1746 = vmatpush1.xpose.msra.mxu0 0.0
    %1747 = vmatprep.subr.mxu0 0.0
    %1748 = vmatpush1.xpose.msra.mxu0 0.0
    %1749 = vmatprep.subr.mxu0 0.0
    %1750 = vmatpush1.xpose.msra.mxu0 0.0
    %1751 = vmatprep.subr.mxu0 0.0
    %1752 = vmatpush1.xpose.msra.mxu0 0.0
    %1753 = vmatprep.subr.mxu0 0.0
    %1754 = vmatpush1.xpose.msra.mxu0 0.0
    %1755 = vmatprep.subr.mxu0 0.0
    %1756 = vmatpush1.xpose.msra.mxu0 0.0
    %1757 = vmatprep.subr.mxu0 0.0
    %1758 = vmatpush1.xpose.msra.mxu0 0.0
    %1759 = vmatprep.subr.mxu0 0.0
    %1760 = vmatpush1.xpose.msra.mxu0 0.0
    %1761 = vmatprep.subr.mxu0 0.0
    %1762 = vmatpush1.xpose.msra.mxu0 0.0
    %1763 = vmatprep.subr.mxu0 0.0
    %1764 = vmatpush1.xpose.msra.mxu0 0.0
    %1765 = vmatprep.subr.mxu0 0.0
    %1766 = vmatpush1.xpose.msra.mxu0 0.0
    %1767 = vmatprep.subr.mxu0 0.0
    %1768 = vmatpush1.xpose.msra.mxu0 0.0
    %1769 = vmatprep.subr.mxu0 0.0
    %1770 = vmatpush1.xpose.msra.mxu0 0.0
    %1771 = vmatprep.subr.mxu0 0.0
    %1772 = vmatpush1.xpose.msra.mxu0 0.0
    %1773 = vmatprep.subr.mxu0 0.0
    %1774 = vmatpush1.xpose.msra.mxu0 0.0
    %1775 = vmatprep.subr.mxu0 0.0
    %1776 = vmatpush1.xpose.msra.mxu0 0.0
    %1777 = vmatprep.subr.mxu0 0.0
    %1778 = vmatpush1.xpose.msra.mxu0 0.0
    %1779 = vmatprep.subr.mxu0 0.0
    %1780 = vmatpush1.xpose.msra.mxu0 0.0
    %1781 = vmatprep.mubr.f32.mxu0 0.0
    %1782 = vmatmul.mubr.f32.gmra.mrb[0].mxu0 %v1713
    %v1783 = vpop.f32.mrb[0].mxu0
    %v1784 = vadd.f32 0.0, %v1783
    %v1785 = vpop.f32.mrb[0].mxu0
    %1786 = vdwg.mxu0
    %v1787 = vmul.f32 %v1784, 0.5
    %1788 = vrot.lane.b32.xlu0 %v347, 116
    %v1789 = vpop.permute.xlu0 %1788
    %1790 = vrot.lane.b32.xlu0 %v347, 84
    %v1791 = vpop.permute.xlu0 %1790
    %v1792 = vsel %vm353, %v1789, 0
    %v1794 = vsel %vm353, %v1791, 0
    %1796 = vmatprep.subr.mxu0 0.0
    %1797 = vmatpush1.xpose.msra.mxu0 %v1794
    %1798 = vmatprep.subr.mxu0 0.0
    %1799 = vmatpush1.xpose.msra.mxu0 0.0
    %1800 = vmatprep.subr.mxu0 0.0
    %1801 = vmatpush1.xpose.msra.mxu0 0.0
    %1802 = vmatprep.subr.mxu0 0.0
    %1803 = vmatpush1.xpose.msra.mxu0 0.0
    %1804 = vmatprep.subr.mxu0 0.0
    %1805 = vmatpush1.xpose.msra.mxu0 0.0
    %1806 = vmatprep.subr.mxu0 0.0
    %1807 = vmatpush1.xpose.msra.mxu0 0.0
    %1808 = vmatprep.subr.mxu0 0.0
    %1809 = vmatpush1.xpose.msra.mxu0 0.0
    %1810 = vmatprep.subr.mxu0 0.0
    %1811 = vmatpush1.xpose.msra.mxu0 0.0
    %1812 = vmatprep.subr.mxu0 0.0
    %1813 = vmatpush1.xpose.msra.mxu0 0.0
    %1814 = vmatprep.subr.mxu0 0.0
    %1815 = vmatpush1.xpose.msra.mxu0 0.0
    %1816 = vmatprep.subr.mxu0 0.0
    %1817 = vmatpush1.xpose.msra.mxu0 0.0
    %1818 = vmatprep.subr.mxu0 0.0
    %1819 = vmatpush1.xpose.msra.mxu0 0.0
    %1820 = vmatprep.subr.mxu0 0.0
    %1821 = vmatpush1.xpose.msra.mxu0 0.0
    %1822 = vmatprep.subr.mxu0 0.0
    %1823 = vmatpush1.xpose.msra.mxu0 0.0
    %1824 = vmatprep.subr.mxu0 0.0
    %1825 = vmatpush1.xpose.msra.mxu0 0.0
    %1826 = vmatprep.subr.mxu0 0.0
    %1827 = vmatpush1.xpose.msra.mxu0 0.0
    %1828 = vmatprep.subr.mxu0 0.0
    %1829 = vmatpush1.xpose.msra.mxu0 0.0
    %1830 = vmatprep.subr.mxu0 0.0
    %1831 = vmatpush1.xpose.msra.mxu0 0.0
    %1832 = vmatprep.subr.mxu0 0.0
    %1833 = vmatpush1.xpose.msra.mxu0 0.0
    %1834 = vmatprep.subr.mxu0 0.0
    %1835 = vmatpush1.xpose.msra.mxu0 0.0
    %1836 = vmatprep.subr.mxu0 0.0
    %1837 = vmatpush1.xpose.msra.mxu0 0.0
    %1838 = vmatprep.subr.mxu0 0.0
    %1839 = vmatpush1.xpose.msra.mxu0 0.0
    %1840 = vmatprep.subr.mxu0 0.0
    %1841 = vmatpush1.xpose.msra.mxu0 0.0
    %1842 = vmatprep.subr.mxu0 0.0
    %1843 = vmatpush1.xpose.msra.mxu0 0.0
    %1844 = vmatprep.subr.mxu0 0.0
    %1845 = vmatpush1.xpose.msra.mxu0 0.0
    %1846 = vmatprep.subr.mxu0 0.0
    %1847 = vmatpush1.xpose.msra.mxu0 0.0
    %1848 = vmatprep.subr.mxu0 0.0
    %1849 = vmatpush1.xpose.msra.mxu0 0.0
    %1850 = vmatprep.subr.mxu0 0.0
    %1851 = vmatpush1.xpose.msra.mxu0 0.0
    %1852 = vmatprep.subr.mxu0 0.0
    %1853 = vmatpush1.xpose.msra.mxu0 0.0
    %1854 = vmatprep.subr.mxu0 0.0
    %1855 = vmatpush1.xpose.msra.mxu0 0.0
    %1856 = vmatprep.subr.mxu0 0.0
    %1857 = vmatpush1.xpose.msra.mxu0 0.0
    %1858 = vmatprep.subr.mxu0 0.0
    %1859 = vmatpush1.xpose.msra.mxu0 0.0
    %1860 = vmatprep.mubr.f32.mxu0 0.0
    %1861 = vmatmul.mubr.f32.gmra.mrb[0].mxu0 %v1792
    %v1862 = vpop.f32.mrb[0].mxu0
    %v1863 = vadd.f32 0.0, %v1862
    %v1864 = vpop.f32.mrb[0].mxu0
    %1865 = vdwg.mxu0
    %v1866 = vmul.f32 %v1863, 0.5
    %v1867 = vsel %vm508, %v1787, -inf
    %1868 = vmax.xlane.f32.xlu0 %v1867
    %v1869 = vpop.xlane.xlu0 %1868
    %v1870 = vsub.f32 %v1787, %v1869
    %v1871 = vmul.f32 %v1870, 1.442695
    %v1872 = vpow.pop %v1871
    %v1873 = vsel %vm508, %v1872, 0.0
    %1874 = vadd.xlane.f32.xlu0 %v1873
    %v1875 = vpop.xlane.xlu0 %1874
    %v1876 = vrcp.pop %v1875
    %v1877 = vmul.f32 %v1872, %v1876
    %v1878 = vsel %vm508, %v1866, -inf
    %1879 = vmax.xlane.f32.xlu0 %v1878
    %v1880 = vpop.xlane.xlu0 %1879
    %v1881 = vsub.f32 %v1866, %v1880
    %v1882 = vmul.f32 %v1881, 1.442695
    %v1883 = vpow.pop %v1882
    %v1884 = vsel %vm508, %v1883, 0.0
    %1885 = vadd.xlane.f32.xlu0 %v1884
    %v1886 = vpop.xlane.xlu0 %1885
    %v1887 = vrcp.pop %v1886
    %v1888 = vmul.f32 %v1883, %v1887
    %v1889 = vmul.f32 %v531, %v1888
    %v1890 = vsub.f32 %v1877, %v1889
    %1891 = vrot.lane.b32.xlu0 %v347, 56
    %v1892 = vpop.permute.xlu0 %1891
    %v1895 = vsel %vm508, %v1890, 0
    %1897 = vmatprep.subr.mxu0 0.0
    %1898 = vmatpush1.msra.mxu0 %v1892
    %1899 = vmatprep.subr.mxu0 0.0
    %1900 = vmatpush1.msra.mxu0 0.0
    %1901 = vmatprep.subr.mxu0 0.0
    %1902 = vmatpush1.msra.mxu0 0.0
    %1903 = vmatprep.subr.mxu0 0.0
    %1904 = vmatpush1.msra.mxu0 0.0
    %1905 = vmatprep.subr.mxu0 0.0
    %1906 = vmatpush1.msra.mxu0 0.0
    %1907 = vmatprep.subr.mxu0 0.0
    %1908 = vmatpush1.msra.mxu0 0.0
    %1909 = vmatprep.subr.mxu0 0.0
    %1910 = vmatpush1.msra.mxu0 0.0
    %1911 = vmatprep.subr.mxu0 0.0
    %1912 = vmatpush1.msra.mxu0 0.0
    %1913 = vmatprep.subr.mxu0 0.0
    %1914 = vmatpush1.msra.mxu0 0.0
    %1915 = vmatprep.subr.mxu0 0.0
    %1916 = vmatpush1.msra.mxu0 0.0
    %1917 = vmatprep.subr.mxu0 0.0
    %1918 = vmatpush1.msra.mxu0 0.0
    %1919 = vmatprep.subr.mxu0 0.0
    %1920 = vmatpush1.msra.mxu0 0.0
    %1921 = vmatprep.subr.mxu0 0.0
    %1922 = vmatpush1.msra.mxu0 0.0
    %1923 = vmatprep.subr.mxu0 0.0
    %1924 = vmatpush1.msra.mxu0 0.0
    %1925 = vmatprep.subr.mxu0 0.0
    %1926 = vmatpush1.msra.mxu0 0.0
    %1927 = vmatprep.subr.mxu0 0.0
    %1928 = vmatpush1.msra.mxu0 0.0
    %1929 = vmatprep.subr.mxu0 0.0
    %1930 = vmatpush1.msra.mxu0 0.0
    %1931 = vmatprep.subr.mxu0 0.0
    %1932 = vmatpush1.msra.mxu0 0.0
    %1933 = vmatprep.subr.mxu0 0.0
    %1934 = vmatpush1.msra.mxu0 0.0
    %1935 = vmatprep.subr.mxu0 0.0
    %1936 = vmatpush1.msra.mxu0 0.0
    %1937 = vmatprep.subr.mxu0 0.0
    %1938 = vmatpush1.msra.mxu0 0.0
    %1939 = vmatprep.subr.mxu0 0.0
    %1940 = vmatpush1.msra.mxu0 0.0
    %1941 = vmatprep.subr.mxu0 0.0
    %1942 = vmatpush1.msra.mxu0 0.0
    %1943 = vmatprep.subr.mxu0 0.0
    %1944 = vmatpush1.msra.mxu0 0.0
    %1945 = vmatprep.subr.mxu0 0.0
    %1946 = vmatpush1.msra.mxu0 0.0
    %1947 = vmatprep.subr.mxu0 0.0
    %1948 = vmatpush1.msra.mxu0 0.0
    %1949 = vmatprep.subr.mxu0 0.0
    %1950 = vmatpush1.msra.mxu0 0.0
    %1951 = vmatprep.subr.mxu0 0.0
    %1952 = vmatpush1.msra.mxu0 0.0
    %1953 = vmatprep.subr.mxu0 0.0
    %1954 = vmatpush1.msra.mxu0 0.0
    %1955 = vmatprep.subr.mxu0 0.0
    %1956 = vmatpush1.msra.mxu0 0.0
    %1957 = vmatprep.subr.mxu0 0.0
    %1958 = vmatpush1.msra.mxu0 0.0
    %1959 = vmatprep.subr.mxu0 0.0
    %1960 = vmatpush1.msra.mxu0 0.0
    %1961 = vmatprep.mubr.f32.mxu0 0.0
    %1962 = vmatmul.mubr.f32.gmra.mrb[0].mxu0 %v1895
    %v1963 = vpop.f32.mrb[0].mxu0
    %v1964 = vadd.f32 0.0, %v1963
    %v1965 = vpop.f32.mrb[0].mxu0
    %1966 = vdwg.mxu0
    %v1967 = vmul.f32 %v1964, %v1964
    %v1968 = vsel %vm508, %v1967, 0.0
    %1969 = vadd.xlane.f32.xlu0 %v1968
    %v1970 = vpop.xlane.xlu0 %1969
    %v1971 = vmul.f32 %v1970, %v614
    %v1972 = vadd.f32 %v1971, 1e-05
    %v1973 = vrsqrt.pop %v1972
    %v1974 = vmul.f32 %v1964, %v1973
    %v1975 = vmul.f32 %v1974, %v620
    %1977 = vrot.lane.b32.xlu0 %v1975, 8
    %v1978 = vpop.permute.xlu0 %1977
    %1980 = vst.msk [vmem:[#allocation2 + $0x8] sm:$0xff] %vm894, %v1978
    %1981 = vrot.lane.b32.xlu0 %v347, 112
    %v1982 = vpop.permute.xlu0 %1981
    %1983 = vrot.lane.b32.xlu0 %v347, 80
    %v1984 = vpop.permute.xlu0 %1983
    %v1985 = vsel %vm353, %v1982, 0
    %v1987 = vsel %vm353, %v1984, 0
    %1989 = vmatprep.subr.mxu0 0.0
    %1990 = vmatpush1.xpose.msra.mxu0 %v1987
    %1991 = vmatprep.subr.mxu0 0.0
    %1992 = vmatpush1.xpose.msra.mxu0 0.0
    %1993 = vmatprep.subr.mxu0 0.0
    %1994 = vmatpush1.xpose.msra.mxu0 0.0
    %1995 = vmatprep.subr.mxu0 0.0
    %1996 = vmatpush1.xpose.msra.mxu0 0.0
    %1997 = vmatprep.subr.mxu0 0.0
    %1998 = vmatpush1.xpose.msra.mxu0 0.0
    %1999 = vmatprep.subr.mxu0 0.0
    %2000 = vmatpush1.xpose.msra.mxu0 0.0
    %2001 = vmatprep.subr.mxu0 0.0
    %2002 = vmatpush1.xpose.msra.mxu0 0.0
    %2003 = vmatprep.subr.mxu0 0.0
    %2004 = vmatpush1.xpose.msra.mxu0 0.0
    %2005 = vmatprep.subr.mxu0 0.0
    %2006 = vmatpush1.xpose.msra.mxu0 0.0
    %2007 = vmatprep.subr.mxu0 0.0
    %2008 = vmatpush1.xpose.msra.mxu0 0.0
    %2009 = vmatprep.subr.mxu0 0.0
    %2010 = vmatpush1.xpose.msra.mxu0 0.0
    %2011 = vmatprep.subr.mxu0 0.0
    %2012 = vmatpush1.xpose.msra.mxu0 0.0
    %2013 = vmatprep.subr.mxu0 0.0
    %2014 = vmatpush1.xpose.msra.mxu0 0.0
    %2015 = vmatprep.subr.mxu0 0.0
    %2016 = vmatpush1.xpose.msra.mxu0 0.0
    %2017 = vmatprep.subr.mxu0 0.0
    %2018 = vmatpush1.xpose.msra.mxu0 0.0
    %2019 = vmatprep.subr.mxu0 0.0
    %2020 = vmatpush1.xpose.msra.mxu0 0.0
    %2021 = vmatprep.subr.mxu0 0.0
    %2022 = vmatpush1.xpose.msra.mxu0 0.0
    %2023 = vmatprep.subr.mxu0 0.0
    %2024 = vmatpush1.xpose.msra.mxu0 0.0
    %2025 = vmatprep.subr.mxu0 0.0
    %2026 = vmatpush1.xpose.msra.mxu0 0.0
    %2027 = vmatprep.subr.mxu0 0.0
    %2028 = vmatpush1.xpose.msra.mxu0 0.0
    %2029 = vmatprep.subr.mxu0 0.0
    %2030 = vmatpush1.xpose.msra.mxu0 0.0
    %2031 = vmatprep.subr.mxu0 0.0
    %2032 = vmatpush1.xpose.msra.mxu0 0.0
    %2033 = vmatprep.subr.mxu0 0.0
    %2034 = vmatpush1.xpose.msra.mxu0 0.0
    %2035 = vmatprep.subr.mxu0 0.0
    %2036 = vmatpush1.xpose.msra.mxu0 0.0
    %2037 = vmatprep.subr.mxu0 0.0
    %2038 = vmatpush1.xpose.msra.mxu0 0.0
    %2039 = vmatprep.subr.mxu0 0.0
    %2040 = vmatpush1.xpose.msra.mxu0 0.0
    %2041 = vmatprep.subr.mxu0 0.0
    %2042 = vmatpush1.xpose.msra.mxu0 0.0
    %2043 = vmatprep.subr.mxu0 0.0
    %2044 = vmatpush1.xpose.msra.mxu0 0.0
    %2045 = vmatprep.subr.mxu0 0.0
    %2046 = vmatpush1.xpose.msra.mxu0 0.0
    %2047 = vmatprep.subr.mxu0 0.0
    %2048 = vmatpush1.xpose.msra.mxu0 0.0
    %2049 = vmatprep.subr.mxu0 0.0
    %2050 = vmatpush1.xpose.msra.mxu0 0.0
    %2051 = vmatprep.subr.mxu0 0.0
    %2052 = vmatpush1.xpose.msra.mxu0 0.0
    %2053 = vmatprep.mubr.f32.mxu0 0.0
    %2054 = vmatmul.mubr.f32.gmra.mrb[0].mxu0 %v1985
    %v2055 = vpop.f32.mrb[0].mxu0
    %v2056 = vadd.f32 0.0, %v2055
    %v2057 = vpop.f32.mrb[0].mxu0
    %2058 = vdwg.mxu0
    %v2059 = vmul.f32 %v2056, 0.5
    %2060 = vrot.lane.b32.xlu0 %v347, 108
    %v2061 = vpop.permute.xlu0 %2060
    %2062 = vrot.lane.b32.xlu0 %v347, 76
    %v2063 = vpop.permute.xlu0 %2062
    %v2064 = vsel %vm353, %v2061, 0
    %v2066 = vsel %vm353, %v2063, 0
    %2068 = vmatprep.subr.mxu0 0.0
    %2069 = vmatpush1.xpose.msra.mxu0 %v2066
    %2070 = vmatprep.subr.mxu0 0.0
    %2071 = vmatpush1.xpose.msra.mxu0 0.0
    %2072 = vmatprep.subr.mxu0 0.0
    %2073 = vmatpush1.xpose.msra.mxu0 0.0
    %2074 = vmatprep.subr.mxu0 0.0
    %2075 = vmatpush1.xpose.msra.mxu0 0.0
    %2076 = vmatprep.subr.mxu0 0.0
    %2077 = vmatpush1.xpose.msra.mxu0 0.0
    %2078 = vmatprep.subr.mxu0 0.0
    %2079 = vmatpush1.xpose.msra.mxu0 0.0
    %2080 = vmatprep.subr.mxu0 0.0
    %2081 = vmatpush1.xpose.msra.mxu0 0.0
    %2082 = vmatprep.subr.mxu0 0.0
    %2083 = vmatpush1.xpose.msra.mxu0 0.0
    %2084 = vmatprep.subr.mxu0 0.0
    %2085 = vmatpush1.xpose.msra.mxu0 0.0
    %2086 = vmatprep.subr.mxu0 0.0
    %2087 = vmatpush1.xpose.msra.mxu0 0.0
    %2088 = vmatprep.subr.mxu0 0.0
    %2089 = vmatpush1.xpose.msra.mxu0 0.0
    %2090 = vmatprep.subr.mxu0 0.0
    %2091 = vmatpush1.xpose.msra.mxu0 0.0
    %2092 = vmatprep.subr.mxu0 0.0
    %2093 = vmatpush1.xpose.msra.mxu0 0.0
    %2094 = vmatprep.subr.mxu0 0.0
    %2095 = vmatpush1.xpose.msra.mxu0 0.0
    %2096 = vmatprep.subr.mxu0 0.0
    %2097 = vmatpush1.xpose.msra.mxu0 0.0
    %2098 = vmatprep.subr.mxu0 0.0
    %2099 = vmatpush1.xpose.msra.mxu0 0.0
    %2100 = vmatprep.subr.mxu0 0.0
    %2101 = vmatpush1.xpose.msra.mxu0 0.0
    %2102 = vmatprep.subr.mxu0 0.0
    %2103 = vmatpush1.xpose.msra.mxu0 0.0
    %2104 = vmatprep.subr.mxu0 0.0
    %2105 = vmatpush1.xpose.msra.mxu0 0.0
    %2106 = vmatprep.subr.mxu0 0.0
    %2107 = vmatpush1.xpose.msra.mxu0 0.0
    %2108 = vmatprep.subr.mxu0 0.0
    %2109 = vmatpush1.xpose.msra.mxu0 0.0
    %2110 = vmatprep.subr.mxu0 0.0
    %2111 = vmatpush1.xpose.msra.mxu0 0.0
    %2112 = vmatprep.subr.mxu0 0.0
    %2113 = vmatpush1.xpose.msra.mxu0 0.0
    %2114 = vmatprep.subr.mxu0 0.0
    %2115 = vmatpush1.xpose.msra.mxu0 0.0
    %2116 = vmatprep.subr.mxu0 0.0
    %2117 = vmatpush1.xpose.msra.mxu0 0.0
    %2118 = vmatprep.subr.mxu0 0.0
    %2119 = vmatpush1.xpose.msra.mxu0 0.0
    %2120 = vmatprep.subr.mxu0 0.0
    %2121 = vmatpush1.xpose.msra.mxu0 0.0
    %2122 = vmatprep.subr.mxu0 0.0
    %2123 = vmatpush1.xpose.msra.mxu0 0.0
    %2124 = vmatprep.subr.mxu0 0.0
    %2125 = vmatpush1.xpose.msra.mxu0 0.0
    %2126 = vmatprep.subr.mxu0 0.0
    %2127 = vmatpush1.xpose.msra.mxu0 0.0
    %2128 = vmatprep.subr.mxu0 0.0
    %2129 = vmatpush1.xpose.msra.mxu0 0.0
    %2130 = vmatprep.subr.mxu0 0.0
    %2131 = vmatpush1.xpose.msra.mxu0 0.0
    %2132 = vmatprep.mubr.f32.mxu0 0.0
    %2133 = vmatmul.mubr.f32.gmra.mrb[0].mxu0 %v2064
    %v2134 = vpop.f32.mrb[0].mxu0
    %v2135 = vadd.f32 0.0, %v2134
    %v2136 = vpop.f32.mrb[0].mxu0
    %2137 = vdwg.mxu0
    %v2138 = vmul.f32 %v2135, 0.5
    %v2139 = vsel %vm508, %v2059, -inf
    %2140 = vmax.xlane.f32.xlu0 %v2139
    %v2141 = vpop.xlane.xlu0 %2140
    %v2142 = vsub.f32 %v2059, %v2141
    %v2143 = vmul.f32 %v2142, 1.442695
    %v2144 = vpow.pop %v2143
    %v2145 = vsel %vm508, %v2144, 0.0
    %2146 = vadd.xlane.f32.xlu0 %v2145
    %v2147 = vpop.xlane.xlu0 %2146
    %v2148 = vrcp.pop %v2147
    %v2149 = vmul.f32 %v2144, %v2148
    %v2150 = vsel %vm508, %v2138, -inf
    %2151 = vmax.xlane.f32.xlu0 %v2150
    %v2152 = vpop.xlane.xlu0 %2151
    %v2153 = vsub.f32 %v2138, %v2152
    %v2154 = vmul.f32 %v2153, 1.442695
    %v2155 = vpow.pop %v2154
    %v2156 = vsel %vm508, %v2155, 0.0
    %2157 = vadd.xlane.f32.xlu0 %v2156
    %v2158 = vpop.xlane.xlu0 %2157
    %v2159 = vrcp.pop %v2158
    %v2160 = vmul.f32 %v2155, %v2159
    %v2161 = vmul.f32 %v531, %v2160
    %v2162 = vsub.f32 %v2149, %v2161
    %2163 = vrot.lane.b32.xlu0 %v347, 48
    %v2164 = vpop.permute.xlu0 %2163
    %v2167 = vsel %vm508, %v2162, 0
    %2169 = vmatprep.subr.mxu0 0.0
    %2170 = vmatpush1.msra.mxu0 %v2164
    %2171 = vmatprep.subr.mxu0 0.0
    %2172 = vmatpush1.msra.mxu0 0.0
    %2173 = vmatprep.subr.mxu0 0.0
    %2174 = vmatpush1.msra.mxu0 0.0
    %2175 = vmatprep.subr.mxu0 0.0
    %2176 = vmatpush1.msra.mxu0 0.0
    %2177 = vmatprep.subr.mxu0 0.0
    %2178 = vmatpush1.msra.mxu0 0.0
    %2179 = vmatprep.subr.mxu0 0.0
    %2180 = vmatpush1.msra.mxu0 0.0
    %2181 = vmatprep.subr.mxu0 0.0
    %2182 = vmatpush1.msra.mxu0 0.0
    %2183 = vmatprep.subr.mxu0 0.0
    %2184 = vmatpush1.msra.mxu0 0.0
    %2185 = vmatprep.subr.mxu0 0.0
    %2186 = vmatpush1.msra.mxu0 0.0
    %2187 = vmatprep.subr.mxu0 0.0
    %2188 = vmatpush1.msra.mxu0 0.0
    %2189 = vmatprep.subr.mxu0 0.0
    %2190 = vmatpush1.msra.mxu0 0.0
    %2191 = vmatprep.subr.mxu0 0.0
    %2192 = vmatpush1.msra.mxu0 0.0
    %2193 = vmatprep.subr.mxu0 0.0
    %2194 = vmatpush1.msra.mxu0 0.0
    %2195 = vmatprep.subr.mxu0 0.0
    %2196 = vmatpush1.msra.mxu0 0.0
    %2197 = vmatprep.subr.mxu0 0.0
    %2198 = vmatpush1.msra.mxu0 0.0
    %2199 = vmatprep.subr.mxu0 0.0
    %2200 = vmatpush1.msra.mxu0 0.0
    %2201 = vmatprep.subr.mxu0 0.0
    %2202 = vmatpush1.msra.mxu0 0.0
    %2203 = vmatprep.subr.mxu0 0.0
    %2204 = vmatpush1.msra.mxu0 0.0
    %2205 = vmatprep.subr.mxu0 0.0
    %2206 = vmatpush1.msra.mxu0 0.0
    %2207 = vmatprep.subr.mxu0 0.0
    %2208 = vmatpush1.msra.mxu0 0.0
    %2209 = vmatprep.subr.mxu0 0.0
    %2210 = vmatpush1.msra.mxu0 0.0
    %2211 = vmatprep.subr.mxu0 0.0
    %2212 = vmatpush1.msra.mxu0 0.0
    %2213 = vmatprep.subr.mxu0 0.0
    %2214 = vmatpush1.msra.mxu0 0.0
    %2215 = vmatprep.subr.mxu0 0.0
    %2216 = vmatpush1.msra.mxu0 0.0
    %2217 = vmatprep.subr.mxu0 0.0
    %2218 = vmatpush1.msra.mxu0 0.0
    %2219 = vmatprep.subr.mxu0 0.0
    %2220 = vmatpush1.msra.mxu0 0.0
    %2221 = vmatprep.subr.mxu0 0.0
    %2222 = vmatpush1.msra.mxu0 0.0
    %2223 = vmatprep.subr.mxu0 0.0
    %2224 = vmatpush1.msra.mxu0 0.0
    %2225 = vmatprep.subr.mxu0 0.0
    %2226 = vmatpush1.msra.mxu0 0.0
    %2227 = vmatprep.subr.mxu0 0.0
    %2228 = vmatpush1.msra.mxu0 0.0
    %2229 = vmatprep.subr.mxu0 0.0
    %2230 = vmatpush1.msra.mxu0 0.0
    %2231 = vmatprep.subr.mxu0 0.0
    %2232 = vmatpush1.msra.mxu0 0.0
    %2233 = vmatprep.mubr.f32.mxu0 0.0
    %2234 = vmatmul.mubr.f32.gmra.mrb[0].mxu0 %v2167
    %v2235 = vpop.f32.mrb[0].mxu0
    %v2236 = vadd.f32 0.0, %v2235
    %v2237 = vpop.f32.mrb[0].mxu0
    %2238 = vdwg.mxu0
    %v2239 = vmul.f32 %v2236, %v2236
    %v2240 = vsel %vm508, %v2239, 0.0
    %2241 = vadd.xlane.f32.xlu0 %v2240
    %v2242 = vpop.xlane.xlu0 %2241
    %v2243 = vmul.f32 %v2242, %v614
    %v2244 = vadd.f32 %v2243, 1e-05
    %v2245 = vrsqrt.pop %v2244
    %v2246 = vmul.f32 %v2236, %v2245
    %v2247 = vmul.f32 %v2246, %v620
    %2249 = vrot.lane.b32.xlu0 %v2247, 16
    %v2250 = vpop.permute.xlu0 %2249
    %2252 = vst.msk [vmem:[#allocation2 + $0x8] sm:$0xff] %vm1167, %v2250
    %2253 = vrot.lane.b32.xlu0 %v347, 104
    %v2254 = vpop.permute.xlu0 %2253
    %2255 = vrot.lane.b32.xlu0 %v347, 72
    %v2256 = vpop.permute.xlu0 %2255
    %v2257 = vsel %vm353, %v2254, 0
    %v2259 = vsel %vm353, %v2256, 0
    %2261 = vmatprep.subr.mxu0 0.0
    %2262 = vmatpush1.xpose.msra.mxu0 %v2259
    %2263 = vmatprep.subr.mxu0 0.0
    %2264 = vmatpush1.xpose.msra.mxu0 0.0
    %2265 = vmatprep.subr.mxu0 0.0
    %2266 = vmatpush1.xpose.msra.mxu0 0.0
    %2267 = vmatprep.subr.mxu0 0.0
    %2268 = vmatpush1.xpose.msra.mxu0 0.0
    %2269 = vmatprep.subr.mxu0 0.0
    %2270 = vmatpush1.xpose.msra.mxu0 0.0
    %2271 = vmatprep.subr.mxu0 0.0
    %2272 = vmatpush1.xpose.msra.mxu0 0.0
    %2273 = vmatprep.subr.mxu0 0.0
    %2274 = vmatpush1.xpose.msra.mxu0 0.0
    %2275 = vmatprep.subr.mxu0 0.0
    %2276 = vmatpush1.xpose.msra.mxu0 0.0
    %2277 = vmatprep.subr.mxu0 0.0
    %2278 = vmatpush1.xpose.msra.mxu0 0.0
    %2279 = vmatprep.subr.mxu0 0.0
    %2280 = vmatpush1.xpose.msra.mxu0 0.0
    %2281 = vmatprep.subr.mxu0 0.0
    %2282 = vmatpush1.xpose.msra.mxu0 0.0
    %2283 = vmatprep.subr.mxu0 0.0
    %2284 = vmatpush1.xpose.msra.mxu0 0.0
    %2285 = vmatprep.subr.mxu0 0.0
    %2286 = vmatpush1.xpose.msra.mxu0 0.0
    %2287 = vmatprep.subr.mxu0 0.0
    %2288 = vmatpush1.xpose.msra.mxu0 0.0
    %2289 = vmatprep.subr.mxu0 0.0
    %2290 = vmatpush1.xpose.msra.mxu0 0.0
    %2291 = vmatprep.subr.mxu0 0.0
    %2292 = vmatpush1.xpose.msra.mxu0 0.0
    %2293 = vmatprep.subr.mxu0 0.0
    %2294 = vmatpush1.xpose.msra.mxu0 0.0
    %2295 = vmatprep.subr.mxu0 0.0
    %2296 = vmatpush1.xpose.msra.mxu0 0.0
    %2297 = vmatprep.subr.mxu0 0.0
    %2298 = vmatpush1.xpose.msra.mxu0 0.0
    %2299 = vmatprep.subr.mxu0 0.0
    %2300 = vmatpush1.xpose.msra.mxu0 0.0
    %2301 = vmatprep.subr.mxu0 0.0
    %2302 = vmatpush1.xpose.msra.mxu0 0.0
    %2303 = vmatprep.subr.mxu0 0.0
    %2304 = vmatpush1.xpose.msra.mxu0 0.0
    %2305 = vmatprep.subr.mxu0 0.0
    %2306 = vmatpush1.xpose.msra.mxu0 0.0
    %2307 = vmatprep.subr.mxu0 0.0
    %2308 = vmatpush1.xpose.msra.mxu0 0.0
    %2309 = vmatprep.subr.mxu0 0.0
    %2310 = vmatpush1.xpose.msra.mxu0 0.0
    %2311 = vmatprep.subr.mxu0 0.0
    %2312 = vmatpush1.xpose.msra.mxu0 0.0
    %2313 = vmatprep.subr.mxu0 0.0
    %2314 = vmatpush1.xpose.msra.mxu0 0.0
    %2315 = vmatprep.subr.mxu0 0.0
    %2316 = vmatpush1.xpose.msra.mxu0 0.0
    %2317 = vmatprep.subr.mxu0 0.0
    %2318 = vmatpush1.xpose.msra.mxu0 0.0
    %2319 = vmatprep.subr.mxu0 0.0
    %2320 = vmatpush1.xpose.msra.mxu0 0.0
    %2321 = vmatprep.subr.mxu0 0.0
    %2322 = vmatpush1.xpose.msra.mxu0 0.0
    %2323 = vmatprep.subr.mxu0 0.0
    %2324 = vmatpush1.xpose.msra.mxu0 0.0
    %2325 = vmatprep.mubr.f32.mxu0 0.0
    %2326 = vmatmul.mubr.f32.gmra.mrb[0].mxu0 %v2257
    %v2327 = vpop.f32.mrb[0].mxu0
    %v2328 = vadd.f32 0.0, %v2327
    %v2329 = vpop.f32.mrb[0].mxu0
    %2330 = vdwg.mxu0
    %v2331 = vmul.f32 %v2328, 0.5
    %2332 = vrot.lane.b32.xlu0 %v347, 100
    %v2333 = vpop.permute.xlu0 %2332
    %2334 = vrot.lane.b32.xlu0 %v347, 68
    %v2335 = vpop.permute.xlu0 %2334
    %v2336 = vsel %vm353, %v2333, 0
    %v2338 = vsel %vm353, %v2335, 0
    %2340 = vmatprep.subr.mxu0 0.0
    %2341 = vmatpush1.xpose.msra.mxu0 %v2338
    %2342 = vmatprep.subr.mxu0 0.0
    %2343 = vmatpush1.xpose.msra.mxu0 0.0
    %2344 = vmatprep.subr.mxu0 0.0
    %2345 = vmatpush1.xpose.msra.mxu0 0.0
    %2346 = vmatprep.subr.mxu0 0.0
    %2347 = vmatpush1.xpose.msra.mxu0 0.0
    %2348 = vmatprep.subr.mxu0 0.0
    %2349 = vmatpush1.xpose.msra.mxu0 0.0
    %2350 = vmatprep.subr.mxu0 0.0
    %2351 = vmatpush1.xpose.msra.mxu0 0.0
    %2352 = vmatprep.subr.mxu0 0.0
    %2353 = vmatpush1.xpose.msra.mxu0 0.0
    %2354 = vmatprep.subr.mxu0 0.0
    %2355 = vmatpush1.xpose.msra.mxu0 0.0
    %2356 = vmatprep.subr.mxu0 0.0
    %2357 = vmatpush1.xpose.msra.mxu0 0.0
    %2358 = vmatprep.subr.mxu0 0.0
    %2359 = vmatpush1.xpose.msra.mxu0 0.0
    %2360 = vmatprep.subr.mxu0 0.0
    %2361 = vmatpush1.xpose.msra.mxu0 0.0
    %2362 = vmatprep.subr.mxu0 0.0
    %2363 = vmatpush1.xpose.msra.mxu0 0.0
    %2364 = vmatprep.subr.mxu0 0.0
    %2365 = vmatpush1.xpose.msra.mxu0 0.0
    %2366 = vmatprep.subr.mxu0 0.0
    %2367 = vmatpush1.xpose.msra.mxu0 0.0
    %2368 = vmatprep.subr.mxu0 0.0
    %2369 = vmatpush1.xpose.msra.mxu0 0.0
    %2370 = vmatprep.subr.mxu0 0.0
    %2371 = vmatpush1.xpose.msra.mxu0 0.0
    %2372 = vmatprep.subr.mxu0 0.0
    %2373 = vmatpush1.xpose.msra.mxu0 0.0
    %2374 = vmatprep.subr.mxu0 0.0
    %2375 = vmatpush1.xpose.msra.mxu0 0.0
    %2376 = vmatprep.subr.mxu0 0.0
    %2377 = vmatpush1.xpose.msra.mxu0 0.0
    %2378 = vmatprep.subr.mxu0 0.0
    %2379 = vmatpush1.xpose.msra.mxu0 0.0
    %2380 = vmatprep.subr.mxu0 0.0
    %2381 = vmatpush1.xpose.msra.mxu0 0.0
    %2382 = vmatprep.subr.mxu0 0.0
    %2383 = vmatpush1.xpose.msra.mxu0 0.0
    %2384 = vmatprep.subr.mxu0 0.0
    %2385 = vmatpush1.xpose.msra.mxu0 0.0
    %2386 = vmatprep.subr.mxu0 0.0
    %2387 = vmatpush1.xpose.msra.mxu0 0.0
    %2388 = vmatprep.subr.mxu0 0.0
    %2389 = vmatpush1.xpose.msra.mxu0 0.0
    %2390 = vmatprep.subr.mxu0 0.0
    %2391 = vmatpush1.xpose.msra.mxu0 0.0
    %2392 = vmatprep.subr.mxu0 0.0
    %2393 = vmatpush1.xpose.msra.mxu0 0.0
    %2394 = vmatprep.subr.mxu0 0.0
    %2395 = vmatpush1.xpose.msra.mxu0 0.0
    %2396 = vmatprep.subr.mxu0 0.0
    %2397 = vmatpush1.xpose.msra.mxu0 0.0
    %2398 = vmatprep.subr.mxu0 0.0
    %2399 = vmatpush1.xpose.msra.mxu0 0.0
    %2400 = vmatprep.subr.mxu0 0.0
    %2401 = vmatpush1.xpose.msra.mxu0 0.0
    %2402 = vmatprep.subr.mxu0 0.0
    %2403 = vmatpush1.xpose.msra.mxu0 0.0
    %2404 = vmatprep.mubr.f32.mxu0 0.0
    %2405 = vmatmul.mubr.f32.gmra.mrb[0].mxu0 %v2336
    %v2406 = vpop.f32.mrb[0].mxu0
    %v2407 = vadd.f32 0.0, %v2406
    %v2408 = vpop.f32.mrb[0].mxu0
    %2409 = vdwg.mxu0
    %v2410 = vmul.f32 %v2407, 0.5
    %v2411 = vsel %vm508, %v2331, -inf
    %2412 = vmax.xlane.f32.xlu0 %v2411
    %v2413 = vpop.xlane.xlu0 %2412
    %v2414 = vsub.f32 %v2331, %v2413
    %v2415 = vmul.f32 %v2414, 1.442695
    %v2416 = vpow.pop %v2415
    %v2417 = vsel %vm508, %v2416, 0.0
    %2418 = vadd.xlane.f32.xlu0 %v2417
    %v2419 = vpop.xlane.xlu0 %2418
    %v2420 = vrcp.pop %v2419
    %v2421 = vmul.f32 %v2416, %v2420
    %v2422 = vsel %vm508, %v2410, -inf
    %2423 = vmax.xlane.f32.xlu0 %v2422
    %v2424 = vpop.xlane.xlu0 %2423
    %v2425 = vsub.f32 %v2410, %v2424
    %v2426 = vmul.f32 %v2425, 1.442695
    %v2427 = vpow.pop %v2426
    %v2428 = vsel %vm508, %v2427, 0.0
    %2429 = vadd.xlane.f32.xlu0 %v2428
    %v2430 = vpop.xlane.xlu0 %2429
    %v2431 = vrcp.pop %v2430
    %v2432 = vmul.f32 %v2427, %v2431
    %v2433 = vmul.f32 %v531, %v2432
    %v2434 = vsub.f32 %v2421, %v2433
    %2435 = vrot.lane.b32.xlu0 %v347, 40
    %v2436 = vpop.permute.xlu0 %2435
    %v2439 = vsel %vm508, %v2434, 0
    %2441 = vmatprep.subr.mxu0 0.0
    %2442 = vmatpush1.msra.mxu0 %v2436
    %2443 = vmatprep.subr.mxu0 0.0
    %2444 = vmatpush1.msra.mxu0 0.0
    %2445 = vmatprep.subr.mxu0 0.0
    %2446 = vmatpush1.msra.mxu0 0.0
    %2447 = vmatprep.subr.mxu0 0.0
    %2448 = vmatpush1.msra.mxu0 0.0
    %2449 = vmatprep.subr.mxu0 0.0
    %2450 = vmatpush1.msra.mxu0 0.0
    %2451 = vmatprep.subr.mxu0 0.0
    %2452 = vmatpush1.msra.mxu0 0.0
    %2453 = vmatprep.subr.mxu0 0.0
    %2454 = vmatpush1.msra.mxu0 0.0
    %2455 = vmatprep.subr.mxu0 0.0
    %2456 = vmatpush1.msra.mxu0 0.0
    %2457 = vmatprep.subr.mxu0 0.0
    %2458 = vmatpush1.msra.mxu0 0.0
    %2459 = vmatprep.subr.mxu0 0.0
    %2460 = vmatpush1.msra.mxu0 0.0
    %2461 = vmatprep.subr.mxu0 0.0
    %2462 = vmatpush1.msra.mxu0 0.0
    %2463 = vmatprep.subr.mxu0 0.0
    %2464 = vmatpush1.msra.mxu0 0.0
    %2465 = vmatprep.subr.mxu0 0.0
    %2466 = vmatpush1.msra.mxu0 0.0
    %2467 = vmatprep.subr.mxu0 0.0
    %2468 = vmatpush1.msra.mxu0 0.0
    %2469 = vmatprep.subr.mxu0 0.0
    %2470 = vmatpush1.msra.mxu0 0.0
    %2471 = vmatprep.subr.mxu0 0.0
    %2472 = vmatpush1.msra.mxu0 0.0
    %2473 = vmatprep.subr.mxu0 0.0
    %2474 = vmatpush1.msra.mxu0 0.0
    %2475 = vmatprep.subr.mxu0 0.0
    %2476 = vmatpush1.msra.mxu0 0.0
    %2477 = vmatprep.subr.mxu0 0.0
    %2478 = vmatpush1.msra.mxu0 0.0
    %2479 = vmatprep.subr.mxu0 0.0
    %2480 = vmatpush1.msra.mxu0 0.0
    %2481 = vmatprep.subr.mxu0 0.0
    %2482 = vmatpush1.msra.mxu0 0.0
    %2483 = vmatprep.subr.mxu0 0.0
    %2484 = vmatpush1.msra.mxu0 0.0
    %2485 = vmatprep.subr.mxu0 0.0
    %2486 = vmatpush1.msra.mxu0 0.0
    %2487 = vmatprep.subr.mxu0 0.0
    %2488 = vmatpush1.msra.mxu0 0.0
    %2489 = vmatprep.subr.mxu0 0.0
    %2490 = vmatpush1.msra.mxu0 0.0
    %2491 = vmatprep.subr.mxu0 0.0
    %2492 = vmatpush1.msra.mxu0 0.0
    %2493 = vmatprep.subr.mxu0 0.0
    %2494 = vmatpush1.msra.mxu0 0.0
    %2495 = vmatprep.subr.mxu0 0.0
    %2496 = vmatpush1.msra.mxu0 0.0
    %2497 = vmatprep.subr.mxu0 0.0
    %2498 = vmatpush1.msra.mxu0 0.0
    %2499 = vmatprep.subr.mxu0 0.0
    %2500 = vmatpush1.msra.mxu0 0.0
    %2501 = vmatprep.subr.mxu0 0.0
    %2502 = vmatpush1.msra.mxu0 0.0
    %2503 = vmatprep.subr.mxu0 0.0
    %2504 = vmatpush1.msra.mxu0 0.0
    %2505 = vmatprep.mubr.f32.mxu0 0.0
    %2506 = vmatmul.mubr.f32.gmra.mrb[0].mxu0 %v2439
    %v2507 = vpop.f32.mrb[0].mxu0
    %v2508 = vadd.f32 0.0, %v2507
    %v2509 = vpop.f32.mrb[0].mxu0
    %2510 = vdwg.mxu0
    %v2511 = vmul.f32 %v2508, %v2508
    %v2512 = vsel %vm508, %v2511, 0.0
    %2513 = vadd.xlane.f32.xlu0 %v2512
    %v2514 = vpop.xlane.xlu0 %2513
    %v2515 = vmul.f32 %v2514, %v614
    %v2516 = vadd.f32 %v2515, 1e-05
    %v2517 = vrsqrt.pop %v2516
    %v2518 = vmul.f32 %v2508, %v2517
    %v2519 = vmul.f32 %v2518, %v620
    %2521 = vrot.lane.b32.xlu0 %v2519, 24
    %v2522 = vpop.permute.xlu0 %2521
    %2524 = vst.msk [vmem:[#allocation2 + $0x8] sm:$0xff] %vm1440, %v2522
    %v2525 = vld [vmem:[#allocation2] sm:$0xff]
    %v2526 = vld [vmem:[#allocation2 + $0x8] sm:$0xff]
    %v2527 = vld [vmem:[%s7] sm:$0xff]
    %v2528 = vld [vmem:[%s7 + $0x8] sm:$0xff]
    %v2529 = vld [vmem:[%s7 + $0x10] sm:$0xff]
    %v2530 = vld [vmem:[%s7 + $0x18] sm:$0xff]
    %v2531 = vld [vmem:[%s8] sm:$0x1]
    %v2533 = vlaneseq
    %v2534 = vshrl.u32 %v2533, 7
    %v2535 = vsub.s32 0, %v2534
    %v2536 = vrot.slane %v2531, %v2535
    %v2539 = vsel %vm177, %v2525, 0
    %v2542 = vsel %vm177, %v2526, 0
    %2544 = vmatprep.subr.mxu0 0.0
    %2545 = vmatpush1.msra.mxu0 %v2527
    %2546 = vmatprep.subr.mxu0 0.0
    %2547 = vmatpush1.msra.mxu0 %v2528
    %2548 = vmatprep.subr.mxu0 0.0
    %2549 = vmatpush1.msra.mxu0 %v2529
    %2550 = vmatprep.subr.mxu0 0.0
    %2551 = vmatpush1.msra.mxu0 %v2530
    %2552 = vmatprep.subr.mxu0 0.0
    %2553 = vmatpush1.msra.mxu0 0.0
    %2554 = vmatprep.subr.mxu0 0.0
    %2555 = vmatpush1.msra.mxu0 0.0
    %2556 = vmatprep.subr.mxu0 0.0
    %2557 = vmatpush1.msra.mxu0 0.0
    %2558 = vmatprep.subr.mxu0 0.0
    %2559 = vmatpush1.msra.mxu0 0.0
    %2560 = vmatprep.subr.mxu0 0.0
    %2561 = vmatpush1.msra.mxu0 0.0
    %2562 = vmatprep.subr.mxu0 0.0
    %2563 = vmatpush1.msra.mxu0 0.0
    %2564 = vmatprep.subr.mxu0 0.0
    %2565 = vmatpush1.msra.mxu0 0.0
    %2566 = vmatprep.subr.mxu0 0.0
    %2567 = vmatpush1.msra.mxu0 0.0
    %2568 = vmatprep.subr.mxu0 0.0
    %2569 = vmatpush1.msra.mxu0 0.0
    %2570 = vmatprep.subr.mxu0 0.0
    %2571 = vmatpush1.msra.mxu0 0.0
    %2572 = vmatprep.subr.mxu0 0.0
    %2573 = vmatpush1.msra.mxu0 0.0
    %2574 = vmatprep.subr.mxu0 0.0
    %2575 = vmatpush1.msra.mxu0 0.0
    %2576 = vmatprep.subr.mxu0 0.0
    %2577 = vmatpush1.msra.mxu0 0.0
    %2578 = vmatprep.subr.mxu0 0.0
    %2579 = vmatpush1.msra.mxu0 0.0
    %2580 = vmatprep.subr.mxu0 0.0
    %2581 = vmatpush1.msra.mxu0 0.0
    %2582 = vmatprep.subr.mxu0 0.0
    %2583 = vmatpush1.msra.mxu0 0.0
    %2584 = vmatprep.subr.mxu0 0.0
    %2585 = vmatpush1.msra.mxu0 0.0
    %2586 = vmatprep.subr.mxu0 0.0
    %2587 = vmatpush1.msra.mxu0 0.0
    %2588 = vmatprep.subr.mxu0 0.0
    %2589 = vmatpush1.msra.mxu0 0.0
    %2590 = vmatprep.subr.mxu0 0.0
    %2591 = vmatpush1.msra.mxu0 0.0
    %2592 = vmatprep.subr.mxu0 0.0
    %2593 = vmatpush1.msra.mxu0 0.0
    %2594 = vmatprep.subr.mxu0 0.0
    %2595 = vmatpush1.msra.mxu0 0.0
    %2596 = vmatprep.subr.mxu0 0.0
    %2597 = vmatpush1.msra.mxu0 0.0
    %2598 = vmatprep.subr.mxu0 0.0
    %2599 = vmatpush1.msra.mxu0 0.0
    %2600 = vmatprep.subr.mxu0 0.0
    %2601 = vmatpush1.msra.mxu0 0.0
    %2602 = vmatprep.subr.mxu0 0.0
    %2603 = vmatpush1.msra.mxu0 0.0
    %2604 = vmatprep.subr.mxu0 0.0
    %2605 = vmatpush1.msra.mxu0 0.0
    %2606 = vmatprep.subr.mxu0 0.0
    %2607 = vmatpush1.msra.mxu0 0.0
    %2608 = vmatprep.mubr.f32.mxu0 0.0
    %2609 = vmatmul.mubr.f32.gmra.mrb[0].mxu0 %v2539
    %v2610 = vpop.f32.mrb[0].mxu0
    %v2611 = vadd.f32 %v2536, %v2610
    %v2612 = vpop.f32.mrb[0].mxu0
    %2613 = vmatprep.mubr.f32.mxu0 0.0
    %2614 = vmatmul.mubr.f32.gmra.mrb[0].mxu0 %v2542
    %v2615 = vpop.f32.mrb[0].mxu0
    %v2616 = vadd.f32 %v2536, %v2615
    %v2617 = vpop.f32.mrb[0].mxu0
    %2618 = vdwg.mxu0
    %v2619 = vadd.f32 %v215, %v2611
    %v2620 = vadd.f32 %v216, %v2616
    %v2621 = vld [vmem:[%s9] sm:$0x3]
    %v2622 = vsel %vm177, %v2619, 0.0
    %2623 = vadd.xlane.f32.xlu0 %v2622
    %v2624 = vpop.xlane.xlu0 %2623
    %v2625 = vsel %vm177, %v2620, 0.0
    %2626 = vadd.xlane.f32.xlu0 %v2625
    %v2627 = vpop.xlane.xlu0 %2626
    %v2628 = vmul.f32 %v2624, %v184
    %v2629 = vmul.f32 %v2627, %v184
    %v2630 = vsub.f32 %v2619, %v2628
    %v2631 = vsub.f32 %v2620, %v2629
    %v2632 = vmul.f32 %v2630, %v2630
    %v2633 = vmul.f32 %v2631, %v2631
    %v2634 = vsel %vm177, %v2632, 0.0
    %2635 = vadd.xlane.f32.xlu0 %v2634
    %v2636 = vpop.xlane.xlu0 %2635
    %v2637 = vsel %vm177, %v2633, 0.0
    %2638 = vadd.xlane.f32.xlu0 %v2637
    %v2639 = vpop.xlane.xlu0 %2638
    %v2640 = vmul.f32 %v2636, %v184
    %v2641 = vmul.f32 %v2639, %v184
    %v2642 = vadd.f32 %v2640, 1e-05
    %v2643 = vadd.f32 %v2641, 1e-05
    %v2644 = vrsqrt.pop %v2642
    %v2645 = vrsqrt.pop %v2643
    %v2646 = vmul.f32 %v2630, %v2644
    %v2647 = vmul.f32 %v2631, %v2645
    %v2648 = vlaneseq
    %v2649 = vshrl.u32 %v2648, 7
    %v2650 = vsub.s32 0, %v2649
    %v2651 = vrot.slane %v2621, %v2650
    %v2652 = vmul.f32 %v2646, %v2651
    %v2653 = vmul.f32 %v2647, %v2651
    %v2654 = vlaneseq
    %v2655 = vshrl.u32 %v2654, 7
    %v2656 = vsub.s32 1, %v2655
    %v2657 = vrot.slane %v2621, %v2656
    %v2658 = vadd.f32 %v2652, %v2657
    %v2659 = vadd.f32 %v2653, %v2657
    %v2660 = vld [vmem:[%s10] sm:$0xff]
    %v2661 = vld [vmem:[%s10 + $0x8] sm:$0xff]
    %v2662 = vld [vmem:[%s10 + $0x10] sm:$0xff]
    %v2663 = vld [vmem:[%s10 + $0x18] sm:$0xff]
    %v2664 = vld [vmem:[%s11] sm:$0x1]
    %v2666 = vlaneseq
    %v2667 = vshrl.u32 %v2666, 7
    %v2668 = vsub.s32 0, %v2667
    %v2669 = vrot.slane %v2664, %v2668
    %v2672 = vsel %vm177, %v2658, 0
    %v2675 = vsel %vm177, %v2659, 0
    %2677 = vmatprep.subr.mxu0 0.0
    %2678 = vmatpush1.msra.mxu0 %v2660
    %2679 = vmatprep.subr.mxu0 0.0
    %2680 = vmatpush1.msra.mxu0 %v2661
    %2681 = vmatprep.subr.mxu0 0.0
    %2682 = vmatpush1.msra.mxu0 %v2662
    %2683 = vmatprep.subr.mxu0 0.0
    %2684 = vmatpush1.msra.mxu0 %v2663
    %2685 = vmatprep.subr.mxu0 0.0
    %2686 = vmatpush1.msra.mxu0 0.0
    %2687 = vmatprep.subr.mxu0 0.0
    %2688 = vmatpush1.msra.mxu0 0.0
    %2689 = vmatprep.subr.mxu0 0.0
    %2690 = vmatpush1.msra.mxu0 0.0
    %2691 = vmatprep.subr.mxu0 0.0
    %2692 = vmatpush1.msra.mxu0 0.0
    %2693 = vmatprep.subr.mxu0 0.0
    %2694 = vmatpush1.msra.mxu0 0.0
    %2695 = vmatprep.subr.mxu0 0.0
    %2696 = vmatpush1.msra.mxu0 0.0
    %2697 = vmatprep.subr.mxu0 0.0
    %2698 = vmatpush1.msra.mxu0 0.0
    %2699 = vmatprep.subr.mxu0 0.0
    %2700 = vmatpush1.msra.mxu0 0.0
    %2701 = vmatprep.subr.mxu0 0.0
    %2702 = vmatpush1.msra.mxu0 0.0
    %2703 = vmatprep.subr.mxu0 0.0
    %2704 = vmatpush1.msra.mxu0 0.0
    %2705 = vmatprep.subr.mxu0 0.0
    %2706 = vmatpush1.msra.mxu0 0.0
    %2707 = vmatprep.subr.mxu0 0.0
    %2708 = vmatpush1.msra.mxu0 0.0
    %2709 = vmatprep.subr.mxu0 0.0
    %2710 = vmatpush1.msra.mxu0 0.0
    %2711 = vmatprep.subr.mxu0 0.0
    %2712 = vmatpush1.msra.mxu0 0.0
    %2713 = vmatprep.subr.mxu0 0.0
    %2714 = vmatpush1.msra.mxu0 0.0
    %2715 = vmatprep.subr.mxu0 0.0
    %2716 = vmatpush1.msra.mxu0 0.0
    %2717 = vmatprep.subr.mxu0 0.0
    %2718 = vmatpush1.msra.mxu0 0.0
    %2719 = vmatprep.subr.mxu0 0.0
    %2720 = vmatpush1.msra.mxu0 0.0
    %2721 = vmatprep.subr.mxu0 0.0
    %2722 = vmatpush1.msra.mxu0 0.0
    %2723 = vmatprep.subr.mxu0 0.0
    %2724 = vmatpush1.msra.mxu0 0.0
    %2725 = vmatprep.subr.mxu0 0.0
    %2726 = vmatpush1.msra.mxu0 0.0
    %2727 = vmatprep.subr.mxu0 0.0
    %2728 = vmatpush1.msra.mxu0 0.0
    %2729 = vmatprep.subr.mxu0 0.0
    %2730 = vmatpush1.msra.mxu0 0.0
    %2731 = vmatprep.subr.mxu0 0.0
    %2732 = vmatpush1.msra.mxu0 0.0
    %2733 = vmatprep.subr.mxu0 0.0
    %2734 = vmatpush1.msra.mxu0 0.0
    %2735 = vmatprep.subr.mxu0 0.0
    %2736 = vmatpush1.msra.mxu0 0.0
    %2737 = vmatprep.subr.mxu0 0.0
    %2738 = vmatpush1.msra.mxu0 0.0
    %2739 = vmatprep.subr.mxu0 0.0
    %2740 = vmatpush1.msra.mxu0 0.0
    %2741 = vmatprep.mubr.f32.mxu0 0.0
    %2742 = vmatmul.mubr.f32.gmra.mrb[0].mxu0 %v2672
    %v2743 = vpop.f32.mrb[0].mxu0
    %v2744 = vadd.f32 %v2669, %v2743
    %v2745 = vpop.f32.mrb[0].mxu0
    %2746 = vmatprep.mubr.f32.mxu0 0.0
    %2747 = vmatmul.mubr.f32.gmra.mrb[0].mxu0 %v2675
    %v2748 = vpop.f32.mrb[0].mxu0
    %v2749 = vadd.f32 %v2669, %v2748
    %v2750 = vpop.f32.mrb[0].mxu0
    %2751 = vdwg.mxu0
    %v2752 = vmul.f32 %v2744, 0.70710677
    %v2753 = vmul.f32 %v2749, 0.70710677
    %v2754 = vand.u32 2147483647, %v2752
    %v2755 = vand.u32 2147483647, %v2753
    %v2756 = vmul.f32 %v2754, 0.3275911
    %v2757 = vmul.f32 %v2755, 0.3275911
    %v2758 = vadd.f32 %v2756, 1.0
    %v2759 = vadd.f32 %v2757, 1.0
    %v2760 = vrcp.pop %v2758
    %v2761 = vmul.f32 1.0, %v2760
    %v2762 = vrcp.pop %v2759
    %v2763 = vmul.f32 1.0, %v2762
    %v2764 = vmul.f32 %v2761, 1.0614054
    %v2765 = vmul.f32 %v2763, 1.0614054
    %v2766 = vadd.f32 %v2764, -1.4531521
    %v2767 = vadd.f32 %v2765, -1.4531521
    %v2768 = vmul.f32 %v2761, %v2766
    %v2769 = vmul.f32 %v2763, %v2767
    %v2770 = vadd.f32 %v2768, 1.4214138
    %v2771 = vadd.f32 %v2769, 1.4214138
    %v2772 = vmul.f32 %v2761, %v2770
    %v2773 = vmul.f32 %v2763, %v2771
    %v2774 = vadd.f32 %v2772, -0.28449672
    %v2775 = vadd.f32 %v2773, -0.28449672
    %v2776 = vmul.f32 %v2761, %v2774
    %v2777 = vmul.f32 %v2763, %v2775
    %v2778 = vadd.f32 %v2776, 0.2548296
    %v2779 = vadd.f32 %v2777, 0.2548296
    %v2780 = vmul.f32 %v2761, %v2778
    %v2781 = vmul.f32 %v2763, %v2779
    %v2782 = vsub.f32 0.0, %v2754
    %v2783 = vsub.f32 0.0, %v2755
    %v2784 = vmul.f32 %v2782, %v2754
    %v2785 = vmul.f32 %v2783, %v2755
    %v2786 = vmul.f32 %v2784, 1.442695
    %v2787 = vpow.pop %v2786
    %v2788 = vmul.f32 %v2785, 1.442695
    %v2789 = vpow.pop %v2788
    %v2790 = vmul.f32 %v2780, %v2787
    %v2791 = vmul.f32 %v2781, %v2789
    %v2792 = vsub.f32 1.0, %v2790
    %v2793 = vsub.f32 1.0, %v2791
    %vm2794 = vcmp.ge.f32.partialorder %v2752, 0.0
    %vm2795 = vcmp.ge.f32.partialorder %v2753, 0.0
    %v2796 = vsub.f32 0.0, %v2792
    %v2797 = vsub.f32 0.0, %v2793
    %v2798 = vsel %vm2794, %v2792, %v2796
    %v2799 = vsel %vm2795, %v2793, %v2797
    %v2800 = vmul.f32 %v2744, 0.5
    %v2801 = vmul.f32 %v2749, 0.5
    %v2802 = vadd.f32 %v2798, 1.0
    %v2803 = vadd.f32 %v2799, 1.0
    %v2804 = vmul.f32 %v2800, %v2802
    %v2805 = vmul.f32 %v2801, %v2803
    %v2806 = vld [vmem:[%s12] sm:$0xff]
    %v2807 = vld [vmem:[%s12 + $0x8] sm:$0xff]
    %v2808 = vld [vmem:[%s12 + $0x10] sm:$0xff]
    %v2809 = vld [vmem:[%s12 + $0x18] sm:$0xff]
    %v2810 = vld [vmem:[%s12 + $0x20] sm:$0xff]
    %v2811 = vld [vmem:[%s12 + $0x28] sm:$0xff]
    %v2812 = vld [vmem:[%s12 + $0x30] sm:$0xff]
    %v2813 = vld [vmem:[%s12 + $0x38] sm:$0xff]
    %v2814 = vld [vmem:[%s12 + $0x40] sm:$0xff]
    %v2815 = vld [vmem:[%s12 + $0x48] sm:$0xff]
    %v2816 = vld [vmem:[%s12 + $0x50] sm:$0xff]
    %v2817 = vld [vmem:[%s12 + $0x58] sm:$0xff]
    %v2818 = vld [vmem:[%s12 + $0x60] sm:$0xff]
    %v2819 = vld [vmem:[%s12 + $0x68] sm:$0xff]
    %v2820 = vld [vmem:[%s12 + $0x70] sm:$0xff]
    %v2821 = vld [vmem:[%s12 + $0x78] sm:$0xff]
    %v2822 = vld [vmem:[%s13] sm:$0x1]
    %v2824 = vlaneseq
    %v2825 = vshrl.u32 %v2824, 7
    %v2826 = vsub.s32 0, %v2825
    %v2827 = vrot.slane %v2822, %v2826
    %2829 = vmatprep.subr.mxu0 0.0
    %2830 = vmatpush1.msra.mxu0 %v2806
    %2831 = vmatprep.subr.mxu0 0.0
    %2832 = vmatpush1.msra.mxu0 %v2807
    %2833 = vmatprep.subr.mxu0 0.0
    %2834 = vmatpush1.msra.mxu0 %v2808
    %2835 = vmatprep.subr.mxu0 0.0
    %2836 = vmatpush1.msra.mxu0 %v2809
    %2837 = vmatprep.subr.mxu0 0.0
    %2838 = vmatpush1.msra.mxu0 %v2810
    %2839 = vmatprep.subr.mxu0 0.0
    %2840 = vmatpush1.msra.mxu0 %v2811
    %2841 = vmatprep.subr.mxu0 0.0
    %2842 = vmatpush1.msra.mxu0 %v2812
    %2843 = vmatprep.subr.mxu0 0.0
    %2844 = vmatpush1.msra.mxu0 %v2813
    %2845 = vmatprep.subr.mxu0 0.0
    %2846 = vmatpush1.msra.mxu0 %v2814
    %2847 = vmatprep.subr.mxu0 0.0
    %2848 = vmatpush1.msra.mxu0 %v2815
    %2849 = vmatprep.subr.mxu0 0.0
    %2850 = vmatpush1.msra.mxu0 %v2816
    %2851 = vmatprep.subr.mxu0 0.0
    %2852 = vmatpush1.msra.mxu0 %v2817
    %2853 = vmatprep.subr.mxu0 0.0
    %2854 = vmatpush1.msra.mxu0 %v2818
    %2855 = vmatprep.subr.mxu0 0.0
    %2856 = vmatpush1.msra.mxu0 %v2819
    %2857 = vmatprep.subr.mxu0 0.0
    %2858 = vmatpush1.msra.mxu0 %v2820
    %2859 = vmatprep.subr.mxu0 0.0
    %2860 = vmatpush1.msra.mxu0 %v2821
    %2861 = vmatprep.subr.mxu0 0.0
    %2862 = vmatpush1.msra.mxu0 0.0
    %2863 = vmatprep.subr.mxu0 0.0
    %2864 = vmatpush1.msra.mxu0 0.0
    %2865 = vmatprep.subr.mxu0 0.0
    %2866 = vmatpush1.msra.mxu0 0.0
    %2867 = vmatprep.subr.mxu0 0.0
    %2868 = vmatpush1.msra.mxu0 0.0
    %2869 = vmatprep.subr.mxu0 0.0
    %2870 = vmatpush1.msra.mxu0 0.0
    %2871 = vmatprep.subr.mxu0 0.0
    %2872 = vmatpush1.msra.mxu0 0.0
    %2873 = vmatprep.subr.mxu0 0.0
    %2874 = vmatpush1.msra.mxu0 0.0
    %2875 = vmatprep.subr.mxu0 0.0
    %2876 = vmatpush1.msra.mxu0 0.0
    %2877 = vmatprep.subr.mxu0 0.0
    %2878 = vmatpush1.msra.mxu0 0.0
    %2879 = vmatprep.subr.mxu0 0.0
    %2880 = vmatpush1.msra.mxu0 0.0
    %2881 = vmatprep.subr.mxu0 0.0
    %2882 = vmatpush1.msra.mxu0 0.0
    %2883 = vmatprep.subr.mxu0 0.0
    %2884 = vmatpush1.msra.mxu0 0.0
    %2885 = vmatprep.subr.mxu0 0.0
    %2886 = vmatpush1.msra.mxu0 0.0
    %2887 = vmatprep.subr.mxu0 0.0
    %2888 = vmatpush1.msra.mxu0 0.0
    %2889 = vmatprep.subr.mxu0 0.0
    %2890 = vmatpush1.msra.mxu0 0.0
    %2891 = vmatprep.subr.mxu0 0.0
    %2892 = vmatpush1.msra.mxu0 0.0
    %2893 = vmatprep.mubr.f32.mxu0 0.0
    %2894 = vmatmul.mubr.f32.gmra.mrb[0].mxu0 %v2804
    %v2895 = vpop.f32.mrb[0].mxu0
    %v2896 = vadd.f32 %v2827, %v2895
    %v2897 = vpop.f32.mrb[0].mxu0
    %2898 = vmatprep.mubr.f32.mxu0 0.0
    %2899 = vmatmul.mubr.f32.gmra.mrb[0].mxu0 %v2805
    %v2900 = vpop.f32.mrb[0].mxu0
    %v2901 = vadd.f32 %v2827, %v2900
    %v2902 = vpop.f32.mrb[0].mxu0
    %2903 = vdwg.mxu0
    %v2904 = vadd.f32 %v2619, %v2896
    %v2905 = vadd.f32 %v2620, %v2901
    %s2906 = sld [smem:[#allocation3 + $0x80]]
    %s2907 = sld [smem:[#allocation3 + $0x81]]
    %s2908 = scalar_lea.vmem %s4, 2
    %v2909 = vld [vmem:[%s2908] sm:$0x3]
    %v2910 = vsel %vm177, %v2904, 0.0
    %2911 = vadd.xlane.f32.xlu0 %v2910
    %v2912 = vpop.xlane.xlu0 %2911
    %v2913 = vsel %vm177, %v2905, 0.0
    %2914 = vadd.xlane.f32.xlu0 %v2913
    %v2915 = vpop.xlane.xlu0 %2914
    %v2916 = vmul.f32 %v2912, %v184
    %v2917 = vmul.f32 %v2915, %v184
    %v2918 = vsub.f32 %v2904, %v2916
    %v2919 = vsub.f32 %v2905, %v2917
    %v2920 = vmul.f32 %v2918, %v2918
    %v2921 = vmul.f32 %v2919, %v2919
    %v2922 = vsel %vm177, %v2920, 0.0
    %2923 = vadd.xlane.f32.xlu0 %v2922
    %v2924 = vpop.xlane.xlu0 %2923
    %v2925 = vsel %vm177, %v2921, 0.0
    %2926 = vadd.xlane.f32.xlu0 %v2925
    %v2927 = vpop.xlane.xlu0 %2926
    %v2928 = vmul.f32 %v2924, %v184
    %v2929 = vmul.f32 %v2927, %v184
    %v2930 = vadd.f32 %v2928, 1e-05
    %v2931 = vadd.f32 %v2929, 1e-05
    %v2932 = vrsqrt.pop %v2930
    %v2933 = vrsqrt.pop %v2931
    %v2934 = vmul.f32 %v2918, %v2932
    %v2935 = vmul.f32 %v2919, %v2933
    %v2936 = vlaneseq
    %v2937 = vshrl.u32 %v2936, 7
    %v2938 = vsub.s32 0, %v2937
    %v2939 = vrot.slane %v2909, %v2938
    %v2940 = vmul.f32 %v2934, %v2939
    %v2941 = vmul.f32 %v2935, %v2939
    %v2942 = vlaneseq
    %v2943 = vshrl.u32 %v2942, 7
    %v2944 = vsub.s32 1, %v2943
    %v2945 = vrot.slane %v2909, %v2944
    %v2946 = vadd.f32 %v2940, %v2945
    %v2947 = vadd.f32 %v2941, %v2945
    %s2948 = scalar_lea.vmem %s5, 32
    %v2949 = vld [vmem:[%s2948] sm:$0xff]
    %v2950 = vld [vmem:[%s2948 + $0x8] sm:$0xff]
    %v2951 = vld [vmem:[%s2948 + $0x10] sm:$0xff]
    %v2952 = vld [vmem:[%s2948 + $0x18] sm:$0xff]
    %s2953 = scalar_lea.vmem %s6, 1
    %v2954 = vld [vmem:[%s2953] sm:$0x1]
    %v2956 = vlaneseq
    %v2957 = vshrl.u32 %v2956, 7
    %v2958 = vsub.s32 0, %v2957
    %v2959 = vrot.slane %v2954, %v2958
    %v2962 = vsel %vm177, %v2946, 0
    %v2965 = vsel %vm177, %v2947, 0
    %2967 = vmatprep.subr.mxu0 0.0
    %2968 = vmatpush1.msra.mxu0 %v2949
    %2969 = vmatprep.subr.mxu0 0.0
    %2970 = vmatpush1.msra.mxu0 %v2950
    %2971 = vmatprep.subr.mxu0 0.0
    %2972 = vmatpush1.msra.mxu0 %v2951
    %2973 = vmatprep.subr.mxu0 0.0
    %2974 = vmatpush1.msra.mxu0 %v2952
    %2975 = vmatprep.subr.mxu0 0.0
    %2976 = vmatpush1.msra.mxu0 0.0
    %2977 = vmatprep.subr.mxu0 0.0
    %2978 = vmatpush1.msra.mxu0 0.0
    %2979 = vmatprep.subr.mxu0 0.0
    %2980 = vmatpush1.msra.mxu0 0.0
    %2981 = vmatprep.subr.mxu0 0.0
    %2982 = vmatpush1.msra.mxu0 0.0
    %2983 = vmatprep.subr.mxu0 0.0
    %2984 = vmatpush1.msra.mxu0 0.0
    %2985 = vmatprep.subr.mxu0 0.0
    %2986 = vmatpush1.msra.mxu0 0.0
    %2987 = vmatprep.subr.mxu0 0.0
    %2988 = vmatpush1.msra.mxu0 0.0
    %2989 = vmatprep.subr.mxu0 0.0
    %2990 = vmatpush1.msra.mxu0 0.0
    %2991 = vmatprep.subr.mxu0 0.0
    %2992 = vmatpush1.msra.mxu0 0.0
    %2993 = vmatprep.subr.mxu0 0.0
    %2994 = vmatpush1.msra.mxu0 0.0
    %2995 = vmatprep.subr.mxu0 0.0
    %2996 = vmatpush1.msra.mxu0 0.0
    %2997 = vmatprep.subr.mxu0 0.0
    %2998 = vmatpush1.msra.mxu0 0.0
    %2999 = vmatprep.subr.mxu0 0.0
    %3000 = vmatpush1.msra.mxu0 0.0
    %3001 = vmatprep.subr.mxu0 0.0
    %3002 = vmatpush1.msra.mxu0 0.0
    %3003 = vmatprep.subr.mxu0 0.0
    %3004 = vmatpush1.msra.mxu0 0.0
    %3005 = vmatprep.subr.mxu0 0.0
    %3006 = vmatpush1.msra.mxu0 0.0
    %3007 = vmatprep.subr.mxu0 0.0
    %3008 = vmatpush1.msra.mxu0 0.0
    %3009 = vmatprep.subr.mxu0 0.0
    %3010 = vmatpush1.msra.mxu0 0.0
    %3011 = vmatprep.subr.mxu0 0.0
    %3012 = vmatpush1.msra.mxu0 0.0
    %3013 = vmatprep.subr.mxu0 0.0
    %3014 = vmatpush1.msra.mxu0 0.0
    %3015 = vmatprep.subr.mxu0 0.0
    %3016 = vmatpush1.msra.mxu0 0.0
    %3017 = vmatprep.subr.mxu0 0.0
    %3018 = vmatpush1.msra.mxu0 0.0
    %3019 = vmatprep.subr.mxu0 0.0
    %3020 = vmatpush1.msra.mxu0 0.0
    %3021 = vmatprep.subr.mxu0 0.0
    %3022 = vmatpush1.msra.mxu0 0.0
    %3023 = vmatprep.subr.mxu0 0.0
    %3024 = vmatpush1.msra.mxu0 0.0
    %3025 = vmatprep.subr.mxu0 0.0
    %3026 = vmatpush1.msra.mxu0 0.0
    %3027 = vmatprep.subr.mxu0 0.0
    %3028 = vmatpush1.msra.mxu0 0.0
    %3029 = vmatprep.subr.mxu0 0.0
    %3030 = vmatpush1.msra.mxu0 0.0
    %3031 = vmatprep.mubr.f32.mxu0 0.0
    %3032 = vmatmul.mubr.f32.gmra.mrb[0].mxu0 %v2962
    %v3033 = vpop.f32.mrb[0].mxu0
    %v3034 = vadd.f32 %v2959, %v3033
    %v3035 = vpop.f32.mrb[0].mxu0
    %3036 = vmatprep.mubr.f32.mxu0 0.0
    %3037 = vmatmul.mubr.f32.gmra.mrb[0].mxu0 %v2965
    %v3038 = vpop.f32.mrb[0].mxu0
    %v3039 = vadd.f32 %v2959, %v3038
    %v3040 = vpop.f32.mrb[0].mxu0
    %3041 = vdwg.mxu0
    %3043 = vrot.lane.b32.xlu0 %v3034, 96
    %v3044 = vpop.permute.xlu0 %3043
    %v3045 = vsel %vm353, %v3034, 0
    %v3047 = vsel %vm353, %v3044, 0
    %3049 = vmatprep.subr.mxu0 0.0
    %3050 = vmatpush1.xpose.msra.mxu0 %v3047
    %3051 = vmatprep.subr.mxu0 0.0
    %3052 = vmatpush1.xpose.msra.mxu0 0.0
    %3053 = vmatprep.subr.mxu0 0.0
    %3054 = vmatpush1.xpose.msra.mxu0 0.0
    %3055 = vmatprep.subr.mxu0 0.0
    %3056 = vmatpush1.xpose.msra.mxu0 0.0
    %3057 = vmatprep.subr.mxu0 0.0
    %3058 = vmatpush1.xpose.msra.mxu0 0.0
    %3059 = vmatprep.subr.mxu0 0.0
    %3060 = vmatpush1.xpose.msra.mxu0 0.0
    %3061 = vmatprep.subr.mxu0 0.0
    %3062 = vmatpush1.xpose.msra.mxu0 0.0
    %3063 = vmatprep.subr.mxu0 0.0
    %3064 = vmatpush1.xpose.msra.mxu0 0.0
    %3065 = vmatprep.subr.mxu0 0.0
    %3066 = vmatpush1.xpose.msra.mxu0 0.0
    %3067 = vmatprep.subr.mxu0 0.0
    %3068 = vmatpush1.xpose.msra.mxu0 0.0
    %3069 = vmatprep.subr.mxu0 0.0
    %3070 = vmatpush1.xpose.msra.mxu0 0.0
    %3071 = vmatprep.subr.mxu0 0.0
    %3072 = vmatpush1.xpose.msra.mxu0 0.0
    %3073 = vmatprep.subr.mxu0 0.0
    %3074 = vmatpush1.xpose.msra.mxu0 0.0
    %3075 = vmatprep.subr.mxu0 0.0
    %3076 = vmatpush1.xpose.msra.mxu0 0.0
    %3077 = vmatprep.subr.mxu0 0.0
    %3078 = vmatpush1.xpose.msra.mxu0 0.0
    %3079 = vmatprep.subr.mxu0 0.0
    %3080 = vmatpush1.xpose.msra.mxu0 0.0
    %3081 = vmatprep.subr.mxu0 0.0
    %3082 = vmatpush1.xpose.msra.mxu0 0.0
    %3083 = vmatprep.subr.mxu0 0.0
    %3084 = vmatpush1.xpose.msra.mxu0 0.0
    %3085 = vmatprep.subr.mxu0 0.0
    %3086 = vmatpush1.xpose.msra.mxu0 0.0
    %3087 = vmatprep.subr.mxu0 0.0
    %3088 = vmatpush1.xpose.msra.mxu0 0.0
    %3089 = vmatprep.subr.mxu0 0.0
    %3090 = vmatpush1.xpose.msra.mxu0 0.0
    %3091 = vmatprep.subr.mxu0 0.0
    %3092 = vmatpush1.xpose.msra.mxu0 0.0
    %3093 = vmatprep.subr.mxu0 0.0
    %3094 = vmatpush1.xpose.msra.mxu0 0.0
    %3095 = vmatprep.subr.mxu0 0.0
    %3096 = vmatpush1.xpose.msra.mxu0 0.0
    %3097 = vmatprep.subr.mxu0 0.0
    %3098 = vmatpush1.xpose.msra.mxu0 0.0
    %3099 = vmatprep.subr.mxu0 0.0
    %3100 = vmatpush1.xpose.msra.mxu0 0.0
    %3101 = vmatprep.subr.mxu0 0.0
    %3102 = vmatpush1.xpose.msra.mxu0 0.0
    %3103 = vmatprep.subr.mxu0 0.0
    %3104 = vmatpush1.xpose.msra.mxu0 0.0
    %3105 = vmatprep.subr.mxu0 0.0
    %3106 = vmatpush1.xpose.msra.mxu0 0.0
    %3107 = vmatprep.subr.mxu0 0.0
    %3108 = vmatpush1.xpose.msra.mxu0 0.0
    %3109 = vmatprep.subr.mxu0 0.0
    %3110 = vmatpush1.xpose.msra.mxu0 0.0
    %3111 = vmatprep.subr.mxu0 0.0
    %3112 = vmatpush1.xpose.msra.mxu0 0.0
    %3113 = vmatprep.mubr.f32.mxu0 0.0
    %3114 = vmatmul.mubr.f32.gmra.mrb[0].mxu0 %v3045
    %v3115 = vpop.f32.mrb[0].mxu0
    %v3116 = vadd.f32 0.0, %v3115
    %v3117 = vpop.f32.mrb[0].mxu0
    %3118 = vdwg.mxu0
    %v3119 = vmul.f32 %v3116, 0.5
    %3120 = vrot.lane.b32.xlu0 %v3034, 124
    %v3121 = vpop.permute.xlu0 %3120
    %3122 = vrot.lane.b32.xlu0 %v3034, 92
    %v3123 = vpop.permute.xlu0 %3122
    %v3124 = vsel %vm353, %v3121, 0
    %v3126 = vsel %vm353, %v3123, 0
    %3128 = vmatprep.subr.mxu0 0.0
    %3129 = vmatpush1.xpose.msra.mxu0 %v3126
    %3130 = vmatprep.subr.mxu0 0.0
    %3131 = vmatpush1.xpose.msra.mxu0 0.0
    %3132 = vmatprep.subr.mxu0 0.0
    %3133 = vmatpush1.xpose.msra.mxu0 0.0
    %3134 = vmatprep.subr.mxu0 0.0
    %3135 = vmatpush1.xpose.msra.mxu0 0.0
    %3136 = vmatprep.subr.mxu0 0.0
    %3137 = vmatpush1.xpose.msra.mxu0 0.0
    %3138 = vmatprep.subr.mxu0 0.0
    %3139 = vmatpush1.xpose.msra.mxu0 0.0
    %3140 = vmatprep.subr.mxu0 0.0
    %3141 = vmatpush1.xpose.msra.mxu0 0.0
    %3142 = vmatprep.subr.mxu0 0.0
    %3143 = vmatpush1.xpose.msra.mxu0 0.0
    %3144 = vmatprep.subr.mxu0 0.0
    %3145 = vmatpush1.xpose.msra.mxu0 0.0
    %3146 = vmatprep.subr.mxu0 0.0
    %3147 = vmatpush1.xpose.msra.mxu0 0.0
    %3148 = vmatprep.subr.mxu0 0.0
    %3149 = vmatpush1.xpose.msra.mxu0 0.0
    %3150 = vmatprep.subr.mxu0 0.0
    %3151 = vmatpush1.xpose.msra.mxu0 0.0
    %3152 = vmatprep.subr.mxu0 0.0
    %3153 = vmatpush1.xpose.msra.mxu0 0.0
    %3154 = vmatprep.subr.mxu0 0.0
    %3155 = vmatpush1.xpose.msra.mxu0 0.0
    %3156 = vmatprep.subr.mxu0 0.0
    %3157 = vmatpush1.xpose.msra.mxu0 0.0
    %3158 = vmatprep.subr.mxu0 0.0
    %3159 = vmatpush1.xpose.msra.mxu0 0.0
    %3160 = vmatprep.subr.mxu0 0.0
    %3161 = vmatpush1.xpose.msra.mxu0 0.0
    %3162 = vmatprep.subr.mxu0 0.0
    %3163 = vmatpush1.xpose.msra.mxu0 0.0
    %3164 = vmatprep.subr.mxu0 0.0
    %3165 = vmatpush1.xpose.msra.mxu0 0.0
    %3166 = vmatprep.subr.mxu0 0.0
    %3167 = vmatpush1.xpose.msra.mxu0 0.0
    %3168 = vmatprep.subr.mxu0 0.0
    %3169 = vmatpush1.xpose.msra.mxu0 0.0
    %3170 = vmatprep.subr.mxu0 0.0
    %3171 = vmatpush1.xpose.msra.mxu0 0.0
    %3172 = vmatprep.subr.mxu0 0.0
    %3173 = vmatpush1.xpose.msra.mxu0 0.0
    %3174 = vmatprep.subr.mxu0 0.0
    %3175 = vmatpush1.xpose.msra.mxu0 0.0
    %3176 = vmatprep.subr.mxu0 0.0
    %3177 = vmatpush1.xpose.msra.mxu0 0.0
    %3178 = vmatprep.subr.mxu0 0.0
    %3179 = vmatpush1.xpose.msra.mxu0 0.0
    %3180 = vmatprep.subr.mxu0 0.0
    %3181 = vmatpush1.xpose.msra.mxu0 0.0
    %3182 = vmatprep.subr.mxu0 0.0
    %3183 = vmatpush1.xpose.msra.mxu0 0.0
    %3184 = vmatprep.subr.mxu0 0.0
    %3185 = vmatpush1.xpose.msra.mxu0 0.0
    %3186 = vmatprep.subr.mxu0 0.0
    %3187 = vmatpush1.xpose.msra.mxu0 0.0
    %3188 = vmatprep.subr.mxu0 0.0
    %3189 = vmatpush1.xpose.msra.mxu0 0.0
    %3190 = vmatprep.subr.mxu0 0.0
    %3191 = vmatpush1.xpose.msra.mxu0 0.0
    %3192 = vmatprep.mubr.f32.mxu0 0.0
    %3193 = vmatmul.mubr.f32.gmra.mrb[0].mxu0 %v3124
    %v3194 = vpop.f32.mrb[0].mxu0
    %v3195 = vadd.f32 0.0, %v3194
    %v3196 = vpop.f32.mrb[0].mxu0
    %3197 = vdwg.mxu0
    %v3198 = vmul.f32 %v3195, 0.5
    %v3199 = vsel %vm508, %v3119, -inf
    %3200 = vmax.xlane.f32.xlu0 %v3199
    %v3201 = vpop.xlane.xlu0 %3200
    %v3202 = vsub.f32 %v3119, %v3201
    %v3203 = vmul.f32 %v3202, 1.442695
    %v3204 = vpow.pop %v3203
    %v3205 = vsel %vm508, %v3204, 0.0
    %3206 = vadd.xlane.f32.xlu0 %v3205
    %v3207 = vpop.xlane.xlu0 %3206
    %v3208 = vrcp.pop %v3207
    %v3209 = vmul.f32 %v3204, %v3208
    %v3210 = vsel %vm508, %v3198, -inf
    %3211 = vmax.xlane.f32.xlu0 %v3210
    %v3212 = vpop.xlane.xlu0 %3211
    %v3213 = vsub.f32 %v3198, %v3212
    %v3214 = vmul.f32 %v3213, 1.442695
    %v3215 = vpow.pop %v3214
    %v3216 = vsel %vm508, %v3215, 0.0
    %3217 = vadd.xlane.f32.xlu0 %v3216
    %v3218 = vpop.xlane.xlu0 %3217
    %v3219 = vrcp.pop %v3218
    %v3220 = vmul.f32 %v3215, %v3219
    %v3221 = vstv %s2906
    %v3222 = vmul.f32 %v3221, %v3220
    %v3223 = vsub.f32 %v3209, %v3222
    %3224 = vrot.lane.b32.xlu0 %v3034, 64
    %v3225 = vpop.permute.xlu0 %3224
    %v3228 = vsel %vm508, %v3223, 0
    %3230 = vmatprep.subr.mxu0 0.0
    %3231 = vmatpush1.msra.mxu0 %v3225
    %3232 = vmatprep.subr.mxu0 0.0
    %3233 = vmatpush1.msra.mxu0 0.0
    %3234 = vmatprep.subr.mxu0 0.0
    %3235 = vmatpush1.msra.mxu0 0.0
    %3236 = vmatprep.subr.mxu0 0.0
    %3237 = vmatpush1.msra.mxu0 0.0
    %3238 = vmatprep.subr.mxu0 0.0
    %3239 = vmatpush1.msra.mxu0 0.0
    %3240 = vmatprep.subr.mxu0 0.0
    %3241 = vmatpush1.msra.mxu0 0.0
    %3242 = vmatprep.subr.mxu0 0.0
    %3243 = vmatpush1.msra.mxu0 0.0
    %3244 = vmatprep.subr.mxu0 0.0
    %3245 = vmatpush1.msra.mxu0 0.0
    %3246 = vmatprep.subr.mxu0 0.0
    %3247 = vmatpush1.msra.mxu0 0.0
    %3248 = vmatprep.subr.mxu0 0.0
    %3249 = vmatpush1.msra.mxu0 0.0
    %3250 = vmatprep.subr.mxu0 0.0
    %3251 = vmatpush1.msra.mxu0 0.0
    %3252 = vmatprep.subr.mxu0 0.0
    %3253 = vmatpush1.msra.mxu0 0.0
    %3254 = vmatprep.subr.mxu0 0.0
    %3255 = vmatpush1.msra.mxu0 0.0
    %3256 = vmatprep.subr.mxu0 0.0
    %3257 = vmatpush1.msra.mxu0 0.0
    %3258 = vmatprep.subr.mxu0 0.0
    %3259 = vmatpush1.msra.mxu0 0.0
    %3260 = vmatprep.subr.mxu0 0.0
    %3261 = vmatpush1.msra.mxu0 0.0
    %3262 = vmatprep.subr.mxu0 0.0
    %3263 = vmatpush1.msra.mxu0 0.0
    %3264 = vmatprep.subr.mxu0 0.0
    %3265 = vmatpush1.msra.mxu0 0.0
    %3266 = vmatprep.subr.mxu0 0.0
    %3267 = vmatpush1.msra.mxu0 0.0
    %3268 = vmatprep.subr.mxu0 0.0
    %3269 = vmatpush1.msra.mxu0 0.0
    %3270 = vmatprep.subr.mxu0 0.0
    %3271 = vmatpush1.msra.mxu0 0.0
    %3272 = vmatprep.subr.mxu0 0.0
    %3273 = vmatpush1.msra.mxu0 0.0
    %3274 = vmatprep.subr.mxu0 0.0
    %3275 = vmatpush1.msra.mxu0 0.0
    %3276 = vmatprep.subr.mxu0 0.0
    %3277 = vmatpush1.msra.mxu0 0.0
    %3278 = vmatprep.subr.mxu0 0.0
    %3279 = vmatpush1.msra.mxu0 0.0
    %3280 = vmatprep.subr.mxu0 0.0
    %3281 = vmatpush1.msra.mxu0 0.0
    %3282 = vmatprep.subr.mxu0 0.0
    %3283 = vmatpush1.msra.mxu0 0.0
    %3284 = vmatprep.subr.mxu0 0.0
    %3285 = vmatpush1.msra.mxu0 0.0
    %3286 = vmatprep.subr.mxu0 0.0
    %3287 = vmatpush1.msra.mxu0 0.0
    %3288 = vmatprep.subr.mxu0 0.0
    %3289 = vmatpush1.msra.mxu0 0.0
    %3290 = vmatprep.subr.mxu0 0.0
    %3291 = vmatpush1.msra.mxu0 0.0
    %3292 = vmatprep.subr.mxu0 0.0
    %3293 = vmatpush1.msra.mxu0 0.0
    %3294 = vmatprep.mubr.f32.mxu0 0.0
    %3295 = vmatmul.mubr.f32.gmra.mrb[0].mxu0 %v3228
    %v3296 = vpop.f32.mrb[0].mxu0
    %v3297 = vadd.f32 0.0, %v3296
    %v3298 = vpop.f32.mrb[0].mxu0
    %3299 = vdwg.mxu0
    %v3300 = vmul.f32 %v3297, %v3297
    %v3301 = vsel %vm508, %v3300, 0.0
    %3302 = vadd.xlane.f32.xlu0 %v3301
    %v3303 = vpop.xlane.xlu0 %3302
    %v3304 = vmul.f32 %v3303, %v614
    %v3305 = vadd.f32 %v3304, 1e-05
    %v3306 = vrsqrt.pop %v3305
    %v3307 = vmul.f32 %v3297, %v3306
    %s3308 = ssub.f32 1.0, %s2907
    %v3309 = vstv %s3308
    %v3310 = vmul.f32 %v3307, %v3309
    %3311 = vst.msk [vmem:[#allocation2] sm:$0xff] %vm508, %v3310
    %3312 = vrot.lane.b32.xlu0 %v3034, 120
    %v3313 = vpop.permute.xlu0 %3312
    %3314 = vrot.lane.b32.xlu0 %v3034, 88
    %v3315 = vpop.permute.xlu0 %3314
    %v3316 = vsel %vm353, %v3313, 0
    %v3318 = vsel %vm353, %v3315, 0
    %3320 = vmatprep.subr.mxu0 0.0
    %3321 = vmatpush1.xpose.msra.mxu0 %v3318
    %3322 = vmatprep.subr.mxu0 0.0
    %3323 = vmatpush1.xpose.msra.mxu0 0.0
    %3324 = vmatprep.subr.mxu0 0.0
    %3325 = vmatpush1.xpose.msra.mxu0 0.0
    %3326 = vmatprep.subr.mxu0 0.0
    %3327 = vmatpush1.xpose.msra.mxu0 0.0
    %3328 = vmatprep.subr.mxu0 0.0
    %3329 = vmatpush1.xpose.msra.mxu0 0.0
    %3330 = vmatprep.subr.mxu0 0.0
    %3331 = vmatpush1.xpose.msra.mxu0 0.0
    %3332 = vmatprep.subr.mxu0 0.0
    %3333 = vmatpush1.xpose.msra.mxu0 0.0
    %3334 = vmatprep.subr.mxu0 0.0
    %3335 = vmatpush1.xpose.msra.mxu0 0.0
    %3336 = vmatprep.subr.mxu0 0.0
    %3337 = vmatpush1.xpose.msra.mxu0 0.0
    %3338 = vmatprep.subr.mxu0 0.0
    %3339 = vmatpush1.xpose.msra.mxu0 0.0
    %3340 = vmatprep.subr.mxu0 0.0
    %3341 = vmatpush1.xpose.msra.mxu0 0.0
    %3342 = vmatprep.subr.mxu0 0.0
    %3343 = vmatpush1.xpose.msra.mxu0 0.0
    %3344 = vmatprep.subr.mxu0 0.0
    %3345 = vmatpush1.xpose.msra.mxu0 0.0
    %3346 = vmatprep.subr.mxu0 0.0
    %3347 = vmatpush1.xpose.msra.mxu0 0.0
    %3348 = vmatprep.subr.mxu0 0.0
    %3349 = vmatpush1.xpose.msra.mxu0 0.0
    %3350 = vmatprep.subr.mxu0 0.0
    %3351 = vmatpush1.xpose.msra.mxu0 0.0
    %3352 = vmatprep.subr.mxu0 0.0
    %3353 = vmatpush1.xpose.msra.mxu0 0.0
    %3354 = vmatprep.subr.mxu0 0.0
    %3355 = vmatpush1.xpose.msra.mxu0 0.0
    %3356 = vmatprep.subr.mxu0 0.0
    %3357 = vmatpush1.xpose.msra.mxu0 0.0
    %3358 = vmatprep.subr.mxu0 0.0
    %3359 = vmatpush1.xpose.msra.mxu0 0.0
    %3360 = vmatprep.subr.mxu0 0.0
    %3361 = vmatpush1.xpose.msra.mxu0 0.0
    %3362 = vmatprep.subr.mxu0 0.0
    %3363 = vmatpush1.xpose.msra.mxu0 0.0
    %3364 = vmatprep.subr.mxu0 0.0
    %3365 = vmatpush1.xpose.msra.mxu0 0.0
    %3366 = vmatprep.subr.mxu0 0.0
    %3367 = vmatpush1.xpose.msra.mxu0 0.0
    %3368 = vmatprep.subr.mxu0 0.0
    %3369 = vmatpush1.xpose.msra.mxu0 0.0
    %3370 = vmatprep.subr.mxu0 0.0
    %3371 = vmatpush1.xpose.msra.mxu0 0.0
    %3372 = vmatprep.subr.mxu0 0.0
    %3373 = vmatpush1.xpose.msra.mxu0 0.0
    %3374 = vmatprep.subr.mxu0 0.0
    %3375 = vmatpush1.xpose.msra.mxu0 0.0
    %3376 = vmatprep.subr.mxu0 0.0
    %3377 = vmatpush1.xpose.msra.mxu0 0.0
    %3378 = vmatprep.subr.mxu0 0.0
    %3379 = vmatpush1.xpose.msra.mxu0 0.0
    %3380 = vmatprep.subr.mxu0 0.0
    %3381 = vmatpush1.xpose.msra.mxu0 0.0
    %3382 = vmatprep.subr.mxu0 0.0
    %3383 = vmatpush1.xpose.msra.mxu0 0.0
    %3384 = vmatprep.mubr.f32.mxu0 0.0
    %3385 = vmatmul.mubr.f32.gmra.mrb[0].mxu0 %v3316
    %v3386 = vpop.f32.mrb[0].mxu0
    %v3387 = vadd.f32 0.0, %v3386
    %v3388 = vpop.f32.mrb[0].mxu0
    %3389 = vdwg.mxu0
    %v3390 = vmul.f32 %v3387, 0.5
    %3391 = vrot.lane.b32.xlu0 %v3034, 116
    %v3392 = vpop.permute.xlu0 %3391
    %3393 = vrot.lane.b32.xlu0 %v3034, 84
    %v3394 = vpop.permute.xlu0 %3393
    %v3395 = vsel %vm353, %v3392, 0
    %v3397 = vsel %vm353, %v3394, 0
    %3399 = vmatprep.subr.mxu0 0.0
    %3400 = vmatpush1.xpose.msra.mxu0 %v3397
    %3401 = vmatprep.subr.mxu0 0.0
    %3402 = vmatpush1.xpose.msra.mxu0 0.0
    %3403 = vmatprep.subr.mxu0 0.0
    %3404 = vmatpush1.xpose.msra.mxu0 0.0
    %3405 = vmatprep.subr.mxu0 0.0
    %3406 = vmatpush1.xpose.msra.mxu0 0.0
    %3407 = vmatprep.subr.mxu0 0.0
    %3408 = vmatpush1.xpose.msra.mxu0 0.0
    %3409 = vmatprep.subr.mxu0 0.0
    %3410 = vmatpush1.xpose.msra.mxu0 0.0
    %3411 = vmatprep.subr.mxu0 0.0
    %3412 = vmatpush1.xpose.msra.mxu0 0.0
    %3413 = vmatprep.subr.mxu0 0.0
    %3414 = vmatpush1.xpose.msra.mxu0 0.0
    %3415 = vmatprep.subr.mxu0 0.0
    %3416 = vmatpush1.xpose.msra.mxu0 0.0
    %3417 = vmatprep.subr.mxu0 0.0
    %3418 = vmatpush1.xpose.msra.mxu0 0.0
    %3419 = vmatprep.subr.mxu0 0.0
    %3420 = vmatpush1.xpose.msra.mxu0 0.0
    %3421 = vmatprep.subr.mxu0 0.0
    %3422 = vmatpush1.xpose.msra.mxu0 0.0
    %3423 = vmatprep.subr.mxu0 0.0
    %3424 = vmatpush1.xpose.msra.mxu0 0.0
    %3425 = vmatprep.subr.mxu0 0.0
    %3426 = vmatpush1.xpose.msra.mxu0 0.0
    %3427 = vmatprep.subr.mxu0 0.0
    %3428 = vmatpush1.xpose.msra.mxu0 0.0
    %3429 = vmatprep.subr.mxu0 0.0
    %3430 = vmatpush1.xpose.msra.mxu0 0.0
    %3431 = vmatprep.subr.mxu0 0.0
    %3432 = vmatpush1.xpose.msra.mxu0 0.0
    %3433 = vmatprep.subr.mxu0 0.0
    %3434 = vmatpush1.xpose.msra.mxu0 0.0
    %3435 = vmatprep.subr.mxu0 0.0
    %3436 = vmatpush1.xpose.msra.mxu0 0.0
    %3437 = vmatprep.subr.mxu0 0.0
    %3438 = vmatpush1.xpose.msra.mxu0 0.0
    %3439 = vmatprep.subr.mxu0 0.0
    %3440 = vmatpush1.xpose.msra.mxu0 0.0
    %3441 = vmatprep.subr.mxu0 0.0
    %3442 = vmatpush1.xpose.msra.mxu0 0.0
    %3443 = vmatprep.subr.mxu0 0.0
    %3444 = vmatpush1.xpose.msra.mxu0 0.0
    %3445 = vmatprep.subr.mxu0 0.0
    %3446 = vmatpush1.xpose.msra.mxu0 0.0
    %3447 = vmatprep.subr.mxu0 0.0
    %3448 = vmatpush1.xpose.msra.mxu0 0.0
    %3449 = vmatprep.subr.mxu0 0.0
    %3450 = vmatpush1.xpose.msra.mxu0 0.0
    %3451 = vmatprep.subr.mxu0 0.0
    %3452 = vmatpush1.xpose.msra.mxu0 0.0
    %3453 = vmatprep.subr.mxu0 0.0
    %3454 = vmatpush1.xpose.msra.mxu0 0.0
    %3455 = vmatprep.subr.mxu0 0.0
    %3456 = vmatpush1.xpose.msra.mxu0 0.0
    %3457 = vmatprep.subr.mxu0 0.0
    %3458 = vmatpush1.xpose.msra.mxu0 0.0
    %3459 = vmatprep.subr.mxu0 0.0
    %3460 = vmatpush1.xpose.msra.mxu0 0.0
    %3461 = vmatprep.subr.mxu0 0.0
    %3462 = vmatpush1.xpose.msra.mxu0 0.0
    %3463 = vmatprep.mubr.f32.mxu0 0.0
    %3464 = vmatmul.mubr.f32.gmra.mrb[0].mxu0 %v3395
    %v3465 = vpop.f32.mrb[0].mxu0
    %v3466 = vadd.f32 0.0, %v3465
    %v3467 = vpop.f32.mrb[0].mxu0
    %3468 = vdwg.mxu0
    %v3469 = vmul.f32 %v3466, 0.5
    %v3470 = vsel %vm508, %v3390, -inf
    %3471 = vmax.xlane.f32.xlu0 %v3470
    %v3472 = vpop.xlane.xlu0 %3471
    %v3473 = vsub.f32 %v3390, %v3472
    %v3474 = vmul.f32 %v3473, 1.442695
    %v3475 = vpow.pop %v3474
    %v3476 = vsel %vm508, %v3475, 0.0
    %3477 = vadd.xlane.f32.xlu0 %v3476
    %v3478 = vpop.xlane.xlu0 %3477
    %v3479 = vrcp.pop %v3478
    %v3480 = vmul.f32 %v3475, %v3479
    %v3481 = vsel %vm508, %v3469, -inf
    %3482 = vmax.xlane.f32.xlu0 %v3481
    %v3483 = vpop.xlane.xlu0 %3482
    %v3484 = vsub.f32 %v3469, %v3483
    %v3485 = vmul.f32 %v3484, 1.442695
    %v3486 = vpow.pop %v3485
    %v3487 = vsel %vm508, %v3486, 0.0
    %3488 = vadd.xlane.f32.xlu0 %v3487
    %v3489 = vpop.xlane.xlu0 %3488
    %v3490 = vrcp.pop %v3489
    %v3491 = vmul.f32 %v3486, %v3490
    %v3492 = vmul.f32 %v3221, %v3491
    %v3493 = vsub.f32 %v3480, %v3492
    %3494 = vrot.lane.b32.xlu0 %v3034, 56
    %v3495 = vpop.permute.xlu0 %3494
    %v3498 = vsel %vm508, %v3493, 0
    %3500 = vmatprep.subr.mxu0 0.0
    %3501 = vmatpush1.msra.mxu0 %v3495
    %3502 = vmatprep.subr.mxu0 0.0
    %3503 = vmatpush1.msra.mxu0 0.0
    %3504 = vmatprep.subr.mxu0 0.0
    %3505 = vmatpush1.msra.mxu0 0.0
    %3506 = vmatprep.subr.mxu0 0.0
    %3507 = vmatpush1.msra.mxu0 0.0
    %3508 = vmatprep.subr.mxu0 0.0
    %3509 = vmatpush1.msra.mxu0 0.0
    %3510 = vmatprep.subr.mxu0 0.0
    %3511 = vmatpush1.msra.mxu0 0.0
    %3512 = vmatprep.subr.mxu0 0.0
    %3513 = vmatpush1.msra.mxu0 0.0
    %3514 = vmatprep.subr.mxu0 0.0
    %3515 = vmatpush1.msra.mxu0 0.0
    %3516 = vmatprep.subr.mxu0 0.0
    %3517 = vmatpush1.msra.mxu0 0.0
    %3518 = vmatprep.subr.mxu0 0.0
    %3519 = vmatpush1.msra.mxu0 0.0
    %3520 = vmatprep.subr.mxu0 0.0
    %3521 = vmatpush1.msra.mxu0 0.0
    %3522 = vmatprep.subr.mxu0 0.0
    %3523 = vmatpush1.msra.mxu0 0.0
    %3524 = vmatprep.subr.mxu0 0.0
    %3525 = vmatpush1.msra.mxu0 0.0
    %3526 = vmatprep.subr.mxu0 0.0
    %3527 = vmatpush1.msra.mxu0 0.0
    %3528 = vmatprep.subr.mxu0 0.0
    %3529 = vmatpush1.msra.mxu0 0.0
    %3530 = vmatprep.subr.mxu0 0.0
    %3531 = vmatpush1.msra.mxu0 0.0
    %3532 = vmatprep.subr.mxu0 0.0
    %3533 = vmatpush1.msra.mxu0 0.0
    %3534 = vmatprep.subr.mxu0 0.0
    %3535 = vmatpush1.msra.mxu0 0.0
    %3536 = vmatprep.subr.mxu0 0.0
    %3537 = vmatpush1.msra.mxu0 0.0
    %3538 = vmatprep.subr.mxu0 0.0
    %3539 = vmatpush1.msra.mxu0 0.0
    %3540 = vmatprep.subr.mxu0 0.0
    %3541 = vmatpush1.msra.mxu0 0.0
    %3542 = vmatprep.subr.mxu0 0.0
    %3543 = vmatpush1.msra.mxu0 0.0
    %3544 = vmatprep.subr.mxu0 0.0
    %3545 = vmatpush1.msra.mxu0 0.0
    %3546 = vmatprep.subr.mxu0 0.0
    %3547 = vmatpush1.msra.mxu0 0.0
    %3548 = vmatprep.subr.mxu0 0.0
    %3549 = vmatpush1.msra.mxu0 0.0
    %3550 = vmatprep.subr.mxu0 0.0
    %3551 = vmatpush1.msra.mxu0 0.0
    %3552 = vmatprep.subr.mxu0 0.0
    %3553 = vmatpush1.msra.mxu0 0.0
    %3554 = vmatprep.subr.mxu0 0.0
    %3555 = vmatpush1.msra.mxu0 0.0
    %3556 = vmatprep.subr.mxu0 0.0
    %3557 = vmatpush1.msra.mxu0 0.0
    %3558 = vmatprep.subr.mxu0 0.0
    %3559 = vmatpush1.msra.mxu0 0.0
    %3560 = vmatprep.subr.mxu0 0.0
    %3561 = vmatpush1.msra.mxu0 0.0
    %3562 = vmatprep.subr.mxu0 0.0
    %3563 = vmatpush1.msra.mxu0 0.0
    %3564 = vmatprep.mubr.f32.mxu0 0.0
    %3565 = vmatmul.mubr.f32.gmra.mrb[0].mxu0 %v3498
    %v3566 = vpop.f32.mrb[0].mxu0
    %v3567 = vadd.f32 0.0, %v3566
    %v3568 = vpop.f32.mrb[0].mxu0
    %3569 = vdwg.mxu0
    %v3570 = vmul.f32 %v3567, %v3567
    %v3571 = vsel %vm508, %v3570, 0.0
    %3572 = vadd.xlane.f32.xlu0 %v3571
    %v3573 = vpop.xlane.xlu0 %3572
    %v3574 = vmul.f32 %v3573, %v614
    %v3575 = vadd.f32 %v3574, 1e-05
    %v3576 = vrsqrt.pop %v3575
    %v3577 = vmul.f32 %v3567, %v3576
    %v3578 = vmul.f32 %v3577, %v3309
    %3580 = vrot.lane.b32.xlu0 %v3578, 8
    %v3581 = vpop.permute.xlu0 %3580
    %3583 = vst.msk [vmem:[#allocation2] sm:$0xff] %vm894, %v3581
    %3584 = vrot.lane.b32.xlu0 %v3034, 112
    %v3585 = vpop.permute.xlu0 %3584
    %3586 = vrot.lane.b32.xlu0 %v3034, 80
    %v3587 = vpop.permute.xlu0 %3586
    %v3588 = vsel %vm353, %v3585, 0
    %v3590 = vsel %vm353, %v3587, 0
    %3592 = vmatprep.subr.mxu0 0.0
    %3593 = vmatpush1.xpose.msra.mxu0 %v3590
    %3594 = vmatprep.subr.mxu0 0.0
    %3595 = vmatpush1.xpose.msra.mxu0 0.0
    %3596 = vmatprep.subr.mxu0 0.0
    %3597 = vmatpush1.xpose.msra.mxu0 0.0
    %3598 = vmatprep.subr.mxu0 0.0
    %3599 = vmatpush1.xpose.msra.mxu0 0.0
    %3600 = vmatprep.subr.mxu0 0.0
    %3601 = vmatpush1.xpose.msra.mxu0 0.0
    %3602 = vmatprep.subr.mxu0 0.0
    %3603 = vmatpush1.xpose.msra.mxu0 0.0
    %3604 = vmatprep.subr.mxu0 0.0
    %3605 = vmatpush1.xpose.msra.mxu0 0.0
    %3606 = vmatprep.subr.mxu0 0.0
    %3607 = vmatpush1.xpose.msra.mxu0 0.0
    %3608 = vmatprep.subr.mxu0 0.0
    %3609 = vmatpush1.xpose.msra.mxu0 0.0
    %3610 = vmatprep.subr.mxu0 0.0
    %3611 = vmatpush1.xpose.msra.mxu0 0.0
    %3612 = vmatprep.subr.mxu0 0.0
    %3613 = vmatpush1.xpose.msra.mxu0 0.0
    %3614 = vmatprep.subr.mxu0 0.0
    %3615 = vmatpush1.xpose.msra.mxu0 0.0
    %3616 = vmatprep.subr.mxu0 0.0
    %3617 = vmatpush1.xpose.msra.mxu0 0.0
    %3618 = vmatprep.subr.mxu0 0.0
    %3619 = vmatpush1.xpose.msra.mxu0 0.0
    %3620 = vmatprep.subr.mxu0 0.0
    %3621 = vmatpush1.xpose.msra.mxu0 0.0
    %3622 = vmatprep.subr.mxu0 0.0
    %3623 = vmatpush1.xpose.msra.mxu0 0.0
    %3624 = vmatprep.subr.mxu0 0.0
    %3625 = vmatpush1.xpose.msra.mxu0 0.0
    %3626 = vmatprep.subr.mxu0 0.0
    %3627 = vmatpush1.xpose.msra.mxu0 0.0
    %3628 = vmatprep.subr.mxu0 0.0
    %3629 = vmatpush1.xpose.msra.mxu0 0.0
    %3630 = vmatprep.subr.mxu0 0.0
    %3631 = vmatpush1.xpose.msra.mxu0 0.0
    %3632 = vmatprep.subr.mxu0 0.0
    %3633 = vmatpush1.xpose.msra.mxu0 0.0
    %3634 = vmatprep.subr.mxu0 0.0
    %3635 = vmatpush1.xpose.msra.mxu0 0.0
    %3636 = vmatprep.subr.mxu0 0.0
    %3637 = vmatpush1.xpose.msra.mxu0 0.0
    %3638 = vmatprep.subr.mxu0 0.0
    %3639 = vmatpush1.xpose.msra.mxu0 0.0
    %3640 = vmatprep.subr.mxu0 0.0
    %3641 = vmatpush1.xpose.msra.mxu0 0.0
    %3642 = vmatprep.subr.mxu0 0.0
    %3643 = vmatpush1.xpose.msra.mxu0 0.0
    %3644 = vmatprep.subr.mxu0 0.0
    %3645 = vmatpush1.xpose.msra.mxu0 0.0
    %3646 = vmatprep.subr.mxu0 0.0
    %3647 = vmatpush1.xpose.msra.mxu0 0.0
    %3648 = vmatprep.subr.mxu0 0.0
    %3649 = vmatpush1.xpose.msra.mxu0 0.0
    %3650 = vmatprep.subr.mxu0 0.0
    %3651 = vmatpush1.xpose.msra.mxu0 0.0
    %3652 = vmatprep.subr.mxu0 0.0
    %3653 = vmatpush1.xpose.msra.mxu0 0.0
    %3654 = vmatprep.subr.mxu0 0.0
    %3655 = vmatpush1.xpose.msra.mxu0 0.0
    %3656 = vmatprep.mubr.f32.mxu0 0.0
    %3657 = vmatmul.mubr.f32.gmra.mrb[0].mxu0 %v3588
    %v3658 = vpop.f32.mrb[0].mxu0
    %v3659 = vadd.f32 0.0, %v3658
    %v3660 = vpop.f32.mrb[0].mxu0
    %3661 = vdwg.mxu0
    %v3662 = vmul.f32 %v3659, 0.5
    %3663 = vrot.lane.b32.xlu0 %v3034, 108
    %v3664 = vpop.permute.xlu0 %3663
    %3665 = vrot.lane.b32.xlu0 %v3034, 76
    %v3666 = vpop.permute.xlu0 %3665
    %v3667 = vsel %vm353, %v3664, 0
    %v3669 = vsel %vm353, %v3666, 0
    %3671 = vmatprep.subr.mxu0 0.0
    %3672 = vmatpush1.xpose.msra.mxu0 %v3669
    %3673 = vmatprep.subr.mxu0 0.0
    %3674 = vmatpush1.xpose.msra.mxu0 0.0
    %3675 = vmatprep.subr.mxu0 0.0
    %3676 = vmatpush1.xpose.msra.mxu0 0.0
    %3677 = vmatprep.subr.mxu0 0.0
    %3678 = vmatpush1.xpose.msra.mxu0 0.0
    %3679 = vmatprep.subr.mxu0 0.0
    %3680 = vmatpush1.xpose.msra.mxu0 0.0
    %3681 = vmatprep.subr.mxu0 0.0
    %3682 = vmatpush1.xpose.msra.mxu0 0.0
    %3683 = vmatprep.subr.mxu0 0.0
    %3684 = vmatpush1.xpose.msra.mxu0 0.0
    %3685 = vmatprep.subr.mxu0 0.0
    %3686 = vmatpush1.xpose.msra.mxu0 0.0
    %3687 = vmatprep.subr.mxu0 0.0
    %3688 = vmatpush1.xpose.msra.mxu0 0.0
    %3689 = vmatprep.subr.mxu0 0.0
    %3690 = vmatpush1.xpose.msra.mxu0 0.0
    %3691 = vmatprep.subr.mxu0 0.0
    %3692 = vmatpush1.xpose.msra.mxu0 0.0
    %3693 = vmatprep.subr.mxu0 0.0
    %3694 = vmatpush1.xpose.msra.mxu0 0.0
    %3695 = vmatprep.subr.mxu0 0.0
    %3696 = vmatpush1.xpose.msra.mxu0 0.0
    %3697 = vmatprep.subr.mxu0 0.0
    %3698 = vmatpush1.xpose.msra.mxu0 0.0
    %3699 = vmatprep.subr.mxu0 0.0
    %3700 = vmatpush1.xpose.msra.mxu0 0.0
    %3701 = vmatprep.subr.mxu0 0.0
    %3702 = vmatpush1.xpose.msra.mxu0 0.0
    %3703 = vmatprep.subr.mxu0 0.0
    %3704 = vmatpush1.xpose.msra.mxu0 0.0
    %3705 = vmatprep.subr.mxu0 0.0
    %3706 = vmatpush1.xpose.msra.mxu0 0.0
    %3707 = vmatprep.subr.mxu0 0.0
    %3708 = vmatpush1.xpose.msra.mxu0 0.0
    %3709 = vmatprep.subr.mxu0 0.0
    %3710 = vmatpush1.xpose.msra.mxu0 0.0
    %3711 = vmatprep.subr.mxu0 0.0
    %3712 = vmatpush1.xpose.msra.mxu0 0.0
    %3713 = vmatprep.subr.mxu0 0.0
    %3714 = vmatpush1.xpose.msra.mxu0 0.0
    %3715 = vmatprep.subr.mxu0 0.0
    %3716 = vmatpush1.xpose.msra.mxu0 0.0
    %3717 = vmatprep.subr.mxu0 0.0
    %3718 = vmatpush1.xpose.msra.mxu0 0.0
    %3719 = vmatprep.subr.mxu0 0.0
    %3720 = vmatpush1.xpose.msra.mxu0 0.0
    %3721 = vmatprep.subr.mxu0 0.0
    %3722 = vmatpush1.xpose.msra.mxu0 0.0
    %3723 = vmatprep.subr.mxu0 0.0
    %3724 = vmatpush1.xpose.msra.mxu0 0.0
    %3725 = vmatprep.subr.mxu0 0.0
    %3726 = vmatpush1.xpose.msra.mxu0 0.0
    %3727 = vmatprep.subr.mxu0 0.0
    %3728 = vmatpush1.xpose.msra.mxu0 0.0
    %3729 = vmatprep.subr.mxu0 0.0
    %3730 = vmatpush1.xpose.msra.mxu0 0.0
    %3731 = vmatprep.subr.mxu0 0.0
    %3732 = vmatpush1.xpose.msra.mxu0 0.0
    %3733 = vmatprep.subr.mxu0 0.0
    %3734 = vmatpush1.xpose.msra.mxu0 0.0
    %3735 = vmatprep.mubr.f32.mxu0 0.0
    %3736 = vmatmul.mubr.f32.gmra.mrb[0].mxu0 %v3667
    %v3737 = vpop.f32.mrb[0].mxu0
    %v3738 = vadd.f32 0.0, %v3737
    %v3739 = vpop.f32.mrb[0].mxu0
    %3740 = vdwg.mxu0
    %v3741 = vmul.f32 %v3738, 0.5
    %v3742 = vsel %vm508, %v3662, -inf
    %3743 = vmax.xlane.f32.xlu0 %v3742
    %v3744 = vpop.xlane.xlu0 %3743
    %v3745 = vsub.f32 %v3662, %v3744
    %v3746 = vmul.f32 %v3745, 1.442695
    %v3747 = vpow.pop %v3746
    %v3748 = vsel %vm508, %v3747, 0.0
    %3749 = vadd.xlane.f32.xlu0 %v3748
    %v3750 = vpop.xlane.xlu0 %3749
    %v3751 = vrcp.pop %v3750
    %v3752 = vmul.f32 %v3747, %v3751
    %v3753 = vsel %vm508, %v3741, -inf
    %3754 = vmax.xlane.f32.xlu0 %v3753
    %v3755 = vpop.xlane.xlu0 %3754
    %v3756 = vsub.f32 %v3741, %v3755
    %v3757 = vmul.f32 %v3756, 1.442695
    %v3758 = vpow.pop %v3757
    %v3759 = vsel %vm508, %v3758, 0.0
    %3760 = vadd.xlane.f32.xlu0 %v3759
    %v3761 = vpop.xlane.xlu0 %3760
    %v3762 = vrcp.pop %v3761
    %v3763 = vmul.f32 %v3758, %v3762
    %v3764 = vmul.f32 %v3221, %v3763
    %v3765 = vsub.f32 %v3752, %v3764
    %3766 = vrot.lane.b32.xlu0 %v3034, 48
    %v3767 = vpop.permute.xlu0 %3766
    %v3770 = vsel %vm508, %v3765, 0
    %3772 = vmatprep.subr.mxu0 0.0
    %3773 = vmatpush1.msra.mxu0 %v3767
    %3774 = vmatprep.subr.mxu0 0.0
    %3775 = vmatpush1.msra.mxu0 0.0
    %3776 = vmatprep.subr.mxu0 0.0
    %3777 = vmatpush1.msra.mxu0 0.0
    %3778 = vmatprep.subr.mxu0 0.0
    %3779 = vmatpush1.msra.mxu0 0.0
    %3780 = vmatprep.subr.mxu0 0.0
    %3781 = vmatpush1.msra.mxu0 0.0
    %3782 = vmatprep.subr.mxu0 0.0
    %3783 = vmatpush1.msra.mxu0 0.0
    %3784 = vmatprep.subr.mxu0 0.0
    %3785 = vmatpush1.msra.mxu0 0.0
    %3786 = vmatprep.subr.mxu0 0.0
    %3787 = vmatpush1.msra.mxu0 0.0
    %3788 = vmatprep.subr.mxu0 0.0
    %3789 = vmatpush1.msra.mxu0 0.0
    %3790 = vmatprep.subr.mxu0 0.0
    %3791 = vmatpush1.msra.mxu0 0.0
    %3792 = vmatprep.subr.mxu0 0.0
    %3793 = vmatpush1.msra.mxu0 0.0
    %3794 = vmatprep.subr.mxu0 0.0
    %3795 = vmatpush1.msra.mxu0 0.0
    %3796 = vmatprep.subr.mxu0 0.0
    %3797 = vmatpush1.msra.mxu0 0.0
    %3798 = vmatprep.subr.mxu0 0.0
    %3799 = vmatpush1.msra.mxu0 0.0
    %3800 = vmatprep.subr.mxu0 0.0
    %3801 = vmatpush1.msra.mxu0 0.0
    %3802 = vmatprep.subr.mxu0 0.0
    %3803 = vmatpush1.msra.mxu0 0.0
    %3804 = vmatprep.subr.mxu0 0.0
    %3805 = vmatpush1.msra.mxu0 0.0
    %3806 = vmatprep.subr.mxu0 0.0
    %3807 = vmatpush1.msra.mxu0 0.0
    %3808 = vmatprep.subr.mxu0 0.0
    %3809 = vmatpush1.msra.mxu0 0.0
    %3810 = vmatprep.subr.mxu0 0.0
    %3811 = vmatpush1.msra.mxu0 0.0
    %3812 = vmatprep.subr.mxu0 0.0
    %3813 = vmatpush1.msra.mxu0 0.0
    %3814 = vmatprep.subr.mxu0 0.0
    %3815 = vmatpush1.msra.mxu0 0.0
    %3816 = vmatprep.subr.mxu0 0.0
    %3817 = vmatpush1.msra.mxu0 0.0
    %3818 = vmatprep.subr.mxu0 0.0
    %3819 = vmatpush1.msra.mxu0 0.0
    %3820 = vmatprep.subr.mxu0 0.0
    %3821 = vmatpush1.msra.mxu0 0.0
    %3822 = vmatprep.subr.mxu0 0.0
    %3823 = vmatpush1.msra.mxu0 0.0
    %3824 = vmatprep.subr.mxu0 0.0
    %3825 = vmatpush1.msra.mxu0 0.0
    %3826 = vmatprep.subr.mxu0 0.0
    %3827 = vmatpush1.msra.mxu0 0.0
    %3828 = vmatprep.subr.mxu0 0.0
    %3829 = vmatpush1.msra.mxu0 0.0
    %3830 = vmatprep.subr.mxu0 0.0
    %3831 = vmatpush1.msra.mxu0 0.0
    %3832 = vmatprep.subr.mxu0 0.0
    %3833 = vmatpush1.msra.mxu0 0.0
    %3834 = vmatprep.subr.mxu0 0.0
    %3835 = vmatpush1.msra.mxu0 0.0
    %3836 = vmatprep.mubr.f32.mxu0 0.0
    %3837 = vmatmul.mubr.f32.gmra.mrb[0].mxu0 %v3770
    %v3838 = vpop.f32.mrb[0].mxu0
    %v3839 = vadd.f32 0.0, %v3838
    %v3840 = vpop.f32.mrb[0].mxu0
    %3841 = vdwg.mxu0
    %v3842 = vmul.f32 %v3839, %v3839
    %v3843 = vsel %vm508, %v3842, 0.0
    %3844 = vadd.xlane.f32.xlu0 %v3843
    %v3845 = vpop.xlane.xlu0 %3844
    %v3846 = vmul.f32 %v3845, %v614
    %v3847 = vadd.f32 %v3846, 1e-05
    %v3848 = vrsqrt.pop %v3847
    %v3849 = vmul.f32 %v3839, %v3848
    %v3850 = vmul.f32 %v3849, %v3309
    %3852 = vrot.lane.b32.xlu0 %v3850, 16
    %v3853 = vpop.permute.xlu0 %3852
    %3855 = vst.msk [vmem:[#allocation2] sm:$0xff] %vm1167, %v3853
    %3856 = vrot.lane.b32.xlu0 %v3034, 104
    %v3857 = vpop.permute.xlu0 %3856
    %3858 = vrot.lane.b32.xlu0 %v3034, 72
    %v3859 = vpop.permute.xlu0 %3858
    %v3860 = vsel %vm353, %v3857, 0
    %v3862 = vsel %vm353, %v3859, 0
    %3864 = vmatprep.subr.mxu0 0.0
    %3865 = vmatpush1.xpose.msra.mxu0 %v3862
    %3866 = vmatprep.subr.mxu0 0.0
    %3867 = vmatpush1.xpose.msra.mxu0 0.0
    %3868 = vmatprep.subr.mxu0 0.0
    %3869 = vmatpush1.xpose.msra.mxu0 0.0
    %3870 = vmatprep.subr.mxu0 0.0
    %3871 = vmatpush1.xpose.msra.mxu0 0.0
    %3872 = vmatprep.subr.mxu0 0.0
    %3873 = vmatpush1.xpose.msra.mxu0 0.0
    %3874 = vmatprep.subr.mxu0 0.0
    %3875 = vmatpush1.xpose.msra.mxu0 0.0
    %3876 = vmatprep.subr.mxu0 0.0
    %3877 = vmatpush1.xpose.msra.mxu0 0.0
    %3878 = vmatprep.subr.mxu0 0.0
    %3879 = vmatpush1.xpose.msra.mxu0 0.0
    %3880 = vmatprep.subr.mxu0 0.0
    %3881 = vmatpush1.xpose.msra.mxu0 0.0
    %3882 = vmatprep.subr.mxu0 0.0
    %3883 = vmatpush1.xpose.msra.mxu0 0.0
    %3884 = vmatprep.subr.mxu0 0.0
    %3885 = vmatpush1.xpose.msra.mxu0 0.0
    %3886 = vmatprep.subr.mxu0 0.0
    %3887 = vmatpush1.xpose.msra.mxu0 0.0
    %3888 = vmatprep.subr.mxu0 0.0
    %3889 = vmatpush1.xpose.msra.mxu0 0.0
    %3890 = vmatprep.subr.mxu0 0.0
    %3891 = vmatpush1.xpose.msra.mxu0 0.0
    %3892 = vmatprep.subr.mxu0 0.0
    %3893 = vmatpush1.xpose.msra.mxu0 0.0
    %3894 = vmatprep.subr.mxu0 0.0
    %3895 = vmatpush1.xpose.msra.mxu0 0.0
    %3896 = vmatprep.subr.mxu0 0.0
    %3897 = vmatpush1.xpose.msra.mxu0 0.0
    %3898 = vmatprep.subr.mxu0 0.0
    %3899 = vmatpush1.xpose.msra.mxu0 0.0
    %3900 = vmatprep.subr.mxu0 0.0
    %3901 = vmatpush1.xpose.msra.mxu0 0.0
    %3902 = vmatprep.subr.mxu0 0.0
    %3903 = vmatpush1.xpose.msra.mxu0 0.0
    %3904 = vmatprep.subr.mxu0 0.0
    %3905 = vmatpush1.xpose.msra.mxu0 0.0
    %3906 = vmatprep.subr.mxu0 0.0
    %3907 = vmatpush1.xpose.msra.mxu0 0.0
    %3908 = vmatprep.subr.mxu0 0.0
    %3909 = vmatpush1.xpose.msra.mxu0 0.0
    %3910 = vmatprep.subr.mxu0 0.0
    %3911 = vmatpush1.xpose.msra.mxu0 0.0
    %3912 = vmatprep.subr.mxu0 0.0
    %3913 = vmatpush1.xpose.msra.mxu0 0.0
    %3914 = vmatprep.subr.mxu0 0.0
    %3915 = vmatpush1.xpose.msra.mxu0 0.0
    %3916 = vmatprep.subr.mxu0 0.0
    %3917 = vmatpush1.xpose.msra.mxu0 0.0
    %3918 = vmatprep.subr.mxu0 0.0
    %3919 = vmatpush1.xpose.msra.mxu0 0.0
    %3920 = vmatprep.subr.mxu0 0.0
    %3921 = vmatpush1.xpose.msra.mxu0 0.0
    %3922 = vmatprep.subr.mxu0 0.0
    %3923 = vmatpush1.xpose.msra.mxu0 0.0
    %3924 = vmatprep.subr.mxu0 0.0
    %3925 = vmatpush1.xpose.msra.mxu0 0.0
    %3926 = vmatprep.subr.mxu0 0.0
    %3927 = vmatpush1.xpose.msra.mxu0 0.0
    %3928 = vmatprep.mubr.f32.mxu0 0.0
    %3929 = vmatmul.mubr.f32.gmra.mrb[0].mxu0 %v3860
    %v3930 = vpop.f32.mrb[0].mxu0
    %v3931 = vadd.f32 0.0, %v3930
    %v3932 = vpop.f32.mrb[0].mxu0
    %3933 = vdwg.mxu0
    %v3934 = vmul.f32 %v3931, 0.5
    %3935 = vrot.lane.b32.xlu0 %v3034, 100
    %v3936 = vpop.permute.xlu0 %3935
    %3937 = vrot.lane.b32.xlu0 %v3034, 68
    %v3938 = vpop.permute.xlu0 %3937
    %v3939 = vsel %vm353, %v3936, 0
    %v3941 = vsel %vm353, %v3938, 0
    %3943 = vmatprep.subr.mxu0 0.0
    %3944 = vmatpush1.xpose.msra.mxu0 %v3941
    %3945 = vmatprep.subr.mxu0 0.0
    %3946 = vmatpush1.xpose.msra.mxu0 0.0
    %3947 = vmatprep.subr.mxu0 0.0
    %3948 = vmatpush1.xpose.msra.mxu0 0.0
    %3949 = vmatprep.subr.mxu0 0.0
    %3950 = vmatpush1.xpose.msra.mxu0 0.0
    %3951 = vmatprep.subr.mxu0 0.0
    %3952 = vmatpush1.xpose.msra.mxu0 0.0
    %3953 = vmatprep.subr.mxu0 0.0
    %3954 = vmatpush1.xpose.msra.mxu0 0.0
    %3955 = vmatprep.subr.mxu0 0.0
    %3956 = vmatpush1.xpose.msra.mxu0 0.0
    %3957 = vmatprep.subr.mxu0 0.0
    %3958 = vmatpush1.xpose.msra.mxu0 0.0
    %3959 = vmatprep.subr.mxu0 0.0
    %3960 = vmatpush1.xpose.msra.mxu0 0.0
    %3961 = vmatprep.subr.mxu0 0.0
    %3962 = vmatpush1.xpose.msra.mxu0 0.0
    %3963 = vmatprep.subr.mxu0 0.0
    %3964 = vmatpush1.xpose.msra.mxu0 0.0
    %3965 = vmatprep.subr.mxu0 0.0
    %3966 = vmatpush1.xpose.msra.mxu0 0.0
    %3967 = vmatprep.subr.mxu0 0.0
    %3968 = vmatpush1.xpose.msra.mxu0 0.0
    %3969 = vmatprep.subr.mxu0 0.0
    %3970 = vmatpush1.xpose.msra.mxu0 0.0
    %3971 = vmatprep.subr.mxu0 0.0
    %3972 = vmatpush1.xpose.msra.mxu0 0.0
    %3973 = vmatprep.subr.mxu0 0.0
    %3974 = vmatpush1.xpose.msra.mxu0 0.0
    %3975 = vmatprep.subr.mxu0 0.0
    %3976 = vmatpush1.xpose.msra.mxu0 0.0
    %3977 = vmatprep.subr.mxu0 0.0
    %3978 = vmatpush1.xpose.msra.mxu0 0.0
    %3979 = vmatprep.subr.mxu0 0.0
    %3980 = vmatpush1.xpose.msra.mxu0 0.0
    %3981 = vmatprep.subr.mxu0 0.0
    %3982 = vmatpush1.xpose.msra.mxu0 0.0
    %3983 = vmatprep.subr.mxu0 0.0
    %3984 = vmatpush1.xpose.msra.mxu0 0.0
    %3985 = vmatprep.subr.mxu0 0.0
    %3986 = vmatpush1.xpose.msra.mxu0 0.0
    %3987 = vmatprep.subr.mxu0 0.0
    %3988 = vmatpush1.xpose.msra.mxu0 0.0
    %3989 = vmatprep.subr.mxu0 0.0
    %3990 = vmatpush1.xpose.msra.mxu0 0.0
    %3991 = vmatprep.subr.mxu0 0.0
    %3992 = vmatpush1.xpose.msra.mxu0 0.0
    %3993 = vmatprep.subr.mxu0 0.0
    %3994 = vmatpush1.xpose.msra.mxu0 0.0
    %3995 = vmatprep.subr.mxu0 0.0
    %3996 = vmatpush1.xpose.msra.mxu0 0.0
    %3997 = vmatprep.subr.mxu0 0.0
    %3998 = vmatpush1.xpose.msra.mxu0 0.0
    %3999 = vmatprep.subr.mxu0 0.0
    %4000 = vmatpush1.xpose.msra.mxu0 0.0
    %4001 = vmatprep.subr.mxu0 0.0
    %4002 = vmatpush1.xpose.msra.mxu0 0.0
    %4003 = vmatprep.subr.mxu0 0.0
    %4004 = vmatpush1.xpose.msra.mxu0 0.0
    %4005 = vmatprep.subr.mxu0 0.0
    %4006 = vmatpush1.xpose.msra.mxu0 0.0
    %4007 = vmatprep.mubr.f32.mxu0 0.0
    %4008 = vmatmul.mubr.f32.gmra.mrb[0].mxu0 %v3939
    %v4009 = vpop.f32.mrb[0].mxu0
    %v4010 = vadd.f32 0.0, %v4009
    %v4011 = vpop.f32.mrb[0].mxu0
    %4012 = vdwg.mxu0
    %v4013 = vmul.f32 %v4010, 0.5
    %v4014 = vsel %vm508, %v3934, -inf
    %4015 = vmax.xlane.f32.xlu0 %v4014
    %v4016 = vpop.xlane.xlu0 %4015
    %v4017 = vsub.f32 %v3934, %v4016
    %v4018 = vmul.f32 %v4017, 1.442695
    %v4019 = vpow.pop %v4018
    %v4020 = vsel %vm508, %v4019, 0.0
    %4021 = vadd.xlane.f32.xlu0 %v4020
    %v4022 = vpop.xlane.xlu0 %4021
    %v4023 = vrcp.pop %v4022
    %v4024 = vmul.f32 %v4019, %v4023
    %v4025 = vsel %vm508, %v4013, -inf
    %4026 = vmax.xlane.f32.xlu0 %v4025
    %v4027 = vpop.xlane.xlu0 %4026
    %v4028 = vsub.f32 %v4013, %v4027
    %v4029 = vmul.f32 %v4028, 1.442695
    %v4030 = vpow.pop %v4029
    %v4031 = vsel %vm508, %v4030, 0.0
    %4032 = vadd.xlane.f32.xlu0 %v4031
    %v4033 = vpop.xlane.xlu0 %4032
    %v4034 = vrcp.pop %v4033
    %v4035 = vmul.f32 %v4030, %v4034
    %v4036 = vmul.f32 %v3221, %v4035
    %v4037 = vsub.f32 %v4024, %v4036
    %4038 = vrot.lane.b32.xlu0 %v3034, 40
    %v4039 = vpop.permute.xlu0 %4038
    %v4042 = vsel %vm508, %v4037, 0
    %4044 = vmatprep.subr.mxu0 0.0
    %4045 = vmatpush1.msra.mxu0 %v4039
    %4046 = vmatprep.subr.mxu0 0.0
    %4047 = vmatpush1.msra.mxu0 0.0
    %4048 = vmatprep.subr.mxu0 0.0
    %4049 = vmatpush1.msra.mxu0 0.0
    %4050 = vmatprep.subr.mxu0 0.0
    %4051 = vmatpush1.msra.mxu0 0.0
    %4052 = vmatprep.subr.mxu0 0.0
    %4053 = vmatpush1.msra.mxu0 0.0
    %4054 = vmatprep.subr.mxu0 0.0
    %4055 = vmatpush1.msra.mxu0 0.0
    %4056 = vmatprep.subr.mxu0 0.0
    %4057 = vmatpush1.msra.mxu0 0.0
    %4058 = vmatprep.subr.mxu0 0.0
    %4059 = vmatpush1.msra.mxu0 0.0
    %4060 = vmatprep.subr.mxu0 0.0
    %4061 = vmatpush1.msra.mxu0 0.0
    %4062 = vmatprep.subr.mxu0 0.0
    %4063 = vmatpush1.msra.mxu0 0.0
    %4064 = vmatprep.subr.mxu0 0.0
    %4065 = vmatpush1.msra.mxu0 0.0
    %4066 = vmatprep.subr.mxu0 0.0
    %4067 = vmatpush1.msra.mxu0 0.0
    %4068 = vmatprep.subr.mxu0 0.0
    %4069 = vmatpush1.msra.mxu0 0.0
    %4070 = vmatprep.subr.mxu0 0.0
    %4071 = vmatpush1.msra.mxu0 0.0
    %4072 = vmatprep.subr.mxu0 0.0
    %4073 = vmatpush1.msra.mxu0 0.0
    %4074 = vmatprep.subr.mxu0 0.0
    %4075 = vmatpush1.msra.mxu0 0.0
    %4076 = vmatprep.subr.mxu0 0.0
    %4077 = vmatpush1.msra.mxu0 0.0
    %4078 = vmatprep.subr.mxu0 0.0
    %4079 = vmatpush1.msra.mxu0 0.0
    %4080 = vmatprep.subr.mxu0 0.0
    %4081 = vmatpush1.msra.mxu0 0.0
    %4082 = vmatprep.subr.mxu0 0.0
    %4083 = vmatpush1.msra.mxu0 0.0
    %4084 = vmatprep.subr.mxu0 0.0
    %4085 = vmatpush1.msra.mxu0 0.0
    %4086 = vmatprep.subr.mxu0 0.0
    %4087 = vmatpush1.msra.mxu0 0.0
    %4088 = vmatprep.subr.mxu0 0.0
    %4089 = vmatpush1.msra.mxu0 0.0
    %4090 = vmatprep.subr.mxu0 0.0
    %4091 = vmatpush1.msra.mxu0 0.0
    %4092 = vmatprep.subr.mxu0 0.0
    %4093 = vmatpush1.msra.mxu0 0.0
    %4094 = vmatprep.subr.mxu0 0.0
    %4095 = vmatpush1.msra.mxu0 0.0
    %4096 = vmatprep.subr.mxu0 0.0
    %4097 = vmatpush1.msra.mxu0 0.0
    %4098 = vmatprep.subr.mxu0 0.0
    %4099 = vmatpush1.msra.mxu0 0.0
    %4100 = vmatprep.subr.mxu0 0.0
    %4101 = vmatpush1.msra.mxu0 0.0
    %4102 = vmatprep.subr.mxu0 0.0
    %4103 = vmatpush1.msra.mxu0 0.0
    %4104 = vmatprep.subr.mxu0 0.0
    %4105 = vmatpush1.msra.mxu0 0.0
    %4106 = vmatprep.subr.mxu0 0.0
    %4107 = vmatpush1.msra.mxu0 0.0
    %4108 = vmatprep.mubr.f32.mxu0 0.0
    %4109 = vmatmul.mubr.f32.gmra.mrb[0].mxu0 %v4042
    %v4110 = vpop.f32.mrb[0].mxu0
    %v4111 = vadd.f32 0.0, %v4110
    %v4112 = vpop.f32.mrb[0].mxu0
    %4113 = vdwg.mxu0
    %v4114 = vmul.f32 %v4111, %v4111
    %v4115 = vsel %vm508, %v4114, 0.0
    %4116 = vadd.xlane.f32.xlu0 %v4115
    %v4117 = vpop.xlane.xlu0 %4116
    %v4118 = vmul.f32 %v4117, %v614
    %v4119 = vadd.f32 %v4118, 1e-05
    %v4120 = vrsqrt.pop %v4119
    %v4121 = vmul.f32 %v4111, %v4120
    %v4122 = vmul.f32 %v4121, %v3309
    %4124 = vrot.lane.b32.xlu0 %v4122, 24
    %v4125 = vpop.permute.xlu0 %4124
    %4127 = vst.msk [vmem:[#allocation2] sm:$0xff] %vm1440, %v4125
    %4129 = vrot.lane.b32.xlu0 %v3039, 96
    %v4130 = vpop.permute.xlu0 %4129
    %v4131 = vsel %vm353, %v3039, 0
    %v4133 = vsel %vm353, %v4130, 0
    %4135 = vmatprep.subr.mxu0 0.0
    %4136 = vmatpush1.xpose.msra.mxu0 %v4133
    %4137 = vmatprep.subr.mxu0 0.0
    %4138 = vmatpush1.xpose.msra.mxu0 0.0
    %4139 = vmatprep.subr.mxu0 0.0
    %4140 = vmatpush1.xpose.msra.mxu0 0.0
    %4141 = vmatprep.subr.mxu0 0.0
    %4142 = vmatpush1.xpose.msra.mxu0 0.0
    %4143 = vmatprep.subr.mxu0 0.0
    %4144 = vmatpush1.xpose.msra.mxu0 0.0
    %4145 = vmatprep.subr.mxu0 0.0
    %4146 = vmatpush1.xpose.msra.mxu0 0.0
    %4147 = vmatprep.subr.mxu0 0.0
    %4148 = vmatpush1.xpose.msra.mxu0 0.0
    %4149 = vmatprep.subr.mxu0 0.0
    %4150 = vmatpush1.xpose.msra.mxu0 0.0
    %4151 = vmatprep.subr.mxu0 0.0
    %4152 = vmatpush1.xpose.msra.mxu0 0.0
    %4153 = vmatprep.subr.mxu0 0.0
    %4154 = vmatpush1.xpose.msra.mxu0 0.0
    %4155 = vmatprep.subr.mxu0 0.0
    %4156 = vmatpush1.xpose.msra.mxu0 0.0
    %4157 = vmatprep.subr.mxu0 0.0
    %4158 = vmatpush1.xpose.msra.mxu0 0.0
    %4159 = vmatprep.subr.mxu0 0.0
    %4160 = vmatpush1.xpose.msra.mxu0 0.0
    %4161 = vmatprep.subr.mxu0 0.0
    %4162 = vmatpush1.xpose.msra.mxu0 0.0
    %4163 = vmatprep.subr.mxu0 0.0
    %4164 = vmatpush1.xpose.msra.mxu0 0.0
    %4165 = vmatprep.subr.mxu0 0.0
    %4166 = vmatpush1.xpose.msra.mxu0 0.0
    %4167 = vmatprep.subr.mxu0 0.0
    %4168 = vmatpush1.xpose.msra.mxu0 0.0
    %4169 = vmatprep.subr.mxu0 0.0
    %4170 = vmatpush1.xpose.msra.mxu0 0.0
    %4171 = vmatprep.subr.mxu0 0.0
    %4172 = vmatpush1.xpose.msra.mxu0 0.0
    %4173 = vmatprep.subr.mxu0 0.0
    %4174 = vmatpush1.xpose.msra.mxu0 0.0
    %4175 = vmatprep.subr.mxu0 0.0
    %4176 = vmatpush1.xpose.msra.mxu0 0.0
    %4177 = vmatprep.subr.mxu0 0.0
    %4178 = vmatpush1.xpose.msra.mxu0 0.0
    %4179 = vmatprep.subr.mxu0 0.0
    %4180 = vmatpush1.xpose.msra.mxu0 0.0
    %4181 = vmatprep.subr.mxu0 0.0
    %4182 = vmatpush1.xpose.msra.mxu0 0.0
    %4183 = vmatprep.subr.mxu0 0.0
    %4184 = vmatpush1.xpose.msra.mxu0 0.0
    %4185 = vmatprep.subr.mxu0 0.0
    %4186 = vmatpush1.xpose.msra.mxu0 0.0
    %4187 = vmatprep.subr.mxu0 0.0
    %4188 = vmatpush1.xpose.msra.mxu0 0.0
    %4189 = vmatprep.subr.mxu0 0.0
    %4190 = vmatpush1.xpose.msra.mxu0 0.0
    %4191 = vmatprep.subr.mxu0 0.0
    %4192 = vmatpush1.xpose.msra.mxu0 0.0
    %4193 = vmatprep.subr.mxu0 0.0
    %4194 = vmatpush1.xpose.msra.mxu0 0.0
    %4195 = vmatprep.subr.mxu0 0.0
    %4196 = vmatpush1.xpose.msra.mxu0 0.0
    %4197 = vmatprep.subr.mxu0 0.0
    %4198 = vmatpush1.xpose.msra.mxu0 0.0
    %4199 = vmatprep.mubr.f32.mxu0 0.0
    %4200 = vmatmul.mubr.f32.gmra.mrb[0].mxu0 %v4131
    %v4201 = vpop.f32.mrb[0].mxu0
    %v4202 = vadd.f32 0.0, %v4201
    %v4203 = vpop.f32.mrb[0].mxu0
    %4204 = vdwg.mxu0
    %v4205 = vmul.f32 %v4202, 0.5
    %4206 = vrot.lane.b32.xlu0 %v3039, 124
    %v4207 = vpop.permute.xlu0 %4206
    %4208 = vrot.lane.b32.xlu0 %v3039, 92
    %v4209 = vpop.permute.xlu0 %4208
    %v4210 = vsel %vm353, %v4207, 0
    %v4212 = vsel %vm353, %v4209, 0
    %4214 = vmatprep.subr.mxu0 0.0
    %4215 = vmatpush1.xpose.msra.mxu0 %v4212
    %4216 = vmatprep.subr.mxu0 0.0
    %4217 = vmatpush1.xpose.msra.mxu0 0.0
    %4218 = vmatprep.subr.mxu0 0.0
    %4219 = vmatpush1.xpose.msra.mxu0 0.0
    %4220 = vmatprep.subr.mxu0 0.0
    %4221 = vmatpush1.xpose.msra.mxu0 0.0
    %4222 = vmatprep.subr.mxu0 0.0
    %4223 = vmatpush1.xpose.msra.mxu0 0.0
    %4224 = vmatprep.subr.mxu0 0.0
    %4225 = vmatpush1.xpose.msra.mxu0 0.0
    %4226 = vmatprep.subr.mxu0 0.0
    %4227 = vmatpush1.xpose.msra.mxu0 0.0
    %4228 = vmatprep.subr.mxu0 0.0
    %4229 = vmatpush1.xpose.msra.mxu0 0.0
    %4230 = vmatprep.subr.mxu0 0.0
    %4231 = vmatpush1.xpose.msra.mxu0 0.0
    %4232 = vmatprep.subr.mxu0 0.0
    %4233 = vmatpush1.xpose.msra.mxu0 0.0
    %4234 = vmatprep.subr.mxu0 0.0
    %4235 = vmatpush1.xpose.msra.mxu0 0.0
    %4236 = vmatprep.subr.mxu0 0.0
    %4237 = vmatpush1.xpose.msra.mxu0 0.0
    %4238 = vmatprep.subr.mxu0 0.0
    %4239 = vmatpush1.xpose.msra.mxu0 0.0
    %4240 = vmatprep.subr.mxu0 0.0
    %4241 = vmatpush1.xpose.msra.mxu0 0.0
    %4242 = vmatprep.subr.mxu0 0.0
    %4243 = vmatpush1.xpose.msra.mxu0 0.0
    %4244 = vmatprep.subr.mxu0 0.0
    %4245 = vmatpush1.xpose.msra.mxu0 0.0
    %4246 = vmatprep.subr.mxu0 0.0
    %4247 = vmatpush1.xpose.msra.mxu0 0.0
    %4248 = vmatprep.subr.mxu0 0.0
    %4249 = vmatpush1.xpose.msra.mxu0 0.0
    %4250 = vmatprep.subr.mxu0 0.0
    %4251 = vmatpush1.xpose.msra.mxu0 0.0
    %4252 = vmatprep.subr.mxu0 0.0
    %4253 = vmatpush1.xpose.msra.mxu0 0.0
    %4254 = vmatprep.subr.mxu0 0.0
    %4255 = vmatpush1.xpose.msra.mxu0 0.0
    %4256 = vmatprep.subr.mxu0 0.0
    %4257 = vmatpush1.xpose.msra.mxu0 0.0
    %4258 = vmatprep.subr.mxu0 0.0
    %4259 = vmatpush1.xpose.msra.mxu0 0.0
    %4260 = vmatprep.subr.mxu0 0.0
    %4261 = vmatpush1.xpose.msra.mxu0 0.0
    %4262 = vmatprep.subr.mxu0 0.0
    %4263 = vmatpush1.xpose.msra.mxu0 0.0
    %4264 = vmatprep.subr.mxu0 0.0
    %4265 = vmatpush1.xpose.msra.mxu0 0.0
    %4266 = vmatprep.subr.mxu0 0.0
    %4267 = vmatpush1.xpose.msra.mxu0 0.0
    %4268 = vmatprep.subr.mxu0 0.0
    %4269 = vmatpush1.xpose.msra.mxu0 0.0
    %4270 = vmatprep.subr.mxu0 0.0
    %4271 = vmatpush1.xpose.msra.mxu0 0.0
    %4272 = vmatprep.subr.mxu0 0.0
    %4273 = vmatpush1.xpose.msra.mxu0 0.0
    %4274 = vmatprep.subr.mxu0 0.0
    %4275 = vmatpush1.xpose.msra.mxu0 0.0
    %4276 = vmatprep.subr.mxu0 0.0
    %4277 = vmatpush1.xpose.msra.mxu0 0.0
    %4278 = vmatprep.mubr.f32.mxu0 0.0
    %4279 = vmatmul.mubr.f32.gmra.mrb[0].mxu0 %v4210
    %v4280 = vpop.f32.mrb[0].mxu0
    %v4281 = vadd.f32 0.0, %v4280
    %v4282 = vpop.f32.mrb[0].mxu0
    %4283 = vdwg.mxu0
    %v4284 = vmul.f32 %v4281, 0.5
    %v4285 = vsel %vm508, %v4205, -inf
    %4286 = vmax.xlane.f32.xlu0 %v4285
    %v4287 = vpop.xlane.xlu0 %4286
    %v4288 = vsub.f32 %v4205, %v4287
    %v4289 = vmul.f32 %v4288, 1.442695
    %v4290 = vpow.pop %v4289
    %v4291 = vsel %vm508, %v4290, 0.0
    %4292 = vadd.xlane.f32.xlu0 %v4291
    %v4293 = vpop.xlane.xlu0 %4292
    %v4294 = vrcp.pop %v4293
    %v4295 = vmul.f32 %v4290, %v4294
    %v4296 = vsel %vm508, %v4284, -inf
    %4297 = vmax.xlane.f32.xlu0 %v4296
    %v4298 = vpop.xlane.xlu0 %4297
    %v4299 = vsub.f32 %v4284, %v4298
    %v4300 = vmul.f32 %v4299, 1.442695
    %v4301 = vpow.pop %v4300
    %v4302 = vsel %vm508, %v4301, 0.0
    %4303 = vadd.xlane.f32.xlu0 %v4302
    %v4304 = vpop.xlane.xlu0 %4303
    %v4305 = vrcp.pop %v4304
    %v4306 = vmul.f32 %v4301, %v4305
    %v4307 = vmul.f32 %v3221, %v4306
    %v4308 = vsub.f32 %v4295, %v4307
    %4309 = vrot.lane.b32.xlu0 %v3039, 64
    %v4310 = vpop.permute.xlu0 %4309
    %v4313 = vsel %vm508, %v4308, 0
    %4315 = vmatprep.subr.mxu0 0.0
    %4316 = vmatpush1.msra.mxu0 %v4310
    %4317 = vmatprep.subr.mxu0 0.0
    %4318 = vmatpush1.msra.mxu0 0.0
    %4319 = vmatprep.subr.mxu0 0.0
    %4320 = vmatpush1.msra.mxu0 0.0
    %4321 = vmatprep.subr.mxu0 0.0
    %4322 = vmatpush1.msra.mxu0 0.0
    %4323 = vmatprep.subr.mxu0 0.0
    %4324 = vmatpush1.msra.mxu0 0.0
    %4325 = vmatprep.subr.mxu0 0.0
    %4326 = vmatpush1.msra.mxu0 0.0
    %4327 = vmatprep.subr.mxu0 0.0
    %4328 = vmatpush1.msra.mxu0 0.0
    %4329 = vmatprep.subr.mxu0 0.0
    %4330 = vmatpush1.msra.mxu0 0.0
    %4331 = vmatprep.subr.mxu0 0.0
    %4332 = vmatpush1.msra.mxu0 0.0
    %4333 = vmatprep.subr.mxu0 0.0
    %4334 = vmatpush1.msra.mxu0 0.0
    %4335 = vmatprep.subr.mxu0 0.0
    %4336 = vmatpush1.msra.mxu0 0.0
    %4337 = vmatprep.subr.mxu0 0.0
    %4338 = vmatpush1.msra.mxu0 0.0
    %4339 = vmatprep.subr.mxu0 0.0
    %4340 = vmatpush1.msra.mxu0 0.0
    %4341 = vmatprep.subr.mxu0 0.0
    %4342 = vmatpush1.msra.mxu0 0.0
    %4343 = vmatprep.subr.mxu0 0.0
    %4344 = vmatpush1.msra.mxu0 0.0
    %4345 = vmatprep.subr.mxu0 0.0
    %4346 = vmatpush1.msra.mxu0 0.0
    %4347 = vmatprep.subr.mxu0 0.0
    %4348 = vmatpush1.msra.mxu0 0.0
    %4349 = vmatprep.subr.mxu0 0.0
    %4350 = vmatpush1.msra.mxu0 0.0
    %4351 = vmatprep.subr.mxu0 0.0
    %4352 = vmatpush1.msra.mxu0 0.0
    %4353 = vmatprep.subr.mxu0 0.0
    %4354 = vmatpush1.msra.mxu0 0.0
    %4355 = vmatprep.subr.mxu0 0.0
    %4356 = vmatpush1.msra.mxu0 0.0
    %4357 = vmatprep.subr.mxu0 0.0
    %4358 = vmatpush1.msra.mxu0 0.0
    %4359 = vmatprep.subr.mxu0 0.0
    %4360 = vmatpush1.msra.mxu0 0.0
    %4361 = vmatprep.subr.mxu0 0.0
    %4362 = vmatpush1.msra.mxu0 0.0
    %4363 = vmatprep.subr.mxu0 0.0
    %4364 = vmatpush1.msra.mxu0 0.0
    %4365 = vmatprep.subr.mxu0 0.0
    %4366 = vmatpush1.msra.mxu0 0.0
    %4367 = vmatprep.subr.mxu0 0.0
    %4368 = vmatpush1.msra.mxu0 0.0
    %4369 = vmatprep.subr.mxu0 0.0
    %4370 = vmatpush1.msra.mxu0 0.0
    %4371 = vmatprep.subr.mxu0 0.0
    %4372 = vmatpush1.msra.mxu0 0.0
    %4373 = vmatprep.subr.mxu0 0.0
    %4374 = vmatpush1.msra.mxu0 0.0
    %4375 = vmatprep.subr.mxu0 0.0
    %4376 = vmatpush1.msra.mxu0 0.0
    %4377 = vmatprep.subr.mxu0 0.0
    %4378 = vmatpush1.msra.mxu0 0.0
    %4379 = vmatprep.mubr.f32.mxu0 0.0
    %4380 = vmatmul.mubr.f32.gmra.mrb[0].mxu0 %v4313
    %v4381 = vpop.f32.mrb[0].mxu0
    %v4382 = vadd.f32 0.0, %v4381
    %v4383 = vpop.f32.mrb[0].mxu0
    %4384 = vdwg.mxu0
    %v4385 = vmul.f32 %v4382, %v4382
    %v4386 = vsel %vm508, %v4385, 0.0
    %4387 = vadd.xlane.f32.xlu0 %v4386
    %v4388 = vpop.xlane.xlu0 %4387
    %v4389 = vmul.f32 %v4388, %v614
    %v4390 = vadd.f32 %v4389, 1e-05
    %v4391 = vrsqrt.pop %v4390
    %v4392 = vmul.f32 %v4382, %v4391
    %v4393 = vmul.f32 %v4392, %v3309
    %4394 = vst.msk [vmem:[#allocation2 + $0x8] sm:$0xff] %vm508, %v4393
    %4395 = vrot.lane.b32.xlu0 %v3039, 120
    %v4396 = vpop.permute.xlu0 %4395
    %4397 = vrot.lane.b32.xlu0 %v3039, 88
    %v4398 = vpop.permute.xlu0 %4397
    %v4399 = vsel %vm353, %v4396, 0
    %v4401 = vsel %vm353, %v4398, 0
    %4403 = vmatprep.subr.mxu0 0.0
    %4404 = vmatpush1.xpose.msra.mxu0 %v4401
    %4405 = vmatprep.subr.mxu0 0.0
    %4406 = vmatpush1.xpose.msra.mxu0 0.0
    %4407 = vmatprep.subr.mxu0 0.0
    %4408 = vmatpush1.xpose.msra.mxu0 0.0
    %4409 = vmatprep.subr.mxu0 0.0
    %4410 = vmatpush1.xpose.msra.mxu0 0.0
    %4411 = vmatprep.subr.mxu0 0.0
    %4412 = vmatpush1.xpose.msra.mxu0 0.0
    %4413 = vmatprep.subr.mxu0 0.0
    %4414 = vmatpush1.xpose.msra.mxu0 0.0
    %4415 = vmatprep.subr.mxu0 0.0
    %4416 = vmatpush1.xpose.msra.mxu0 0.0
    %4417 = vmatprep.subr.mxu0 0.0
    %4418 = vmatpush1.xpose.msra.mxu0 0.0
    %4419 = vmatprep.subr.mxu0 0.0
    %4420 = vmatpush1.xpose.msra.mxu0 0.0
    %4421 = vmatprep.subr.mxu0 0.0
    %4422 = vmatpush1.xpose.msra.mxu0 0.0
    %4423 = vmatprep.subr.mxu0 0.0
    %4424 = vmatpush1.xpose.msra.mxu0 0.0
    %4425 = vmatprep.subr.mxu0 0.0
    %4426 = vmatpush1.xpose.msra.mxu0 0.0
    %4427 = vmatprep.subr.mxu0 0.0
    %4428 = vmatpush1.xpose.msra.mxu0 0.0
    %4429 = vmatprep.subr.mxu0 0.0
    %4430 = vmatpush1.xpose.msra.mxu0 0.0
    %4431 = vmatprep.subr.mxu0 0.0
    %4432 = vmatpush1.xpose.msra.mxu0 0.0
    %4433 = vmatprep.subr.mxu0 0.0
    %4434 = vmatpush1.xpose.msra.mxu0 0.0
    %4435 = vmatprep.subr.mxu0 0.0
    %4436 = vmatpush1.xpose.msra.mxu0 0.0
    %4437 = vmatprep.subr.mxu0 0.0
    %4438 = vmatpush1.xpose.msra.mxu0 0.0
    %4439 = vmatprep.subr.mxu0 0.0
    %4440 = vmatpush1.xpose.msra.mxu0 0.0
    %4441 = vmatprep.subr.mxu0 0.0
    %4442 = vmatpush1.xpose.msra.mxu0 0.0
    %4443 = vmatprep.subr.mxu0 0.0
    %4444 = vmatpush1.xpose.msra.mxu0 0.0
    %4445 = vmatprep.subr.mxu0 0.0
    %4446 = vmatpush1.xpose.msra.mxu0 0.0
    %4447 = vmatprep.subr.mxu0 0.0
    %4448 = vmatpush1.xpose.msra.mxu0 0.0
    %4449 = vmatprep.subr.mxu0 0.0
    %4450 = vmatpush1.xpose.msra.mxu0 0.0
    %4451 = vmatprep.subr.mxu0 0.0
    %4452 = vmatpush1.xpose.msra.mxu0 0.0
    %4453 = vmatprep.subr.mxu0 0.0
    %4454 = vmatpush1.xpose.msra.mxu0 0.0
    %4455 = vmatprep.subr.mxu0 0.0
    %4456 = vmatpush1.xpose.msra.mxu0 0.0
    %4457 = vmatprep.subr.mxu0 0.0
    %4458 = vmatpush1.xpose.msra.mxu0 0.0
    %4459 = vmatprep.subr.mxu0 0.0
    %4460 = vmatpush1.xpose.msra.mxu0 0.0
    %4461 = vmatprep.subr.mxu0 0.0
    %4462 = vmatpush1.xpose.msra.mxu0 0.0
    %4463 = vmatprep.subr.mxu0 0.0
    %4464 = vmatpush1.xpose.msra.mxu0 0.0
    %4465 = vmatprep.subr.mxu0 0.0
    %4466 = vmatpush1.xpose.msra.mxu0 0.0
    %4467 = vmatprep.mubr.f32.mxu0 0.0
    %4468 = vmatmul.mubr.f32.gmra.mrb[0].mxu0 %v4399
    %v4469 = vpop.f32.mrb[0].mxu0
    %v4470 = vadd.f32 0.0, %v4469
    %v4471 = vpop.f32.mrb[0].mxu0
    %4472 = vdwg.mxu0
    %v4473 = vmul.f32 %v4470, 0.5
    %4474 = vrot.lane.b32.xlu0 %v3039, 116
    %v4475 = vpop.permute.xlu0 %4474
    %4476 = vrot.lane.b32.xlu0 %v3039, 84
    %v4477 = vpop.permute.xlu0 %4476
    %v4478 = vsel %vm353, %v4475, 0
    %v4480 = vsel %vm353, %v4477, 0
    %4482 = vmatprep.subr.mxu0 0.0
    %4483 = vmatpush1.xpose.msra.mxu0 %v4480
    %4484 = vmatprep.subr.mxu0 0.0
    %4485 = vmatpush1.xpose.msra.mxu0 0.0
    %4486 = vmatprep.subr.mxu0 0.0
    %4487 = vmatpush1.xpose.msra.mxu0 0.0
    %4488 = vmatprep.subr.mxu0 0.0
    %4489 = vmatpush1.xpose.msra.mxu0 0.0
    %4490 = vmatprep.subr.mxu0 0.0
    %4491 = vmatpush1.xpose.msra.mxu0 0.0
    %4492 = vmatprep.subr.mxu0 0.0
    %4493 = vmatpush1.xpose.msra.mxu0 0.0
    %4494 = vmatprep.subr.mxu0 0.0
    %4495 = vmatpush1.xpose.msra.mxu0 0.0
    %4496 = vmatprep.subr.mxu0 0.0
    %4497 = vmatpush1.xpose.msra.mxu0 0.0
    %4498 = vmatprep.subr.mxu0 0.0
    %4499 = vmatpush1.xpose.msra.mxu0 0.0
    %4500 = vmatprep.subr.mxu0 0.0
    %4501 = vmatpush1.xpose.msra.mxu0 0.0
    %4502 = vmatprep.subr.mxu0 0.0
    %4503 = vmatpush1.xpose.msra.mxu0 0.0
    %4504 = vmatprep.subr.mxu0 0.0
    %4505 = vmatpush1.xpose.msra.mxu0 0.0
    %4506 = vmatprep.subr.mxu0 0.0
    %4507 = vmatpush1.xpose.msra.mxu0 0.0
    %4508 = vmatprep.subr.mxu0 0.0
    %4509 = vmatpush1.xpose.msra.mxu0 0.0
    %4510 = vmatprep.subr.mxu0 0.0
    %4511 = vmatpush1.xpose.msra.mxu0 0.0
    %4512 = vmatprep.subr.mxu0 0.0
    %4513 = vmatpush1.xpose.msra.mxu0 0.0
    %4514 = vmatprep.subr.mxu0 0.0
    %4515 = vmatpush1.xpose.msra.mxu0 0.0
    %4516 = vmatprep.subr.mxu0 0.0
    %4517 = vmatpush1.xpose.msra.mxu0 0.0
    %4518 = vmatprep.subr.mxu0 0.0
    %4519 = vmatpush1.xpose.msra.mxu0 0.0
    %4520 = vmatprep.subr.mxu0 0.0
    %4521 = vmatpush1.xpose.msra.mxu0 0.0
    %4522 = vmatprep.subr.mxu0 0.0
    %4523 = vmatpush1.xpose.msra.mxu0 0.0
    %4524 = vmatprep.subr.mxu0 0.0
    %4525 = vmatpush1.xpose.msra.mxu0 0.0
    %4526 = vmatprep.subr.mxu0 0.0
    %4527 = vmatpush1.xpose.msra.mxu0 0.0
    %4528 = vmatprep.subr.mxu0 0.0
    %4529 = vmatpush1.xpose.msra.mxu0 0.0
    %4530 = vmatprep.subr.mxu0 0.0
    %4531 = vmatpush1.xpose.msra.mxu0 0.0
    %4532 = vmatprep.subr.mxu0 0.0
    %4533 = vmatpush1.xpose.msra.mxu0 0.0
    %4534 = vmatprep.subr.mxu0 0.0
    %4535 = vmatpush1.xpose.msra.mxu0 0.0
    %4536 = vmatprep.subr.mxu0 0.0
    %4537 = vmatpush1.xpose.msra.mxu0 0.0
    %4538 = vmatprep.subr.mxu0 0.0
    %4539 = vmatpush1.xpose.msra.mxu0 0.0
    %4540 = vmatprep.subr.mxu0 0.0
    %4541 = vmatpush1.xpose.msra.mxu0 0.0
    %4542 = vmatprep.subr.mxu0 0.0
    %4543 = vmatpush1.xpose.msra.mxu0 0.0
    %4544 = vmatprep.subr.mxu0 0.0
    %4545 = vmatpush1.xpose.msra.mxu0 0.0
    %4546 = vmatprep.mubr.f32.mxu0 0.0
    %4547 = vmatmul.mubr.f32.gmra.mrb[0].mxu0 %v4478
    %v4548 = vpop.f32.mrb[0].mxu0
    %v4549 = vadd.f32 0.0, %v4548
    %v4550 = vpop.f32.mrb[0].mxu0
    %4551 = vdwg.mxu0
    %v4552 = vmul.f32 %v4549, 0.5
    %v4553 = vsel %vm508, %v4473, -inf
    %4554 = vmax.xlane.f32.xlu0 %v4553
    %v4555 = vpop.xlane.xlu0 %4554
    %v4556 = vsub.f32 %v4473, %v4555
    %v4557 = vmul.f32 %v4556, 1.442695
    %v4558 = vpow.pop %v4557
    %v4559 = vsel %vm508, %v4558, 0.0
    %4560 = vadd.xlane.f32.xlu0 %v4559
    %v4561 = vpop.xlane.xlu0 %4560
    %v4562 = vrcp.pop %v4561
    %v4563 = vmul.f32 %v4558, %v4562
    %v4564 = vsel %vm508, %v4552, -inf
    %4565 = vmax.xlane.f32.xlu0 %v4564
    %v4566 = vpop.xlane.xlu0 %4565
    %v4567 = vsub.f32 %v4552, %v4566
    %v4568 = vmul.f32 %v4567, 1.442695
    %v4569 = vpow.pop %v4568
    %v4570 = vsel %vm508, %v4569, 0.0
    %4571 = vadd.xlane.f32.xlu0 %v4570
    %v4572 = vpop.xlane.xlu0 %4571
    %v4573 = vrcp.pop %v4572
    %v4574 = vmul.f32 %v4569, %v4573
    %v4575 = vmul.f32 %v3221, %v4574
    %v4576 = vsub.f32 %v4563, %v4575
    %4577 = vrot.lane.b32.xlu0 %v3039, 56
    %v4578 = vpop.permute.xlu0 %4577
    %v4581 = vsel %vm508, %v4576, 0
    %4583 = vmatprep.subr.mxu0 0.0
    %4584 = vmatpush1.msra.mxu0 %v4578
    %4585 = vmatprep.subr.mxu0 0.0
    %4586 = vmatpush1.msra.mxu0 0.0
    %4587 = vmatprep.subr.mxu0 0.0
    %4588 = vmatpush1.msra.mxu0 0.0
    %4589 = vmatprep.subr.mxu0 0.0
    %4590 = vmatpush1.msra.mxu0 0.0
    %4591 = vmatprep.subr.mxu0 0.0
    %4592 = vmatpush1.msra.mxu0 0.0
    %4593 = vmatprep.subr.mxu0 0.0
    %4594 = vmatpush1.msra.mxu0 0.0
    %4595 = vmatprep.subr.mxu0 0.0
    %4596 = vmatpush1.msra.mxu0 0.0
    %4597 = vmatprep.subr.mxu0 0.0
    %4598 = vmatpush1.msra.mxu0 0.0
    %4599 = vmatprep.subr.mxu0 0.0
    %4600 = vmatpush1.msra.mxu0 0.0
    %4601 = vmatprep.subr.mxu0 0.0
    %4602 = vmatpush1.msra.mxu0 0.0
    %4603 = vmatprep.subr.mxu0 0.0
    %4604 = vmatpush1.msra.mxu0 0.0
    %4605 = vmatprep.subr.mxu0 0.0
    %4606 = vmatpush1.msra.mxu0 0.0
    %4607 = vmatprep.subr.mxu0 0.0
    %4608 = vmatpush1.msra.mxu0 0.0
    %4609 = vmatprep.subr.mxu0 0.0
    %4610 = vmatpush1.msra.mxu0 0.0
    %4611 = vmatprep.subr.mxu0 0.0
    %4612 = vmatpush1.msra.mxu0 0.0
    %4613 = vmatprep.subr.mxu0 0.0
    %4614 = vmatpush1.msra.mxu0 0.0
    %4615 = vmatprep.subr.mxu0 0.0
    %4616 = vmatpush1.msra.mxu0 0.0
    %4617 = vmatprep.subr.mxu0 0.0
    %4618 = vmatpush1.msra.mxu0 0.0
    %4619 = vmatprep.subr.mxu0 0.0
    %4620 = vmatpush1.msra.mxu0 0.0
    %4621 = vmatprep.subr.mxu0 0.0
    %4622 = vmatpush1.msra.mxu0 0.0
    %4623 = vmatprep.subr.mxu0 0.0
    %4624 = vmatpush1.msra.mxu0 0.0
    %4625 = vmatprep.subr.mxu0 0.0
    %4626 = vmatpush1.msra.mxu0 0.0
    %4627 = vmatprep.subr.mxu0 0.0
    %4628 = vmatpush1.msra.mxu0 0.0
    %4629 = vmatprep.subr.mxu0 0.0
    %4630 = vmatpush1.msra.mxu0 0.0
    %4631 = vmatprep.subr.mxu0 0.0
    %4632 = vmatpush1.msra.mxu0 0.0
    %4633 = vmatprep.subr.mxu0 0.0
    %4634 = vmatpush1.msra.mxu0 0.0
    %4635 = vmatprep.subr.mxu0 0.0
    %4636 = vmatpush1.msra.mxu0 0.0
    %4637 = vmatprep.subr.mxu0 0.0
    %4638 = vmatpush1.msra.mxu0 0.0
    %4639 = vmatprep.subr.mxu0 0.0
    %4640 = vmatpush1.msra.mxu0 0.0
    %4641 = vmatprep.subr.mxu0 0.0
    %4642 = vmatpush1.msra.mxu0 0.0
    %4643 = vmatprep.subr.mxu0 0.0
    %4644 = vmatpush1.msra.mxu0 0.0
    %4645 = vmatprep.subr.mxu0 0.0
    %4646 = vmatpush1.msra.mxu0 0.0
    %4647 = vmatprep.mubr.f32.mxu0 0.0
    %4648 = vmatmul.mubr.f32.gmra.mrb[0].mxu0 %v4581
    %v4649 = vpop.f32.mrb[0].mxu0
    %v4650 = vadd.f32 0.0, %v4649
    %v4651 = vpop.f32.mrb[0].mxu0
    %4652 = vdwg.mxu0
    %v4653 = vmul.f32 %v4650, %v4650
    %v4654 = vsel %vm508, %v4653, 0.0
    %4655 = vadd.xlane.f32.xlu0 %v4654
    %v4656 = vpop.xlane.xlu0 %4655
    %v4657 = vmul.f32 %v4656, %v614
    %v4658 = vadd.f32 %v4657, 1e-05
    %v4659 = vrsqrt.pop %v4658
    %v4660 = vmul.f32 %v4650, %v4659
    %v4661 = vmul.f32 %v4660, %v3309
    %4663 = vrot.lane.b32.xlu0 %v4661, 8
    %v4664 = vpop.permute.xlu0 %4663
    %4666 = vst.msk [vmem:[#allocation2 + $0x8] sm:$0xff] %vm894, %v4664
    %4667 = vrot.lane.b32.xlu0 %v3039, 112
    %v4668 = vpop.permute.xlu0 %4667
    %4669 = vrot.lane.b32.xlu0 %v3039, 80
    %v4670 = vpop.permute.xlu0 %4669
    %v4671 = vsel %vm353, %v4668, 0
    %v4673 = vsel %vm353, %v4670, 0
    %4675 = vmatprep.subr.mxu0 0.0
    %4676 = vmatpush1.xpose.msra.mxu0 %v4673
    %4677 = vmatprep.subr.mxu0 0.0
    %4678 = vmatpush1.xpose.msra.mxu0 0.0
    %4679 = vmatprep.subr.mxu0 0.0
    %4680 = vmatpush1.xpose.msra.mxu0 0.0
    %4681 = vmatprep.subr.mxu0 0.0
    %4682 = vmatpush1.xpose.msra.mxu0 0.0
    %4683 = vmatprep.subr.mxu0 0.0
    %4684 = vmatpush1.xpose.msra.mxu0 0.0
    %4685 = vmatprep.subr.mxu0 0.0
    %4686 = vmatpush1.xpose.msra.mxu0 0.0
    %4687 = vmatprep.subr.mxu0 0.0
    %4688 = vmatpush1.xpose.msra.mxu0 0.0
    %4689 = vmatprep.subr.mxu0 0.0
    %4690 = vmatpush1.xpose.msra.mxu0 0.0
    %4691 = vmatprep.subr.mxu0 0.0
    %4692 = vmatpush1.xpose.msra.mxu0 0.0
    %4693 = vmatprep.subr.mxu0 0.0
    %4694 = vmatpush1.xpose.msra.mxu0 0.0
    %4695 = vmatprep.subr.mxu0 0.0
    %4696 = vmatpush1.xpose.msra.mxu0 0.0
    %4697 = vmatprep.subr.mxu0 0.0
    %4698 = vmatpush1.xpose.msra.mxu0 0.0
    %4699 = vmatprep.subr.mxu0 0.0
    %4700 = vmatpush1.xpose.msra.mxu0 0.0
    %4701 = vmatprep.subr.mxu0 0.0
    %4702 = vmatpush1.xpose.msra.mxu0 0.0
    %4703 = vmatprep.subr.mxu0 0.0
    %4704 = vmatpush1.xpose.msra.mxu0 0.0
    %4705 = vmatprep.subr.mxu0 0.0
    %4706 = vmatpush1.xpose.msra.mxu0 0.0
    %4707 = vmatprep.subr.mxu0 0.0
    %4708 = vmatpush1.xpose.msra.mxu0 0.0
    %4709 = vmatprep.subr.mxu0 0.0
    %4710 = vmatpush1.xpose.msra.mxu0 0.0
    %4711 = vmatprep.subr.mxu0 0.0
    %4712 = vmatpush1.xpose.msra.mxu0 0.0
    %4713 = vmatprep.subr.mxu0 0.0
    %4714 = vmatpush1.xpose.msra.mxu0 0.0
    %4715 = vmatprep.subr.mxu0 0.0
    %4716 = vmatpush1.xpose.msra.mxu0 0.0
    %4717 = vmatprep.subr.mxu0 0.0
    %4718 = vmatpush1.xpose.msra.mxu0 0.0
    %4719 = vmatprep.subr.mxu0 0.0
    %4720 = vmatpush1.xpose.msra.mxu0 0.0
    %4721 = vmatprep.subr.mxu0 0.0
    %4722 = vmatpush1.xpose.msra.mxu0 0.0
    %4723 = vmatprep.subr.mxu0 0.0
    %4724 = vmatpush1.xpose.msra.mxu0 0.0
    %4725 = vmatprep.subr.mxu0 0.0
    %4726 = vmatpush1.xpose.msra.mxu0 0.0
    %4727 = vmatprep.subr.mxu0 0.0
    %4728 = vmatpush1.xpose.msra.mxu0 0.0
    %4729 = vmatprep.subr.mxu0 0.0
    %4730 = vmatpush1.xpose.msra.mxu0 0.0
    %4731 = vmatprep.subr.mxu0 0.0
    %4732 = vmatpush1.xpose.msra.mxu0 0.0
    %4733 = vmatprep.subr.mxu0 0.0
    %4734 = vmatpush1.xpose.msra.mxu0 0.0
    %4735 = vmatprep.subr.mxu0 0.0
    %4736 = vmatpush1.xpose.msra.mxu0 0.0
    %4737 = vmatprep.subr.mxu0 0.0
    %4738 = vmatpush1.xpose.msra.mxu0 0.0
    %4739 = vmatprep.mubr.f32.mxu0 0.0
    %4740 = vmatmul.mubr.f32.gmra.mrb[0].mxu0 %v4671
    %v4741 = vpop.f32.mrb[0].mxu0
    %v4742 = vadd.f32 0.0, %v4741
    %v4743 = vpop.f32.mrb[0].mxu0
    %4744 = vdwg.mxu0
    %v4745 = vmul.f32 %v4742, 0.5
    %4746 = vrot.lane.b32.xlu0 %v3039, 108
    %v4747 = vpop.permute.xlu0 %4746
    %4748 = vrot.lane.b32.xlu0 %v3039, 76
    %v4749 = vpop.permute.xlu0 %4748
    %v4750 = vsel %vm353, %v4747, 0
    %v4752 = vsel %vm353, %v4749, 0
    %4754 = vmatprep.subr.mxu0 0.0
    %4755 = vmatpush1.xpose.msra.mxu0 %v4752
    %4756 = vmatprep.subr.mxu0 0.0
    %4757 = vmatpush1.xpose.msra.mxu0 0.0
    %4758 = vmatprep.subr.mxu0 0.0
    %4759 = vmatpush1.xpose.msra.mxu0 0.0
    %4760 = vmatprep.subr.mxu0 0.0
    %4761 = vmatpush1.xpose.msra.mxu0 0.0
    %4762 = vmatprep.subr.mxu0 0.0
    %4763 = vmatpush1.xpose.msra.mxu0 0.0
    %4764 = vmatprep.subr.mxu0 0.0
    %4765 = vmatpush1.xpose.msra.mxu0 0.0
    %4766 = vmatprep.subr.mxu0 0.0
    %4767 = vmatpush1.xpose.msra.mxu0 0.0
    %4768 = vmatprep.subr.mxu0 0.0
    %4769 = vmatpush1.xpose.msra.mxu0 0.0
    %4770 = vmatprep.subr.mxu0 0.0
    %4771 = vmatpush1.xpose.msra.mxu0 0.0
    %4772 = vmatprep.subr.mxu0 0.0
    %4773 = vmatpush1.xpose.msra.mxu0 0.0
    %4774 = vmatprep.subr.mxu0 0.0
    %4775 = vmatpush1.xpose.msra.mxu0 0.0
    %4776 = vmatprep.subr.mxu0 0.0
    %4777 = vmatpush1.xpose.msra.mxu0 0.0
    %4778 = vmatprep.subr.mxu0 0.0
    %4779 = vmatpush1.xpose.msra.mxu0 0.0
    %4780 = vmatprep.subr.mxu0 0.0
    %4781 = vmatpush1.xpose.msra.mxu0 0.0
    %4782 = vmatprep.subr.mxu0 0.0
    %4783 = vmatpush1.xpose.msra.mxu0 0.0
    %4784 = vmatprep.subr.mxu0 0.0
    %4785 = vmatpush1.xpose.msra.mxu0 0.0
    %4786 = vmatprep.subr.mxu0 0.0
    %4787 = vmatpush1.xpose.msra.mxu0 0.0
    %4788 = vmatprep.subr.mxu0 0.0
    %4789 = vmatpush1.xpose.msra.mxu0 0.0
    %4790 = vmatprep.subr.mxu0 0.0
    %4791 = vmatpush1.xpose.msra.mxu0 0.0
    %4792 = vmatprep.subr.mxu0 0.0
    %4793 = vmatpush1.xpose.msra.mxu0 0.0
    %4794 = vmatprep.subr.mxu0 0.0
    %4795 = vmatpush1.xpose.msra.mxu0 0.0
    %4796 = vmatprep.subr.mxu0 0.0
    %4797 = vmatpush1.xpose.msra.mxu0 0.0
    %4798 = vmatprep.subr.mxu0 0.0
    %4799 = vmatpush1.xpose.msra.mxu0 0.0
    %4800 = vmatprep.subr.mxu0 0.0
    %4801 = vmatpush1.xpose.msra.mxu0 0.0
    %4802 = vmatprep.subr.mxu0 0.0
    %4803 = vmatpush1.xpose.msra.mxu0 0.0
    %4804 = vmatprep.subr.mxu0 0.0
    %4805 = vmatpush1.xpose.msra.mxu0 0.0
    %4806 = vmatprep.subr.mxu0 0.0
    %4807 = vmatpush1.xpose.msra.mxu0 0.0
    %4808 = vmatprep.subr.mxu0 0.0
    %4809 = vmatpush1.xpose.msra.mxu0 0.0
    %4810 = vmatprep.subr.mxu0 0.0
    %4811 = vmatpush1.xpose.msra.mxu0 0.0
    %4812 = vmatprep.subr.mxu0 0.0
    %4813 = vmatpush1.xpose.msra.mxu0 0.0
    %4814 = vmatprep.subr.mxu0 0.0
    %4815 = vmatpush1.xpose.msra.mxu0 0.0
    %4816 = vmatprep.subr.mxu0 0.0
    %4817 = vmatpush1.xpose.msra.mxu0 0.0
    %4818 = vmatprep.mubr.f32.mxu0 0.0
    %4819 = vmatmul.mubr.f32.gmra.mrb[0].mxu0 %v4750
    %v4820 = vpop.f32.mrb[0].mxu0
    %v4821 = vadd.f32 0.0, %v4820
    %v4822 = vpop.f32.mrb[0].mxu0
    %4823 = vdwg.mxu0
    %v4824 = vmul.f32 %v4821, 0.5
    %v4825 = vsel %vm508, %v4745, -inf
    %4826 = vmax.xlane.f32.xlu0 %v4825
    %v4827 = vpop.xlane.xlu0 %4826
    %v4828 = vsub.f32 %v4745, %v4827
    %v4829 = vmul.f32 %v4828, 1.442695
    %v4830 = vpow.pop %v4829
    %v4831 = vsel %vm508, %v4830, 0.0
    %4832 = vadd.xlane.f32.xlu0 %v4831
    %v4833 = vpop.xlane.xlu0 %4832
    %v4834 = vrcp.pop %v4833
    %v4835 = vmul.f32 %v4830, %v4834
    %v4836 = vsel %vm508, %v4824, -inf
    %4837 = vmax.xlane.f32.xlu0 %v4836
    %v4838 = vpop.xlane.xlu0 %4837
    %v4839 = vsub.f32 %v4824, %v4838
    %v4840 = vmul.f32 %v4839, 1.442695
    %v4841 = vpow.pop %v4840
    %v4842 = vsel %vm508, %v4841, 0.0
    %4843 = vadd.xlane.f32.xlu0 %v4842
    %v4844 = vpop.xlane.xlu0 %4843
    %v4845 = vrcp.pop %v4844
    %v4846 = vmul.f32 %v4841, %v4845
    %v4847 = vmul.f32 %v3221, %v4846
    %v4848 = vsub.f32 %v4835, %v4847
    %4849 = vrot.lane.b32.xlu0 %v3039, 48
    %v4850 = vpop.permute.xlu0 %4849
    %v4853 = vsel %vm508, %v4848, 0
    %4855 = vmatprep.subr.mxu0 0.0
    %4856 = vmatpush1.msra.mxu0 %v4850
    %4857 = vmatprep.subr.mxu0 0.0
    %4858 = vmatpush1.msra.mxu0 0.0
    %4859 = vmatprep.subr.mxu0 0.0
    %4860 = vmatpush1.msra.mxu0 0.0
    %4861 = vmatprep.subr.mxu0 0.0
    %4862 = vmatpush1.msra.mxu0 0.0
    %4863 = vmatprep.subr.mxu0 0.0
    %4864 = vmatpush1.msra.mxu0 0.0
    %4865 = vmatprep.subr.mxu0 0.0
    %4866 = vmatpush1.msra.mxu0 0.0
    %4867 = vmatprep.subr.mxu0 0.0
    %4868 = vmatpush1.msra.mxu0 0.0
    %4869 = vmatprep.subr.mxu0 0.0
    %4870 = vmatpush1.msra.mxu0 0.0
    %4871 = vmatprep.subr.mxu0 0.0
    %4872 = vmatpush1.msra.mxu0 0.0
    %4873 = vmatprep.subr.mxu0 0.0
    %4874 = vmatpush1.msra.mxu0 0.0
    %4875 = vmatprep.subr.mxu0 0.0
    %4876 = vmatpush1.msra.mxu0 0.0
    %4877 = vmatprep.subr.mxu0 0.0
    %4878 = vmatpush1.msra.mxu0 0.0
    %4879 = vmatprep.subr.mxu0 0.0
    %4880 = vmatpush1.msra.mxu0 0.0
    %4881 = vmatprep.subr.mxu0 0.0
    %4882 = vmatpush1.msra.mxu0 0.0
    %4883 = vmatprep.subr.mxu0 0.0
    %4884 = vmatpush1.msra.mxu0 0.0
    %4885 = vmatprep.subr.mxu0 0.0
    %4886 = vmatpush1.msra.mxu0 0.0
    %4887 = vmatprep.subr.mxu0 0.0
    %4888 = vmatpush1.msra.mxu0 0.0
    %4889 = vmatprep.subr.mxu0 0.0
    %4890 = vmatpush1.msra.mxu0 0.0
    %4891 = vmatprep.subr.mxu0 0.0
    %4892 = vmatpush1.msra.mxu0 0.0
    %4893 = vmatprep.subr.mxu0 0.0
    %4894 = vmatpush1.msra.mxu0 0.0
    %4895 = vmatprep.subr.mxu0 0.0
    %4896 = vmatpush1.msra.mxu0 0.0
    %4897 = vmatprep.subr.mxu0 0.0
    %4898 = vmatpush1.msra.mxu0 0.0
    %4899 = vmatprep.subr.mxu0 0.0
    %4900 = vmatpush1.msra.mxu0 0.0
    %4901 = vmatprep.subr.mxu0 0.0
    %4902 = vmatpush1.msra.mxu0 0.0
    %4903 = vmatprep.subr.mxu0 0.0
    %4904 = vmatpush1.msra.mxu0 0.0
    %4905 = vmatprep.subr.mxu0 0.0
    %4906 = vmatpush1.msra.mxu0 0.0
    %4907 = vmatprep.subr.mxu0 0.0
    %4908 = vmatpush1.msra.mxu0 0.0
    %4909 = vmatprep.subr.mxu0 0.0
    %4910 = vmatpush1.msra.mxu0 0.0
    %4911 = vmatprep.subr.mxu0 0.0
    %4912 = vmatpush1.msra.mxu0 0.0
    %4913 = vmatprep.subr.mxu0 0.0
    %4914 = vmatpush1.msra.mxu0 0.0
    %4915 = vmatprep.subr.mxu0 0.0
    %4916 = vmatpush1.msra.mxu0 0.0
    %4917 = vmatprep.subr.mxu0 0.0
    %4918 = vmatpush1.msra.mxu0 0.0
    %4919 = vmatprep.mubr.f32.mxu0 0.0
    %4920 = vmatmul.mubr.f32.gmra.mrb[0].mxu0 %v4853
    %v4921 = vpop.f32.mrb[0].mxu0
    %v4922 = vadd.f32 0.0, %v4921
    %v4923 = vpop.f32.mrb[0].mxu0
    %4924 = vdwg.mxu0
    %v4925 = vmul.f32 %v4922, %v4922
    %v4926 = vsel %vm508, %v4925, 0.0
    %4927 = vadd.xlane.f32.xlu0 %v4926
    %v4928 = vpop.xlane.xlu0 %4927
    %v4929 = vmul.f32 %v4928, %v614
    %v4930 = vadd.f32 %v4929, 1e-05
    %v4931 = vrsqrt.pop %v4930
    %v4932 = vmul.f32 %v4922, %v4931
    %v4933 = vmul.f32 %v4932, %v3309
    %4935 = vrot.lane.b32.xlu0 %v4933, 16
    %v4936 = vpop.permute.xlu0 %4935
    %4938 = vst.msk [vmem:[#allocation2 + $0x8] sm:$0xff] %vm1167, %v4936
    %4939 = vrot.lane.b32.xlu0 %v3039, 104
    %v4940 = vpop.permute.xlu0 %4939
    %4941 = vrot.lane.b32.xlu0 %v3039, 72
    %v4942 = vpop.permute.xlu0 %4941
    %v4943 = vsel %vm353, %v4940, 0
    %v4945 = vsel %vm353, %v4942, 0
    %4947 = vmatprep.subr.mxu0 0.0
    %4948 = vmatpush1.xpose.msra.mxu0 %v4945
    %4949 = vmatprep.subr.mxu0 0.0
    %4950 = vmatpush1.xpose.msra.mxu0 0.0
    %4951 = vmatprep.subr.mxu0 0.0
    %4952 = vmatpush1.xpose.msra.mxu0 0.0
    %4953 = vmatprep.subr.mxu0 0.0
    %4954 = vmatpush1.xpose.msra.mxu0 0.0
    %4955 = vmatprep.subr.mxu0 0.0
    %4956 = vmatpush1.xpose.msra.mxu0 0.0
    %4957 = vmatprep.subr.mxu0 0.0
    %4958 = vmatpush1.xpose.msra.mxu0 0.0
    %4959 = vmatprep.subr.mxu0 0.0
    %4960 = vmatpush1.xpose.msra.mxu0 0.0
    %4961 = vmatprep.subr.mxu0 0.0
    %4962 = vmatpush1.xpose.msra.mxu0 0.0
    %4963 = vmatprep.subr.mxu0 0.0
    %4964 = vmatpush1.xpose.msra.mxu0 0.0
    %4965 = vmatprep.subr.mxu0 0.0
    %4966 = vmatpush1.xpose.msra.mxu0 0.0
    %4967 = vmatprep.subr.mxu0 0.0
    %4968 = vmatpush1.xpose.msra.mxu0 0.0
    %4969 = vmatprep.subr.mxu0 0.0
    %4970 = vmatpush1.xpose.msra.mxu0 0.0
    %4971 = vmatprep.subr.mxu0 0.0
    %4972 = vmatpush1.xpose.msra.mxu0 0.0
    %4973 = vmatprep.subr.mxu0 0.0
    %4974 = vmatpush1.xpose.msra.mxu0 0.0
    %4975 = vmatprep.subr.mxu0 0.0
    %4976 = vmatpush1.xpose.msra.mxu0 0.0
    %4977 = vmatprep.subr.mxu0 0.0
    %4978 = vmatpush1.xpose.msra.mxu0 0.0
    %4979 = vmatprep.subr.mxu0 0.0
    %4980 = vmatpush1.xpose.msra.mxu0 0.0
    %4981 = vmatprep.subr.mxu0 0.0
    %4982 = vmatpush1.xpose.msra.mxu0 0.0
    %4983 = vmatprep.subr.mxu0 0.0
    %4984 = vmatpush1.xpose.msra.mxu0 0.0
    %4985 = vmatprep.subr.mxu0 0.0
    %4986 = vmatpush1.xpose.msra.mxu0 0.0
    %4987 = vmatprep.subr.mxu0 0.0
    %4988 = vmatpush1.xpose.msra.mxu0 0.0
    %4989 = vmatprep.subr.mxu0 0.0
    %4990 = vmatpush1.xpose.msra.mxu0 0.0
    %4991 = vmatprep.subr.mxu0 0.0
    %4992 = vmatpush1.xpose.msra.mxu0 0.0
    %4993 = vmatprep.subr.mxu0 0.0
    %4994 = vmatpush1.xpose.msra.mxu0 0.0
    %4995 = vmatprep.subr.mxu0 0.0
    %4996 = vmatpush1.xpose.msra.mxu0 0.0
    %4997 = vmatprep.subr.mxu0 0.0
    %4998 = vmatpush1.xpose.msra.mxu0 0.0
    %4999 = vmatprep.subr.mxu0 0.0
    %5000 = vmatpush1.xpose.msra.mxu0 0.0
    %5001 = vmatprep.subr.mxu0 0.0
    %5002 = vmatpush1.xpose.msra.mxu0 0.0
    %5003 = vmatprep.subr.mxu0 0.0
    %5004 = vmatpush1.xpose.msra.mxu0 0.0
    %5005 = vmatprep.subr.mxu0 0.0
    %5006 = vmatpush1.xpose.msra.mxu0 0.0
    %5007 = vmatprep.subr.mxu0 0.0
    %5008 = vmatpush1.xpose.msra.mxu0 0.0
    %5009 = vmatprep.subr.mxu0 0.0
    %5010 = vmatpush1.xpose.msra.mxu0 0.0
    %5011 = vmatprep.mubr.f32.mxu0 0.0
    %5012 = vmatmul.mubr.f32.gmra.mrb[0].mxu0 %v4943
    %v5013 = vpop.f32.mrb[0].mxu0
    %v5014 = vadd.f32 0.0, %v5013
    %v5015 = vpop.f32.mrb[0].mxu0
    %5016 = vdwg.mxu0
    %v5017 = vmul.f32 %v5014, 0.5
    %5018 = vrot.lane.b32.xlu0 %v3039, 100
    %v5019 = vpop.permute.xlu0 %5018
    %5020 = vrot.lane.b32.xlu0 %v3039, 68
    %v5021 = vpop.permute.xlu0 %5020
    %v5022 = vsel %vm353, %v5019, 0
    %v5024 = vsel %vm353, %v5021, 0
    %5026 = vmatprep.subr.mxu0 0.0
    %5027 = vmatpush1.xpose.msra.mxu0 %v5024
    %5028 = vmatprep.subr.mxu0 0.0
    %5029 = vmatpush1.xpose.msra.mxu0 0.0
    %5030 = vmatprep.subr.mxu0 0.0
    %5031 = vmatpush1.xpose.msra.mxu0 0.0
    %5032 = vmatprep.subr.mxu0 0.0
    %5033 = vmatpush1.xpose.msra.mxu0 0.0
    %5034 = vmatprep.subr.mxu0 0.0
    %5035 = vmatpush1.xpose.msra.mxu0 0.0
    %5036 = vmatprep.subr.mxu0 0.0
    %5037 = vmatpush1.xpose.msra.mxu0 0.0
    %5038 = vmatprep.subr.mxu0 0.0
    %5039 = vmatpush1.xpose.msra.mxu0 0.0
    %5040 = vmatprep.subr.mxu0 0.0
    %5041 = vmatpush1.xpose.msra.mxu0 0.0
    %5042 = vmatprep.subr.mxu0 0.0
    %5043 = vmatpush1.xpose.msra.mxu0 0.0
    %5044 = vmatprep.subr.mxu0 0.0
    %5045 = vmatpush1.xpose.msra.mxu0 0.0
    %5046 = vmatprep.subr.mxu0 0.0
    %5047 = vmatpush1.xpose.msra.mxu0 0.0
    %5048 = vmatprep.subr.mxu0 0.0
    %5049 = vmatpush1.xpose.msra.mxu0 0.0
    %5050 = vmatprep.subr.mxu0 0.0
    %5051 = vmatpush1.xpose.msra.mxu0 0.0
    %5052 = vmatprep.subr.mxu0 0.0
    %5053 = vmatpush1.xpose.msra.mxu0 0.0
    %5054 = vmatprep.subr.mxu0 0.0
    %5055 = vmatpush1.xpose.msra.mxu0 0.0
    %5056 = vmatprep.subr.mxu0 0.0
    %5057 = vmatpush1.xpose.msra.mxu0 0.0
    %5058 = vmatprep.subr.mxu0 0.0
    %5059 = vmatpush1.xpose.msra.mxu0 0.0
    %5060 = vmatprep.subr.mxu0 0.0
    %5061 = vmatpush1.xpose.msra.mxu0 0.0
    %5062 = vmatprep.subr.mxu0 0.0
    %5063 = vmatpush1.xpose.msra.mxu0 0.0
    %5064 = vmatprep.subr.mxu0 0.0
    %5065 = vmatpush1.xpose.msra.mxu0 0.0
    %5066 = vmatprep.subr.mxu0 0.0
    %5067 = vmatpush1.xpose.msra.mxu0 0.0
    %5068 = vmatprep.subr.mxu0 0.0
    %5069 = vmatpush1.xpose.msra.mxu0 0.0
    %5070 = vmatprep.subr.mxu0 0.0
    %5071 = vmatpush1.xpose.msra.mxu0 0.0
    %5072 = vmatprep.subr.mxu0 0.0
    %5073 = vmatpush1.xpose.msra.mxu0 0.0
    %5074 = vmatprep.subr.mxu0 0.0
    %5075 = vmatpush1.xpose.msra.mxu0 0.0
    %5076 = vmatprep.subr.mxu0 0.0
    %5077 = vmatpush1.xpose.msra.mxu0 0.0
    %5078 = vmatprep.subr.mxu0 0.0
    %5079 = vmatpush1.xpose.msra.mxu0 0.0
    %5080 = vmatprep.subr.mxu0 0.0
    %5081 = vmatpush1.xpose.msra.mxu0 0.0
    %5082 = vmatprep.subr.mxu0 0.0
    %5083 = vmatpush1.xpose.msra.mxu0 0.0
    %5084 = vmatprep.subr.mxu0 0.0
    %5085 = vmatpush1.xpose.msra.mxu0 0.0
    %5086 = vmatprep.subr.mxu0 0.0
    %5087 = vmatpush1.xpose.msra.mxu0 0.0
    %5088 = vmatprep.subr.mxu0 0.0
    %5089 = vmatpush1.xpose.msra.mxu0 0.0
    %5090 = vmatprep.mubr.f32.mxu0 0.0
    %5091 = vmatmul.mubr.f32.gmra.mrb[0].mxu0 %v5022
    %v5092 = vpop.f32.mrb[0].mxu0
    %v5093 = vadd.f32 0.0, %v5092
    %v5094 = vpop.f32.mrb[0].mxu0
    %5095 = vdwg.mxu0
    %v5096 = vmul.f32 %v5093, 0.5
    %v5097 = vsel %vm508, %v5017, -inf
    %5098 = vmax.xlane.f32.xlu0 %v5097
    %v5099 = vpop.xlane.xlu0 %5098
    %v5100 = vsub.f32 %v5017, %v5099
    %v5101 = vmul.f32 %v5100, 1.442695
    %v5102 = vpow.pop %v5101
    %v5103 = vsel %vm508, %v5102, 0.0
    %5104 = vadd.xlane.f32.xlu0 %v5103
    %v5105 = vpop.xlane.xlu0 %5104
    %v5106 = vrcp.pop %v5105
    %v5107 = vmul.f32 %v5102, %v5106
    %v5108 = vsel %vm508, %v5096, -inf
    %5109 = vmax.xlane.f32.xlu0 %v5108
    %v5110 = vpop.xlane.xlu0 %5109
    %v5111 = vsub.f32 %v5096, %v5110
    %v5112 = vmul.f32 %v5111, 1.442695
    %v5113 = vpow.pop %v5112
    %v5114 = vsel %vm508, %v5113, 0.0
    %5115 = vadd.xlane.f32.xlu0 %v5114
    %v5116 = vpop.xlane.xlu0 %5115
    %v5117 = vrcp.pop %v5116
    %v5118 = vmul.f32 %v5113, %v5117
    %v5119 = vmul.f32 %v3221, %v5118
    %v5120 = vsub.f32 %v5107, %v5119
    %5121 = vrot.lane.b32.xlu0 %v3039, 40
    %v5122 = vpop.permute.xlu0 %5121
    %v5125 = vsel %vm508, %v5120, 0
    %5127 = vmatprep.subr.mxu0 0.0
    %5128 = vmatpush1.msra.mxu0 %v5122
    %5129 = vmatprep.subr.mxu0 0.0
    %5130 = vmatpush1.msra.mxu0 0.0
    %5131 = vmatprep.subr.mxu0 0.0
    %5132 = vmatpush1.msra.mxu0 0.0
    %5133 = vmatprep.subr.mxu0 0.0
    %5134 = vmatpush1.msra.mxu0 0.0
    %5135 = vmatprep.subr.mxu0 0.0
    %5136 = vmatpush1.msra.mxu0 0.0
    %5137 = vmatprep.subr.mxu0 0.0
    %5138 = vmatpush1.msra.mxu0 0.0
    %5139 = vmatprep.subr.mxu0 0.0
    %5140 = vmatpush1.msra.mxu0 0.0
    %5141 = vmatprep.subr.mxu0 0.0
    %5142 = vmatpush1.msra.mxu0 0.0
    %5143 = vmatprep.subr.mxu0 0.0
    %5144 = vmatpush1.msra.mxu0 0.0
    %5145 = vmatprep.subr.mxu0 0.0
    %5146 = vmatpush1.msra.mxu0 0.0
    %5147 = vmatprep.subr.mxu0 0.0
    %5148 = vmatpush1.msra.mxu0 0.0
    %5149 = vmatprep.subr.mxu0 0.0
    %5150 = vmatpush1.msra.mxu0 0.0
    %5151 = vmatprep.subr.mxu0 0.0
    %5152 = vmatpush1.msra.mxu0 0.0
    %5153 = vmatprep.subr.mxu0 0.0
    %5154 = vmatpush1.msra.mxu0 0.0
    %5155 = vmatprep.subr.mxu0 0.0
    %5156 = vmatpush1.msra.mxu0 0.0
    %5157 = vmatprep.subr.mxu0 0.0
    %5158 = vmatpush1.msra.mxu0 0.0
    %5159 = vmatprep.subr.mxu0 0.0
    %5160 = vmatpush1.msra.mxu0 0.0
    %5161 = vmatprep.subr.mxu0 0.0
    %5162 = vmatpush1.msra.mxu0 0.0
    %5163 = vmatprep.subr.mxu0 0.0
    %5164 = vmatpush1.msra.mxu0 0.0
    %5165 = vmatprep.subr.mxu0 0.0
    %5166 = vmatpush1.msra.mxu0 0.0
    %5167 = vmatprep.subr.mxu0 0.0
    %5168 = vmatpush1.msra.mxu0 0.0
    %5169 = vmatprep.subr.mxu0 0.0
    %5170 = vmatpush1.msra.mxu0 0.0
    %5171 = vmatprep.subr.mxu0 0.0
    %5172 = vmatpush1.msra.mxu0 0.0
    %5173 = vmatprep.subr.mxu0 0.0
    %5174 = vmatpush1.msra.mxu0 0.0
    %5175 = vmatprep.subr.mxu0 0.0
    %5176 = vmatpush1.msra.mxu0 0.0
    %5177 = vmatprep.subr.mxu0 0.0
    %5178 = vmatpush1.msra.mxu0 0.0
    %5179 = vmatprep.subr.mxu0 0.0
    %5180 = vmatpush1.msra.mxu0 0.0
    %5181 = vmatprep.subr.mxu0 0.0
    %5182 = vmatpush1.msra.mxu0 0.0
    %5183 = vmatprep.subr.mxu0 0.0
    %5184 = vmatpush1.msra.mxu0 0.0
    %5185 = vmatprep.subr.mxu0 0.0
    %5186 = vmatpush1.msra.mxu0 0.0
    %5187 = vmatprep.subr.mxu0 0.0
    %5188 = vmatpush1.msra.mxu0 0.0
    %5189 = vmatprep.subr.mxu0 0.0
    %5190 = vmatpush1.msra.mxu0 0.0
    %5191 = vmatprep.mubr.f32.mxu0 0.0
    %5192 = vmatmul.mubr.f32.gmra.mrb[0].mxu0 %v5125
    %v5193 = vpop.f32.mrb[0].mxu0
    %v5194 = vadd.f32 0.0, %v5193
    %v5195 = vpop.f32.mrb[0].mxu0
    %5196 = vdwg.mxu0
    %v5197 = vmul.f32 %v5194, %v5194
    %v5198 = vsel %vm508, %v5197, 0.0
    %5199 = vadd.xlane.f32.xlu0 %v5198
    %v5200 = vpop.xlane.xlu0 %5199
    %v5201 = vmul.f32 %v5200, %v614
    %v5202 = vadd.f32 %v5201, 1e-05
    %v5203 = vrsqrt.pop %v5202
    %v5204 = vmul.f32 %v5194, %v5203
    %v5205 = vmul.f32 %v5204, %v3309
    %5207 = vrot.lane.b32.xlu0 %v5205, 24
    %v5208 = vpop.permute.xlu0 %5207
    %5210 = vst.msk [vmem:[#allocation2 + $0x8] sm:$0xff] %vm1440, %v5208
    %v5211 = vld [vmem:[#allocation2] sm:$0xff]
    %v5212 = vld [vmem:[#allocation2 + $0x8] sm:$0xff]
    %s5213 = scalar_lea.vmem %s7, 32
    %v5214 = vld [vmem:[%s5213] sm:$0xff]
    %v5215 = vld [vmem:[%s5213 + $0x8] sm:$0xff]
    %v5216 = vld [vmem:[%s5213 + $0x10] sm:$0xff]
    %v5217 = vld [vmem:[%s5213 + $0x18] sm:$0xff]
    %s5218 = scalar_lea.vmem %s8, 1
    %v5219 = vld [vmem:[%s5218] sm:$0x1]
    %v5221 = vlaneseq
    %v5222 = vshrl.u32 %v5221, 7
    %v5223 = vsub.s32 0, %v5222
    %v5224 = vrot.slane %v5219, %v5223
    %v5227 = vsel %vm177, %v5211, 0
    %v5230 = vsel %vm177, %v5212, 0
    %5232 = vmatprep.subr.mxu0 0.0
    %5233 = vmatpush1.msra.mxu0 %v5214
    %5234 = vmatprep.subr.mxu0 0.0
    %5235 = vmatpush1.msra.mxu0 %v5215
    %5236 = vmatprep.subr.mxu0 0.0
    %5237 = vmatpush1.msra.mxu0 %v5216
    %5238 = vmatprep.subr.mxu0 0.0
    %5239 = vmatpush1.msra.mxu0 %v5217
    %5240 = vmatprep.subr.mxu0 0.0
    %5241 = vmatpush1.msra.mxu0 0.0
    %5242 = vmatprep.subr.mxu0 0.0
    %5243 = vmatpush1.msra.mxu0 0.0
    %5244 = vmatprep.subr.mxu0 0.0
    %5245 = vmatpush1.msra.mxu0 0.0
    %5246 = vmatprep.subr.mxu0 0.0
    %5247 = vmatpush1.msra.mxu0 0.0
    %5248 = vmatprep.subr.mxu0 0.0
    %5249 = vmatpush1.msra.mxu0 0.0
    %5250 = vmatprep.subr.mxu0 0.0
    %5251 = vmatpush1.msra.mxu0 0.0
    %5252 = vmatprep.subr.mxu0 0.0
    %5253 = vmatpush1.msra.mxu0 0.0
    %5254 = vmatprep.subr.mxu0 0.0
    %5255 = vmatpush1.msra.mxu0 0.0
    %5256 = vmatprep.subr.mxu0 0.0
    %5257 = vmatpush1.msra.mxu0 0.0
    %5258 = vmatprep.subr.mxu0 0.0
    %5259 = vmatpush1.msra.mxu0 0.0
    %5260 = vmatprep.subr.mxu0 0.0
    %5261 = vmatpush1.msra.mxu0 0.0
    %5262 = vmatprep.subr.mxu0 0.0
    %5263 = vmatpush1.msra.mxu0 0.0
    %5264 = vmatprep.subr.mxu0 0.0
    %5265 = vmatpush1.msra.mxu0 0.0
    %5266 = vmatprep.subr.mxu0 0.0
    %5267 = vmatpush1.msra.mxu0 0.0
    %5268 = vmatprep.subr.mxu0 0.0
    %5269 = vmatpush1.msra.mxu0 0.0
    %5270 = vmatprep.subr.mxu0 0.0
    %5271 = vmatpush1.msra.mxu0 0.0
    %5272 = vmatprep.subr.mxu0 0.0
    %5273 = vmatpush1.msra.mxu0 0.0
    %5274 = vmatprep.subr.mxu0 0.0
    %5275 = vmatpush1.msra.mxu0 0.0
    %5276 = vmatprep.subr.mxu0 0.0
    %5277 = vmatpush1.msra.mxu0 0.0
    %5278 = vmatprep.subr.mxu0 0.0
    %5279 = vmatpush1.msra.mxu0 0.0
    %5280 = vmatprep.subr.mxu0 0.0
    %5281 = vmatpush1.msra.mxu0 0.0
    %5282 = vmatprep.subr.mxu0 0.0
    %5283 = vmatpush1.msra.mxu0 0.0
    %5284 = vmatprep.subr.mxu0 0.0
    %5285 = vmatpush1.msra.mxu0 0.0
    %5286 = vmatprep.subr.mxu0 0.0
    %5287 = vmatpush1.msra.mxu0 0.0
    %5288 = vmatprep.subr.mxu0 0.0
    %5289 = vmatpush1.msra.mxu0 0.0
    %5290 = vmatprep.subr.mxu0 0.0
    %5291 = vmatpush1.msra.mxu0 0.0
    %5292 = vmatprep.subr.mxu0 0.0
    %5293 = vmatpush1.msra.mxu0 0.0
    %5294 = vmatprep.subr.mxu0 0.0
    %5295 = vmatpush1.msra.mxu0 0.0
    %5296 = vmatprep.mubr.f32.mxu0 0.0
    %5297 = vmatmul.mubr.f32.gmra.mrb[0].mxu0 %v5227
    %v5298 = vpop.f32.mrb[0].mxu0
    %v5299 = vadd.f32 %v5224, %v5298
    %v5300 = vpop.f32.mrb[0].mxu0
    %5301 = vmatprep.mubr.f32.mxu0 0.0
    %5302 = vmatmul.mubr.f32.gmra.mrb[0].mxu0 %v5230
    %v5303 = vpop.f32.mrb[0].mxu0
    %v5304 = vadd.f32 %v5224, %v5303
    %v5305 = vpop.f32.mrb[0].mxu0
    %5306 = vdwg.mxu0
    %v5307 = vadd.f32 %v2904, %v5299
    %v5308 = vadd.f32 %v2905, %v5304
    %s5309 = scalar_lea.vmem %s9, 2
    %v5310 = vld [vmem:[%s5309] sm:$0x3]
    %v5311 = vsel %vm177, %v5307, 0.0
    %5312 = vadd.xlane.f32.xlu0 %v5311
    %v5313 = vpop.xlane.xlu0 %5312
    %v5314 = vsel %vm177, %v5308, 0.0
    %5315 = vadd.xlane.f32.xlu0 %v5314
    %v5316 = vpop.xlane.xlu0 %5315
    %v5317 = vmul.f32 %v5313, %v184
    %v5318 = vmul.f32 %v5316, %v184
    %v5319 = vsub.f32 %v5307, %v5317
    %v5320 = vsub.f32 %v5308, %v5318
    %v5321 = vmul.f32 %v5319, %v5319
    %v5322 = vmul.f32 %v5320, %v5320
    %v5323 = vsel %vm177, %v5321, 0.0
    %5324 = vadd.xlane.f32.xlu0 %v5323
    %v5325 = vpop.xlane.xlu0 %5324
    %v5326 = vsel %vm177, %v5322, 0.0
    %5327 = vadd.xlane.f32.xlu0 %v5326
    %v5328 = vpop.xlane.xlu0 %5327
    %v5329 = vmul.f32 %v5325, %v184
    %v5330 = vmul.f32 %v5328, %v184
    %v5331 = vadd.f32 %v5329, 1e-05
    %v5332 = vadd.f32 %v5330, 1e-05
    %v5333 = vrsqrt.pop %v5331
    %v5334 = vrsqrt.pop %v5332
    %v5335 = vmul.f32 %v5319, %v5333
    %v5336 = vmul.f32 %v5320, %v5334
    %v5337 = vlaneseq
    %v5338 = vshrl.u32 %v5337, 7
    %v5339 = vsub.s32 0, %v5338
    %v5340 = vrot.slane %v5310, %v5339
    %v5341 = vmul.f32 %v5335, %v5340
    %v5342 = vmul.f32 %v5336, %v5340
    %v5343 = vlaneseq
    %v5344 = vshrl.u32 %v5343, 7
    %v5345 = vsub.s32 1, %v5344
    %v5346 = vrot.slane %v5310, %v5345
    %v5347 = vadd.f32 %v5341, %v5346
    %v5348 = vadd.f32 %v5342, %v5346
    %s5349 = scalar_lea.vmem %s10, 32
    %v5350 = vld [vmem:[%s5349] sm:$0xff]
    %v5351 = vld [vmem:[%s5349 + $0x8] sm:$0xff]
    %v5352 = vld [vmem:[%s5349 + $0x10] sm:$0xff]
    %v5353 = vld [vmem:[%s5349 + $0x18] sm:$0xff]
    %s5354 = scalar_lea.vmem %s11, 1
    %v5355 = vld [vmem:[%s5354] sm:$0x1]
    %v5357 = vlaneseq
    %v5358 = vshrl.u32 %v5357, 7
    %v5359 = vsub.s32 0, %v5358
    %v5360 = vrot.slane %v5355, %v5359
    %v5363 = vsel %vm177, %v5347, 0
    %v5366 = vsel %vm177, %v5348, 0
    %5368 = vmatprep.subr.mxu0 0.0
    %5369 = vmatpush1.msra.mxu0 %v5350
    %5370 = vmatprep.subr.mxu0 0.0
    %5371 = vmatpush1.msra.mxu0 %v5351
    %5372 = vmatprep.subr.mxu0 0.0
    %5373 = vmatpush1.msra.mxu0 %v5352
    %5374 = vmatprep.subr.mxu0 0.0
    %5375 = vmatpush1.msra.mxu0 %v5353
    %5376 = vmatprep.subr.mxu0 0.0
    %5377 = vmatpush1.msra.mxu0 0.0
    %5378 = vmatprep.subr.mxu0 0.0
    %5379 = vmatpush1.msra.mxu0 0.0
    %5380 = vmatprep.subr.mxu0 0.0
    %5381 = vmatpush1.msra.mxu0 0.0
    %5382 = vmatprep.subr.mxu0 0.0
    %5383 = vmatpush1.msra.mxu0 0.0
    %5384 = vmatprep.subr.mxu0 0.0
    %5385 = vmatpush1.msra.mxu0 0.0
    %5386 = vmatprep.subr.mxu0 0.0
    %5387 = vmatpush1.msra.mxu0 0.0
    %5388 = vmatprep.subr.mxu0 0.0
    %5389 = vmatpush1.msra.mxu0 0.0
    %5390 = vmatprep.subr.mxu0 0.0
    %5391 = vmatpush1.msra.mxu0 0.0
    %5392 = vmatprep.subr.mxu0 0.0
    %5393 = vmatpush1.msra.mxu0 0.0
    %5394 = vmatprep.subr.mxu0 0.0
    %5395 = vmatpush1.msra.mxu0 0.0
    %5396 = vmatprep.subr.mxu0 0.0
    %5397 = vmatpush1.msra.mxu0 0.0
    %5398 = vmatprep.subr.mxu0 0.0
    %5399 = vmatpush1.msra.mxu0 0.0
    %5400 = vmatprep.subr.mxu0 0.0
    %5401 = vmatpush1.msra.mxu0 0.0
    %5402 = vmatprep.subr.mxu0 0.0
    %5403 = vmatpush1.msra.mxu0 0.0
    %5404 = vmatprep.subr.mxu0 0.0
    %5405 = vmatpush1.msra.mxu0 0.0
    %5406 = vmatprep.subr.mxu0 0.0
    %5407 = vmatpush1.msra.mxu0 0.0
    %5408 = vmatprep.subr.mxu0 0.0
    %5409 = vmatpush1.msra.mxu0 0.0
    %5410 = vmatprep.subr.mxu0 0.0
    %5411 = vmatpush1.msra.mxu0 0.0
    %5412 = vmatprep.subr.mxu0 0.0
    %5413 = vmatpush1.msra.mxu0 0.0
    %5414 = vmatprep.subr.mxu0 0.0
    %5415 = vmatpush1.msra.mxu0 0.0
    %5416 = vmatprep.subr.mxu0 0.0
    %5417 = vmatpush1.msra.mxu0 0.0
    %5418 = vmatprep.subr.mxu0 0.0
    %5419 = vmatpush1.msra.mxu0 0.0
    %5420 = vmatprep.subr.mxu0 0.0
    %5421 = vmatpush1.msra.mxu0 0.0
    %5422 = vmatprep.subr.mxu0 0.0
    %5423 = vmatpush1.msra.mxu0 0.0
    %5424 = vmatprep.subr.mxu0 0.0
    %5425 = vmatpush1.msra.mxu0 0.0
    %5426 = vmatprep.subr.mxu0 0.0
    %5427 = vmatpush1.msra.mxu0 0.0
    %5428 = vmatprep.subr.mxu0 0.0
    %5429 = vmatpush1.msra.mxu0 0.0
    %5430 = vmatprep.subr.mxu0 0.0
    %5431 = vmatpush1.msra.mxu0 0.0
    %5432 = vmatprep.mubr.f32.mxu0 0.0
    %5433 = vmatmul.mubr.f32.gmra.mrb[0].mxu0 %v5363
    %v5434 = vpop.f32.mrb[0].mxu0
    %v5435 = vadd.f32 %v5360, %v5434
    %v5436 = vpop.f32.mrb[0].mxu0
    %5437 = vmatprep.mubr.f32.mxu0 0.0
    %5438 = vmatmul.mubr.f32.gmra.mrb[0].mxu0 %v5366
    %v5439 = vpop.f32.mrb[0].mxu0
    %v5440 = vadd.f32 %v5360, %v5439
    %v5441 = vpop.f32.mrb[0].mxu0
    %5442 = vdwg.mxu0
    %v5443 = vmul.f32 %v5435, 0.70710677
    %v5444 = vmul.f32 %v5440, 0.70710677
    %v5445 = vand.u32 2147483647, %v5443
    %v5446 = vand.u32 2147483647, %v5444
    %v5447 = vmul.f32 %v5445, 0.3275911
    %v5448 = vmul.f32 %v5446, 0.3275911
    %v5449 = vadd.f32 %v5447, 1.0
    %v5450 = vadd.f32 %v5448, 1.0
    %v5451 = vrcp.pop %v5449
    %v5452 = vmul.f32 1.0, %v5451
    %v5453 = vrcp.pop %v5450
    %v5454 = vmul.f32 1.0, %v5453
    %v5455 = vmul.f32 %v5452, 1.0614054
    %v5456 = vmul.f32 %v5454, 1.0614054
    %v5457 = vadd.f32 %v5455, -1.4531521
    %v5458 = vadd.f32 %v5456, -1.4531521
    %v5459 = vmul.f32 %v5452, %v5457
    %v5460 = vmul.f32 %v5454, %v5458
    %v5461 = vadd.f32 %v5459, 1.4214138
    %v5462 = vadd.f32 %v5460, 1.4214138
    %v5463 = vmul.f32 %v5452, %v5461
    %v5464 = vmul.f32 %v5454, %v5462
    %v5465 = vadd.f32 %v5463, -0.28449672
    %v5466 = vadd.f32 %v5464, -0.28449672
    %v5467 = vmul.f32 %v5452, %v5465
    %v5468 = vmul.f32 %v5454, %v5466
    %v5469 = vadd.f32 %v5467, 0.2548296
    %v5470 = vadd.f32 %v5468, 0.2548296
    %v5471 = vmul.f32 %v5452, %v5469
    %v5472 = vmul.f32 %v5454, %v5470
    %v5473 = vsub.f32 0.0, %v5445
    %v5474 = vsub.f32 0.0, %v5446
    %v5475 = vmul.f32 %v5473, %v5445
    %v5476 = vmul.f32 %v5474, %v5446
    %v5477 = vmul.f32 %v5475, 1.442695
    %v5478 = vpow.pop %v5477
    %v5479 = vmul.f32 %v5476, 1.442695
    %v5480 = vpow.pop %v5479
    %v5481 = vmul.f32 %v5471, %v5478
    %v5482 = vmul.f32 %v5472, %v5480
    %v5483 = vsub.f32 1.0, %v5481
    %v5484 = vsub.f32 1.0, %v5482
    %vm5485 = vcmp.ge.f32.partialorder %v5443, 0.0
    %vm5486 = vcmp.ge.f32.partialorder %v5444, 0.0
    %v5487 = vsub.f32 0.0, %v5483
    %v5488 = vsub.f32 0.0, %v5484
    %v5489 = vsel %vm5485, %v5483, %v5487
    %v5490 = vsel %vm5486, %v5484, %v5488
    %v5491 = vmul.f32 %v5435, 0.5
    %v5492 = vmul.f32 %v5440, 0.5
    %v5493 = vadd.f32 %v5489, 1.0
    %v5494 = vadd.f32 %v5490, 1.0
    %v5495 = vmul.f32 %v5491, %v5493
    %v5496 = vmul.f32 %v5492, %v5494
    %s5497 = scalar_lea.vmem %s12, 128
    %v5498 = vld [vmem:[%s5497] sm:$0xff]
    %v5499 = vld [vmem:[%s5497 + $0x8] sm:$0xff]
    %v5500 = vld [vmem:[%s5497 + $0x10] sm:$0xff]
    %v5501 = vld [vmem:[%s5497 + $0x18] sm:$0xff]
    %v5502 = vld [vmem:[%s5497 + $0x20] sm:$0xff]
    %v5503 = vld [vmem:[%s5497 + $0x28] sm:$0xff]
    %v5504 = vld [vmem:[%s5497 + $0x30] sm:$0xff]
    %v5505 = vld [vmem:[%s5497 + $0x38] sm:$0xff]
    %v5506 = vld [vmem:[%s5497 + $0x40] sm:$0xff]
    %v5507 = vld [vmem:[%s5497 + $0x48] sm:$0xff]
    %v5508 = vld [vmem:[%s5497 + $0x50] sm:$0xff]
    %v5509 = vld [vmem:[%s5497 + $0x58] sm:$0xff]
    %v5510 = vld [vmem:[%s5497 + $0x60] sm:$0xff]
    %v5511 = vld [vmem:[%s5497 + $0x68] sm:$0xff]
    %v5512 = vld [vmem:[%s5497 + $0x70] sm:$0xff]
    %v5513 = vld [vmem:[%s5497 + $0x78] sm:$0xff]
    %s5514 = scalar_lea.vmem %s13, 1
    %v5515 = vld [vmem:[%s5514] sm:$0x1]
    %v5517 = vlaneseq
    %v5518 = vshrl.u32 %v5517, 7
    %v5519 = vsub.s32 0, %v5518
    %v5520 = vrot.slane %v5515, %v5519
    %5522 = vmatprep.subr.mxu0 0.0
    %5523 = vmatpush1.msra.mxu0 %v5498
    %5524 = vmatprep.subr.mxu0 0.0
    %5525 = vmatpush1.msra.mxu0 %v5499
    %5526 = vmatprep.subr.mxu0 0.0
    %5527 = vmatpush1.msra.mxu0 %v5500
    %5528 = vmatprep.subr.mxu0 0.0
    %5529 = vmatpush1.msra.mxu0 %v5501
    %5530 = vmatprep.subr.mxu0 0.0
    %5531 = vmatpush1.msra.mxu0 %v5502
    %5532 = vmatprep.subr.mxu0 0.0
    %5533 = vmatpush1.msra.mxu0 %v5503
    %5534 = vmatprep.subr.mxu0 0.0
    %5535 = vmatpush1.msra.mxu0 %v5504
    %5536 = vmatprep.subr.mxu0 0.0
    %5537 = vmatpush1.msra.mxu0 %v5505
    %5538 = vmatprep.subr.mxu0 0.0
    %5539 = vmatpush1.msra.mxu0 %v5506
    %5540 = vmatprep.subr.mxu0 0.0
    %5541 = vmatpush1.msra.mxu0 %v5507
    %5542 = vmatprep.subr.mxu0 0.0
    %5543 = vmatpush1.msra.mxu0 %v5508
    %5544 = vmatprep.subr.mxu0 0.0
    %5545 = vmatpush1.msra.mxu0 %v5509
    %5546 = vmatprep.subr.mxu0 0.0
    %5547 = vmatpush1.msra.mxu0 %v5510
    %5548 = vmatprep.subr.mxu0 0.0
    %5549 = vmatpush1.msra.mxu0 %v5511
    %5550 = vmatprep.subr.mxu0 0.0
    %5551 = vmatpush1.msra.mxu0 %v5512
    %5552 = vmatprep.subr.mxu0 0.0
    %5553 = vmatpush1.msra.mxu0 %v5513
    %5554 = vmatprep.subr.mxu0 0.0
    %5555 = vmatpush1.msra.mxu0 0.0
    %5556 = vmatprep.subr.mxu0 0.0
    %5557 = vmatpush1.msra.mxu0 0.0
    %5558 = vmatprep.subr.mxu0 0.0
    %5559 = vmatpush1.msra.mxu0 0.0
    %5560 = vmatprep.subr.mxu0 0.0
    %5561 = vmatpush1.msra.mxu0 0.0
    %5562 = vmatprep.subr.mxu0 0.0
    %5563 = vmatpush1.msra.mxu0 0.0
    %5564 = vmatprep.subr.mxu0 0.0
    %5565 = vmatpush1.msra.mxu0 0.0
    %5566 = vmatprep.subr.mxu0 0.0
    %5567 = vmatpush1.msra.mxu0 0.0
    %5568 = vmatprep.subr.mxu0 0.0
    %5569 = vmatpush1.msra.mxu0 0.0
    %5570 = vmatprep.subr.mxu0 0.0
    %5571 = vmatpush1.msra.mxu0 0.0
    %5572 = vmatprep.subr.mxu0 0.0
    %5573 = vmatpush1.msra.mxu0 0.0
    %5574 = vmatprep.subr.mxu0 0.0
    %5575 = vmatpush1.msra.mxu0 0.0
    %5576 = vmatprep.subr.mxu0 0.0
    %5577 = vmatpush1.msra.mxu0 0.0
    %5578 = vmatprep.subr.mxu0 0.0
    %5579 = vmatpush1.msra.mxu0 0.0
    %5580 = vmatprep.subr.mxu0 0.0
    %5581 = vmatpush1.msra.mxu0 0.0
    %5582 = vmatprep.subr.mxu0 0.0
    %5583 = vmatpush1.msra.mxu0 0.0
    %5584 = vmatprep.subr.mxu0 0.0
    %5585 = vmatpush1.msra.mxu0 0.0
    %5586 = vmatprep.mubr.f32.mxu0 0.0
    %5587 = vmatmul.mubr.f32.gmra.mrb[0].mxu0 %v5495
    %v5588 = vpop.f32.mrb[0].mxu0
    %v5589 = vadd.f32 %v5520, %v5588
    %v5590 = vpop.f32.mrb[0].mxu0
    %5591 = vmatprep.mubr.f32.mxu0 0.0
    %5592 = vmatmul.mubr.f32.gmra.mrb[0].mxu0 %v5496
    %v5593 = vpop.f32.mrb[0].mxu0
    %v5594 = vadd.f32 %v5520, %v5593
    %v5595 = vpop.f32.mrb[0].mxu0
    %5596 = vdwg.mxu0
    %v5597 = vadd.f32 %v5307, %v5589
    %v5598 = vadd.f32 %v5308, %v5594
    %s5599 = sld [smem:[#allocation3 + $0x100]]
    %s5600 = sld [smem:[#allocation3 + $0x101]]
    %s5601 = scalar_lea.vmem %s4, 4
    %v5602 = vld [vmem:[%s5601] sm:$0x3]
    %v5603 = vsel %vm177, %v5597, 0.0
    %5604 = vadd.xlane.f32.xlu0 %v5603
    %v5605 = vpop.xlane.xlu0 %5604
    %v5606 = vsel %vm177, %v5598, 0.0
    %5607 = vadd.xlane.f32.xlu0 %v5606
    %v5608 = vpop.xlane.xlu0 %5607
    %v5609 = vmul.f32 %v5605, %v184
    %v5610 = vmul.f32 %v5608, %v184
    %v5611 = vsub.f32 %v5597, %v5609
    %v5612 = vsub.f32 %v5598, %v5610
    %v5613 = vmul.f32 %v5611, %v5611
    %v5614 = vmul.f32 %v5612, %v5612
    %v5615 = vsel %vm177, %v5613, 0.0
    %5616 = vadd.xlane.f32.xlu0 %v5615
    %v5617 = vpop.xlane.xlu0 %5616
    %v5618 = vsel %vm177, %v5614, 0.0
    %5619 = vadd.xlane.f32.xlu0 %v5618
    %v5620 = vpop.xlane.xlu0 %5619
    %v5621 = vmul.f32 %v5617, %v184
    %v5622 = vmul.f32 %v5620, %v184
    %v5623 = vadd.f32 %v5621, 1e-05
    %v5624 = vadd.f32 %v5622, 1e-05
    %v5625 = vrsqrt.pop %v5623
    %v5626 = vrsqrt.pop %v5624
    %v5627 = vmul.f32 %v5611, %v5625
    %v5628 = vmul.f32 %v5612, %v5626
    %v5629 = vlaneseq
    %v5630 = vshrl.u32 %v5629, 7
    %v5631 = vsub.s32 0, %v5630
    %v5632 = vrot.slane %v5602, %v5631
    %v5633 = vmul.f32 %v5627, %v5632
    %v5634 = vmul.f32 %v5628, %v5632
    %v5635 = vlaneseq
    %v5636 = vshrl.u32 %v5635, 7
    %v5637 = vsub.s32 1, %v5636
    %v5638 = vrot.slane %v5602, %v5637
    %v5639 = vadd.f32 %v5633, %v5638
    %v5640 = vadd.f32 %v5634, %v5638
    %s5641 = scalar_lea.vmem %s5, 64
    %v5642 = vld [vmem:[%s5641] sm:$0xff]
    %v5643 = vld [vmem:[%s5641 + $0x8] sm:$0xff]
    %v5644 = vld [vmem:[%s5641 + $0x10] sm:$0xff]
    %v5645 = vld [vmem:[%s5641 + $0x18] sm:$0xff]
    %s5646 = scalar_lea.vmem %s6, 2
    %v5647 = vld [vmem:[%s5646] sm:$0x1]
    %v5649 = vlaneseq
    %v5650 = vshrl.u32 %v5649, 7
    %v5651 = vsub.s32 0, %v5650
    %v5652 = vrot.slane %v5647, %v5651
    %v5655 = vsel %vm177, %v5639, 0
    %v5658 = vsel %vm177, %v5640, 0
    %5660 = vmatprep.subr.mxu0 0.0
    %5661 = vmatpush1.msra.mxu0 %v5642
    %5662 = vmatprep.subr.mxu0 0.0
    %5663 = vmatpush1.msra.mxu0 %v5643
    %5664 = vmatprep.subr.mxu0 0.0
    %5665 = vmatpush1.msra.mxu0 %v5644
    %5666 = vmatprep.subr.mxu0 0.0
    %5667 = vmatpush1.msra.mxu0 %v5645
    %5668 = vmatprep.subr.mxu0 0.0
    %5669 = vmatpush1.msra.mxu0 0.0
    %5670 = vmatprep.subr.mxu0 0.0
    %5671 = vmatpush1.msra.mxu0 0.0
    %5672 = vmatprep.subr.mxu0 0.0
    %5673 = vmatpush1.msra.mxu0 0.0
    %5674 = vmatprep.subr.mxu0 0.0
    %5675 = vmatpush1.msra.mxu0 0.0
    %5676 = vmatprep.subr.mxu0 0.0
    %5677 = vmatpush1.msra.mxu0 0.0
    %5678 = vmatprep.subr.mxu0 0.0
    %5679 = vmatpush1.msra.mxu0 0.0
    %5680 = vmatprep.subr.mxu0 0.0
    %5681 = vmatpush1.msra.mxu0 0.0
    %5682 = vmatprep.subr.mxu0 0.0
    %5683 = vmatpush1.msra.mxu0 0.0
    %5684 = vmatprep.subr.mxu0 0.0
    %5685 = vmatpush1.msra.mxu0 0.0
    %5686 = vmatprep.subr.mxu0 0.0
    %5687 = vmatpush1.msra.mxu0 0.0
    %5688 = vmatprep.subr.mxu0 0.0
    %5689 = vmatpush1.msra.mxu0 0.0
    %5690 = vmatprep.subr.mxu0 0.0
    %5691 = vmatpush1.msra.mxu0 0.0
    %5692 = vmatprep.subr.mxu0 0.0
    %5693 = vmatpush1.msra.mxu0 0.0
    %5694 = vmatprep.subr.mxu0 0.0
    %5695 = vmatpush1.msra.mxu0 0.0
    %5696 = vmatprep.subr.mxu0 0.0
    %5697 = vmatpush1.msra.mxu0 0.0
    %5698 = vmatprep.subr.mxu0 0.0
    %5699 = vmatpush1.msra.mxu0 0.0
    %5700 = vmatprep.subr.mxu0 0.0
    %5701 = vmatpush1.msra.mxu0 0.0
    %5702 = vmatprep.subr.mxu0 0.0
    %5703 = vmatpush1.msra.mxu0 0.0
    %5704 = vmatprep.subr.mxu0 0.0
    %5705 = vmatpush1.msra.mxu0 0.0
    %5706 = vmatprep.subr.mxu0 0.0
    %5707 = vmatpush1.msra.mxu0 0.0
    %5708 = vmatprep.subr.mxu0 0.0
    %5709 = vmatpush1.msra.mxu0 0.0
    %5710 = vmatprep.subr.mxu0 0.0
    %5711 = vmatpush1.msra.mxu0 0.0
    %5712 = vmatprep.subr.mxu0 0.0
    %5713 = vmatpush1.msra.mxu0 0.0
    %5714 = vmatprep.subr.mxu0 0.0
    %5715 = vmatpush1.msra.mxu0 0.0
    %5716 = vmatprep.subr.mxu0 0.0
    %5717 = vmatpush1.msra.mxu0 0.0
    %5718 = vmatprep.subr.mxu0 0.0
    %5719 = vmatpush1.msra.mxu0 0.0
    %5720 = vmatprep.subr.mxu0 0.0
    %5721 = vmatpush1.msra.mxu0 0.0
    %5722 = vmatprep.subr.mxu0 0.0
    %5723 = vmatpush1.msra.mxu0 0.0
    %5724 = vmatprep.mubr.f32.mxu0 0.0
    %5725 = vmatmul.mubr.f32.gmra.mrb[0].mxu0 %v5655
    %v5726 = vpop.f32.mrb[0].mxu0
    %v5727 = vadd.f32 %v5652, %v5726
    %v5728 = vpop.f32.mrb[0].mxu0
    %5729 = vmatprep.mubr.f32.mxu0 0.0
    %5730 = vmatmul.mubr.f32.gmra.mrb[0].mxu0 %v5658
    %v5731 = vpop.f32.mrb[0].mxu0
    %v5732 = vadd.f32 %v5652, %v5731
    %v5733 = vpop.f32.mrb[0].mxu0
    %5734 = vdwg.mxu0
    %5736 = vrot.lane.b32.xlu0 %v5727, 96
    %v5737 = vpop.permute.xlu0 %5736
    %v5738 = vsel %vm353, %v5727, 0
    %v5740 = vsel %vm353, %v5737, 0
    %5742 = vmatprep.subr.mxu0 0.0
    %5743 = vmatpush1.xpose.msra.mxu0 %v5740
    %5744 = vmatprep.subr.mxu0 0.0
    %5745 = vmatpush1.xpose.msra.mxu0 0.0
    %5746 = vmatprep.subr.mxu0 0.0
    %5747 = vmatpush1.xpose.msra.mxu0 0.0
    %5748 = vmatprep.subr.mxu0 0.0
    %5749 = vmatpush1.xpose.msra.mxu0 0.0
    %5750 = vmatprep.subr.mxu0 0.0
    %5751 = vmatpush1.xpose.msra.mxu0 0.0
    %5752 = vmatprep.subr.mxu0 0.0
    %5753 = vmatpush1.xpose.msra.mxu0 0.0
    %5754 = vmatprep.subr.mxu0 0.0
    %5755 = vmatpush1.xpose.msra.mxu0 0.0
    %5756 = vmatprep.subr.mxu0 0.0
    %5757 = vmatpush1.xpose.msra.mxu0 0.0
    %5758 = vmatprep.subr.mxu0 0.0
    %5759 = vmatpush1.xpose.msra.mxu0 0.0
    %5760 = vmatprep.subr.mxu0 0.0
    %5761 = vmatpush1.xpose.msra.mxu0 0.0
    %5762 = vmatprep.subr.mxu0 0.0
    %5763 = vmatpush1.xpose.msra.mxu0 0.0
    %5764 = vmatprep.subr.mxu0 0.0
    %5765 = vmatpush1.xpose.msra.mxu0 0.0
    %5766 = vmatprep.subr.mxu0 0.0
    %5767 = vmatpush1.xpose.msra.mxu0 0.0
    %5768 = vmatprep.subr.mxu0 0.0
    %5769 = vmatpush1.xpose.msra.mxu0 0.0
    %5770 = vmatprep.subr.mxu0 0.0
    %5771 = vmatpush1.xpose.msra.mxu0 0.0
    %5772 = vmatprep.subr.mxu0 0.0
    %5773 = vmatpush1.xpose.msra.mxu0 0.0
    %5774 = vmatprep.subr.mxu0 0.0
    %5775 = vmatpush1.xpose.msra.mxu0 0.0
    %5776 = vmatprep.subr.mxu0 0.0
    %5777 = vmatpush1.xpose.msra.mxu0 0.0
    %5778 = vmatprep.subr.mxu0 0.0
    %5779 = vmatpush1.xpose.msra.mxu0 0.0
    %5780 = vmatprep.subr.mxu0 0.0
    %5781 = vmatpush1.xpose.msra.mxu0 0.0
    %5782 = vmatprep.subr.mxu0 0.0
    %5783 = vmatpush1.xpose.msra.mxu0 0.0
    %5784 = vmatprep.subr.mxu0 0.0
    %5785 = vmatpush1.xpose.msra.mxu0 0.0
    %5786 = vmatprep.subr.mxu0 0.0
    %5787 = vmatpush1.xpose.msra.mxu0 0.0
    %5788 = vmatprep.subr.mxu0 0.0
    %5789 = vmatpush1.xpose.msra.mxu0 0.0
    %5790 = vmatprep.subr.mxu0 0.0
    %5791 = vmatpush1.xpose.msra.mxu0 0.0
    %5792 = vmatprep.subr.mxu0 0.0
    %5793 = vmatpush1.xpose.msra.mxu0 0.0
    %5794 = vmatprep.subr.mxu0 0.0
    %5795 = vmatpush1.xpose.msra.mxu0 0.0
    %5796 = vmatprep.subr.mxu0 0.0
    %5797 = vmatpush1.xpose.msra.mxu0 0.0
    %5798 = vmatprep.subr.mxu0 0.0
    %5799 = vmatpush1.xpose.msra.mxu0 0.0
    %5800 = vmatprep.subr.mxu0 0.0
    %5801 = vmatpush1.xpose.msra.mxu0 0.0
    %5802 = vmatprep.subr.mxu0 0.0
    %5803 = vmatpush1.xpose.msra.mxu0 0.0
    %5804 = vmatprep.subr.mxu0 0.0
    %5805 = vmatpush1.xpose.msra.mxu0 0.0
    %5806 = vmatprep.mubr.f32.mxu0 0.0
    %5807 = vmatmul.mubr.f32.gmra.mrb[0].mxu0 %v5738
    %v5808 = vpop.f32.mrb[0].mxu0
    %v5809 = vadd.f32 0.0, %v5808
    %v5810 = vpop.f32.mrb[0].mxu0
    %5811 = vdwg.mxu0
    %v5812 = vmul.f32 %v5809, 0.5
    %5813 = vrot.lane.b32.xlu0 %v5727, 124
    %v5814 = vpop.permute.xlu0 %5813
    %5815 = vrot.lane.b32.xlu0 %v5727, 92
    %v5816 = vpop.permute.xlu0 %5815
    %v5817 = vsel %vm353, %v5814, 0
    %v5819 = vsel %vm353, %v5816, 0
    %5821 = vmatprep.subr.mxu0 0.0
    %5822 = vmatpush1.xpose.msra.mxu0 %v5819
    %5823 = vmatprep.subr.mxu0 0.0
    %5824 = vmatpush1.xpose.msra.mxu0 0.0
    %5825 = vmatprep.subr.mxu0 0.0
    %5826 = vmatpush1.xpose.msra.mxu0 0.0
    %5827 = vmatprep.subr.mxu0 0.0
    %5828 = vmatpush1.xpose.msra.mxu0 0.0
    %5829 = vmatprep.subr.mxu0 0.0
    %5830 = vmatpush1.xpose.msra.mxu0 0.0
    %5831 = vmatprep.subr.mxu0 0.0
    %5832 = vmatpush1.xpose.msra.mxu0 0.0
    %5833 = vmatprep.subr.mxu0 0.0
    %5834 = vmatpush1.xpose.msra.mxu0 0.0
    %5835 = vmatprep.subr.mxu0 0.0
    %5836 = vmatpush1.xpose.msra.mxu0 0.0
    %5837 = vmatprep.subr.mxu0 0.0
    %5838 = vmatpush1.xpose.msra.mxu0 0.0
    %5839 = vmatprep.subr.mxu0 0.0
    %5840 = vmatpush1.xpose.msra.mxu0 0.0
    %5841 = vmatprep.subr.mxu0 0.0
    %5842 = vmatpush1.xpose.msra.mxu0 0.0
    %5843 = vmatprep.subr.mxu0 0.0
    %5844 = vmatpush1.xpose.msra.mxu0 0.0
    %5845 = vmatprep.subr.mxu0 0.0
    %5846 = vmatpush1.xpose.msra.mxu0 0.0
    %5847 = vmatprep.subr.mxu0 0.0
    %5848 = vmatpush1.xpose.msra.mxu0 0.0
    %5849 = vmatprep.subr.mxu0 0.0
    %5850 = vmatpush1.xpose.msra.mxu0 0.0
    %5851 = vmatprep.subr.mxu0 0.0
    %5852 = vmatpush1.xpose.msra.mxu0 0.0
    %5853 = vmatprep.subr.mxu0 0.0
    %5854 = vmatpush1.xpose.msra.mxu0 0.0
    %5855 = vmatprep.subr.mxu0 0.0
    %5856 = vmatpush1.xpose.msra.mxu0 0.0
    %5857 = vmatprep.subr.mxu0 0.0
    %5858 = vmatpush1.xpose.msra.mxu0 0.0
    %5859 = vmatprep.subr.mxu0 0.0
    %5860 = vmatpush1.xpose.msra.mxu0 0.0
    %5861 = vmatprep.subr.mxu0 0.0
    %5862 = vmatpush1.xpose.msra.mxu0 0.0
    %5863 = vmatprep.subr.mxu0 0.0
    %5864 = vmatpush1.xpose.msra.mxu0 0.0
    %5865 = vmatprep.subr.mxu0 0.0
    %5866 = vmatpush1.xpose.msra.mxu0 0.0
    %5867 = vmatprep.subr.mxu0 0.0
    %5868 = vmatpush1.xpose.msra.mxu0 0.0
    %5869 = vmatprep.subr.mxu0 0.0
    %5870 = vmatpush1.xpose.msra.mxu0 0.0
    %5871 = vmatprep.subr.mxu0 0.0
    %5872 = vmatpush1.xpose.msra.mxu0 0.0
    %5873 = vmatprep.subr.mxu0 0.0
    %5874 = vmatpush1.xpose.msra.mxu0 0.0
    %5875 = vmatprep.subr.mxu0 0.0
    %5876 = vmatpush1.xpose.msra.mxu0 0.0
    %5877 = vmatprep.subr.mxu0 0.0
    %5878 = vmatpush1.xpose.msra.mxu0 0.0
    %5879 = vmatprep.subr.mxu0 0.0
    %5880 = vmatpush1.xpose.msra.mxu0 0.0
    %5881 = vmatprep.subr.mxu0 0.0
    %5882 = vmatpush1.xpose.msra.mxu0 0.0
    %5883 = vmatprep.subr.mxu0 0.0
    %5884 = vmatpush1.xpose.msra.mxu0 0.0
    %5885 = vmatprep.mubr.f32.mxu0 0.0
    %5886 = vmatmul.mubr.f32.gmra.mrb[0].mxu0 %v5817
    %v5887 = vpop.f32.mrb[0].mxu0
    %v5888 = vadd.f32 0.0, %v5887
    %v5889 = vpop.f32.mrb[0].mxu0
    %5890 = vdwg.mxu0
    %v5891 = vmul.f32 %v5888, 0.5
    %v5892 = vsel %vm508, %v5812, -inf
    %5893 = vmax.xlane.f32.xlu0 %v5892
    %v5894 = vpop.xlane.xlu0 %5893
    %v5895 = vsub.f32 %v5812, %v5894
    %v5896 = vmul.f32 %v5895, 1.442695
    %v5897 = vpow.pop %v5896
    %v5898 = vsel %vm508, %v5897, 0.0
    %5899 = vadd.xlane.f32.xlu0 %v5898
    %v5900 = vpop.xlane.xlu0 %5899
    %v5901 = vrcp.pop %v5900
    %v5902 = vmul.f32 %v5897, %v5901
    %v5903 = vsel %vm508, %v5891, -inf
    %5904 = vmax.xlane.f32.xlu0 %v5903
    %v5905 = vpop.xlane.xlu0 %5904
    %v5906 = vsub.f32 %v5891, %v5905
    %v5907 = vmul.f32 %v5906, 1.442695
    %v5908 = vpow.pop %v5907
    %v5909 = vsel %vm508, %v5908, 0.0
    %5910 = vadd.xlane.f32.xlu0 %v5909
    %v5911 = vpop.xlane.xlu0 %5910
    %v5912 = vrcp.pop %v5911
    %v5913 = vmul.f32 %v5908, %v5912
    %v5914 = vstv %s5599
    %v5915 = vmul.f32 %v5914, %v5913
    %v5916 = vsub.f32 %v5902, %v5915
    %5917 = vrot.lane.b32.xlu0 %v5727, 64
    %v5918 = vpop.permute.xlu0 %5917
    %v5921 = vsel %vm508, %v5916, 0
    %5923 = vmatprep.subr.mxu0 0.0
    %5924 = vmatpush1.msra.mxu0 %v5918
    %5925 = vmatprep.subr.mxu0 0.0
    %5926 = vmatpush1.msra.mxu0 0.0
    %5927 = vmatprep.subr.mxu0 0.0
    %5928 = vmatpush1.msra.mxu0 0.0
    %5929 = vmatprep.subr.mxu0 0.0
    %5930 = vmatpush1.msra.mxu0 0.0
    %5931 = vmatprep.subr.mxu0 0.0
    %5932 = vmatpush1.msra.mxu0 0.0
    %5933 = vmatprep.subr.mxu0 0.0
    %5934 = vmatpush1.msra.mxu0 0.0
    %5935 = vmatprep.subr.mxu0 0.0
    %5936 = vmatpush1.msra.mxu0 0.0
    %5937 = vmatprep.subr.mxu0 0.0
    %5938 = vmatpush1.msra.mxu0 0.0
    %5939 = vmatprep.subr.mxu0 0.0
    %5940 = vmatpush1.msra.mxu0 0.0
    %5941 = vmatprep.subr.mxu0 0.0
    %5942 = vmatpush1.msra.mxu0 0.0
    %5943 = vmatprep.subr.mxu0 0.0
    %5944 = vmatpush1.msra.mxu0 0.0
    %5945 = vmatprep.subr.mxu0 0.0
    %5946 = vmatpush1.msra.mxu0 0.0
    %5947 = vmatprep.subr.mxu0 0.0
    %5948 = vmatpush1.msra.mxu0 0.0
    %5949 = vmatprep.subr.mxu0 0.0
    %5950 = vmatpush1.msra.mxu0 0.0
    %5951 = vmatprep.subr.mxu0 0.0
    %5952 = vmatpush1.msra.mxu0 0.0
    %5953 = vmatprep.subr.mxu0 0.0
    %5954 = vmatpush1.msra.mxu0 0.0
    %5955 = vmatprep.subr.mxu0 0.0
    %5956 = vmatpush1.msra.mxu0 0.0
    %5957 = vmatprep.subr.mxu0 0.0
    %5958 = vmatpush1.msra.mxu0 0.0
    %5959 = vmatprep.subr.mxu0 0.0
    %5960 = vmatpush1.msra.mxu0 0.0
    %5961 = vmatprep.subr.mxu0 0.0
    %5962 = vmatpush1.msra.mxu0 0.0
    %5963 = vmatprep.subr.mxu0 0.0
    %5964 = vmatpush1.msra.mxu0 0.0
    %5965 = vmatprep.subr.mxu0 0.0
    %5966 = vmatpush1.msra.mxu0 0.0
    %5967 = vmatprep.subr.mxu0 0.0
    %5968 = vmatpush1.msra.mxu0 0.0
    %5969 = vmatprep.subr.mxu0 0.0
    %5970 = vmatpush1.msra.mxu0 0.0
    %5971 = vmatprep.subr.mxu0 0.0
    %5972 = vmatpush1.msra.mxu0 0.0
    %5973 = vmatprep.subr.mxu0 0.0
    %5974 = vmatpush1.msra.mxu0 0.0
    %5975 = vmatprep.subr.mxu0 0.0
    %5976 = vmatpush1.msra.mxu0 0.0
    %5977 = vmatprep.subr.mxu0 0.0
    %5978 = vmatpush1.msra.mxu0 0.0
    %5979 = vmatprep.subr.mxu0 0.0
    %5980 = vmatpush1.msra.mxu0 0.0
    %5981 = vmatprep.subr.mxu0 0.0
    %5982 = vmatpush1.msra.mxu0 0.0
    %5983 = vmatprep.subr.mxu0 0.0
    %5984 = vmatpush1.msra.mxu0 0.0
    %5985 = vmatprep.subr.mxu0 0.0
    %5986 = vmatpush1.msra.mxu0 0.0
    %5987 = vmatprep.mubr.f32.mxu0 0.0
    %5988 = vmatmul.mubr.f32.gmra.mrb[0].mxu0 %v5921
    %v5989 = vpop.f32.mrb[0].mxu0
    %v5990 = vadd.f32 0.0, %v5989
    %v5991 = vpop.f32.mrb[0].mxu0
    %5992 = vdwg.mxu0
    %v5993 = vmul.f32 %v5990, %v5990
    %v5994 = vsel %vm508, %v5993, 0.0
    %5995 = vadd.xlane.f32.xlu0 %v5994
    %v5996 = vpop.xlane.xlu0 %5995
    %v5997 = vmul.f32 %v5996, %v614
    %v5998 = vadd.f32 %v5997, 1e-05
    %v5999 = vrsqrt.pop %v5998
    %v6000 = vmul.f32 %v5990, %v5999
    %s6001 = ssub.f32 1.0, %s5600
    %v6002 = vstv %s6001
    %v6003 = vmul.f32 %v6000, %v6002
    %6004 = vst.msk [vmem:[#allocation2] sm:$0xff] %vm508, %v6003
    %6005 = vrot.lane.b32.xlu0 %v5727, 120
    %v6006 = vpop.permute.xlu0 %6005
    %6007 = vrot.lane.b32.xlu0 %v5727, 88
    %v6008 = vpop.permute.xlu0 %6007
    %v6009 = vsel %vm353, %v6006, 0
    %v6011 = vsel %vm353, %v6008, 0
    %6013 = vmatprep.subr.mxu0 0.0
    %6014 = vmatpush1.xpose.msra.mxu0 %v6011
    %6015 = vmatprep.subr.mxu0 0.0
    %6016 = vmatpush1.xpose.msra.mxu0 0.0
    %6017 = vmatprep.subr.mxu0 0.0
    %6018 = vmatpush1.xpose.msra.mxu0 0.0
    %6019 = vmatprep.subr.mxu0 0.0
    %6020 = vmatpush1.xpose.msra.mxu0 0.0
    %6021 = vmatprep.subr.mxu0 0.0
    %6022 = vmatpush1.xpose.msra.mxu0 0.0
    %6023 = vmatprep.subr.mxu0 0.0
    %6024 = vmatpush1.xpose.msra.mxu0 0.0
    %6025 = vmatprep.subr.mxu0 0.0
    %6026 = vmatpush1.xpose.msra.mxu0 0.0
    %6027 = vmatprep.subr.mxu0 0.0
    %6028 = vmatpush1.xpose.msra.mxu0 0.0
    %6029 = vmatprep.subr.mxu0 0.0
    %6030 = vmatpush1.xpose.msra.mxu0 0.0
    %6031 = vmatprep.subr.mxu0 0.0
    %6032 = vmatpush1.xpose.msra.mxu0 0.0
    %6033 = vmatprep.subr.mxu0 0.0
    %6034 = vmatpush1.xpose.msra.mxu0 0.0
    %6035 = vmatprep.subr.mxu0 0.0
    %6036 = vmatpush1.xpose.msra.mxu0 0.0
    %6037 = vmatprep.subr.mxu0 0.0
    %6038 = vmatpush1.xpose.msra.mxu0 0.0
    %6039 = vmatprep.subr.mxu0 0.0
    %6040 = vmatpush1.xpose.msra.mxu0 0.0
    %6041 = vmatprep.subr.mxu0 0.0
    %6042 = vmatpush1.xpose.msra.mxu0 0.0
    %6043 = vmatprep.subr.mxu0 0.0
    %6044 = vmatpush1.xpose.msra.mxu0 0.0
    %6045 = vmatprep.subr.mxu0 0.0
    %6046 = vmatpush1.xpose.msra.mxu0 0.0
    %6047 = vmatprep.subr.mxu0 0.0
    %6048 = vmatpush1.xpose.msra.mxu0 0.0
    %6049 = vmatprep.subr.mxu0 0.0
    %6050 = vmatpush1.xpose.msra.mxu0 0.0
    %6051 = vmatprep.subr.mxu0 0.0
    %6052 = vmatpush1.xpose.msra.mxu0 0.0
    %6053 = vmatprep.subr.mxu0 0.0
    %6054 = vmatpush1.xpose.msra.mxu0 0.0
    %6055 = vmatprep.subr.mxu0 0.0
    %6056 = vmatpush1.xpose.msra.mxu0 0.0
    %6057 = vmatprep.subr.mxu0 0.0
    %6058 = vmatpush1.xpose.msra.mxu0 0.0
    %6059 = vmatprep.subr.mxu0 0.0
    %6060 = vmatpush1.xpose.msra.mxu0 0.0
    %6061 = vmatprep.subr.mxu0 0.0
    %6062 = vmatpush1.xpose.msra.mxu0 0.0
    %6063 = vmatprep.subr.mxu0 0.0
    %6064 = vmatpush1.xpose.msra.mxu0 0.0
    %6065 = vmatprep.subr.mxu0 0.0
    %6066 = vmatpush1.xpose.msra.mxu0 0.0
    %6067 = vmatprep.subr.mxu0 0.0
    %6068 = vmatpush1.xpose.msra.mxu0 0.0
    %6069 = vmatprep.subr.mxu0 0.0
    %6070 = vmatpush1.xpose.msra.mxu0 0.0
    %6071 = vmatprep.subr.mxu0 0.0
    %6072 = vmatpush1.xpose.msra.mxu0 0.0
    %6073 = vmatprep.subr.mxu0 0.0
    %6074 = vmatpush1.xpose.msra.mxu0 0.0
    %6075 = vmatprep.subr.mxu0 0.0
    %6076 = vmatpush1.xpose.msra.mxu0 0.0
    %6077 = vmatprep.mubr.f32.mxu0 0.0
    %6078 = vmatmul.mubr.f32.gmra.mrb[0].mxu0 %v6009
    %v6079 = vpop.f32.mrb[0].mxu0
    %v6080 = vadd.f32 0.0, %v6079
    %v6081 = vpop.f32.mrb[0].mxu0
    %6082 = vdwg.mxu0
    %v6083 = vmul.f32 %v6080, 0.5
    %6084 = vrot.lane.b32.xlu0 %v5727, 116
    %v6085 = vpop.permute.xlu0 %6084
    %6086 = vrot.lane.b32.xlu0 %v5727, 84
    %v6087 = vpop.permute.xlu0 %6086
    %v6088 = vsel %vm353, %v6085, 0
    %v6090 = vsel %vm353, %v6087, 0
    %6092 = vmatprep.subr.mxu0 0.0
    %6093 = vmatpush1.xpose.msra.mxu0 %v6090
    %6094 = vmatprep.subr.mxu0 0.0
    %6095 = vmatpush1.xpose.msra.mxu0 0.0
    %6096 = vmatprep.subr.mxu0 0.0
    %6097 = vmatpush1.xpose.msra.mxu0 0.0
    %6098 = vmatprep.subr.mxu0 0.0
    %6099 = vmatpush1.xpose.msra.mxu0 0.0
    %6100 = vmatprep.subr.mxu0 0.0
    %6101 = vmatpush1.xpose.msra.mxu0 0.0
    %6102 = vmatprep.subr.mxu0 0.0
    %6103 = vmatpush1.xpose.msra.mxu0 0.0
    %6104 = vmatprep.subr.mxu0 0.0
    %6105 = vmatpush1.xpose.msra.mxu0 0.0
    %6106 = vmatprep.subr.mxu0 0.0
    %6107 = vmatpush1.xpose.msra.mxu0 0.0
    %6108 = vmatprep.subr.mxu0 0.0
    %6109 = vmatpush1.xpose.msra.mxu0 0.0
    %6110 = vmatprep.subr.mxu0 0.0
    %6111 = vmatpush1.xpose.msra.mxu0 0.0
    %6112 = vmatprep.subr.mxu0 0.0
    %6113 = vmatpush1.xpose.msra.mxu0 0.0
    %6114 = vmatprep.subr.mxu0 0.0
    %6115 = vmatpush1.xpose.msra.mxu0 0.0
    %6116 = vmatprep.subr.mxu0 0.0
    %6117 = vmatpush1.xpose.msra.mxu0 0.0
    %6118 = vmatprep.subr.mxu0 0.0
    %6119 = vmatpush1.xpose.msra.mxu0 0.0
    %6120 = vmatprep.subr.mxu0 0.0
    %6121 = vmatpush1.xpose.msra.mxu0 0.0
    %6122 = vmatprep.subr.mxu0 0.0
    %6123 = vmatpush1.xpose.msra.mxu0 0.0
    %6124 = vmatprep.subr.mxu0 0.0
    %6125 = vmatpush1.xpose.msra.mxu0 0.0
    %6126 = vmatprep.subr.mxu0 0.0
    %6127 = vmatpush1.xpose.msra.mxu0 0.0
    %6128 = vmatprep.subr.mxu0 0.0
    %6129 = vmatpush1.xpose.msra.mxu0 0.0
    %6130 = vmatprep.subr.mxu0 0.0
    %6131 = vmatpush1.xpose.msra.mxu0 0.0
    %6132 = vmatprep.subr.mxu0 0.0
    %6133 = vmatpush1.xpose.msra.mxu0 0.0
    %6134 = vmatprep.subr.mxu0 0.0
    %6135 = vmatpush1.xpose.msra.mxu0 0.0
    %6136 = vmatprep.subr.mxu0 0.0
    %6137 = vmatpush1.xpose.msra.mxu0 0.0
    %6138 = vmatprep.subr.mxu0 0.0
    %6139 = vmatpush1.xpose.msra.mxu0 0.0
    %6140 = vmatprep.subr.mxu0 0.0
    %6141 = vmatpush1.xpose.msra.mxu0 0.0
    %6142 = vmatprep.subr.mxu0 0.0
    %6143 = vmatpush1.xpose.msra.mxu0 0.0
    %6144 = vmatprep.subr.mxu0 0.0
    %6145 = vmatpush1.xpose.msra.mxu0 0.0
    %6146 = vmatprep.subr.mxu0 0.0
    %6147 = vmatpush1.xpose.msra.mxu0 0.0
    %6148 = vmatprep.subr.mxu0 0.0
    %6149 = vmatpush1.xpose.msra.mxu0 0.0
    %6150 = vmatprep.subr.mxu0 0.0
    %6151 = vmatpush1.xpose.msra.mxu0 0.0
    %6152 = vmatprep.subr.mxu0 0.0
    %6153 = vmatpush1.xpose.msra.mxu0 0.0
    %6154 = vmatprep.subr.mxu0 0.0
    %6155 = vmatpush1.xpose.msra.mxu0 0.0
    %6156 = vmatprep.mubr.f32.mxu0 0.0
    %6157 = vmatmul.mubr.f32.gmra.mrb[0].mxu0 %v6088
    %v6158 = vpop.f32.mrb[0].mxu0
    %v6159 = vadd.f32 0.0, %v6158
    %v6160 = vpop.f32.mrb[0].mxu0
    %6161 = vdwg.mxu0
    %v6162 = vmul.f32 %v6159, 0.5
    %v6163 = vsel %vm508, %v6083, -inf
    %6164 = vmax.xlane.f32.xlu0 %v6163
    %v6165 = vpop.xlane.xlu0 %6164
    %v6166 = vsub.f32 %v6083, %v6165
    %v6167 = vmul.f32 %v6166, 1.442695
    %v6168 = vpow.pop %v6167
    %v6169 = vsel %vm508, %v6168, 0.0
    %6170 = vadd.xlane.f32.xlu0 %v6169
    %v6171 = vpop.xlane.xlu0 %6170
    %v6172 = vrcp.pop %v6171
    %v6173 = vmul.f32 %v6168, %v6172
    %v6174 = vsel %vm508, %v6162, -inf
    %6175 = vmax.xlane.f32.xlu0 %v6174
    %v6176 = vpop.xlane.xlu0 %6175
    %v6177 = vsub.f32 %v6162, %v6176
    %v6178 = vmul.f32 %v6177, 1.442695
    %v6179 = vpow.pop %v6178
    %v6180 = vsel %vm508, %v6179, 0.0
    %6181 = vadd.xlane.f32.xlu0 %v6180
    %v6182 = vpop.xlane.xlu0 %6181
    %v6183 = vrcp.pop %v6182
    %v6184 = vmul.f32 %v6179, %v6183
    %v6185 = vmul.f32 %v5914, %v6184
    %v6186 = vsub.f32 %v6173, %v6185
    %6187 = vrot.lane.b32.xlu0 %v5727, 56
    %v6188 = vpop.permute.xlu0 %6187
    %v6191 = vsel %vm508, %v6186, 0
    %6193 = vmatprep.subr.mxu0 0.0
    %6194 = vmatpush1.msra.mxu0 %v6188
    %6195 = vmatprep.subr.mxu0 0.0
    %6196 = vmatpush1.msra.mxu0 0.0
    %6197 = vmatprep.subr.mxu0 0.0
    %6198 = vmatpush1.msra.mxu0 0.0
    %6199 = vmatprep.subr.mxu0 0.0
    %6200 = vmatpush1.msra.mxu0 0.0
    %6201 = vmatprep.subr.mxu0 0.0
    %6202 = vmatpush1.msra.mxu0 0.0
    %6203 = vmatprep.subr.mxu0 0.0
    %6204 = vmatpush1.msra.mxu0 0.0
    %6205 = vmatprep.subr.mxu0 0.0
    %6206 = vmatpush1.msra.mxu0 0.0
    %6207 = vmatprep.subr.mxu0 0.0
    %6208 = vmatpush1.msra.mxu0 0.0
    %6209 = vmatprep.subr.mxu0 0.0
    %6210 = vmatpush1.msra.mxu0 0.0
    %6211 = vmatprep.subr.mxu0 0.0
    %6212 = vmatpush1.msra.mxu0 0.0
    %6213 = vmatprep.subr.mxu0 0.0
    %6214 = vmatpush1.msra.mxu0 0.0
    %6215 = vmatprep.subr.mxu0 0.0
    %6216 = vmatpush1.msra.mxu0 0.0
    %6217 = vmatprep.subr.mxu0 0.0
    %6218 = vmatpush1.msra.mxu0 0.0
    %6219 = vmatprep.subr.mxu0 0.0
    %6220 = vmatpush1.msra.mxu0 0.0
    %6221 = vmatprep.subr.mxu0 0.0
    %6222 = vmatpush1.msra.mxu0 0.0
    %6223 = vmatprep.subr.mxu0 0.0
    %6224 = vmatpush1.msra.mxu0 0.0
    %6225 = vmatprep.subr.mxu0 0.0
    %6226 = vmatpush1.msra.mxu0 0.0
    %6227 = vmatprep.subr.mxu0 0.0
    %6228 = vmatpush1.msra.mxu0 0.0
    %6229 = vmatprep.subr.mxu0 0.0
    %6230 = vmatpush1.msra.mxu0 0.0
    %6231 = vmatprep.subr.mxu0 0.0
    %6232 = vmatpush1.msra.mxu0 0.0
    %6233 = vmatprep.subr.mxu0 0.0
    %6234 = vmatpush1.msra.mxu0 0.0
    %6235 = vmatprep.subr.mxu0 0.0
    %6236 = vmatpush1.msra.mxu0 0.0
    %6237 = vmatprep.subr.mxu0 0.0
    %6238 = vmatpush1.msra.mxu0 0.0
    %6239 = vmatprep.subr.mxu0 0.0
    %6240 = vmatpush1.msra.mxu0 0.0
    %6241 = vmatprep.subr.mxu0 0.0
    %6242 = vmatpush1.msra.mxu0 0.0
    %6243 = vmatprep.subr.mxu0 0.0
    %6244 = vmatpush1.msra.mxu0 0.0
    %6245 = vmatprep.subr.mxu0 0.0
    %6246 = vmatpush1.msra.mxu0 0.0
    %6247 = vmatprep.subr.mxu0 0.0
    %6248 = vmatpush1.msra.mxu0 0.0
    %6249 = vmatprep.subr.mxu0 0.0
    %6250 = vmatpush1.msra.mxu0 0.0
    %6251 = vmatprep.subr.mxu0 0.0
    %6252 = vmatpush1.msra.mxu0 0.0
    %6253 = vmatprep.subr.mxu0 0.0
    %6254 = vmatpush1.msra.mxu0 0.0
    %6255 = vmatprep.subr.mxu0 0.0
    %6256 = vmatpush1.msra.mxu0 0.0
    %6257 = vmatprep.mubr.f32.mxu0 0.0
    %6258 = vmatmul.mubr.f32.gmra.mrb[0].mxu0 %v6191
    %v6259 = vpop.f32.mrb[0].mxu0
    %v6260 = vadd.f32 0.0, %v6259
    %v6261 = vpop.f32.mrb[0].mxu0
    %6262 = vdwg.mxu0
    %v6263 = vmul.f32 %v6260, %v6260
    %v6264 = vsel %vm508, %v6263, 0.0
    %6265 = vadd.xlane.f32.xlu0 %v6264
    %v6266 = vpop.xlane.xlu0 %6265
    %v6267 = vmul.f32 %v6266, %v614
    %v6268 = vadd.f32 %v6267, 1e-05
    %v6269 = vrsqrt.pop %v6268
    %v6270 = vmul.f32 %v6260, %v6269
    %v6271 = vmul.f32 %v6270, %v6002
    %6273 = vrot.lane.b32.xlu0 %v6271, 8
    %v6274 = vpop.permute.xlu0 %6273
    %6276 = vst.msk [vmem:[#allocation2] sm:$0xff] %vm894, %v6274
    %6277 = vrot.lane.b32.xlu0 %v5727, 112
    %v6278 = vpop.permute.xlu0 %6277
    %6279 = vrot.lane.b32.xlu0 %v5727, 80
    %v6280 = vpop.permute.xlu0 %6279
    %v6281 = vsel %vm353, %v6278, 0
    %v6283 = vsel %vm353, %v6280, 0
    %6285 = vmatprep.subr.mxu0 0.0
    %6286 = vmatpush1.xpose.msra.mxu0 %v6283
    %6287 = vmatprep.subr.mxu0 0.0
    %6288 = vmatpush1.xpose.msra.mxu0 0.0
    %6289 = vmatprep.subr.mxu0 0.0
    %6290 = vmatpush1.xpose.msra.mxu0 0.0
    %6291 = vmatprep.subr.mxu0 0.0
    %6292 = vmatpush1.xpose.msra.mxu0 0.0
    %6293 = vmatprep.subr.mxu0 0.0
    %6294 = vmatpush1.xpose.msra.mxu0 0.0
    %6295 = vmatprep.subr.mxu0 0.0
    %6296 = vmatpush1.xpose.msra.mxu0 0.0
    %6297 = vmatprep.subr.mxu0 0.0
    %6298 = vmatpush1.xpose.msra.mxu0 0.0
    %6299 = vmatprep.subr.mxu0 0.0
    %6300 = vmatpush1.xpose.msra.mxu0 0.0
    %6301 = vmatprep.subr.mxu0 0.0
    %6302 = vmatpush1.xpose.msra.mxu0 0.0
    %6303 = vmatprep.subr.mxu0 0.0
    %6304 = vmatpush1.xpose.msra.mxu0 0.0
    %6305 = vmatprep.subr.mxu0 0.0
    %6306 = vmatpush1.xpose.msra.mxu0 0.0
    %6307 = vmatprep.subr.mxu0 0.0
    %6308 = vmatpush1.xpose.msra.mxu0 0.0
    %6309 = vmatprep.subr.mxu0 0.0
    %6310 = vmatpush1.xpose.msra.mxu0 0.0
    %6311 = vmatprep.subr.mxu0 0.0
    %6312 = vmatpush1.xpose.msra.mxu0 0.0
    %6313 = vmatprep.subr.mxu0 0.0
    %6314 = vmatpush1.xpose.msra.mxu0 0.0
    %6315 = vmatprep.subr.mxu0 0.0
    %6316 = vmatpush1.xpose.msra.mxu0 0.0
    %6317 = vmatprep.subr.mxu0 0.0
    %6318 = vmatpush1.xpose.msra.mxu0 0.0
    %6319 = vmatprep.subr.mxu0 0.0
    %6320 = vmatpush1.xpose.msra.mxu0 0.0
    %6321 = vmatprep.subr.mxu0 0.0
    %6322 = vmatpush1.xpose.msra.mxu0 0.0
    %6323 = vmatprep.subr.mxu0 0.0
    %6324 = vmatpush1.xpose.msra.mxu0 0.0
    %6325 = vmatprep.subr.mxu0 0.0
    %6326 = vmatpush1.xpose.msra.mxu0 0.0
    %6327 = vmatprep.subr.mxu0 0.0
    %6328 = vmatpush1.xpose.msra.mxu0 0.0
    %6329 = vmatprep.subr.mxu0 0.0
    %6330 = vmatpush1.xpose.msra.mxu0 0.0
    %6331 = vmatprep.subr.mxu0 0.0
    %6332 = vmatpush1.xpose.msra.mxu0 0.0
    %6333 = vmatprep.subr.mxu0 0.0
    %6334 = vmatpush1.xpose.msra.mxu0 0.0
    %6335 = vmatprep.subr.mxu0 0.0
    %6336 = vmatpush1.xpose.msra.mxu0 0.0
    %6337 = vmatprep.subr.mxu0 0.0
    %6338 = vmatpush1.xpose.msra.mxu0 0.0
    %6339 = vmatprep.subr.mxu0 0.0
    %6340 = vmatpush1.xpose.msra.mxu0 0.0
    %6341 = vmatprep.subr.mxu0 0.0
    %6342 = vmatpush1.xpose.msra.mxu0 0.0
    %6343 = vmatprep.subr.mxu0 0.0
    %6344 = vmatpush1.xpose.msra.mxu0 0.0
    %6345 = vmatprep.subr.mxu0 0.0
    %6346 = vmatpush1.xpose.msra.mxu0 0.0
    %6347 = vmatprep.subr.mxu0 0.0
    %6348 = vmatpush1.xpose.msra.mxu0 0.0
    %6349 = vmatprep.mubr.f32.mxu0 0.0
    %6350 = vmatmul.mubr.f32.gmra.mrb[0].mxu0 %v6281
    %v6351 = vpop.f32.mrb[0].mxu0
    %v6352 = vadd.f32 0.0, %v6351
    %v6353 = vpop.f32.mrb[0].mxu0
    %6354 = vdwg.mxu0
    %v6355 = vmul.f32 %v6352, 0.5
    %6356 = vrot.lane.b32.xlu0 %v5727, 108
    %v6357 = vpop.permute.xlu0 %6356
    %6358 = vrot.lane.b32.xlu0 %v5727, 76
    %v6359 = vpop.permute.xlu0 %6358
    %v6360 = vsel %vm353, %v6357, 0
    %v6362 = vsel %vm353, %v6359, 0
    %6364 = vmatprep.subr.mxu0 0.0
    %6365 = vmatpush1.xpose.msra.mxu0 %v6362
    %6366 = vmatprep.subr.mxu0 0.0
    %6367 = vmatpush1.xpose.msra.mxu0 0.0
    %6368 = vmatprep.subr.mxu0 0.0
    %6369 = vmatpush1.xpose.msra.mxu0 0.0
    %6370 = vmatprep.subr.mxu0 0.0
    %6371 = vmatpush1.xpose.msra.mxu0 0.0
    %6372 = vmatprep.subr.mxu0 0.0
    %6373 = vmatpush1.xpose.msra.mxu0 0.0
    %6374 = vmatprep.subr.mxu0 0.0
    %6375 = vmatpush1.xpose.msra.mxu0 0.0
    %6376 = vmatprep.subr.mxu0 0.0
    %6377 = vmatpush1.xpose.msra.mxu0 0.0
    %6378 = vmatprep.subr.mxu0 0.0
    %6379 = vmatpush1.xpose.msra.mxu0 0.0
    %6380 = vmatprep.subr.mxu0 0.0
    %6381 = vmatpush1.xpose.msra.mxu0 0.0
    %6382 = vmatprep.subr.mxu0 0.0
    %6383 = vmatpush1.xpose.msra.mxu0 0.0
    %6384 = vmatprep.subr.mxu0 0.0
    %6385 = vmatpush1.xpose.msra.mxu0 0.0
    %6386 = vmatprep.subr.mxu0 0.0
    %6387 = vmatpush1.xpose.msra.mxu0 0.0
    %6388 = vmatprep.subr.mxu0 0.0
    %6389 = vmatpush1.xpose.msra.mxu0 0.0
    %6390 = vmatprep.subr.mxu0 0.0
    %6391 = vmatpush1.xpose.msra.mxu0 0.0
    %6392 = vmatprep.subr.mxu0 0.0
    %6393 = vmatpush1.xpose.msra.mxu0 0.0
    %6394 = vmatprep.subr.mxu0 0.0
    %6395 = vmatpush1.xpose.msra.mxu0 0.0
    %6396 = vmatprep.subr.mxu0 0.0
    %6397 = vmatpush1.xpose.msra.mxu0 0.0
    %6398 = vmatprep.subr.mxu0 0.0
    %6399 = vmatpush1.xpose.msra.mxu0 0.0
    %6400 = vmatprep.subr.mxu0 0.0
    %6401 = vmatpush1.xpose.msra.mxu0 0.0
    %6402 = vmatprep.subr.mxu0 0.0
    %6403 = vmatpush1.xpose.msra.mxu0 0.0
    %6404 = vmatprep.subr.mxu0 0.0
    %6405 = vmatpush1.xpose.msra.mxu0 0.0
    %6406 = vmatprep.subr.mxu0 0.0
    %6407 = vmatpush1.xpose.msra.mxu0 0.0
    %6408 = vmatprep.subr.mxu0 0.0
    %6409 = vmatpush1.xpose.msra.mxu0 0.0
    %6410 = vmatprep.subr.mxu0 0.0
    %6411 = vmatpush1.xpose.msra.mxu0 0.0
    %6412 = vmatprep.subr.mxu0 0.0
    %6413 = vmatpush1.xpose.msra.mxu0 0.0
    %6414 = vmatprep.subr.mxu0 0.0
    %6415 = vmatpush1.xpose.msra.mxu0 0.0
    %6416 = vmatprep.subr.mxu0 0.0
    %6417 = vmatpush1.xpose.msra.mxu0 0.0
    %6418 = vmatprep.subr.mxu0 0.0
    %6419 = vmatpush1.xpose.msra.mxu0 0.0
    %6420 = vmatprep.subr.mxu0 0.0
    %6421 = vmatpush1.xpose.msra.mxu0 0.0
    %6422 = vmatprep.subr.mxu0 0.0
    %6423 = vmatpush1.xpose.msra.mxu0 0.0
    %6424 = vmatprep.subr.mxu0 0.0
    %6425 = vmatpush1.xpose.msra.mxu0 0.0
    %6426 = vmatprep.subr.mxu0 0.0
    %6427 = vmatpush1.xpose.msra.mxu0 0.0
    %6428 = vmatprep.mubr.f32.mxu0 0.0
    %6429 = vmatmul.mubr.f32.gmra.mrb[0].mxu0 %v6360
    %v6430 = vpop.f32.mrb[0].mxu0
    %v6431 = vadd.f32 0.0, %v6430
    %v6432 = vpop.f32.mrb[0].mxu0
    %6433 = vdwg.mxu0
    %v6434 = vmul.f32 %v6431, 0.5
    %v6435 = vsel %vm508, %v6355, -inf
    %6436 = vmax.xlane.f32.xlu0 %v6435
    %v6437 = vpop.xlane.xlu0 %6436
    %v6438 = vsub.f32 %v6355, %v6437
    %v6439 = vmul.f32 %v6438, 1.442695
    %v6440 = vpow.pop %v6439
    %v6441 = vsel %vm508, %v6440, 0.0
    %6442 = vadd.xlane.f32.xlu0 %v6441
    %v6443 = vpop.xlane.xlu0 %6442
    %v6444 = vrcp.pop %v6443
    %v6445 = vmul.f32 %v6440, %v6444
    %v6446 = vsel %vm508, %v6434, -inf
    %6447 = vmax.xlane.f32.xlu0 %v6446
    %v6448 = vpop.xlane.xlu0 %6447
    %v6449 = vsub.f32 %v6434, %v6448
    %v6450 = vmul.f32 %v6449, 1.442695
    %v6451 = vpow.pop %v6450
    %v6452 = vsel %vm508, %v6451, 0.0
    %6453 = vadd.xlane.f32.xlu0 %v6452
    %v6454 = vpop.xlane.xlu0 %6453
    %v6455 = vrcp.pop %v6454
    %v6456 = vmul.f32 %v6451, %v6455
    %v6457 = vmul.f32 %v5914, %v6456
    %v6458 = vsub.f32 %v6445, %v6457
    %6459 = vrot.lane.b32.xlu0 %v5727, 48
    %v6460 = vpop.permute.xlu0 %6459
    %v6463 = vsel %vm508, %v6458, 0
    %6465 = vmatprep.subr.mxu0 0.0
    %6466 = vmatpush1.msra.mxu0 %v6460
    %6467 = vmatprep.subr.mxu0 0.0
    %6468 = vmatpush1.msra.mxu0 0.0
    %6469 = vmatprep.subr.mxu0 0.0
    %6470 = vmatpush1.msra.mxu0 0.0
    %6471 = vmatprep.subr.mxu0 0.0
    %6472 = vmatpush1.msra.mxu0 0.0
    %6473 = vmatprep.subr.mxu0 0.0
    %6474 = vmatpush1.msra.mxu0 0.0
    %6475 = vmatprep.subr.mxu0 0.0
    %6476 = vmatpush1.msra.mxu0 0.0
    %6477 = vmatprep.subr.mxu0 0.0
    %6478 = vmatpush1.msra.mxu0 0.0
    %6479 = vmatprep.subr.mxu0 0.0
    %6480 = vmatpush1.msra.mxu0 0.0
    %6481 = vmatprep.subr.mxu0 0.0
    %6482 = vmatpush1.msra.mxu0 0.0
    %6483 = vmatprep.subr.mxu0 0.0
    %6484 = vmatpush1.msra.mxu0 0.0
    %6485 = vmatprep.subr.mxu0 0.0
    %6486 = vmatpush1.msra.mxu0 0.0
    %6487 = vmatprep.subr.mxu0 0.0
    %6488 = vmatpush1.msra.mxu0 0.0
    %6489 = vmatprep.subr.mxu0 0.0
    %6490 = vmatpush1.msra.mxu0 0.0
    %6491 = vmatprep.subr.mxu0 0.0
    %6492 = vmatpush1.msra.mxu0 0.0
    %6493 = vmatprep.subr.mxu0 0.0
    %6494 = vmatpush1.msra.mxu0 0.0
    %6495 = vmatprep.subr.mxu0 0.0
    %6496 = vmatpush1.msra.mxu0 0.0
    %6497 = vmatprep.subr.mxu0 0.0
    %6498 = vmatpush1.msra.mxu0 0.0
    %6499 = vmatprep.subr.mxu0 0.0
    %6500 = vmatpush1.msra.mxu0 0.0
    %6501 = vmatprep.subr.mxu0 0.0
    %6502 = vmatpush1.msra.mxu0 0.0
    %6503 = vmatprep.subr.mxu0 0.0
    %6504 = vmatpush1.msra.mxu0 0.0
    %6505 = vmatprep.subr.mxu0 0.0
    %6506 = vmatpush1.msra.mxu0 0.0
    %6507 = vmatprep.subr.mxu0 0.0
    %6508 = vmatpush1.msra.mxu0 0.0
    %6509 = vmatprep.subr.mxu0 0.0
    %6510 = vmatpush1.msra.mxu0 0.0
    %6511 = vmatprep.subr.mxu0 0.0
    %6512 = vmatpush1.msra.mxu0 0.0
    %6513 = vmatprep.subr.mxu0 0.0
    %6514 = vmatpush1.msra.mxu0 0.0
    %6515 = vmatprep.subr.mxu0 0.0
    %6516 = vmatpush1.msra.mxu0 0.0
    %6517 = vmatprep.subr.mxu0 0.0
    %6518 = vmatpush1.msra.mxu0 0.0
    %6519 = vmatprep.subr.mxu0 0.0
    %6520 = vmatpush1.msra.mxu0 0.0
    %6521 = vmatprep.subr.mxu0 0.0
    %6522 = vmatpush1.msra.mxu0 0.0
    %6523 = vmatprep.subr.mxu0 0.0
    %6524 = vmatpush1.msra.mxu0 0.0
    %6525 = vmatprep.subr.mxu0 0.0
    %6526 = vmatpush1.msra.mxu0 0.0
    %6527 = vmatprep.subr.mxu0 0.0
    %6528 = vmatpush1.msra.mxu0 0.0
    %6529 = vmatprep.mubr.f32.mxu0 0.0
    %6530 = vmatmul.mubr.f32.gmra.mrb[0].mxu0 %v6463
    %v6531 = vpop.f32.mrb[0].mxu0
    %v6532 = vadd.f32 0.0, %v6531
    %v6533 = vpop.f32.mrb[0].mxu0
    %6534 = vdwg.mxu0
    %v6535 = vmul.f32 %v6532, %v6532
    %v6536 = vsel %vm508, %v6535, 0.0
    %6537 = vadd.xlane.f32.xlu0 %v6536
    %v6538 = vpop.xlane.xlu0 %6537
    %v6539 = vmul.f32 %v6538, %v614
    %v6540 = vadd.f32 %v6539, 1e-05
    %v6541 = vrsqrt.pop %v6540
    %v6542 = vmul.f32 %v6532, %v6541
    %v6543 = vmul.f32 %v6542, %v6002
    %6545 = vrot.lane.b32.xlu0 %v6543, 16
    %v6546 = vpop.permute.xlu0 %6545
    %6548 = vst.msk [vmem:[#allocation2] sm:$0xff] %vm1167, %v6546
    %6549 = vrot.lane.b32.xlu0 %v5727, 104
    %v6550 = vpop.permute.xlu0 %6549
    %6551 = vrot.lane.b32.xlu0 %v5727, 72
    %v6552 = vpop.permute.xlu0 %6551
    %v6553 = vsel %vm353, %v6550, 0
    %v6555 = vsel %vm353, %v6552, 0
    %6557 = vmatprep.subr.mxu0 0.0
    %6558 = vmatpush1.xpose.msra.mxu0 %v6555
    %6559 = vmatprep.subr.mxu0 0.0
    %6560 = vmatpush1.xpose.msra.mxu0 0.0
    %6561 = vmatprep.subr.mxu0 0.0
    %6562 = vmatpush1.xpose.msra.mxu0 0.0
    %6563 = vmatprep.subr.mxu0 0.0
    %6564 = vmatpush1.xpose.msra.mxu0 0.0
    %6565 = vmatprep.subr.mxu0 0.0
    %6566 = vmatpush1.xpose.msra.mxu0 0.0
    %6567 = vmatprep.subr.mxu0 0.0
    %6568 = vmatpush1.xpose.msra.mxu0 0.0
    %6569 = vmatprep.subr.mxu0 0.0
    %6570 = vmatpush1.xpose.msra.mxu0 0.0
    %6571 = vmatprep.subr.mxu0 0.0
    %6572 = vmatpush1.xpose.msra.mxu0 0.0
    %6573 = vmatprep.subr.mxu0 0.0
    %6574 = vmatpush1.xpose.msra.mxu0 0.0
    %6575 = vmatprep.subr.mxu0 0.0
    %6576 = vmatpush1.xpose.msra.mxu0 0.0
    %6577 = vmatprep.subr.mxu0 0.0
    %6578 = vmatpush1.xpose.msra.mxu0 0.0
    %6579 = vmatprep.subr.mxu0 0.0
    %6580 = vmatpush1.xpose.msra.mxu0 0.0
    %6581 = vmatprep.subr.mxu0 0.0
    %6582 = vmatpush1.xpose.msra.mxu0 0.0
    %6583 = vmatprep.subr.mxu0 0.0
    %6584 = vmatpush1.xpose.msra.mxu0 0.0
    %6585 = vmatprep.subr.mxu0 0.0
    %6586 = vmatpush1.xpose.msra.mxu0 0.0
    %6587 = vmatprep.subr.mxu0 0.0
    %6588 = vmatpush1.xpose.msra.mxu0 0.0
    %6589 = vmatprep.subr.mxu0 0.0
    %6590 = vmatpush1.xpose.msra.mxu0 0.0
    %6591 = vmatprep.subr.mxu0 0.0
    %6592 = vmatpush1.xpose.msra.mxu0 0.0
    %6593 = vmatprep.subr.mxu0 0.0
    %6594 = vmatpush1.xpose.msra.mxu0 0.0
    %6595 = vmatprep.subr.mxu0 0.0
    %6596 = vmatpush1.xpose.msra.mxu0 0.0
    %6597 = vmatprep.subr.mxu0 0.0
    %6598 = vmatpush1.xpose.msra.mxu0 0.0
    %6599 = vmatprep.subr.mxu0 0.0
    %6600 = vmatpush1.xpose.msra.mxu0 0.0
    %6601 = vmatprep.subr.mxu0 0.0
    %6602 = vmatpush1.xpose.msra.mxu0 0.0
    %6603 = vmatprep.subr.mxu0 0.0
    %6604 = vmatpush1.xpose.msra.mxu0 0.0
    %6605 = vmatprep.subr.mxu0 0.0
    %6606 = vmatpush1.xpose.msra.mxu0 0.0
    %6607 = vmatprep.subr.mxu0 0.0
    %6608 = vmatpush1.xpose.msra.mxu0 0.0
    %6609 = vmatprep.subr.mxu0 0.0
    %6610 = vmatpush1.xpose.msra.mxu0 0.0
    %6611 = vmatprep.subr.mxu0 0.0
    %6612 = vmatpush1.xpose.msra.mxu0 0.0
    %6613 = vmatprep.subr.mxu0 0.0
    %6614 = vmatpush1.xpose.msra.mxu0 0.0
    %6615 = vmatprep.subr.mxu0 0.0
    %6616 = vmatpush1.xpose.msra.mxu0 0.0
    %6617 = vmatprep.subr.mxu0 0.0
    %6618 = vmatpush1.xpose.msra.mxu0 0.0
    %6619 = vmatprep.subr.mxu0 0.0
    %6620 = vmatpush1.xpose.msra.mxu0 0.0
    %6621 = vmatprep.mubr.f32.mxu0 0.0
    %6622 = vmatmul.mubr.f32.gmra.mrb[0].mxu0 %v6553
    %v6623 = vpop.f32.mrb[0].mxu0
    %v6624 = vadd.f32 0.0, %v6623
    %v6625 = vpop.f32.mrb[0].mxu0
    %6626 = vdwg.mxu0
    %v6627 = vmul.f32 %v6624, 0.5
    %6628 = vrot.lane.b32.xlu0 %v5727, 100
    %v6629 = vpop.permute.xlu0 %6628
    %6630 = vrot.lane.b32.xlu0 %v5727, 68
    %v6631 = vpop.permute.xlu0 %6630
    %v6632 = vsel %vm353, %v6629, 0
    %v6634 = vsel %vm353, %v6631, 0
    %6636 = vmatprep.subr.mxu0 0.0
    %6637 = vmatpush1.xpose.msra.mxu0 %v6634
    %6638 = vmatprep.subr.mxu0 0.0
    %6639 = vmatpush1.xpose.msra.mxu0 0.0
    %6640 = vmatprep.subr.mxu0 0.0
    %6641 = vmatpush1.xpose.msra.mxu0 0.0
    %6642 = vmatprep.subr.mxu0 0.0
    %6643 = vmatpush1.xpose.msra.mxu0 0.0
    %6644 = vmatprep.subr.mxu0 0.0
    %6645 = vmatpush1.xpose.msra.mxu0 0.0
    %6646 = vmatprep.subr.mxu0 0.0
    %6647 = vmatpush1.xpose.msra.mxu0 0.0
    %6648 = vmatprep.subr.mxu0 0.0
    %6649 = vmatpush1.xpose.msra.mxu0 0.0
    %6650 = vmatprep.subr.mxu0 0.0
    %6651 = vmatpush1.xpose.msra.mxu0 0.0
    %6652 = vmatprep.subr.mxu0 0.0
    %6653 = vmatpush1.xpose.msra.mxu0 0.0
    %6654 = vmatprep.subr.mxu0 0.0
    %6655 = vmatpush1.xpose.msra.mxu0 0.0
    %6656 = vmatprep.subr.mxu0 0.0
    %6657 = vmatpush1.xpose.msra.mxu0 0.0
    %6658 = vmatprep.subr.mxu0 0.0
    %6659 = vmatpush1.xpose.msra.mxu0 0.0
    %6660 = vmatprep.subr.mxu0 0.0
    %6661 = vmatpush1.xpose.msra.mxu0 0.0
    %6662 = vmatprep.subr.mxu0 0.0
    %6663 = vmatpush1.xpose.msra.mxu0 0.0
    %6664 = vmatprep.subr.mxu0 0.0
    %6665 = vmatpush1.xpose.msra.mxu0 0.0
    %6666 = vmatprep.subr.mxu0 0.0
    %6667 = vmatpush1.xpose.msra.mxu0 0.0
    %6668 = vmatprep.subr.mxu0 0.0
    %6669 = vmatpush1.xpose.msra.mxu0 0.0
    %6670 = vmatprep.subr.mxu0 0.0
    %6671 = vmatpush1.xpose.msra.mxu0 0.0
    %6672 = vmatprep.subr.mxu0 0.0
    %6673 = vmatpush1.xpose.msra.mxu0 0.0
    %6674 = vmatprep.subr.mxu0 0.0
    %6675 = vmatpush1.xpose.msra.mxu0 0.0
    %6676 = vmatprep.subr.mxu0 0.0
    %6677 = vmatpush1.xpose.msra.mxu0 0.0
    %6678 = vmatprep.subr.mxu0 0.0
    %6679 = vmatpush1.xpose.msra.mxu0 0.0
    %6680 = vmatprep.subr.mxu0 0.0
    %6681 = vmatpush1.xpose.msra.mxu0 0.0
    %6682 = vmatprep.subr.mxu0 0.0
    %6683 = vmatpush1.xpose.msra.mxu0 0.0
    %6684 = vmatprep.subr.mxu0 0.0
    %6685 = vmatpush1.xpose.msra.mxu0 0.0
    %6686 = vmatprep.subr.mxu0 0.0
    %6687 = vmatpush1.xpose.msra.mxu0 0.0
    %6688 = vmatprep.subr.mxu0 0.0
    %6689 = vmatpush1.xpose.msra.mxu0 0.0
    %6690 = vmatprep.subr.mxu0 0.0
    %6691 = vmatpush1.xpose.msra.mxu0 0.0
    %6692 = vmatprep.subr.mxu0 0.0
    %6693 = vmatpush1.xpose.msra.mxu0 0.0
    %6694 = vmatprep.subr.mxu0 0.0
    %6695 = vmatpush1.xpose.msra.mxu0 0.0
    %6696 = vmatprep.subr.mxu0 0.0
    %6697 = vmatpush1.xpose.msra.mxu0 0.0
    %6698 = vmatprep.subr.mxu0 0.0
    %6699 = vmatpush1.xpose.msra.mxu0 0.0
    %6700 = vmatprep.mubr.f32.mxu0 0.0
    %6701 = vmatmul.mubr.f32.gmra.mrb[0].mxu0 %v6632
    %v6702 = vpop.f32.mrb[0].mxu0
    %v6703 = vadd.f32 0.0, %v6702
    %v6704 = vpop.f32.mrb[0].mxu0
    %6705 = vdwg.mxu0
    %v6706 = vmul.f32 %v6703, 0.5
    %v6707 = vsel %vm508, %v6627, -inf
    %6708 = vmax.xlane.f32.xlu0 %v6707
    %v6709 = vpop.xlane.xlu0 %6708
    %v6710 = vsub.f32 %v6627, %v6709
    %v6711 = vmul.f32 %v6710, 1.442695
    %v6712 = vpow.pop %v6711
    %v6713 = vsel %vm508, %v6712, 0.0
    %6714 = vadd.xlane.f32.xlu0 %v6713
    %v6715 = vpop.xlane.xlu0 %6714
    %v6716 = vrcp.pop %v6715
    %v6717 = vmul.f32 %v6712, %v6716
    %v6718 = vsel %vm508, %v6706, -inf
    %6719 = vmax.xlane.f32.xlu0 %v6718
    %v6720 = vpop.xlane.xlu0 %6719
    %v6721 = vsub.f32 %v6706, %v6720
    %v6722 = vmul.f32 %v6721, 1.442695
    %v6723 = vpow.pop %v6722
    %v6724 = vsel %vm508, %v6723, 0.0
    %6725 = vadd.xlane.f32.xlu0 %v6724
    %v6726 = vpop.xlane.xlu0 %6725
    %v6727 = vrcp.pop %v6726
    %v6728 = vmul.f32 %v6723, %v6727
    %v6729 = vmul.f32 %v5914, %v6728
    %v6730 = vsub.f32 %v6717, %v6729
    %6731 = vrot.lane.b32.xlu0 %v5727, 40
    %v6732 = vpop.permute.xlu0 %6731
    %v6735 = vsel %vm508, %v6730, 0
    %6737 = vmatprep.subr.mxu0 0.0
    %6738 = vmatpush1.msra.mxu0 %v6732
    %6739 = vmatprep.subr.mxu0 0.0
    %6740 = vmatpush1.msra.mxu0 0.0
    %6741 = vmatprep.subr.mxu0 0.0
    %6742 = vmatpush1.msra.mxu0 0.0
    %6743 = vmatprep.subr.mxu0 0.0
    %6744 = vmatpush1.msra.mxu0 0.0
    %6745 = vmatprep.subr.mxu0 0.0
    %6746 = vmatpush1.msra.mxu0 0.0
    %6747 = vmatprep.subr.mxu0 0.0
    %6748 = vmatpush1.msra.mxu0 0.0
    %6749 = vmatprep.subr.mxu0 0.0
    %6750 = vmatpush1.msra.mxu0 0.0
    %6751 = vmatprep.subr.mxu0 0.0
    %6752 = vmatpush1.msra.mxu0 0.0
    %6753 = vmatprep.subr.mxu0 0.0
    %6754 = vmatpush1.msra.mxu0 0.0
    %6755 = vmatprep.subr.mxu0 0.0
    %6756 = vmatpush1.msra.mxu0 0.0
    %6757 = vmatprep.subr.mxu0 0.0
    %6758 = vmatpush1.msra.mxu0 0.0
    %6759 = vmatprep.subr.mxu0 0.0
    %6760 = vmatpush1.msra.mxu0 0.0
    %6761 = vmatprep.subr.mxu0 0.0
    %6762 = vmatpush1.msra.mxu0 0.0
    %6763 = vmatprep.subr.mxu0 0.0
    %6764 = vmatpush1.msra.mxu0 0.0
    %6765 = vmatprep.subr.mxu0 0.0
    %6766 = vmatpush1.msra.mxu0 0.0
    %6767 = vmatprep.subr.mxu0 0.0
    %6768 = vmatpush1.msra.mxu0 0.0
    %6769 = vmatprep.subr.mxu0 0.0
    %6770 = vmatpush1.msra.mxu0 0.0
    %6771 = vmatprep.subr.mxu0 0.0
    %6772 = vmatpush1.msra.mxu0 0.0
    %6773 = vmatprep.subr.mxu0 0.0
    %6774 = vmatpush1.msra.mxu0 0.0
    %6775 = vmatprep.subr.mxu0 0.0
    %6776 = vmatpush1.msra.mxu0 0.0
    %6777 = vmatprep.subr.mxu0 0.0
    %6778 = vmatpush1.msra.mxu0 0.0
    %6779 = vmatprep.subr.mxu0 0.0
    %6780 = vmatpush1.msra.mxu0 0.0
    %6781 = vmatprep.subr.mxu0 0.0
    %6782 = vmatpush1.msra.mxu0 0.0
    %6783 = vmatprep.subr.mxu0 0.0
    %6784 = vmatpush1.msra.mxu0 0.0
    %6785 = vmatprep.subr.mxu0 0.0
    %6786 = vmatpush1.msra.mxu0 0.0
    %6787 = vmatprep.subr.mxu0 0.0
    %6788 = vmatpush1.msra.mxu0 0.0
    %6789 = vmatprep.subr.mxu0 0.0
    %6790 = vmatpush1.msra.mxu0 0.0
    %6791 = vmatprep.subr.mxu0 0.0
    %6792 = vmatpush1.msra.mxu0 0.0
    %6793 = vmatprep.subr.mxu0 0.0
    %6794 = vmatpush1.msra.mxu0 0.0
    %6795 = vmatprep.subr.mxu0 0.0
    %6796 = vmatpush1.msra.mxu0 0.0
    %6797 = vmatprep.subr.mxu0 0.0
    %6798 = vmatpush1.msra.mxu0 0.0
    %6799 = vmatprep.subr.mxu0 0.0
    %6800 = vmatpush1.msra.mxu0 0.0
    %6801 = vmatprep.mubr.f32.mxu0 0.0
    %6802 = vmatmul.mubr.f32.gmra.mrb[0].mxu0 %v6735
    %v6803 = vpop.f32.mrb[0].mxu0
    %v6804 = vadd.f32 0.0, %v6803
    %v6805 = vpop.f32.mrb[0].mxu0
    %6806 = vdwg.mxu0
    %v6807 = vmul.f32 %v6804, %v6804
    %v6808 = vsel %vm508, %v6807, 0.0
    %6809 = vadd.xlane.f32.xlu0 %v6808
    %v6810 = vpop.xlane.xlu0 %6809
    %v6811 = vmul.f32 %v6810, %v614
    %v6812 = vadd.f32 %v6811, 1e-05
    %v6813 = vrsqrt.pop %v6812
    %v6814 = vmul.f32 %v6804, %v6813
    %v6815 = vmul.f32 %v6814, %v6002
    %6817 = vrot.lane.b32.xlu0 %v6815, 24
    %v6818 = vpop.permute.xlu0 %6817
    %6820 = vst.msk [vmem:[#allocation2] sm:$0xff] %vm1440, %v6818
    %6822 = vrot.lane.b32.xlu0 %v5732, 96
    %v6823 = vpop.permute.xlu0 %6822
    %v6824 = vsel %vm353, %v5732, 0
    %v6826 = vsel %vm353, %v6823, 0
    %6828 = vmatprep.subr.mxu0 0.0
    %6829 = vmatpush1.xpose.msra.mxu0 %v6826
    %6830 = vmatprep.subr.mxu0 0.0
    %6831 = vmatpush1.xpose.msra.mxu0 0.0
    %6832 = vmatprep.subr.mxu0 0.0
    %6833 = vmatpush1.xpose.msra.mxu0 0.0
    %6834 = vmatprep.subr.mxu0 0.0
    %6835 = vmatpush1.xpose.msra.mxu0 0.0
    %6836 = vmatprep.subr.mxu0 0.0
    %6837 = vmatpush1.xpose.msra.mxu0 0.0
    %6838 = vmatprep.subr.mxu0 0.0
    %6839 = vmatpush1.xpose.msra.mxu0 0.0
    %6840 = vmatprep.subr.mxu0 0.0
    %6841 = vmatpush1.xpose.msra.mxu0 0.0
    %6842 = vmatprep.subr.mxu0 0.0
    %6843 = vmatpush1.xpose.msra.mxu0 0.0
    %6844 = vmatprep.subr.mxu0 0.0
    %6845 = vmatpush1.xpose.msra.mxu0 0.0
    %6846 = vmatprep.subr.mxu0 0.0
    %6847 = vmatpush1.xpose.msra.mxu0 0.0
    %6848 = vmatprep.subr.mxu0 0.0
    %6849 = vmatpush1.xpose.msra.mxu0 0.0
    %6850 = vmatprep.subr.mxu0 0.0
    %6851 = vmatpush1.xpose.msra.mxu0 0.0
    %6852 = vmatprep.subr.mxu0 0.0
    %6853 = vmatpush1.xpose.msra.mxu0 0.0
    %6854 = vmatprep.subr.mxu0 0.0
    %6855 = vmatpush1.xpose.msra.mxu0 0.0
    %6856 = vmatprep.subr.mxu0 0.0
    %6857 = vmatpush1.xpose.msra.mxu0 0.0
    %6858 = vmatprep.subr.mxu0 0.0
    %6859 = vmatpush1.xpose.msra.mxu0 0.0
    %6860 = vmatprep.subr.mxu0 0.0
    %6861 = vmatpush1.xpose.msra.mxu0 0.0
    %6862 = vmatprep.subr.mxu0 0.0
    %6863 = vmatpush1.xpose.msra.mxu0 0.0
    %6864 = vmatprep.subr.mxu0 0.0
    %6865 = vmatpush1.xpose.msra.mxu0 0.0
    %6866 = vmatprep.subr.mxu0 0.0
    %6867 = vmatpush1.xpose.msra.mxu0 0.0
    %6868 = vmatprep.subr.mxu0 0.0
    %6869 = vmatpush1.xpose.msra.mxu0 0.0
    %6870 = vmatprep.subr.mxu0 0.0
    %6871 = vmatpush1.xpose.msra.mxu0 0.0
    %6872 = vmatprep.subr.mxu0 0.0
    %6873 = vmatpush1.xpose.msra.mxu0 0.0
    %6874 = vmatprep.subr.mxu0 0.0
    %6875 = vmatpush1.xpose.msra.mxu0 0.0
    %6876 = vmatprep.subr.mxu0 0.0
    %6877 = vmatpush1.xpose.msra.mxu0 0.0
    %6878 = vmatprep.subr.mxu0 0.0
    %6879 = vmatpush1.xpose.msra.mxu0 0.0
    %6880 = vmatprep.subr.mxu0 0.0
    %6881 = vmatpush1.xpose.msra.mxu0 0.0
    %6882 = vmatprep.subr.mxu0 0.0
    %6883 = vmatpush1.xpose.msra.mxu0 0.0
    %6884 = vmatprep.subr.mxu0 0.0
    %6885 = vmatpush1.xpose.msra.mxu0 0.0
    %6886 = vmatprep.subr.mxu0 0.0
    %6887 = vmatpush1.xpose.msra.mxu0 0.0
    %6888 = vmatprep.subr.mxu0 0.0
    %6889 = vmatpush1.xpose.msra.mxu0 0.0
    %6890 = vmatprep.subr.mxu0 0.0
    %6891 = vmatpush1.xpose.msra.mxu0 0.0
    %6892 = vmatprep.mubr.f32.mxu0 0.0
    %6893 = vmatmul.mubr.f32.gmra.mrb[0].mxu0 %v6824
    %v6894 = vpop.f32.mrb[0].mxu0
    %v6895 = vadd.f32 0.0, %v6894
    %v6896 = vpop.f32.mrb[0].mxu0
    %6897 = vdwg.mxu0
    %v6898 = vmul.f32 %v6895, 0.5
    %6899 = vrot.lane.b32.xlu0 %v5732, 124
    %v6900 = vpop.permute.xlu0 %6899
    %6901 = vrot.lane.b32.xlu0 %v5732, 92
    %v6902 = vpop.permute.xlu0 %6901
    %v6903 = vsel %vm353, %v6900, 0
    %v6905 = vsel %vm353, %v6902, 0
    %6907 = vmatprep.subr.mxu0 0.0
    %6908 = vmatpush1.xpose.msra.mxu0 %v6905
    %6909 = vmatprep.subr.mxu0 0.0
    %6910 = vmatpush1.xpose.msra.mxu0 0.0
    %6911 = vmatprep.subr.mxu0 0.0
    %6912 = vmatpush1.xpose.msra.mxu0 0.0
    %6913 = vmatprep.subr.mxu0 0.0
    %6914 = vmatpush1.xpose.msra.mxu0 0.0
    %6915 = vmatprep.subr.mxu0 0.0
    %6916 = vmatpush1.xpose.msra.mxu0 0.0
    %6917 = vmatprep.subr.mxu0 0.0
    %6918 = vmatpush1.xpose.msra.mxu0 0.0
    %6919 = vmatprep.subr.mxu0 0.0
    %6920 = vmatpush1.xpose.msra.mxu0 0.0
    %6921 = vmatprep.subr.mxu0 0.0
    %6922 = vmatpush1.xpose.msra.mxu0 0.0
    %6923 = vmatprep.subr.mxu0 0.0
    %6924 = vmatpush1.xpose.msra.mxu0 0.0
    %6925 = vmatprep.subr.mxu0 0.0
    %6926 = vmatpush1.xpose.msra.mxu0 0.0
    %6927 = vmatprep.subr.mxu0 0.0
    %6928 = vmatpush1.xpose.msra.mxu0 0.0
    %6929 = vmatprep.subr.mxu0 0.0
    %6930 = vmatpush1.xpose.msra.mxu0 0.0
    %6931 = vmatprep.subr.mxu0 0.0
    %6932 = vmatpush1.xpose.msra.mxu0 0.0
    %6933 = vmatprep.subr.mxu0 0.0
    %6934 = vmatpush1.xpose.msra.mxu0 0.0
    %6935 = vmatprep.subr.mxu0 0.0
    %6936 = vmatpush1.xpose.msra.mxu0 0.0
    %6937 = vmatprep.subr.mxu0 0.0
    %6938 = vmatpush1.xpose.msra.mxu0 0.0
    %6939 = vmatprep.subr.mxu0 0.0
    %6940 = vmatpush1.xpose.msra.mxu0 0.0
    %6941 = vmatprep.subr.mxu0 0.0
    %6942 = vmatpush1.xpose.msra.mxu0 0.0
    %6943 = vmatprep.subr.mxu0 0.0
    %6944 = vmatpush1.xpose.msra.mxu0 0.0
    %6945 = vmatprep.subr.mxu0 0.0
    %6946 = vmatpush1.xpose.msra.mxu0 0.0
    %6947 = vmatprep.subr.mxu0 0.0
    %6948 = vmatpush1.xpose.msra.mxu0 0.0
    %6949 = vmatprep.subr.mxu0 0.0
    %6950 = vmatpush1.xpose.msra.mxu0 0.0
    %6951 = vmatprep.subr.mxu0 0.0
    %6952 = vmatpush1.xpose.msra.mxu0 0.0
    %6953 = vmatprep.subr.mxu0 0.0
    %6954 = vmatpush1.xpose.msra.mxu0 0.0
    %6955 = vmatprep.subr.mxu0 0.0
    %6956 = vmatpush1.xpose.msra.mxu0 0.0
    %6957 = vmatprep.subr.mxu0 0.0
    %6958 = vmatpush1.xpose.msra.mxu0 0.0
    %6959 = vmatprep.subr.mxu0 0.0
    %6960 = vmatpush1.xpose.msra.mxu0 0.0
    %6961 = vmatprep.subr.mxu0 0.0
    %6962 = vmatpush1.xpose.msra.mxu0 0.0
    %6963 = vmatprep.subr.mxu0 0.0
    %6964 = vmatpush1.xpose.msra.mxu0 0.0
    %6965 = vmatprep.subr.mxu0 0.0
    %6966 = vmatpush1.xpose.msra.mxu0 0.0
    %6967 = vmatprep.subr.mxu0 0.0
    %6968 = vmatpush1.xpose.msra.mxu0 0.0
    %6969 = vmatprep.subr.mxu0 0.0
    %6970 = vmatpush1.xpose.msra.mxu0 0.0
    %6971 = vmatprep.mubr.f32.mxu0 0.0
    %6972 = vmatmul.mubr.f32.gmra.mrb[0].mxu0 %v6903
    %v6973 = vpop.f32.mrb[0].mxu0
    %v6974 = vadd.f32 0.0, %v6973
    %v6975 = vpop.f32.mrb[0].mxu0
    %6976 = vdwg.mxu0
    %v6977 = vmul.f32 %v6974, 0.5
    %v6978 = vsel %vm508, %v6898, -inf
    %6979 = vmax.xlane.f32.xlu0 %v6978
    %v6980 = vpop.xlane.xlu0 %6979
    %v6981 = vsub.f32 %v6898, %v6980
    %v6982 = vmul.f32 %v6981, 1.442695
    %v6983 = vpow.pop %v6982
    %v6984 = vsel %vm508, %v6983, 0.0
    %6985 = vadd.xlane.f32.xlu0 %v6984
    %v6986 = vpop.xlane.xlu0 %6985
    %v6987 = vrcp.pop %v6986
    %v6988 = vmul.f32 %v6983, %v6987
    %v6989 = vsel %vm508, %v6977, -inf
    %6990 = vmax.xlane.f32.xlu0 %v6989
    %v6991 = vpop.xlane.xlu0 %6990
    %v6992 = vsub.f32 %v6977, %v6991
    %v6993 = vmul.f32 %v6992, 1.442695
    %v6994 = vpow.pop %v6993
    %v6995 = vsel %vm508, %v6994, 0.0
    %6996 = vadd.xlane.f32.xlu0 %v6995
    %v6997 = vpop.xlane.xlu0 %6996
    %v6998 = vrcp.pop %v6997
    %v6999 = vmul.f32 %v6994, %v6998
    %v7000 = vmul.f32 %v5914, %v6999
    %v7001 = vsub.f32 %v6988, %v7000
    %7002 = vrot.lane.b32.xlu0 %v5732, 64
    %v7003 = vpop.permute.xlu0 %7002
    %v7006 = vsel %vm508, %v7001, 0
    %7008 = vmatprep.subr.mxu0 0.0
    %7009 = vmatpush1.msra.mxu0 %v7003
    %7010 = vmatprep.subr.mxu0 0.0
    %7011 = vmatpush1.msra.mxu0 0.0
    %7012 = vmatprep.subr.mxu0 0.0
    %7013 = vmatpush1.msra.mxu0 0.0
    %7014 = vmatprep.subr.mxu0 0.0
    %7015 = vmatpush1.msra.mxu0 0.0
    %7016 = vmatprep.subr.mxu0 0.0
    %7017 = vmatpush1.msra.mxu0 0.0
    %7018 = vmatprep.subr.mxu0 0.0
    %7019 = vmatpush1.msra.mxu0 0.0
    %7020 = vmatprep.subr.mxu0 0.0
    %7021 = vmatpush1.msra.mxu0 0.0
    %7022 = vmatprep.subr.mxu0 0.0
    %7023 = vmatpush1.msra.mxu0 0.0
    %7024 = vmatprep.subr.mxu0 0.0
    %7025 = vmatpush1.msra.mxu0 0.0
    %7026 = vmatprep.subr.mxu0 0.0
    %7027 = vmatpush1.msra.mxu0 0.0
    %7028 = vmatprep.subr.mxu0 0.0
    %7029 = vmatpush1.msra.mxu0 0.0
    %7030 = vmatprep.subr.mxu0 0.0
    %7031 = vmatpush1.msra.mxu0 0.0
    %7032 = vmatprep.subr.mxu0 0.0
    %7033 = vmatpush1.msra.mxu0 0.0
    %7034 = vmatprep.subr.mxu0 0.0
    %7035 = vmatpush1.msra.mxu0 0.0
    %7036 = vmatprep.subr.mxu0 0.0
    %7037 = vmatpush1.msra.mxu0 0.0
    %7038 = vmatprep.subr.mxu0 0.0
    %7039 = vmatpush1.msra.mxu0 0.0
    %7040 = vmatprep.subr.mxu0 0.0
    %7041 = vmatpush1.msra.mxu0 0.0
    %7042 = vmatprep.subr.mxu0 0.0
    %7043 = vmatpush1.msra.mxu0 0.0
    %7044 = vmatprep.subr.mxu0 0.0
    %7045 = vmatpush1.msra.mxu0 0.0
    %7046 = vmatprep.subr.mxu0 0.0
    %7047 = vmatpush1.msra.mxu0 0.0
    %7048 = vmatprep.subr.mxu0 0.0
    %7049 = vmatpush1.msra.mxu0 0.0
    %7050 = vmatprep.subr.mxu0 0.0
    %7051 = vmatpush1.msra.mxu0 0.0
    %7052 = vmatprep.subr.mxu0 0.0
    %7053 = vmatpush1.msra.mxu0 0.0
    %7054 = vmatprep.subr.mxu0 0.0
    %7055 = vmatpush1.msra.mxu0 0.0
    %7056 = vmatprep.subr.mxu0 0.0
    %7057 = vmatpush1.msra.mxu0 0.0
    %7058 = vmatprep.subr.mxu0 0.0
    %7059 = vmatpush1.msra.mxu0 0.0
    %7060 = vmatprep.subr.mxu0 0.0
    %7061 = vmatpush1.msra.mxu0 0.0
    %7062 = vmatprep.subr.mxu0 0.0
    %7063 = vmatpush1.msra.mxu0 0.0
    %7064 = vmatprep.subr.mxu0 0.0
    %7065 = vmatpush1.msra.mxu0 0.0
    %7066 = vmatprep.subr.mxu0 0.0
    %7067 = vmatpush1.msra.mxu0 0.0
    %7068 = vmatprep.subr.mxu0 0.0
    %7069 = vmatpush1.msra.mxu0 0.0
    %7070 = vmatprep.subr.mxu0 0.0
    %7071 = vmatpush1.msra.mxu0 0.0
    %7072 = vmatprep.mubr.f32.mxu0 0.0
    %7073 = vmatmul.mubr.f32.gmra.mrb[0].mxu0 %v7006
    %v7074 = vpop.f32.mrb[0].mxu0
    %v7075 = vadd.f32 0.0, %v7074
    %v7076 = vpop.f32.mrb[0].mxu0
    %7077 = vdwg.mxu0
    %v7078 = vmul.f32 %v7075, %v7075
    %v7079 = vsel %vm508, %v7078, 0.0
    %7080 = vadd.xlane.f32.xlu0 %v7079
    %v7081 = vpop.xlane.xlu0 %7080
    %v7082 = vmul.f32 %v7081, %v614
    %v7083 = vadd.f32 %v7082, 1e-05
    %v7084 = vrsqrt.pop %v7083
    %v7085 = vmul.f32 %v7075, %v7084
    %v7086 = vmul.f32 %v7085, %v6002
    %7087 = vst.msk [vmem:[#allocation2 + $0x8] sm:$0xff] %vm508, %v7086
    %7088 = vrot.lane.b32.xlu0 %v5732, 120
    %v7089 = vpop.permute.xlu0 %7088
    %7090 = vrot.lane.b32.xlu0 %v5732, 88
    %v7091 = vpop.permute.xlu0 %7090
    %v7092 = vsel %vm353, %v7089, 0
    %v7094 = vsel %vm353, %v7091, 0
    %7096 = vmatprep.subr.mxu0 0.0
    %7097 = vmatpush1.xpose.msra.mxu0 %v7094
    %7098 = vmatprep.subr.mxu0 0.0
    %7099 = vmatpush1.xpose.msra.mxu0 0.0
    %7100 = vmatprep.subr.mxu0 0.0
    %7101 = vmatpush1.xpose.msra.mxu0 0.0
    %7102 = vmatprep.subr.mxu0 0.0
    %7103 = vmatpush1.xpose.msra.mxu0 0.0
    %7104 = vmatprep.subr.mxu0 0.0
    %7105 = vmatpush1.xpose.msra.mxu0 0.0
    %7106 = vmatprep.subr.mxu0 0.0
    %7107 = vmatpush1.xpose.msra.mxu0 0.0
    %7108 = vmatprep.subr.mxu0 0.0
    %7109 = vmatpush1.xpose.msra.mxu0 0.0
    %7110 = vmatprep.subr.mxu0 0.0
    %7111 = vmatpush1.xpose.msra.mxu0 0.0
    %7112 = vmatprep.subr.mxu0 0.0
    %7113 = vmatpush1.xpose.msra.mxu0 0.0
    %7114 = vmatprep.subr.mxu0 0.0
    %7115 = vmatpush1.xpose.msra.mxu0 0.0
    %7116 = vmatprep.subr.mxu0 0.0
    %7117 = vmatpush1.xpose.msra.mxu0 0.0
    %7118 = vmatprep.subr.mxu0 0.0
    %7119 = vmatpush1.xpose.msra.mxu0 0.0
    %7120 = vmatprep.subr.mxu0 0.0
    %7121 = vmatpush1.xpose.msra.mxu0 0.0
    %7122 = vmatprep.subr.mxu0 0.0
    %7123 = vmatpush1.xpose.msra.mxu0 0.0
    %7124 = vmatprep.subr.mxu0 0.0
    %7125 = vmatpush1.xpose.msra.mxu0 0.0
    %7126 = vmatprep.subr.mxu0 0.0
    %7127 = vmatpush1.xpose.msra.mxu0 0.0
    %7128 = vmatprep.subr.mxu0 0.0
    %7129 = vmatpush1.xpose.msra.mxu0 0.0
    %7130 = vmatprep.subr.mxu0 0.0
    %7131 = vmatpush1.xpose.msra.mxu0 0.0
    %7132 = vmatprep.subr.mxu0 0.0
    %7133 = vmatpush1.xpose.msra.mxu0 0.0
    %7134 = vmatprep.subr.mxu0 0.0
    %7135 = vmatpush1.xpose.msra.mxu0 0.0
    %7136 = vmatprep.subr.mxu0 0.0
    %7137 = vmatpush1.xpose.msra.mxu0 0.0
    %7138 = vmatprep.subr.mxu0 0.0
    %7139 = vmatpush1.xpose.msra.mxu0 0.0
    %7140 = vmatprep.subr.mxu0 0.0
    %7141 = vmatpush1.xpose.msra.mxu0 0.0
    %7142 = vmatprep.subr.mxu0 0.0
    %7143 = vmatpush1.xpose.msra.mxu0 0.0
    %7144 = vmatprep.subr.mxu0 0.0
    %7145 = vmatpush1.xpose.msra.mxu0 0.0
    %7146 = vmatprep.subr.mxu0 0.0
    %7147 = vmatpush1.xpose.msra.mxu0 0.0
    %7148 = vmatprep.subr.mxu0 0.0
    %7149 = vmatpush1.xpose.msra.mxu0 0.0
    %7150 = vmatprep.subr.mxu0 0.0
    %7151 = vmatpush1.xpose.msra.mxu0 0.0
    %7152 = vmatprep.subr.mxu0 0.0
    %7153 = vmatpush1.xpose.msra.mxu0 0.0
    %7154 = vmatprep.subr.mxu0 0.0
    %7155 = vmatpush1.xpose.msra.mxu0 0.0
    %7156 = vmatprep.subr.mxu0 0.0
    %7157 = vmatpush1.xpose.msra.mxu0 0.0
    %7158 = vmatprep.subr.mxu0 0.0
    %7159 = vmatpush1.xpose.msra.mxu0 0.0
    %7160 = vmatprep.mubr.f32.mxu0 0.0
    %7161 = vmatmul.mubr.f32.gmra.mrb[0].mxu0 %v7092
    %v7162 = vpop.f32.mrb[0].mxu0
    %v7163 = vadd.f32 0.0, %v7162
    %v7164 = vpop.f32.mrb[0].mxu0
    %7165 = vdwg.mxu0
    %v7166 = vmul.f32 %v7163, 0.5
    %7167 = vrot.lane.b32.xlu0 %v5732, 116
    %v7168 = vpop.permute.xlu0 %7167
    %7169 = vrot.lane.b32.xlu0 %v5732, 84
    %v7170 = vpop.permute.xlu0 %7169
    %v7171 = vsel %vm353, %v7168, 0
    %v7173 = vsel %vm353, %v7170, 0
    %7175 = vmatprep.subr.mxu0 0.0
    %7176 = vmatpush1.xpose.msra.mxu0 %v7173
    %7177 = vmatprep.subr.mxu0 0.0
    %7178 = vmatpush1.xpose.msra.mxu0 0.0
    %7179 = vmatprep.subr.mxu0 0.0
    %7180 = vmatpush1.xpose.msra.mxu0 0.0
    %7181 = vmatprep.subr.mxu0 0.0
    %7182 = vmatpush1.xpose.msra.mxu0 0.0
    %7183 = vmatprep.subr.mxu0 0.0
    %7184 = vmatpush1.xpose.msra.mxu0 0.0
    %7185 = vmatprep.subr.mxu0 0.0
    %7186 = vmatpush1.xpose.msra.mxu0 0.0
    %7187 = vmatprep.subr.mxu0 0.0
    %7188 = vmatpush1.xpose.msra.mxu0 0.0
    %7189 = vmatprep.subr.mxu0 0.0
    %7190 = vmatpush1.xpose.msra.mxu0 0.0
    %7191 = vmatprep.subr.mxu0 0.0
    %7192 = vmatpush1.xpose.msra.mxu0 0.0
    %7193 = vmatprep.subr.mxu0 0.0
    %7194 = vmatpush1.xpose.msra.mxu0 0.0
    %7195 = vmatprep.subr.mxu0 0.0
    %7196 = vmatpush1.xpose.msra.mxu0 0.0
    %7197 = vmatprep.subr.mxu0 0.0
    %7198 = vmatpush1.xpose.msra.mxu0 0.0
    %7199 = vmatprep.subr.mxu0 0.0
    %7200 = vmatpush1.xpose.msra.mxu0 0.0
    %7201 = vmatprep.subr.mxu0 0.0
    %7202 = vmatpush1.xpose.msra.mxu0 0.0
    %7203 = vmatprep.subr.mxu0 0.0
    %7204 = vmatpush1.xpose.msra.mxu0 0.0
    %7205 = vmatprep.subr.mxu0 0.0
    %7206 = vmatpush1.xpose.msra.mxu0 0.0
    %7207 = vmatprep.subr.mxu0 0.0
    %7208 = vmatpush1.xpose.msra.mxu0 0.0
    %7209 = vmatprep.subr.mxu0 0.0
    %7210 = vmatpush1.xpose.msra.mxu0 0.0
    %7211 = vmatprep.subr.mxu0 0.0
    %7212 = vmatpush1.xpose.msra.mxu0 0.0
    %7213 = vmatprep.subr.mxu0 0.0
    %7214 = vmatpush1.xpose.msra.mxu0 0.0
    %7215 = vmatprep.subr.mxu0 0.0
    %7216 = vmatpush1.xpose.msra.mxu0 0.0
    %7217 = vmatprep.subr.mxu0 0.0
    %7218 = vmatpush1.xpose.msra.mxu0 0.0
    %7219 = vmatprep.subr.mxu0 0.0
    %7220 = vmatpush1.xpose.msra.mxu0 0.0
    %7221 = vmatprep.subr.mxu0 0.0
    %7222 = vmatpush1.xpose.msra.mxu0 0.0
    %7223 = vmatprep.subr.mxu0 0.0
    %7224 = vmatpush1.xpose.msra.mxu0 0.0
    %7225 = vmatprep.subr.mxu0 0.0
    %7226 = vmatpush1.xpose.msra.mxu0 0.0
    %7227 = vmatprep.subr.mxu0 0.0
    %7228 = vmatpush1.xpose.msra.mxu0 0.0
    %7229 = vmatprep.subr.mxu0 0.0
    %7230 = vmatpush1.xpose.msra.mxu0 0.0
    %7231 = vmatprep.subr.mxu0 0.0
    %7232 = vmatpush1.xpose.msra.mxu0 0.0
    %7233 = vmatprep.subr.mxu0 0.0
    %7234 = vmatpush1.xpose.msra.mxu0 0.0
    %7235 = vmatprep.subr.mxu0 0.0
    %7236 = vmatpush1.xpose.msra.mxu0 0.0
    %7237 = vmatprep.subr.mxu0 0.0
    %7238 = vmatpush1.xpose.msra.mxu0 0.0
    %7239 = vmatprep.mubr.f32.mxu0 0.0
    %7240 = vmatmul.mubr.f32.gmra.mrb[0].mxu0 %v7171
    %v7241 = vpop.f32.mrb[0].mxu0
    %v7242 = vadd.f32 0.0, %v7241
    %v7243 = vpop.f32.mrb[0].mxu0
    %7244 = vdwg.mxu0
    %v7245 = vmul.f32 %v7242, 0.5
    %v7246 = vsel %vm508, %v7166, -inf
    %7247 = vmax.xlane.f32.xlu0 %v7246
    %v7248 = vpop.xlane.xlu0 %7247
    %v7249 = vsub.f32 %v7166, %v7248
    %v7250 = vmul.f32 %v7249, 1.442695
    %v7251 = vpow.pop %v7250
    %v7252 = vsel %vm508, %v7251, 0.0
    %7253 = vadd.xlane.f32.xlu0 %v7252
    %v7254 = vpop.xlane.xlu0 %7253
    %v7255 = vrcp.pop %v7254
    %v7256 = vmul.f32 %v7251, %v7255
    %v7257 = vsel %vm508, %v7245, -inf
    %7258 = vmax.xlane.f32.xlu0 %v7257
    %v7259 = vpop.xlane.xlu0 %7258
    %v7260 = vsub.f32 %v7245, %v7259
    %v7261 = vmul.f32 %v7260, 1.442695
    %v7262 = vpow.pop %v7261
    %v7263 = vsel %vm508, %v7262, 0.0
    %7264 = vadd.xlane.f32.xlu0 %v7263
    %v7265 = vpop.xlane.xlu0 %7264
    %v7266 = vrcp.pop %v7265
    %v7267 = vmul.f32 %v7262, %v7266
    %v7268 = vmul.f32 %v5914, %v7267
    %v7269 = vsub.f32 %v7256, %v7268
    %7270 = vrot.lane.b32.xlu0 %v5732, 56
    %v7271 = vpop.permute.xlu0 %7270
    %v7274 = vsel %vm508, %v7269, 0
    %7276 = vmatprep.subr.mxu0 0.0
    %7277 = vmatpush1.msra.mxu0 %v7271
    %7278 = vmatprep.subr.mxu0 0.0
    %7279 = vmatpush1.msra.mxu0 0.0
    %7280 = vmatprep.subr.mxu0 0.0
    %7281 = vmatpush1.msra.mxu0 0.0
    %7282 = vmatprep.subr.mxu0 0.0
    %7283 = vmatpush1.msra.mxu0 0.0
    %7284 = vmatprep.subr.mxu0 0.0
    %7285 = vmatpush1.msra.mxu0 0.0
    %7286 = vmatprep.subr.mxu0 0.0
    %7287 = vmatpush1.msra.mxu0 0.0
    %7288 = vmatprep.subr.mxu0 0.0
    %7289 = vmatpush1.msra.mxu0 0.0
    %7290 = vmatprep.subr.mxu0 0.0
    %7291 = vmatpush1.msra.mxu0 0.0
    %7292 = vmatprep.subr.mxu0 0.0
    %7293 = vmatpush1.msra.mxu0 0.0
    %7294 = vmatprep.subr.mxu0 0.0
    %7295 = vmatpush1.msra.mxu0 0.0
    %7296 = vmatprep.subr.mxu0 0.0
    %7297 = vmatpush1.msra.mxu0 0.0
    %7298 = vmatprep.subr.mxu0 0.0
    %7299 = vmatpush1.msra.mxu0 0.0
    %7300 = vmatprep.subr.mxu0 0.0
    %7301 = vmatpush1.msra.mxu0 0.0
    %7302 = vmatprep.subr.mxu0 0.0
    %7303 = vmatpush1.msra.mxu0 0.0
    %7304 = vmatprep.subr.mxu0 0.0
    %7305 = vmatpush1.msra.mxu0 0.0
    %7306 = vmatprep.subr.mxu0 0.0
    %7307 = vmatpush1.msra.mxu0 0.0
    %7308 = vmatprep.subr.mxu0 0.0
    %7309 = vmatpush1.msra.mxu0 0.0
    %7310 = vmatprep.subr.mxu0 0.0
    %7311 = vmatpush1.msra.mxu0 0.0
    %7312 = vmatprep.subr.mxu0 0.0
    %7313 = vmatpush1.msra.mxu0 0.0
    %7314 = vmatprep.subr.mxu0 0.0
    %7315 = vmatpush1.msra.mxu0 0.0
    %7316 = vmatprep.subr.mxu0 0.0
    %7317 = vmatpush1.msra.mxu0 0.0
    %7318 = vmatprep.subr.mxu0 0.0
    %7319 = vmatpush1.msra.mxu0 0.0
    %7320 = vmatprep.subr.mxu0 0.0
    %7321 = vmatpush1.msra.mxu0 0.0
    %7322 = vmatprep.subr.mxu0 0.0
    %7323 = vmatpush1.msra.mxu0 0.0
    %7324 = vmatprep.subr.mxu0 0.0
    %7325 = vmatpush1.msra.mxu0 0.0
    %7326 = vmatprep.subr.mxu0 0.0
    %7327 = vmatpush1.msra.mxu0 0.0
    %7328 = vmatprep.subr.mxu0 0.0
    %7329 = vmatpush1.msra.mxu0 0.0
    %7330 = vmatprep.subr.mxu0 0.0
    %7331 = vmatpush1.msra.mxu0 0.0
    %7332 = vmatprep.subr.mxu0 0.0
    %7333 = vmatpush1.msra.mxu0 0.0
    %7334 = vmatprep.subr.mxu0 0.0
    %7335 = vmatpush1.msra.mxu0 0.0
    %7336 = vmatprep.subr.mxu0 0.0
    %7337 = vmatpush1.msra.mxu0 0.0
    %7338 = vmatprep.subr.mxu0 0.0
    %7339 = vmatpush1.msra.mxu0 0.0
    %7340 = vmatprep.mubr.f32.mxu0 0.0
    %7341 = vmatmul.mubr.f32.gmra.mrb[0].mxu0 %v7274
    %v7342 = vpop.f32.mrb[0].mxu0
    %v7343 = vadd.f32 0.0, %v7342
    %v7344 = vpop.f32.mrb[0].mxu0
    %7345 = vdwg.mxu0
    %v7346 = vmul.f32 %v7343, %v7343
    %v7347 = vsel %vm508, %v7346, 0.0
    %7348 = vadd.xlane.f32.xlu0 %v7347
    %v7349 = vpop.xlane.xlu0 %7348
    %v7350 = vmul.f32 %v7349, %v614
    %v7351 = vadd.f32 %v7350, 1e-05
    %v7352 = vrsqrt.pop %v7351
    %v7353 = vmul.f32 %v7343, %v7352
    %v7354 = vmul.f32 %v7353, %v6002
    %7356 = vrot.lane.b32.xlu0 %v7354, 8
    %v7357 = vpop.permute.xlu0 %7356
    %7359 = vst.msk [vmem:[#allocation2 + $0x8] sm:$0xff] %vm894, %v7357
    %7360 = vrot.lane.b32.xlu0 %v5732, 112
    %v7361 = vpop.permute.xlu0 %7360
    %7362 = vrot.lane.b32.xlu0 %v5732, 80
    %v7363 = vpop.permute.xlu0 %7362
    %v7364 = vsel %vm353, %v7361, 0
    %v7366 = vsel %vm353, %v7363, 0
    %7368 = vmatprep.subr.mxu0 0.0
    %7369 = vmatpush1.xpose.msra.mxu0 %v7366
    %7370 = vmatprep.subr.mxu0 0.0
    %7371 = vmatpush1.xpose.msra.mxu0 0.0
    %7372 = vmatprep.subr.mxu0 0.0
    %7373 = vmatpush1.xpose.msra.mxu0 0.0
    %7374 = vmatprep.subr.mxu0 0.0
    %7375 = vmatpush1.xpose.msra.mxu0 0.0
    %7376 = vmatprep.subr.mxu0 0.0
    %7377 = vmatpush1.xpose.msra.mxu0 0.0
    %7378 = vmatprep.subr.mxu0 0.0
    %7379 = vmatpush1.xpose.msra.mxu0 0.0
    %7380 = vmatprep.subr.mxu0 0.0
    %7381 = vmatpush1.xpose.msra.mxu0 0.0
    %7382 = vmatprep.subr.mxu0 0.0
    %7383 = vmatpush1.xpose.msra.mxu0 0.0
    %7384 = vmatprep.subr.mxu0 0.0
    %7385 = vmatpush1.xpose.msra.mxu0 0.0
    %7386 = vmatprep.subr.mxu0 0.0
    %7387 = vmatpush1.xpose.msra.mxu0 0.0
    %7388 = vmatprep.subr.mxu0 0.0
    %7389 = vmatpush1.xpose.msra.mxu0 0.0
    %7390 = vmatprep.subr.mxu0 0.0
    %7391 = vmatpush1.xpose.msra.mxu0 0.0
    %7392 = vmatprep.subr.mxu0 0.0
    %7393 = vmatpush1.xpose.msra.mxu0 0.0
    %7394 = vmatprep.subr.mxu0 0.0
    %7395 = vmatpush1.xpose.msra.mxu0 0.0
    %7396 = vmatprep.subr.mxu0 0.0
    %7397 = vmatpush1.xpose.msra.mxu0 0.0
    %7398 = vmatprep.subr.mxu0 0.0
    %7399 = vmatpush1.xpose.msra.mxu0 0.0
    %7400 = vmatprep.subr.mxu0 0.0
    %7401 = vmatpush1.xpose.msra.mxu0 0.0
    %7402 = vmatprep.subr.mxu0 0.0
    %7403 = vmatpush1.xpose.msra.mxu0 0.0
    %7404 = vmatprep.subr.mxu0 0.0
    %7405 = vmatpush1.xpose.msra.mxu0 0.0
    %7406 = vmatprep.subr.mxu0 0.0
    %7407 = vmatpush1.xpose.msra.mxu0 0.0
    %7408 = vmatprep.subr.mxu0 0.0
    %7409 = vmatpush1.xpose.msra.mxu0 0.0
    %7410 = vmatprep.subr.mxu0 0.0
    %7411 = vmatpush1.xpose.msra.mxu0 0.0
    %7412 = vmatprep.subr.mxu0 0.0
    %7413 = vmatpush1.xpose.msra.mxu0 0.0
    %7414 = vmatprep.subr.mxu0 0.0
    %7415 = vmatpush1.xpose.msra.mxu0 0.0
    %7416 = vmatprep.subr.mxu0 0.0
    %7417 = vmatpush1.xpose.msra.mxu0 0.0
    %7418 = vmatprep.subr.mxu0 0.0
    %7419 = vmatpush1.xpose.msra.mxu0 0.0
    %7420 = vmatprep.subr.mxu0 0.0
    %7421 = vmatpush1.xpose.msra.mxu0 0.0
    %7422 = vmatprep.subr.mxu0 0.0
    %7423 = vmatpush1.xpose.msra.mxu0 0.0
    %7424 = vmatprep.subr.mxu0 0.0
    %7425 = vmatpush1.xpose.msra.mxu0 0.0
    %7426 = vmatprep.subr.mxu0 0.0
    %7427 = vmatpush1.xpose.msra.mxu0 0.0
    %7428 = vmatprep.subr.mxu0 0.0
    %7429 = vmatpush1.xpose.msra.mxu0 0.0
    %7430 = vmatprep.subr.mxu0 0.0
    %7431 = vmatpush1.xpose.msra.mxu0 0.0
    %7432 = vmatprep.mubr.f32.mxu0 0.0
    %7433 = vmatmul.mubr.f32.gmra.mrb[0].mxu0 %v7364
    %v7434 = vpop.f32.mrb[0].mxu0
    %v7435 = vadd.f32 0.0, %v7434
    %v7436 = vpop.f32.mrb[0].mxu0
    %7437 = vdwg.mxu0
    %v7438 = vmul.f32 %v7435, 0.5
    %7439 = vrot.lane.b32.xlu0 %v5732, 108
    %v7440 = vpop.permute.xlu0 %7439
    %7441 = vrot.lane.b32.xlu0 %v5732, 76
    %v7442 = vpop.permute.xlu0 %7441
    %v7443 = vsel %vm353, %v7440, 0
    %v7445 = vsel %vm353, %v7442, 0
    %7447 = vmatprep.subr.mxu0 0.0
    %7448 = vmatpush1.xpose.msra.mxu0 %v7445
    %7449 = vmatprep.subr.mxu0 0.0
    %7450 = vmatpush1.xpose.msra.mxu0 0.0
    %7451 = vmatprep.subr.mxu0 0.0
    %7452 = vmatpush1.xpose.msra.mxu0 0.0
    %7453 = vmatprep.subr.mxu0 0.0
    %7454 = vmatpush1.xpose.msra.mxu0 0.0
    %7455 = vmatprep.subr.mxu0 0.0
    %7456 = vmatpush1.xpose.msra.mxu0 0.0
    %7457 = vmatprep.subr.mxu0 0.0
    %7458 = vmatpush1.xpose.msra.mxu0 0.0
    %7459 = vmatprep.subr.mxu0 0.0
    %7460 = vmatpush1.xpose.msra.mxu0 0.0
    %7461 = vmatprep.subr.mxu0 0.0
    %7462 = vmatpush1.xpose.msra.mxu0 0.0
    %7463 = vmatprep.subr.mxu0 0.0
    %7464 = vmatpush1.xpose.msra.mxu0 0.0
    %7465 = vmatprep.subr.mxu0 0.0
    %7466 = vmatpush1.xpose.msra.mxu0 0.0
    %7467 = vmatprep.subr.mxu0 0.0
    %7468 = vmatpush1.xpose.msra.mxu0 0.0
    %7469 = vmatprep.subr.mxu0 0.0
    %7470 = vmatpush1.xpose.msra.mxu0 0.0
    %7471 = vmatprep.subr.mxu0 0.0
    %7472 = vmatpush1.xpose.msra.mxu0 0.0
    %7473 = vmatprep.subr.mxu0 0.0
    %7474 = vmatpush1.xpose.msra.mxu0 0.0
    %7475 = vmatprep.subr.mxu0 0.0
    %7476 = vmatpush1.xpose.msra.mxu0 0.0
    %7477 = vmatprep.subr.mxu0 0.0
    %7478 = vmatpush1.xpose.msra.mxu0 0.0
    %7479 = vmatprep.subr.mxu0 0.0
    %7480 = vmatpush1.xpose.msra.mxu0 0.0
    %7481 = vmatprep.subr.mxu0 0.0
    %7482 = vmatpush1.xpose.msra.mxu0 0.0
    %7483 = vmatprep.subr.mxu0 0.0
    %7484 = vmatpush1.xpose.msra.mxu0 0.0
    %7485 = vmatprep.subr.mxu0 0.0
    %7486 = vmatpush1.xpose.msra.mxu0 0.0
    %7487 = vmatprep.subr.mxu0 0.0
    %7488 = vmatpush1.xpose.msra.mxu0 0.0
    %7489 = vmatprep.subr.mxu0 0.0
    %7490 = vmatpush1.xpose.msra.mxu0 0.0
    %7491 = vmatprep.subr.mxu0 0.0
    %7492 = vmatpush1.xpose.msra.mxu0 0.0
    %7493 = vmatprep.subr.mxu0 0.0
    %7494 = vmatpush1.xpose.msra.mxu0 0.0
    %7495 = vmatprep.subr.mxu0 0.0
    %7496 = vmatpush1.xpose.msra.mxu0 0.0
    %7497 = vmatprep.subr.mxu0 0.0
    %7498 = vmatpush1.xpose.msra.mxu0 0.0
    %7499 = vmatprep.subr.mxu0 0.0
    %7500 = vmatpush1.xpose.msra.mxu0 0.0
    %7501 = vmatprep.subr.mxu0 0.0
    %7502 = vmatpush1.xpose.msra.mxu0 0.0
    %7503 = vmatprep.subr.mxu0 0.0
    %7504 = vmatpush1.xpose.msra.mxu0 0.0
    %7505 = vmatprep.subr.mxu0 0.0
    %7506 = vmatpush1.xpose.msra.mxu0 0.0
    %7507 = vmatprep.subr.mxu0 0.0
    %7508 = vmatpush1.xpose.msra.mxu0 0.0
    %7509 = vmatprep.subr.mxu0 0.0
    %7510 = vmatpush1.xpose.msra.mxu0 0.0
    %7511 = vmatprep.mubr.f32.mxu0 0.0
    %7512 = vmatmul.mubr.f32.gmra.mrb[0].mxu0 %v7443
    %v7513 = vpop.f32.mrb[0].mxu0
    %v7514 = vadd.f32 0.0, %v7513
    %v7515 = vpop.f32.mrb[0].mxu0
    %7516 = vdwg.mxu0
    %v7517 = vmul.f32 %v7514, 0.5
    %v7518 = vsel %vm508, %v7438, -inf
    %7519 = vmax.xlane.f32.xlu0 %v7518
    %v7520 = vpop.xlane.xlu0 %7519
    %v7521 = vsub.f32 %v7438, %v7520
    %v7522 = vmul.f32 %v7521, 1.442695
    %v7523 = vpow.pop %v7522
    %v7524 = vsel %vm508, %v7523, 0.0
    %7525 = vadd.xlane.f32.xlu0 %v7524
    %v7526 = vpop.xlane.xlu0 %7525
    %v7527 = vrcp.pop %v7526
    %v7528 = vmul.f32 %v7523, %v7527
    %v7529 = vsel %vm508, %v7517, -inf
    %7530 = vmax.xlane.f32.xlu0 %v7529
    %v7531 = vpop.xlane.xlu0 %7530
    %v7532 = vsub.f32 %v7517, %v7531
    %v7533 = vmul.f32 %v7532, 1.442695
    %v7534 = vpow.pop %v7533
    %v7535 = vsel %vm508, %v7534, 0.0
    %7536 = vadd.xlane.f32.xlu0 %v7535
    %v7537 = vpop.xlane.xlu0 %7536
    %v7538 = vrcp.pop %v7537
    %v7539 = vmul.f32 %v7534, %v7538
    %v7540 = vmul.f32 %v5914, %v7539
    %v7541 = vsub.f32 %v7528, %v7540
    %7542 = vrot.lane.b32.xlu0 %v5732, 48
    %v7543 = vpop.permute.xlu0 %7542
    %v7546 = vsel %vm508, %v7541, 0
    %7548 = vmatprep.subr.mxu0 0.0
    %7549 = vmatpush1.msra.mxu0 %v7543
    %7550 = vmatprep.subr.mxu0 0.0
    %7551 = vmatpush1.msra.mxu0 0.0
    %7552 = vmatprep.subr.mxu0 0.0
    %7553 = vmatpush1.msra.mxu0 0.0
    %7554 = vmatprep.subr.mxu0 0.0
    %7555 = vmatpush1.msra.mxu0 0.0
    %7556 = vmatprep.subr.mxu0 0.0
    %7557 = vmatpush1.msra.mxu0 0.0
    %7558 = vmatprep.subr.mxu0 0.0
    %7559 = vmatpush1.msra.mxu0 0.0
    %7560 = vmatprep.subr.mxu0 0.0
    %7561 = vmatpush1.msra.mxu0 0.0
    %7562 = vmatprep.subr.mxu0 0.0
    %7563 = vmatpush1.msra.mxu0 0.0
    %7564 = vmatprep.subr.mxu0 0.0
    %7565 = vmatpush1.msra.mxu0 0.0
    %7566 = vmatprep.subr.mxu0 0.0
    %7567 = vmatpush1.msra.mxu0 0.0
    %7568 = vmatprep.subr.mxu0 0.0
    %7569 = vmatpush1.msra.mxu0 0.0
    %7570 = vmatprep.subr.mxu0 0.0
    %7571 = vmatpush1.msra.mxu0 0.0
    %7572 = vmatprep.subr.mxu0 0.0
    %7573 = vmatpush1.msra.mxu0 0.0
    %7574 = vmatprep.subr.mxu0 0.0
    %7575 = vmatpush1.msra.mxu0 0.0
    %7576 = vmatprep.subr.mxu0 0.0
    %7577 = vmatpush1.msra.mxu0 0.0
    %7578 = vmatprep.subr.mxu0 0.0
    %7579 = vmatpush1.msra.mxu0 0.0
    %7580 = vmatprep.subr.mxu0 0.0
    %7581 = vmatpush1.msra.mxu0 0.0
    %7582 = vmatprep.subr.mxu0 0.0
    %7583 = vmatpush1.msra.mxu0 0.0
    %7584 = vmatprep.subr.mxu0 0.0
    %7585 = vmatpush1.msra.mxu0 0.0
    %7586 = vmatprep.subr.mxu0 0.0
    %7587 = vmatpush1.msra.mxu0 0.0
    %7588 = vmatprep.subr.mxu0 0.0
    %7589 = vmatpush1.msra.mxu0 0.0
    %7590 = vmatprep.subr.mxu0 0.0
    %7591 = vmatpush1.msra.mxu0 0.0
    %7592 = vmatprep.subr.mxu0 0.0
    %7593 = vmatpush1.msra.mxu0 0.0
    %7594 = vmatprep.subr.mxu0 0.0
    %7595 = vmatpush1.msra.mxu0 0.0
    %7596 = vmatprep.subr.mxu0 0.0
    %7597 = vmatpush1.msra.mxu0 0.0
    %7598 = vmatprep.subr.mxu0 0.0
    %7599 = vmatpush1.msra.mxu0 0.0
    %7600 = vmatprep.subr.mxu0 0.0
    %7601 = vmatpush1.msra.mxu0 0.0
    %7602 = vmatprep.subr.mxu0 0.0
    %7603 = vmatpush1.msra.mxu0 0.0
    %7604 = vmatprep.subr.mxu0 0.0
    %7605 = vmatpush1.msra.mxu0 0.0
    %7606 = vmatprep.subr.mxu0 0.0
    %7607 = vmatpush1.msra.mxu0 0.0
    %7608 = vmatprep.subr.mxu0 0.0
    %7609 = vmatpush1.msra.mxu0 0.0
    %7610 = vmatprep.subr.mxu0 0.0
    %7611 = vmatpush1.msra.mxu0 0.0
    %7612 = vmatprep.mubr.f32.mxu0 0.0
    %7613 = vmatmul.mubr.f32.gmra.mrb[0].mxu0 %v7546
    %v7614 = vpop.f32.mrb[0].mxu0
    %v7615 = vadd.f32 0.0, %v7614
    %v7616 = vpop.f32.mrb[0].mxu0
    %7617 = vdwg.mxu0
    %v7618 = vmul.f32 %v7615, %v7615
    %v7619 = vsel %vm508, %v7618, 0.0
    %7620 = vadd.xlane.f32.xlu0 %v7619
    %v7621 = vpop.xlane.xlu0 %7620
    %v7622 = vmul.f32 %v7621, %v614
    %v7623 = vadd.f32 %v7622, 1e-05
    %v7624 = vrsqrt.pop %v7623
    %v7625 = vmul.f32 %v7615, %v7624
    %v7626 = vmul.f32 %v7625, %v6002
    %7628 = vrot.lane.b32.xlu0 %v7626, 16
    %v7629 = vpop.permute.xlu0 %7628
    %7631 = vst.msk [vmem:[#allocation2 + $0x8] sm:$0xff] %vm1167, %v7629
    %7632 = vrot.lane.b32.xlu0 %v5732, 104
    %v7633 = vpop.permute.xlu0 %7632
    %7634 = vrot.lane.b32.xlu0 %v5732, 72
    %v7635 = vpop.permute.xlu0 %7634
    %v7636 = vsel %vm353, %v7633, 0
    %v7638 = vsel %vm353, %v7635, 0
    %7640 = vmatprep.subr.mxu0 0.0
    %7641 = vmatpush1.xpose.msra.mxu0 %v7638
    %7642 = vmatprep.subr.mxu0 0.0
    %7643 = vmatpush1.xpose.msra.mxu0 0.0
    %7644 = vmatprep.subr.mxu0 0.0
    %7645 = vmatpush1.xpose.msra.mxu0 0.0
    %7646 = vmatprep.subr.mxu0 0.0
    %7647 = vmatpush1.xpose.msra.mxu0 0.0
    %7648 = vmatprep.subr.mxu0 0.0
    %7649 = vmatpush1.xpose.msra.mxu0 0.0
    %7650 = vmatprep.subr.mxu0 0.0
    %7651 = vmatpush1.xpose.msra.mxu0 0.0
    %7652 = vmatprep.subr.mxu0 0.0
    %7653 = vmatpush1.xpose.msra.mxu0 0.0
    %7654 = vmatprep.subr.mxu0 0.0
    %7655 = vmatpush1.xpose.msra.mxu0 0.0
    %7656 = vmatprep.subr.mxu0 0.0
    %7657 = vmatpush1.xpose.msra.mxu0 0.0
    %7658 = vmatprep.subr.mxu0 0.0
    %7659 = vmatpush1.xpose.msra.mxu0 0.0
    %7660 = vmatprep.subr.mxu0 0.0
    %7661 = vmatpush1.xpose.msra.mxu0 0.0
    %7662 = vmatprep.subr.mxu0 0.0
    %7663 = vmatpush1.xpose.msra.mxu0 0.0
    %7664 = vmatprep.subr.mxu0 0.0
    %7665 = vmatpush1.xpose.msra.mxu0 0.0
    %7666 = vmatprep.subr.mxu0 0.0
    %7667 = vmatpush1.xpose.msra.mxu0 0.0
    %7668 = vmatprep.subr.mxu0 0.0
    %7669 = vmatpush1.xpose.msra.mxu0 0.0
    %7670 = vmatprep.subr.mxu0 0.0
    %7671 = vmatpush1.xpose.msra.mxu0 0.0
    %7672 = vmatprep.subr.mxu0 0.0
    %7673 = vmatpush1.xpose.msra.mxu0 0.0
    %7674 = vmatprep.subr.mxu0 0.0
    %7675 = vmatpush1.xpose.msra.mxu0 0.0
    %7676 = vmatprep.subr.mxu0 0.0
    %7677 = vmatpush1.xpose.msra.mxu0 0.0
    %7678 = vmatprep.subr.mxu0 0.0
    %7679 = vmatpush1.xpose.msra.mxu0 0.0
    %7680 = vmatprep.subr.mxu0 0.0
    %7681 = vmatpush1.xpose.msra.mxu0 0.0
    %7682 = vmatprep.subr.mxu0 0.0
    %7683 = vmatpush1.xpose.msra.mxu0 0.0
    %7684 = vmatprep.subr.mxu0 0.0
    %7685 = vmatpush1.xpose.msra.mxu0 0.0
    %7686 = vmatprep.subr.mxu0 0.0
    %7687 = vmatpush1.xpose.msra.mxu0 0.0
    %7688 = vmatprep.subr.mxu0 0.0
    %7689 = vmatpush1.xpose.msra.mxu0 0.0
    %7690 = vmatprep.subr.mxu0 0.0
    %7691 = vmatpush1.xpose.msra.mxu0 0.0
    %7692 = vmatprep.subr.mxu0 0.0
    %7693 = vmatpush1.xpose.msra.mxu0 0.0
    %7694 = vmatprep.subr.mxu0 0.0
    %7695 = vmatpush1.xpose.msra.mxu0 0.0
    %7696 = vmatprep.subr.mxu0 0.0
    %7697 = vmatpush1.xpose.msra.mxu0 0.0
    %7698 = vmatprep.subr.mxu0 0.0
    %7699 = vmatpush1.xpose.msra.mxu0 0.0
    %7700 = vmatprep.subr.mxu0 0.0
    %7701 = vmatpush1.xpose.msra.mxu0 0.0
    %7702 = vmatprep.subr.mxu0 0.0
    %7703 = vmatpush1.xpose.msra.mxu0 0.0
    %7704 = vmatprep.mubr.f32.mxu0 0.0
    %7705 = vmatmul.mubr.f32.gmra.mrb[0].mxu0 %v7636
    %v7706 = vpop.f32.mrb[0].mxu0
    %v7707 = vadd.f32 0.0, %v7706
    %v7708 = vpop.f32.mrb[0].mxu0
    %7709 = vdwg.mxu0
    %v7710 = vmul.f32 %v7707, 0.5
    %7711 = vrot.lane.b32.xlu0 %v5732, 100
    %v7712 = vpop.permute.xlu0 %7711
    %7713 = vrot.lane.b32.xlu0 %v5732, 68
    %v7714 = vpop.permute.xlu0 %7713
    %v7715 = vsel %vm353, %v7712, 0
    %v7717 = vsel %vm353, %v7714, 0
    %7719 = vmatprep.subr.mxu0 0.0
    %7720 = vmatpush1.xpose.msra.mxu0 %v7717
    %7721 = vmatprep.subr.mxu0 0.0
    %7722 = vmatpush1.xpose.msra.mxu0 0.0
    %7723 = vmatprep.subr.mxu0 0.0
    %7724 = vmatpush1.xpose.msra.mxu0 0.0
    %7725 = vmatprep.subr.mxu0 0.0
    %7726 = vmatpush1.xpose.msra.mxu0 0.0
    %7727 = vmatprep.subr.mxu0 0.0
    %7728 = vmatpush1.xpose.msra.mxu0 0.0
    %7729 = vmatprep.subr.mxu0 0.0
    %7730 = vmatpush1.xpose.msra.mxu0 0.0
    %7731 = vmatprep.subr.mxu0 0.0
    %7732 = vmatpush1.xpose.msra.mxu0 0.0
    %7733 = vmatprep.subr.mxu0 0.0
    %7734 = vmatpush1.xpose.msra.mxu0 0.0
    %7735 = vmatprep.subr.mxu0 0.0
    %7736 = vmatpush1.xpose.msra.mxu0 0.0
    %7737 = vmatprep.subr.mxu0 0.0
    %7738 = vmatpush1.xpose.msra.mxu0 0.0
    %7739 = vmatprep.subr.mxu0 0.0
    %7740 = vmatpush1.xpose.msra.mxu0 0.0
    %7741 = vmatprep.subr.mxu0 0.0
    %7742 = vmatpush1.xpose.msra.mxu0 0.0
    %7743 = vmatprep.subr.mxu0 0.0
    %7744 = vmatpush1.xpose.msra.mxu0 0.0
    %7745 = vmatprep.subr.mxu0 0.0
    %7746 = vmatpush1.xpose.msra.mxu0 0.0
    %7747 = vmatprep.subr.mxu0 0.0
    %7748 = vmatpush1.xpose.msra.mxu0 0.0
    %7749 = vmatprep.subr.mxu0 0.0
    %7750 = vmatpush1.xpose.msra.mxu0 0.0
    %7751 = vmatprep.subr.mxu0 0.0
    %7752 = vmatpush1.xpose.msra.mxu0 0.0
    %7753 = vmatprep.subr.mxu0 0.0
    %7754 = vmatpush1.xpose.msra.mxu0 0.0
    %7755 = vmatprep.subr.mxu0 0.0
    %7756 = vmatpush1.xpose.msra.mxu0 0.0
    %7757 = vmatprep.subr.mxu0 0.0
    %7758 = vmatpush1.xpose.msra.mxu0 0.0
    %7759 = vmatprep.subr.mxu0 0.0
    %7760 = vmatpush1.xpose.msra.mxu0 0.0
    %7761 = vmatprep.subr.mxu0 0.0
    %7762 = vmatpush1.xpose.msra.mxu0 0.0
    %7763 = vmatprep.subr.mxu0 0.0
    %7764 = vmatpush1.xpose.msra.mxu0 0.0
    %7765 = vmatprep.subr.mxu0 0.0
    %7766 = vmatpush1.xpose.msra.mxu0 0.0
    %7767 = vmatprep.subr.mxu0 0.0
    %7768 = vmatpush1.xpose.msra.mxu0 0.0
    %7769 = vmatprep.subr.mxu0 0.0
    %7770 = vmatpush1.xpose.msra.mxu0 0.0
    %7771 = vmatprep.subr.mxu0 0.0
    %7772 = vmatpush1.xpose.msra.mxu0 0.0
    %7773 = vmatprep.subr.mxu0 0.0
    %7774 = vmatpush1.xpose.msra.mxu0 0.0
    %7775 = vmatprep.subr.mxu0 0.0
    %7776 = vmatpush1.xpose.msra.mxu0 0.0
    %7777 = vmatprep.subr.mxu0 0.0
    %7778 = vmatpush1.xpose.msra.mxu0 0.0
    %7779 = vmatprep.subr.mxu0 0.0
    %7780 = vmatpush1.xpose.msra.mxu0 0.0
    %7781 = vmatprep.subr.mxu0 0.0
    %7782 = vmatpush1.xpose.msra.mxu0 0.0
    %7783 = vmatprep.mubr.f32.mxu0 0.0
    %7784 = vmatmul.mubr.f32.gmra.mrb[0].mxu0 %v7715
    %v7785 = vpop.f32.mrb[0].mxu0
    %v7786 = vadd.f32 0.0, %v7785
    %v7787 = vpop.f32.mrb[0].mxu0
    %7788 = vdwg.mxu0
    %v7789 = vmul.f32 %v7786, 0.5
    %v7790 = vsel %vm508, %v7710, -inf
    %7791 = vmax.xlane.f32.xlu0 %v7790
    %v7792 = vpop.xlane.xlu0 %7791
    %v7793 = vsub.f32 %v7710, %v7792
    %v7794 = vmul.f32 %v7793, 1.442695
    %v7795 = vpow.pop %v7794
    %v7796 = vsel %vm508, %v7795, 0.0
    %7797 = vadd.xlane.f32.xlu0 %v7796
    %v7798 = vpop.xlane.xlu0 %7797
    %v7799 = vrcp.pop %v7798
    %v7800 = vmul.f32 %v7795, %v7799
    %v7801 = vsel %vm508, %v7789, -inf
    %7802 = vmax.xlane.f32.xlu0 %v7801
    %v7803 = vpop.xlane.xlu0 %7802
    %v7804 = vsub.f32 %v7789, %v7803
    %v7805 = vmul.f32 %v7804, 1.442695
    %v7806 = vpow.pop %v7805
    %v7807 = vsel %vm508, %v7806, 0.0
    %7808 = vadd.xlane.f32.xlu0 %v7807
    %v7809 = vpop.xlane.xlu0 %7808
    %v7810 = vrcp.pop %v7809
    %v7811 = vmul.f32 %v7806, %v7810
    %v7812 = vmul.f32 %v5914, %v7811
    %v7813 = vsub.f32 %v7800, %v7812
    %7814 = vrot.lane.b32.xlu0 %v5732, 40
    %v7815 = vpop.permute.xlu0 %7814
    %v7818 = vsel %vm508, %v7813, 0
    %7820 = vmatprep.subr.mxu0 0.0
    %7821 = vmatpush1.msra.mxu0 %v7815
    %7822 = vmatprep.subr.mxu0 0.0
    %7823 = vmatpush1.msra.mxu0 0.0
    %7824 = vmatprep.subr.mxu0 0.0
    %7825 = vmatpush1.msra.mxu0 0.0
    %7826 = vmatprep.subr.mxu0 0.0
    %7827 = vmatpush1.msra.mxu0 0.0
    %7828 = vmatprep.subr.mxu0 0.0
    %7829 = vmatpush1.msra.mxu0 0.0
    %7830 = vmatprep.subr.mxu0 0.0
    %7831 = vmatpush1.msra.mxu0 0.0
    %7832 = vmatprep.subr.mxu0 0.0
    %7833 = vmatpush1.msra.mxu0 0.0
    %7834 = vmatprep.subr.mxu0 0.0
    %7835 = vmatpush1.msra.mxu0 0.0
    %7836 = vmatprep.subr.mxu0 0.0
    %7837 = vmatpush1.msra.mxu0 0.0
    %7838 = vmatprep.subr.mxu0 0.0
    %7839 = vmatpush1.msra.mxu0 0.0
    %7840 = vmatprep.subr.mxu0 0.0
    %7841 = vmatpush1.msra.mxu0 0.0
    %7842 = vmatprep.subr.mxu0 0.0
    %7843 = vmatpush1.msra.mxu0 0.0
    %7844 = vmatprep.subr.mxu0 0.0
    %7845 = vmatpush1.msra.mxu0 0.0
    %7846 = vmatprep.subr.mxu0 0.0
    %7847 = vmatpush1.msra.mxu0 0.0
    %7848 = vmatprep.subr.mxu0 0.0
    %7849 = vmatpush1.msra.mxu0 0.0
    %7850 = vmatprep.subr.mxu0 0.0
    %7851 = vmatpush1.msra.mxu0 0.0
    %7852 = vmatprep.subr.mxu0 0.0
    %7853 = vmatpush1.msra.mxu0 0.0
    %7854 = vmatprep.subr.mxu0 0.0
    %7855 = vmatpush1.msra.mxu0 0.0
    %7856 = vmatprep.subr.mxu0 0.0
    %7857 = vmatpush1.msra.mxu0 0.0
    %7858 = vmatprep.subr.mxu0 0.0
    %7859 = vmatpush1.msra.mxu0 0.0
    %7860 = vmatprep.subr.mxu0 0.0
    %7861 = vmatpush1.msra.mxu0 0.0
    %7862 = vmatprep.subr.mxu0 0.0
    %7863 = vmatpush1.msra.mxu0 0.0
    %7864 = vmatprep.subr.mxu0 0.0
    %7865 = vmatpush1.msra.mxu0 0.0
    %7866 = vmatprep.subr.mxu0 0.0
    %7867 = vmatpush1.msra.mxu0 0.0
    %7868 = vmatprep.subr.mxu0 0.0
    %7869 = vmatpush1.msra.mxu0 0.0
    %7870 = vmatprep.subr.mxu0 0.0
    %7871 = vmatpush1.msra.mxu0 0.0
    %7872 = vmatprep.subr.mxu0 0.0
    %7873 = vmatpush1.msra.mxu0 0.0
    %7874 = vmatprep.subr.mxu0 0.0
    %7875 = vmatpush1.msra.mxu0 0.0
    %7876 = vmatprep.subr.mxu0 0.0
    %7877 = vmatpush1.msra.mxu0 0.0
    %7878 = vmatprep.subr.mxu0 0.0
    %7879 = vmatpush1.msra.mxu0 0.0
    %7880 = vmatprep.subr.mxu0 0.0
    %7881 = vmatpush1.msra.mxu0 0.0
    %7882 = vmatprep.subr.mxu0 0.0
    %7883 = vmatpush1.msra.mxu0 0.0
    %7884 = vmatprep.mubr.f32.mxu0 0.0
    %7885 = vmatmul.mubr.f32.gmra.mrb[0].mxu0 %v7818
    %v7886 = vpop.f32.mrb[0].mxu0
    %v7887 = vadd.f32 0.0, %v7886
    %v7888 = vpop.f32.mrb[0].mxu0
    %7889 = vdwg.mxu0
    %v7890 = vmul.f32 %v7887, %v7887
    %v7891 = vsel %vm508, %v7890, 0.0
    %7892 = vadd.xlane.f32.xlu0 %v7891
    %v7893 = vpop.xlane.xlu0 %7892
    %v7894 = vmul.f32 %v7893, %v614
    %v7895 = vadd.f32 %v7894, 1e-05
    %v7896 = vrsqrt.pop %v7895
    %v7897 = vmul.f32 %v7887, %v7896
    %v7898 = vmul.f32 %v7897, %v6002
    %7900 = vrot.lane.b32.xlu0 %v7898, 24
    %v7901 = vpop.permute.xlu0 %7900
    %7903 = vst.msk [vmem:[#allocation2 + $0x8] sm:$0xff] %vm1440, %v7901
    %v7904 = vld [vmem:[#allocation2] sm:$0xff]
    %v7905 = vld [vmem:[#allocation2 + $0x8] sm:$0xff]
    %s7906 = scalar_lea.vmem %s7, 64
    %v7907 = vld [vmem:[%s7906] sm:$0xff]
    %v7908 = vld [vmem:[%s7906 + $0x8] sm:$0xff]
    %v7909 = vld [vmem:[%s7906 + $0x10] sm:$0xff]
    %v7910 = vld [vmem:[%s7906 + $0x18] sm:$0xff]
    %s7911 = scalar_lea.vmem %s8, 2
    %v7912 = vld [vmem:[%s7911] sm:$0x1]
    %v7914 = vlaneseq
    %v7915 = vshrl.u32 %v7914, 7
    %v7916 = vsub.s32 0, %v7915
    %v7917 = vrot.slane %v7912, %v7916
    %v7920 = vsel %vm177, %v7904, 0
    %v7923 = vsel %vm177, %v7905, 0
    %7925 = vmatprep.subr.mxu0 0.0
    %7926 = vmatpush1.msra.mxu0 %v7907
    %7927 = vmatprep.subr.mxu0 0.0
    %7928 = vmatpush1.msra.mxu0 %v7908
    %7929 = vmatprep.subr.mxu0 0.0
    %7930 = vmatpush1.msra.mxu0 %v7909
    %7931 = vmatprep.subr.mxu0 0.0
    %7932 = vmatpush1.msra.mxu0 %v7910
    %7933 = vmatprep.subr.mxu0 0.0
    %7934 = vmatpush1.msra.mxu0 0.0
    %7935 = vmatprep.subr.mxu0 0.0
    %7936 = vmatpush1.msra.mxu0 0.0
    %7937 = vmatprep.subr.mxu0 0.0
    %7938 = vmatpush1.msra.mxu0 0.0
    %7939 = vmatprep.subr.mxu0 0.0
    %7940 = vmatpush1.msra.mxu0 0.0
    %7941 = vmatprep.subr.mxu0 0.0
    %7942 = vmatpush1.msra.mxu0 0.0
    %7943 = vmatprep.subr.mxu0 0.0
    %7944 = vmatpush1.msra.mxu0 0.0
    %7945 = vmatprep.subr.mxu0 0.0
    %7946 = vmatpush1.msra.mxu0 0.0
    %7947 = vmatprep.subr.mxu0 0.0
    %7948 = vmatpush1.msra.mxu0 0.0
    %7949 = vmatprep.subr.mxu0 0.0
    %7950 = vmatpush1.msra.mxu0 0.0
    %7951 = vmatprep.subr.mxu0 0.0
    %7952 = vmatpush1.msra.mxu0 0.0
    %7953 = vmatprep.subr.mxu0 0.0
    %7954 = vmatpush1.msra.mxu0 0.0
    %7955 = vmatprep.subr.mxu0 0.0
    %7956 = vmatpush1.msra.mxu0 0.0
    %7957 = vmatprep.subr.mxu0 0.0
    %7958 = vmatpush1.msra.mxu0 0.0
    %7959 = vmatprep.subr.mxu0 0.0
    %7960 = vmatpush1.msra.mxu0 0.0
    %7961 = vmatprep.subr.mxu0 0.0
    %7962 = vmatpush1.msra.mxu0 0.0
    %7963 = vmatprep.subr.mxu0 0.0
    %7964 = vmatpush1.msra.mxu0 0.0
    %7965 = vmatprep.subr.mxu0 0.0
    %7966 = vmatpush1.msra.mxu0 0.0
    %7967 = vmatprep.subr.mxu0 0.0
    %7968 = vmatpush1.msra.mxu0 0.0
    %7969 = vmatprep.subr.mxu0 0.0
    %7970 = vmatpush1.msra.mxu0 0.0
    %7971 = vmatprep.subr.mxu0 0.0
    %7972 = vmatpush1.msra.mxu0 0.0
    %7973 = vmatprep.subr.mxu0 0.0
    %7974 = vmatpush1.msra.mxu0 0.0
    %7975 = vmatprep.subr.mxu0 0.0
    %7976 = vmatpush1.msra.mxu0 0.0
    %7977 = vmatprep.subr.mxu0 0.0
    %7978 = vmatpush1.msra.mxu0 0.0
    %7979 = vmatprep.subr.mxu0 0.0
    %7980 = vmatpush1.msra.mxu0 0.0
    %7981 = vmatprep.subr.mxu0 0.0
    %7982 = vmatpush1.msra.mxu0 0.0
    %7983 = vmatprep.subr.mxu0 0.0
    %7984 = vmatpush1.msra.mxu0 0.0
    %7985 = vmatprep.subr.mxu0 0.0
    %7986 = vmatpush1.msra.mxu0 0.0
    %7987 = vmatprep.subr.mxu0 0.0
    %7988 = vmatpush1.msra.mxu0 0.0
    %7989 = vmatprep.mubr.f32.mxu0 0.0
    %7990 = vmatmul.mubr.f32.gmra.mrb[0].mxu0 %v7920
    %v7991 = vpop.f32.mrb[0].mxu0
    %v7992 = vadd.f32 %v7917, %v7991
    %v7993 = vpop.f32.mrb[0].mxu0
    %7994 = vmatprep.mubr.f32.mxu0 0.0
    %7995 = vmatmul.mubr.f32.gmra.mrb[0].mxu0 %v7923
    %v7996 = vpop.f32.mrb[0].mxu0
    %v7997 = vadd.f32 %v7917, %v7996
    %v7998 = vpop.f32.mrb[0].mxu0
    %7999 = vdwg.mxu0
    %v8000 = vadd.f32 %v5597, %v7992
    %v8001 = vadd.f32 %v5598, %v7997
    %s8002 = scalar_lea.vmem %s9, 4
    %v8003 = vld [vmem:[%s8002] sm:$0x3]
    %v8004 = vsel %vm177, %v8000, 0.0
    %8005 = vadd.xlane.f32.xlu0 %v8004
    %v8006 = vpop.xlane.xlu0 %8005
    %v8007 = vsel %vm177, %v8001, 0.0
    %8008 = vadd.xlane.f32.xlu0 %v8007
    %v8009 = vpop.xlane.xlu0 %8008
    %v8010 = vmul.f32 %v8006, %v184
    %v8011 = vmul.f32 %v8009, %v184
    %v8012 = vsub.f32 %v8000, %v8010
    %v8013 = vsub.f32 %v8001, %v8011
    %v8014 = vmul.f32 %v8012, %v8012
    %v8015 = vmul.f32 %v8013, %v8013
    %v8016 = vsel %vm177, %v8014, 0.0
    %8017 = vadd.xlane.f32.xlu0 %v8016
    %v8018 = vpop.xlane.xlu0 %8017
    %v8019 = vsel %vm177, %v8015, 0.0
    %8020 = vadd.xlane.f32.xlu0 %v8019
    %v8021 = vpop.xlane.xlu0 %8020
    %v8022 = vmul.f32 %v8018, %v184
    %v8023 = vmul.f32 %v8021, %v184
    %v8024 = vadd.f32 %v8022, 1e-05
    %v8025 = vadd.f32 %v8023, 1e-05
    %v8026 = vrsqrt.pop %v8024
    %v8027 = vrsqrt.pop %v8025
    %v8028 = vmul.f32 %v8012, %v8026
    %v8029 = vmul.f32 %v8013, %v8027
    %v8030 = vlaneseq
    %v8031 = vshrl.u32 %v8030, 7
    %v8032 = vsub.s32 0, %v8031
    %v8033 = vrot.slane %v8003, %v8032
    %v8034 = vmul.f32 %v8028, %v8033
    %v8035 = vmul.f32 %v8029, %v8033
    %v8036 = vlaneseq
    %v8037 = vshrl.u32 %v8036, 7
    %v8038 = vsub.s32 1, %v8037
    %v8039 = vrot.slane %v8003, %v8038
    %v8040 = vadd.f32 %v8034, %v8039
    %v8041 = vadd.f32 %v8035, %v8039
    %s8042 = scalar_lea.vmem %s10, 64
    %v8043 = vld [vmem:[%s8042] sm:$0xff]
    %v8044 = vld [vmem:[%s8042 + $0x8] sm:$0xff]
    %v8045 = vld [vmem:[%s8042 + $0x10] sm:$0xff]
    %v8046 = vld [vmem:[%s8042 + $0x18] sm:$0xff]
    %s8047 = scalar_lea.vmem %s11, 2
    %v8048 = vld [vmem:[%s8047] sm:$0x1]
    %v8050 = vlaneseq
    %v8051 = vshrl.u32 %v8050, 7
    %v8052 = vsub.s32 0, %v8051
    %v8053 = vrot.slane %v8048, %v8052
    %v8056 = vsel %vm177, %v8040, 0
    %v8059 = vsel %vm177, %v8041, 0
    %8061 = vmatprep.subr.mxu0 0.0
    %8062 = vmatpush1.msra.mxu0 %v8043
    %8063 = vmatprep.subr.mxu0 0.0
    %8064 = vmatpush1.msra.mxu0 %v8044
    %8065 = vmatprep.subr.mxu0 0.0
    %8066 = vmatpush1.msra.mxu0 %v8045
    %8067 = vmatprep.subr.mxu0 0.0
    %8068 = vmatpush1.msra.mxu0 %v8046
    %8069 = vmatprep.subr.mxu0 0.0
    %8070 = vmatpush1.msra.mxu0 0.0
    %8071 = vmatprep.subr.mxu0 0.0
    %8072 = vmatpush1.msra.mxu0 0.0
    %8073 = vmatprep.subr.mxu0 0.0
    %8074 = vmatpush1.msra.mxu0 0.0
    %8075 = vmatprep.subr.mxu0 0.0
    %8076 = vmatpush1.msra.mxu0 0.0
    %8077 = vmatprep.subr.mxu0 0.0
    %8078 = vmatpush1.msra.mxu0 0.0
    %8079 = vmatprep.subr.mxu0 0.0
    %8080 = vmatpush1.msra.mxu0 0.0
    %8081 = vmatprep.subr.mxu0 0.0
    %8082 = vmatpush1.msra.mxu0 0.0
    %8083 = vmatprep.subr.mxu0 0.0
    %8084 = vmatpush1.msra.mxu0 0.0
    %8085 = vmatprep.subr.mxu0 0.0
    %8086 = vmatpush1.msra.mxu0 0.0
    %8087 = vmatprep.subr.mxu0 0.0
    %8088 = vmatpush1.msra.mxu0 0.0
    %8089 = vmatprep.subr.mxu0 0.0
    %8090 = vmatpush1.msra.mxu0 0.0
    %8091 = vmatprep.subr.mxu0 0.0
    %8092 = vmatpush1.msra.mxu0 0.0
    %8093 = vmatprep.subr.mxu0 0.0
    %8094 = vmatpush1.msra.mxu0 0.0
    %8095 = vmatprep.subr.mxu0 0.0
    %8096 = vmatpush1.msra.mxu0 0.0
    %8097 = vmatprep.subr.mxu0 0.0
    %8098 = vmatpush1.msra.mxu0 0.0
    %8099 = vmatprep.subr.mxu0 0.0
    %8100 = vmatpush1.msra.mxu0 0.0
    %8101 = vmatprep.subr.mxu0 0.0
    %8102 = vmatpush1.msra.mxu0 0.0
    %8103 = vmatprep.subr.mxu0 0.0
    %8104 = vmatpush1.msra.mxu0 0.0
    %8105 = vmatprep.subr.mxu0 0.0
    %8106 = vmatpush1.msra.mxu0 0.0
    %8107 = vmatprep.subr.mxu0 0.0
    %8108 = vmatpush1.msra.mxu0 0.0
    %8109 = vmatprep.subr.mxu0 0.0
    %8110 = vmatpush1.msra.mxu0 0.0
    %8111 = vmatprep.subr.mxu0 0.0
    %8112 = vmatpush1.msra.mxu0 0.0
    %8113 = vmatprep.subr.mxu0 0.0
    %8114 = vmatpush1.msra.mxu0 0.0
    %8115 = vmatprep.subr.mxu0 0.0
    %8116 = vmatpush1.msra.mxu0 0.0
    %8117 = vmatprep.subr.mxu0 0.0
    %8118 = vmatpush1.msra.mxu0 0.0
    %8119 = vmatprep.subr.mxu0 0.0
    %8120 = vmatpush1.msra.mxu0 0.0
    %8121 = vmatprep.subr.mxu0 0.0
    %8122 = vmatpush1.msra.mxu0 0.0
    %8123 = vmatprep.subr.mxu0 0.0
    %8124 = vmatpush1.msra.mxu0 0.0
    %8125 = vmatprep.mubr.f32.mxu0 0.0
    %8126 = vmatmul.mubr.f32.gmra.mrb[0].mxu0 %v8056
    %v8127 = vpop.f32.mrb[0].mxu0
    %v8128 = vadd.f32 %v8053, %v8127
    %v8129 = vpop.f32.mrb[0].mxu0
    %8130 = vmatprep.mubr.f32.mxu0 0.0
    %8131 = vmatmul.mubr.f32.gmra.mrb[0].mxu0 %v8059
    %v8132 = vpop.f32.mrb[0].mxu0
    %v8133 = vadd.f32 %v8053, %v8132
    %v8134 = vpop.f32.mrb[0].mxu0
    %8135 = vdwg.mxu0
    %v8136 = vmul.f32 %v8128, 0.70710677
    %v8137 = vmul.f32 %v8133, 0.70710677
    %v8138 = vand.u32 2147483647, %v8136
    %v8139 = vand.u32 2147483647, %v8137
    %v8140 = vmul.f32 %v8138, 0.3275911
    %v8141 = vmul.f32 %v8139, 0.3275911
    %v8142 = vadd.f32 %v8140, 1.0
    %v8143 = vadd.f32 %v8141, 1.0
    %v8144 = vrcp.pop %v8142
    %v8145 = vmul.f32 1.0, %v8144
    %v8146 = vrcp.pop %v8143
    %v8147 = vmul.f32 1.0, %v8146
    %v8148 = vmul.f32 %v8145, 1.0614054
    %v8149 = vmul.f32 %v8147, 1.0614054
    %v8150 = vadd.f32 %v8148, -1.4531521
    %v8151 = vadd.f32 %v8149, -1.4531521
    %v8152 = vmul.f32 %v8145, %v8150
    %v8153 = vmul.f32 %v8147, %v8151
    %v8154 = vadd.f32 %v8152, 1.4214138
    %v8155 = vadd.f32 %v8153, 1.4214138
    %v8156 = vmul.f32 %v8145, %v8154
    %v8157 = vmul.f32 %v8147, %v8155
    %v8158 = vadd.f32 %v8156, -0.28449672
    %v8159 = vadd.f32 %v8157, -0.28449672
    %v8160 = vmul.f32 %v8145, %v8158
    %v8161 = vmul.f32 %v8147, %v8159
    %v8162 = vadd.f32 %v8160, 0.2548296
    %v8163 = vadd.f32 %v8161, 0.2548296
    %v8164 = vmul.f32 %v8145, %v8162
    %v8165 = vmul.f32 %v8147, %v8163
    %v8166 = vsub.f32 0.0, %v8138
    %v8167 = vsub.f32 0.0, %v8139
    %v8168 = vmul.f32 %v8166, %v8138
    %v8169 = vmul.f32 %v8167, %v8139
    %v8170 = vmul.f32 %v8168, 1.442695
    %v8171 = vpow.pop %v8170
    %v8172 = vmul.f32 %v8169, 1.442695
    %v8173 = vpow.pop %v8172
    %v8174 = vmul.f32 %v8164, %v8171
    %v8175 = vmul.f32 %v8165, %v8173
    %v8176 = vsub.f32 1.0, %v8174
    %v8177 = vsub.f32 1.0, %v8175
    %vm8178 = vcmp.ge.f32.partialorder %v8136, 0.0
    %vm8179 = vcmp.ge.f32.partialorder %v8137, 0.0
    %v8180 = vsub.f32 0.0, %v8176
    %v8181 = vsub.f32 0.0, %v8177
    %v8182 = vsel %vm8178, %v8176, %v8180
    %v8183 = vsel %vm8179, %v8177, %v8181
    %v8184 = vmul.f32 %v8128, 0.5
    %v8185 = vmul.f32 %v8133, 0.5
    %v8186 = vadd.f32 %v8182, 1.0
    %v8187 = vadd.f32 %v8183, 1.0
    %v8188 = vmul.f32 %v8184, %v8186
    %v8189 = vmul.f32 %v8185, %v8187
    %s8190 = scalar_lea.vmem %s12, 256
    %v8191 = vld [vmem:[%s8190] sm:$0xff]
    %v8192 = vld [vmem:[%s8190 + $0x8] sm:$0xff]
    %v8193 = vld [vmem:[%s8190 + $0x10] sm:$0xff]
    %v8194 = vld [vmem:[%s8190 + $0x18] sm:$0xff]
    %v8195 = vld [vmem:[%s8190 + $0x20] sm:$0xff]
    %v8196 = vld [vmem:[%s8190 + $0x28] sm:$0xff]
    %v8197 = vld [vmem:[%s8190 + $0x30] sm:$0xff]
    %v8198 = vld [vmem:[%s8190 + $0x38] sm:$0xff]
    %v8199 = vld [vmem:[%s8190 + $0x40] sm:$0xff]
    %v8200 = vld [vmem:[%s8190 + $0x48] sm:$0xff]
    %v8201 = vld [vmem:[%s8190 + $0x50] sm:$0xff]
    %v8202 = vld [vmem:[%s8190 + $0x58] sm:$0xff]
    %v8203 = vld [vmem:[%s8190 + $0x60] sm:$0xff]
    %v8204 = vld [vmem:[%s8190 + $0x68] sm:$0xff]
    %v8205 = vld [vmem:[%s8190 + $0x70] sm:$0xff]
    %v8206 = vld [vmem:[%s8190 + $0x78] sm:$0xff]
    %s8207 = scalar_lea.vmem %s13, 2
    %v8208 = vld [vmem:[%s8207] sm:$0x1]
    %v8210 = vlaneseq
    %v8211 = vshrl.u32 %v8210, 7
    %v8212 = vsub.s32 0, %v8211
    %v8213 = vrot.slane %v8208, %v8212
    %8215 = vmatprep.subr.mxu0 0.0
    %8216 = vmatpush1.msra.mxu0 %v8191
    %8217 = vmatprep.subr.mxu0 0.0
    %8218 = vmatpush1.msra.mxu0 %v8192
    %8219 = vmatprep.subr.mxu0 0.0
    %8220 = vmatpush1.msra.mxu0 %v8193
    %8221 = vmatprep.subr.mxu0 0.0
    %8222 = vmatpush1.msra.mxu0 %v8194
    %8223 = vmatprep.subr.mxu0 0.0
    %8224 = vmatpush1.msra.mxu0 %v8195
    %8225 = vmatprep.subr.mxu0 0.0
    %8226 = vmatpush1.msra.mxu0 %v8196
    %8227 = vmatprep.subr.mxu0 0.0
    %8228 = vmatpush1.msra.mxu0 %v8197
    %8229 = vmatprep.subr.mxu0 0.0
    %8230 = vmatpush1.msra.mxu0 %v8198
    %8231 = vmatprep.subr.mxu0 0.0
    %8232 = vmatpush1.msra.mxu0 %v8199
    %8233 = vmatprep.subr.mxu0 0.0
    %8234 = vmatpush1.msra.mxu0 %v8200
    %8235 = vmatprep.subr.mxu0 0.0
    %8236 = vmatpush1.msra.mxu0 %v8201
    %8237 = vmatprep.subr.mxu0 0.0
    %8238 = vmatpush1.msra.mxu0 %v8202
    %8239 = vmatprep.subr.mxu0 0.0
    %8240 = vmatpush1.msra.mxu0 %v8203
    %8241 = vmatprep.subr.mxu0 0.0
    %8242 = vmatpush1.msra.mxu0 %v8204
    %8243 = vmatprep.subr.mxu0 0.0
    %8244 = vmatpush1.msra.mxu0 %v8205
    %8245 = vmatprep.subr.mxu0 0.0
    %8246 = vmatpush1.msra.mxu0 %v8206
    %8247 = vmatprep.subr.mxu0 0.0
    %8248 = vmatpush1.msra.mxu0 0.0
    %8249 = vmatprep.subr.mxu0 0.0
    %8250 = vmatpush1.msra.mxu0 0.0
    %8251 = vmatprep.subr.mxu0 0.0
    %8252 = vmatpush1.msra.mxu0 0.0
    %8253 = vmatprep.subr.mxu0 0.0
    %8254 = vmatpush1.msra.mxu0 0.0
    %8255 = vmatprep.subr.mxu0 0.0
    %8256 = vmatpush1.msra.mxu0 0.0
    %8257 = vmatprep.subr.mxu0 0.0
    %8258 = vmatpush1.msra.mxu0 0.0
    %8259 = vmatprep.subr.mxu0 0.0
    %8260 = vmatpush1.msra.mxu0 0.0
    %8261 = vmatprep.subr.mxu0 0.0
    %8262 = vmatpush1.msra.mxu0 0.0
    %8263 = vmatprep.subr.mxu0 0.0
    %8264 = vmatpush1.msra.mxu0 0.0
    %8265 = vmatprep.subr.mxu0 0.0
    %8266 = vmatpush1.msra.mxu0 0.0
    %8267 = vmatprep.subr.mxu0 0.0
    %8268 = vmatpush1.msra.mxu0 0.0
    %8269 = vmatprep.subr.mxu0 0.0
    %8270 = vmatpush1.msra.mxu0 0.0
    %8271 = vmatprep.subr.mxu0 0.0
    %8272 = vmatpush1.msra.mxu0 0.0
    %8273 = vmatprep.subr.mxu0 0.0
    %8274 = vmatpush1.msra.mxu0 0.0
    %8275 = vmatprep.subr.mxu0 0.0
    %8276 = vmatpush1.msra.mxu0 0.0
    %8277 = vmatprep.subr.mxu0 0.0
    %8278 = vmatpush1.msra.mxu0 0.0
    %8279 = vmatprep.mubr.f32.mxu0 0.0
    %8280 = vmatmul.mubr.f32.gmra.mrb[0].mxu0 %v8188
    %v8281 = vpop.f32.mrb[0].mxu0
    %v8282 = vadd.f32 %v8213, %v8281
    %v8283 = vpop.f32.mrb[0].mxu0
    %8284 = vmatprep.mubr.f32.mxu0 0.0
    %8285 = vmatmul.mubr.f32.gmra.mrb[0].mxu0 %v8189
    %v8286 = vpop.f32.mrb[0].mxu0
    %v8287 = vadd.f32 %v8213, %v8286
    %v8288 = vpop.f32.mrb[0].mxu0
    %8289 = vdwg.mxu0
    %v8290 = vadd.f32 %v8000, %v8282
    %v8291 = vadd.f32 %v8001, %v8287
    %v8292 = vld [vmem:[%s14] sm:$0x3]
    %v8293 = vsel %vm177, %v8290, 0.0
    %8294 = vadd.xlane.f32.xlu0 %v8293
    %v8295 = vpop.xlane.xlu0 %8294
    %v8296 = vsel %vm177, %v8291, 0.0
    %8297 = vadd.xlane.f32.xlu0 %v8296
    %v8298 = vpop.xlane.xlu0 %8297
    %v8299 = vmul.f32 %v8295, %v184
    %v8300 = vmul.f32 %v8298, %v184
    %v8301 = vsub.f32 %v8290, %v8299
    %v8302 = vsub.f32 %v8291, %v8300
    %v8303 = vmul.f32 %v8301, %v8301
    %v8304 = vmul.f32 %v8302, %v8302
    %v8305 = vsel %vm177, %v8303, 0.0
    %8306 = vadd.xlane.f32.xlu0 %v8305
    %v8307 = vpop.xlane.xlu0 %8306
    %v8308 = vsel %vm177, %v8304, 0.0
    %8309 = vadd.xlane.f32.xlu0 %v8308
    %v8310 = vpop.xlane.xlu0 %8309
    %v8311 = vmul.f32 %v8307, %v184
    %v8312 = vmul.f32 %v8310, %v184
    %v8313 = vadd.f32 %v8311, 1e-05
    %v8314 = vadd.f32 %v8312, 1e-05
    %v8315 = vrsqrt.pop %v8313
    %v8316 = vrsqrt.pop %v8314
    %v8317 = vmul.f32 %v8301, %v8315
    %v8318 = vmul.f32 %v8302, %v8316
    %v8319 = vlaneseq
    %v8320 = vshrl.u32 %v8319, 7
    %v8321 = vsub.s32 0, %v8320
    %v8322 = vrot.slane %v8292, %v8321
    %v8323 = vmul.f32 %v8317, %v8322
    %v8324 = vmul.f32 %v8318, %v8322
    %v8325 = vlaneseq
    %v8326 = vshrl.u32 %v8325, 7
    %v8327 = vsub.s32 1, %v8326
    %v8328 = vrot.slane %v8292, %v8327
    %v8329 = vadd.f32 %v8323, %v8328
    %v8330 = vadd.f32 %v8324, %v8328
    %v8331 = vsel %vm177, %v8329, 0.0
    %v8332 = vrot.slane %v8331, 4
    %v8333 = vadd.f32 %v8331, %v8332
    %v8334 = vrot.slane %v8333, 2
    %v8335 = vadd.f32 %v8333, %v8334
    %v8336 = vrot.slane %v8335, 1
    %v8337 = vadd.f32 %v8335, %v8336
    %v8338 = vsel %vm177, %v8330, 0.0
    %v8339 = vrot.slane %v8338, 4
    %v8340 = vadd.f32 %v8338, %v8339
    %v8341 = vrot.slane %v8340, 2
    %v8342 = vadd.f32 %v8340, %v8341
    %v8343 = vrot.slane %v8342, 1
    %v8344 = vadd.f32 %v8342, %v8343
    %v8345 = vmul.f32 %v8337, %v614
    %v8346 = vmul.f32 %v8344, %v614
    %v8347 = vld [vmem:[%s15] sm:$0xff]
    %v8348 = vld [vmem:[%s15 + $0x8] sm:$0xff]
    %v8349 = vld [vmem:[%s15 + $0x10] sm:$0xff]
    %v8350 = vld [vmem:[%s15 + $0x18] sm:$0xff]
    %v8351 = vld [vmem:[%s16] sm:$0x1]
    %v8353 = vlaneseq
    %v8354 = vshrl.u32 %v8353, 7
    %v8355 = vsub.s32 0, %v8354
    %v8356 = vrot.slane %v8351, %v8355
    %vm8360 = vcmask 1041409
    %v8361 = vsel %vm8360, %v8346, %v8345
    %v8362 = vsel %vm177, %v8361, 0
    %8364 = vmatprep.subr.mxu0 0.0
    %8365 = vmatpush1.msra.mxu0 %v8347
    %8366 = vmatprep.subr.mxu0 0.0
    %8367 = vmatpush1.msra.mxu0 %v8348
    %8368 = vmatprep.subr.mxu0 0.0
    %8369 = vmatpush1.msra.mxu0 %v8349
    %8370 = vmatprep.subr.mxu0 0.0
    %8371 = vmatpush1.msra.mxu0 %v8350
    %8372 = vmatprep.subr.mxu0 0.0
    %8373 = vmatpush1.msra.mxu0 0.0
    %8374 = vmatprep.subr.mxu0 0.0
    %8375 = vmatpush1.msra.mxu0 0.0
    %8376 = vmatprep.subr.mxu0 0.0
    %8377 = vmatpush1.msra.mxu0 0.0
    %8378 = vmatprep.subr.mxu0 0.0
    %8379 = vmatpush1.msra.mxu0 0.0
    %8380 = vmatprep.subr.mxu0 0.0
    %8381 = vmatpush1.msra.mxu0 0.0
    %8382 = vmatprep.subr.mxu0 0.0
    %8383 = vmatpush1.msra.mxu0 0.0
    %8384 = vmatprep.subr.mxu0 0.0
    %8385 = vmatpush1.msra.mxu0 0.0
    %8386 = vmatprep.subr.mxu0 0.0
    %8387 = vmatpush1.msra.mxu0 0.0
    %8388 = vmatprep.subr.mxu0 0.0
    %8389 = vmatpush1.msra.mxu0 0.0
    %8390 = vmatprep.subr.mxu0 0.0
    %8391 = vmatpush1.msra.mxu0 0.0
    %8392 = vmatprep.subr.mxu0 0.0
    %8393 = vmatpush1.msra.mxu0 0.0
    %8394 = vmatprep.subr.mxu0 0.0
    %8395 = vmatpush1.msra.mxu0 0.0
    %8396 = vmatprep.subr.mxu0 0.0
    %8397 = vmatpush1.msra.mxu0 0.0
    %8398 = vmatprep.subr.mxu0 0.0
    %8399 = vmatpush1.msra.mxu0 0.0
    %8400 = vmatprep.subr.mxu0 0.0
    %8401 = vmatpush1.msra.mxu0 0.0
    %8402 = vmatprep.subr.mxu0 0.0
    %8403 = vmatpush1.msra.mxu0 0.0
    %8404 = vmatprep.subr.mxu0 0.0
    %8405 = vmatpush1.msra.mxu0 0.0
    %8406 = vmatprep.subr.mxu0 0.0
    %8407 = vmatpush1.msra.mxu0 0.0
    %8408 = vmatprep.subr.mxu0 0.0
    %8409 = vmatpush1.msra.mxu0 0.0
    %8410 = vmatprep.subr.mxu0 0.0
    %8411 = vmatpush1.msra.mxu0 0.0
    %8412 = vmatprep.subr.mxu0 0.0
    %8413 = vmatpush1.msra.mxu0 0.0
    %8414 = vmatprep.subr.mxu0 0.0
    %8415 = vmatpush1.msra.mxu0 0.0
    %8416 = vmatprep.subr.mxu0 0.0
    %8417 = vmatpush1.msra.mxu0 0.0
    %8418 = vmatprep.subr.mxu0 0.0
    %8419 = vmatpush1.msra.mxu0 0.0
    %8420 = vmatprep.subr.mxu0 0.0
    %8421 = vmatpush1.msra.mxu0 0.0
    %8422 = vmatprep.subr.mxu0 0.0
    %8423 = vmatpush1.msra.mxu0 0.0
    %8424 = vmatprep.subr.mxu0 0.0
    %8425 = vmatpush1.msra.mxu0 0.0
    %8426 = vmatprep.subr.mxu0 0.0
    %8427 = vmatpush1.msra.mxu0 0.0
    %8428 = vmatprep.mubr.f32.mxu0 0.0
    %8429 = vmatmul.mubr.f32.gmra.mrb[0].mxu0 %v8362
    %v8430 = vpop.f32.mrb[0].mxu0
    %v8431 = vadd.f32 %v8356, %v8430
    %v8432 = vpop.f32.mrb[0].mxu0
    %8433 = vdwg.mxu0
    %vm8434 = vcmask 25600
    %8435 = vst.msk [vmem:[#allocation6] sm:$0x3] %vm8434, %v8431
    // Predicated region
    $region74: #{forward.1} parent=1 // pred_check
      _
    $region75: #{forward.1} parent=1 // pred_check_branch
      %8437 = sbr.rel (0) target = $region77
    $region76: #{forward.1} parent=1 // pred_region
      %s8439 = ssub.s32 32, 32
      %8440 = vsyncadd [#allocation4], %s8439
      %s8442 = sshll.u32 [#allocation6], 4
      %s8443 = int_to_ptr.vmem [resolvable:$true] %s8442
      %8445 = dma.vmem_to_hbm [thread:$0]  %s8443, 32, %s17, [#allocation4]
    $region77: #{forward.1} parent=1 // pred_fallthru
      _
    // Predicated region
    $region78: #{forward.1} parent=1 // pred_check
      _
    $region79: #{forward.1} parent=1 // pred_check_branch
      %8447 = sbr.rel (0) target = $region81
    $region80: #{forward.1} parent=1 // pred_region
      %8448 = dma.done [#allocation4], 32
    $region81: #{forward.1} parent=1 // pred_fallthru
      _
    %8449 = vsyncpa [#allocation4], 1
    %8450 = vsyncpa [#allocation5], 1

</llo_original>
